<compile_context>
chip_gen: v7x
topology: tpu7x:2x2x1
jax: 0.10.0
libtpu: 0.0.40
codegen_flags: <defaults>
</compile_context>

<pallas_src>
import functools

import numpy as np

import jax
import jax.numpy as jnp
from jax.experimental import pallas as pl
from jax.experimental.pallas import tpu as pltpu

NZ = 102


# ----------------------------------------------------------------------------- kernel
def _gemm_epilogue_kernel(a_ref, b_ref, scale_ref, shift_ref, o_ref, acc_ref, *, activation):
    """acc += A @ B over the K grid axis; on the last K step apply y*scale+shift + activation
    and store in the output dtype (bf16 or f32)."""
    kk = pl.program_id(2)

    @pl.when(kk == 0)
    def _():
        acc_ref[...] = jnp.zeros_like(acc_ref)

    acc_ref[...] += jnp.dot(a_ref[...], b_ref[...], preferred_element_type=jnp.float32)

    @pl.when(kk == pl.num_programs(2) - 1)
    def _():
        y = acc_ref[...] * scale_ref[...] + shift_ref[...]
        if activation == "relu":
            y = jnp.maximum(y, 0.0)
        elif activation == "tanh":
            y = jnp.tanh(y)
        o_ref[...] = y.astype(o_ref.dtype)


# ----------------------------------------------------------------------------- glue
def _round_up(x, m):
    return ((x + m - 1) // m) * m


def _pad2d(x, rows, cols):
    return jnp.pad(x, ((0, rows - x.shape[0]), (0, cols - x.shape[1])))


def _fused_gemm(a, b_p, scale_p, shift_p, activation, out_dtype, tn):
    """(M,K) @ pre-padded-bf16 (Kp,Np) with fused per-column scale/shift + activation.

    b_p, scale_p, shift_p are precomputed outside jit (bf16 weights, f32 (1,Np) vectors)."""
    m, k = a.shape
    kp, np_ = b_p.shape
    assert kp % 128 == 0 and np_ % 128 == 0 and np_ % tn == 0 and kp >= k

    tm = min(_round_up(max(m, 8), 8), 512)
    mp = _round_up(m, tm)
    tk = kp                                        # whole K in one grid step (K is small here)

    a_p = jnp.pad(a.astype(jnp.bfloat16), ((0, mp - m), (0, kp - k)))

    out = pl.pallas_call(
        functools.partial(_gemm_epilogue_kernel, activation=activation),
        out_shape=jax.ShapeDtypeStruct((mp, np_), out_dtype),
        grid_spec=pltpu.PrefetchScalarGridSpec(
            num_scalar_prefetch=0,
            grid=(mp // tm, np_ // tn, kp // tk),
            in_specs=[
                pl.BlockSpec((tm, tk), lambda i, j, kk: (i, kk)),
                pl.BlockSpec((tk, tn), lambda i, j, kk: (kk, j)),
                pl.BlockSpec((1, tn), lambda i, j, kk: (0, j)),
                pl.BlockSpec((1, tn), lambda i, j, kk: (0, j)),
            ],
            out_specs=pl.BlockSpec((tm, tn), lambda i, j, kk: (i, j)),
            scratch_shapes=[pltpu.VMEM((tm, tn), jnp.float32)],
        ),
        compiler_params=pltpu.CompilerParams(
            dimension_semantics=("parallel", "parallel", "arbitrary"),
            vmem_limit_bytes=32 * 1024 * 1024,
        ),
    )(a_p, b_p, scale_p, shift_p)
    return out


def _im2col3x3(x_nhwc):
    """3x3 / stride 1 / pad 1 im2col in the input dtype (bf16).
    Returns (N*H*W, 9*C); patch element order = (dr+1, dc+1, ci)."""
    n, h, w, c = x_nhwc.shape
    xp = jnp.pad(x_nhwc, ((0, 0), (1, 1), (1, 1), (0, 0)))
    slabs = [xp[:, i:i + h, j:j + w, :] for i in range(3) for j in range(3)]
    patches = jnp.stack(slabs, axis=3)             # (N, H, W, 9, C)
    return patches.reshape(n * h * w, 9 * c)


def _pixel_shuffle2x(y, n, h, cout):
    """(N*H*H, 4*cout) with columns ordered (py, px, cout) -> (N, 2H, 2H, cout)."""
    y = y.reshape(n, h, h, 2, 2, cout)
    y = jnp.transpose(y, (0, 1, 3, 2, 4, 5))
    return y.reshape(n, 2 * h, 2 * h, cout)


def _tconv_k4s2p1_to_subpixel_mat(w_tconv):
    """ConvTranspose weight (Cin, Cout, 4, 4), stride 2, pad 1  ->  sub-pixel conv matrix
    (9*Cin, 4*Cout): a 3x3 stride-1 conv over the original-resolution input producing the
    four output phases (py, px) as channel groups (pixel shuffle afterwards).

    out[y=2h'+py, x=2w'+px, co] = sum_{dr,dc,ci} in[h'+dr, w'+dc, ci] * W[ci, co, kh, kw]
    with kh = py+1-2*dr, kw = px+1-2*dc (zero tap if outside [0,4))."""
    w_np = np.asarray(w_tconv, dtype=np.float32)
    cin, cout, _, _ = w_np.shape
    m = np.zeros((3, 3, cin, 2, 2, cout), np.float32)
    for py in range(2):
        for px in range(2):
            for dr in (-1, 0, 1):
                for dc in (-1, 0, 1):
                    a = py + 1 - 2 * dr
                    b = px + 1 - 2 * dc
                    if 0 <= a < 4 and 0 <= b < 4:
                        m[dr + 1, dc + 1, :, py, px, :] = w_np[:, :, a, b]
    return jnp.asarray(m.reshape(9 * cin, 4 * cout))


def _bn_to_scale_shift(gamma, beta, mean, var, eps=1e-5):
    scale = gamma / jnp.sqrt(var + eps)
    shift = beta - mean * scale
    return scale, shift


# ----------------------------------------------------------------------------- params
def init_params(key):
    ks = jax.random.split(key, 16)
    p = {}
    p["fc1_w"] = 0.05 * jax.random.normal(ks[0], (512, NZ), jnp.float32)      # (out, in)
    p["fc1_b"] = 0.05 * jax.random.normal(ks[1], (512,), jnp.float32)
    # ConvTranspose2d weights: (Cin, Cout, kh, kw)
    p["tconv2_w"] = 0.05 * jax.random.normal(ks[2], (512, 256, 7, 7), jnp.float32)
    p["tconv3_w"] = 0.05 * jax.random.normal(ks[3], (256, 128, 4, 4), jnp.float32)
    p["tconv4_w"] = 0.05 * jax.random.normal(ks[4], (128, 1, 4, 4), jnp.float32)
    # BatchNorm2d(256)
    p["bn2_gamma"] = 1.0 + 0.1 * jax.random.normal(ks[5], (256,), jnp.float32)
    p["bn2_beta"] = 0.1 * jax.random.normal(ks[6], (256,), jnp.float32)
    p["bn2_mean"] = 0.1 * jax.random.normal(ks[7], (256,), jnp.float32)
    p["bn2_var"] = jax.random.uniform(ks[8], (256,), jnp.float32, 0.5, 1.5)
    # BatchNorm2d(128)
    p["bn3_gamma"] = 1.0 + 0.1 * jax.random.normal(ks[9], (128,), jnp.float32)
    p["bn3_beta"] = 0.1 * jax.random.normal(ks[10], (128,), jnp.float32)
    p["bn3_mean"] = 0.1 * jax.random.normal(ks[11], (128,), jnp.float32)
    p["bn3_var"] = jax.random.uniform(ks[12], (128,), jnp.float32, 0.5, 1.5)
    return p


def prepare_params(params):
    """One-time (eager, outside jit) weight re-layout: bf16, pre-padded GEMM matrices and
    pre-tiled (1, Nout) f32 epilogue scale/shift rows."""
    prep = {}

    # ---- fused fc1 (Linear 102->512, bias) + tconv2 (ConvTranspose 512->256 k7 s1 p0) + BN + ReLU
    # tconv2 on a 1x1 input is a GEMM with columns ordered (kh, kw, cout).
    w2 = jnp.transpose(params["tconv2_w"], (0, 2, 3, 1)).reshape(512, 49 * 256)   # (512, 12544)
    w12 = params["fc1_w"].T @ w2                                                  # (102, 12544)
    b2 = params["fc1_b"] @ w2                                                     # (12544,)
    sc2, sh2 = _bn_to_scale_shift(params["bn2_gamma"], params["bn2_beta"],
                                  params["bn2_mean"], params["bn2_var"])
    scale12 = jnp.tile(sc2, 49)
    shift12 = jnp.tile(sh2, 49) + b2 * scale12
    prep["w12"] = _pad2d(w12, 128, 49 * 256).astype(jnp.bfloat16)                 # K: 102 -> 128
    prep["scale12"] = scale12.reshape(1, -1).astype(jnp.float32)
    prep["shift12"] = shift12.reshape(1, -1).astype(jnp.float32)

    # ---- tconv3 (ConvTranspose 256->128 k4 s2 p1) + BN + ReLU, as sub-pixel 3x3 conv
    w3 = _tconv_k4s2p1_to_subpixel_mat(params["tconv3_w"])                        # (2304, 512)
    sc3, sh3 = _bn_to_scale_shift(params["bn3_gamma"], params["bn3_beta"],
                                  params["bn3_mean"], params["bn3_var"])
    prep["w3"] = w3.astype(jnp.bfloat16)
    prep["scale3"] = jnp.tile(sc3, 4).reshape(1, -1).astype(jnp.float32)
    prep["shift3"] = jnp.tile(sh3, 4).reshape(1, -1).astype(jnp.float32)

    # ---- tconv4 (ConvTranspose 128->1 k4 s2 p1) + Tanh, as sub-pixel 3x3 conv (4 phase cols)
    w4 = _tconv_k4s2p1_to_subpixel_mat(params["tconv4_w"])                        # (1152, 4)
    prep["w4"] = _pad2d(w4, 9 * 128, 128).astype(jnp.bfloat16)                    # Nout: 4 -> 128
    prep["scale4"] = _pad2d(jnp.ones((1, 4), jnp.float32), 1, 128)
    prep["shift4"] = _pad2d(jnp.zeros((1, 4), jnp.float32), 1, 128)
    return prep


# ----------------------------------------------------------------------------- model
def netG_28_forward(prep, z):
    z2 = z.reshape(-1, NZ)                                   # input.view(-1, nz)
    n = z2.shape[0]

    # Stage 1: fused fc1 + tconv2 + BN(256) + ReLU  -> (N, 7, 7, 256) bf16
    # grid (1, 7, 1): 7 lane-dense N tiles of 1792 -> both v7x TensorCores get work.
    t2 = _fused_gemm(z2, prep["w12"], prep["scale12"], prep["shift12"],
                     "relu", jnp.bfloat16, tn=1792)
    t2 = t2[:n].reshape(n, 7, 7, 256)

    # Stage 2: tconv3 as 3x3 sub-pixel conv + BN(128) + ReLU  (7x7 -> 14x14)
    p3 = _im2col3x3(t2)                                      # (N*49, 2304) bf16
    t3 = _fused_gemm(p3, prep["w3"], prep["scale3"], prep["shift3"],
                     "relu", jnp.bfloat16, tn=256)           # grid (1, 2, 1)
    t3 = _pixel_shuffle2x(t3[:n * 49], n, 7, 128)            # (N, 14, 14, 128) bf16

    # Stage 3: tconv4 as 3x3 sub-pixel conv + Tanh            (14x14 -> 28x28)
    # Nout = 4 phase columns padded to 128 lanes: ~200 KB written for ~6 KB of data; a
    # transposed (spatial-on-lanes) GEMM would shave this further but is negligible here.
    p4 = _im2col3x3(t3)                                      # (N*196, 1152) bf16
    t4 = _fused_gemm(p4, prep["w4"], prep["scale4"], prep["shift4"],
                     "tanh", jnp.float32, tn=128)            # grid (1, 1, 1)
    img = _pixel_shuffle2x(t4[:n * 196, :4], n, 14, 1)       # (N, 28, 28, 1)

    return jnp.transpose(img, (0, 3, 1, 2))                  # NHWC -> NCHW: (N, 1, 28, 28)


# ----------------------------------------------------------------------------- main
if __name__ == "__main__":
    key = jax.random.PRNGKey(0)
    kparams, kz = jax.random.split(key)
    params = init_params(kparams)
    prep = prepare_params(params)        # one-time weight re-layout, OUTSIDE the jitted forward

    batch = 2
    z = jax.random.normal(kz, (batch, NZ, 1, 1), jnp.float32)  # noise, PyTorch (N, nz, 1, 1)

    fwd = jax.jit(netG_28_forward)
    out = fwd(prep, z)
    jax.block_until_ready(out)

    assert out.shape == (batch, 1, 28, 28)
    assert bool(jnp.all(jnp.isfinite(out)))
    assert bool(jnp.all(jnp.abs(out) <= 1.0 + 1e-5))  # tanh output range

    print("KERNEL_OK")
</pallas_src>

<mosaic_0001>
module attributes {stable_mosaic.version = 11 : i64} {
  func.func @_gemm_epilogue_kernel(%arg0: i32, %arg1: i32, %arg2: i32, %arg3: memref<8x128xbf16, #tpu.memory_space<vmem>>, %arg4: memref<128x1792xbf16, #tpu.memory_space<vmem>>, %arg5: memref<1x1792xf32, #tpu.memory_space<vmem>>, %arg6: memref<1x1792xf32, #tpu.memory_space<vmem>>, %arg7: memref<8x1792xbf16, #tpu.memory_space<vmem>>, %arg8: memref<8x1792xf32, #tpu.memory_space<vmem>>) attributes {dimension_semantics = [#tpu.dimension_semantics<parallel>, #tpu.dimension_semantics<parallel>, #tpu.dimension_semantics<arbitrary>], iteration_bounds = array<i64: 1, 7, 1>, scalar_prefetch = 0 : i64, scratch_operands = 1 : i64, tpu.core_type = #tpu.core_type<tc>, window_params = [{transform_indices = @transform_0, window_bounds = array<i64: 8, 128>}, {transform_indices = @transform_1, window_bounds = array<i64: 128, 1792>}, {transform_indices = @transform_2, window_bounds = array<i64: 1, 1792>}, {transform_indices = @transform_3, window_bounds = array<i64: 1, 1792>}, {transform_indices = @transform_4, window_bounds = array<i64: 8, 1792>}]} {
    %c0_i32 = arith.constant 0 : i32
    %0 = arith.cmpi eq, %arg2, %c0_i32 : i32
    %1 = arith.extui %0 : i1 to i32
    %c0_i32_0 = arith.constant 0 : i32
    %2 = arith.cmpi ne, %1, %c0_i32_0 : i32
    scf.if %2 {
      %cst_10 = arith.constant 0.000000e+00 : f32
      %12 = vector.broadcast %cst_10 : f32 to vector<8x1792xf32>
      %c0_11 = arith.constant 0 : index
      %c0_12 = arith.constant 0 : index
      %13 = vector.load %arg8[%c0_11, %c0_12] : memref<8x1792xf32, #tpu.memory_space<vmem>>, vector<8x1792xf32>
      tpu.vector_store %arg8[%c0_11, %c0_12], %12 {strides = array<i32>} : memref<8x1792xf32, #tpu.memory_space<vmem>>, vector<8x1792xf32>,
    } else {
    }
    %c0 = arith.constant 0 : index
    %c0_1 = arith.constant 0 : index
    %3 = vector.load %arg8[%c0, %c0_1] : memref<8x1792xf32, #tpu.memory_space<vmem>>, vector<8x1792xf32>
    %c0_2 = arith.constant 0 : index
    %c0_3 = arith.constant 0 : index
    %4 = vector.load %arg3[%c0_2, %c0_3] : memref<8x128xbf16, #tpu.memory_space<vmem>>, vector<8x128xbf16>
    %c0_4 = arith.constant 0 : index
    %c0_5 = arith.constant 0 : index
    %5 = vector.load %arg4[%c0_4, %c0_5] : memref<128x1792xbf16, #tpu.memory_space<vmem>>, vector<128x1792xbf16>
    %cst = arith.constant dense<0.000000e+00> : vector<8x1792xf32>
    %6 = tpu.matmul %4, %5, %cst {dimension_numbers = #tpu.dot_dimension_numbers<[1], [0], [0], [1], [0, 0, 1, 1], [], []>} : vector<8x128xbf16>, vector<128x1792xbf16>, vector<8x1792xf32> -> vector<8x1792xf32>
    %7 = arith.addf %3, %6 : vector<8x1792xf32>
    %c0_6 = arith.constant 0 : index
    %c0_7 = arith.constant 0 : index
    %8 = vector.load %arg8[%c0_6, %c0_7] : memref<8x1792xf32, #tpu.memory_space<vmem>>, vector<8x1792xf32>
    tpu.vector_store %arg8[%c0_6, %c0_7], %7 {strides = array<i32>} : memref<8x1792xf32, #tpu.memory_space<vmem>>, vector<8x1792xf32>,
    %c0_i32_8 = arith.constant 0 : i32
    %9 = arith.cmpi eq, %arg2, %c0_i32_8 : i32
    %10 = arith.extui %9 : i1 to i32
    %c0_i32_9 = arith.constant 0 : i32
    %11 = arith.cmpi ne, %10, %c0_i32_9 : i32
    scf.if %11 {
      %c0_10 = arith.constant 0 : index
      %c0_11 = arith.constant 0 : index
      %12 = vector.load %arg8[%c0_10, %c0_11] : memref<8x1792xf32, #tpu.memory_space<vmem>>, vector<8x1792xf32>
      %c0_12 = arith.constant 0 : index
      %c0_13 = arith.constant 0 : index
      %13 = vector.load %arg5[%c0_12, %c0_13] : memref<1x1792xf32, #tpu.memory_space<vmem>>, vector<1x1792xf32>
      %14 = vector.broadcast %13 : vector<1x1792xf32> to vector<8x1792xf32>
      %15 = arith.mulf %12, %14 : vector<8x1792xf32>
      %c0_14 = arith.constant 0 : index
      %c0_15 = arith.constant 0 : index
      %16 = vector.load %arg6[%c0_14, %c0_15] : memref<1x1792xf32, #tpu.memory_space<vmem>>, vector<1x1792xf32>
      %17 = vector.broadcast %16 : vector<1x1792xf32> to vector<8x1792xf32>
      %18 = arith.addf %15, %17 : vector<8x1792xf32>
      %cst_16 = arith.constant 0.000000e+00 : f32
      %19 = vector.broadcast %cst_16 : f32 to vector<8x1792xf32>
      %20 = arith.maximumf %18, %19 : vector<8x1792xf32>
      %21 = arith.truncf %20 : vector<8x1792xf32> to vector<8x1792xbf16>
      %c0_17 = arith.constant 0 : index
      %c0_18 = arith.constant 0 : index
      %22 = vector.load %arg7[%c0_17, %c0_18] : memref<8x1792xbf16, #tpu.memory_space<vmem>>, vector<8x1792xbf16>
      tpu.vector_store %arg7[%c0_17, %c0_18], %21 {strides = array<i32>} : memref<8x1792xbf16, #tpu.memory_space<vmem>>, vector<8x1792xbf16>,
    } else {
    }
    return
  }
  func.func @transform_0(%arg0: i32, %arg1: i32, %arg2: i32) -> (i32, i32) {
    %c0_i32 = arith.constant 0 : i32
    return %arg0, %arg2 : i32, i32
  }
  func.func @transform_1(%arg0: i32, %arg1: i32, %arg2: i32) -> (i32, i32) {
    %c0_i32 = arith.constant 0 : i32
    return %arg2, %arg1 : i32, i32
  }
  func.func @transform_2(%arg0: i32, %arg1: i32, %arg2: i32) -> (i32, i32) {
    %c0_i32 = arith.constant 0 : i32
    %c0_i32_0 = arith.constant 0 : i32
    return %c0_i32, %arg1 : i32, i32
  }
  func.func @transform_3(%arg0: i32, %arg1: i32, %arg2: i32) -> (i32, i32) {
    %c0_i32 = arith.constant 0 : i32
    %c0_i32_0 = arith.constant 0 : i32
    return %c0_i32, %arg1 : i32, i32
  }
  func.func @transform_4(%arg0: i32, %arg1: i32, %arg2: i32) -> (i32, i32) {
    %c0_i32 = arith.constant 0 : i32
    return %arg0, %arg1 : i32, i32
  }
}

module attributes {stable_mosaic.version = 11 : i64} {
  func.func @_gemm_epilogue_kernel(%arg0: i32, %arg1: i32, %arg2: i32, %arg3: memref<104x2304xbf16, #tpu.memory_space<vmem>>, %arg4: memref<2304x256xbf16, #tpu.memory_space<vmem>>, %arg5: memref<1x256xf32, #tpu.memory_space<vmem>>, %arg6: memref<1x256xf32, #tpu.memory_space<vmem>>, %arg7: memref<104x256xbf16, #tpu.memory_space<vmem>>, %arg8: memref<104x256xf32, #tpu.memory_space<vmem>>) attributes {dimension_semantics = [#tpu.dimension_semantics<parallel>, #tpu.dimension_semantics<parallel>, #tpu.dimension_semantics<arbitrary>], iteration_bounds = array<i64: 1, 2, 1>, scalar_prefetch = 0 : i64, scratch_operands = 1 : i64, tpu.core_type = #tpu.core_type<tc>, window_params = [{transform_indices = @transform_0, window_bounds = array<i64: 104, 2304>}, {transform_indices = @transform_1, window_bounds = array<i64: 2304, 256>}, {transform_indices = @transform_2, window_bounds = array<i64: 1, 256>}, {transform_indices = @transform_3, window_bounds = array<i64: 1, 256>}, {transform_indices = @transform_4, window_bounds = array<i64: 104, 256>}]} {
    %c0_i32 = arith.constant 0 : i32
    %0 = arith.cmpi eq, %arg2, %c0_i32 : i32
    %1 = arith.extui %0 : i1 to i32
    %c0_i32_0 = arith.constant 0 : i32
    %2 = arith.cmpi ne, %1, %c0_i32_0 : i32
    scf.if %2 {
      %cst_10 = arith.constant 0.000000e+00 : f32
      %12 = vector.broadcast %cst_10 : f32 to vector<104x256xf32>
      %c0_11 = arith.constant 0 : index
      %c0_12 = arith.constant 0 : index
      %13 = vector.load %arg8[%c0_11, %c0_12] : memref<104x256xf32, #tpu.memory_space<vmem>>, vector<104x256xf32>
      tpu.vector_store %arg8[%c0_11, %c0_12], %12 {strides = array<i32>} : memref<104x256xf32, #tpu.memory_space<vmem>>, vector<104x256xf32>,
    } else {
    }
    %c0 = arith.constant 0 : index
    %c0_1 = arith.constant 0 : index
    %3 = vector.load %arg8[%c0, %c0_1] : memref<104x256xf32, #tpu.memory_space<vmem>>, vector<104x256xf32>
    %c0_2 = arith.constant 0 : index
    %c0_3 = arith.constant 0 : index
    %4 = vector.load %arg3[%c0_2, %c0_3] : memref<104x2304xbf16, #tpu.memory_space<vmem>>, vector<104x2304xbf16>
    %c0_4 = arith.constant 0 : index
    %c0_5 = arith.constant 0 : index
    %5 = vector.load %arg4[%c0_4, %c0_5] : memref<2304x256xbf16, #tpu.memory_space<vmem>>, vector<2304x256xbf16>
    %cst = arith.constant dense<0.000000e+00> : vector<104x256xf32>
    %6 = tpu.matmul %4, %5, %cst {dimension_numbers = #tpu.dot_dimension_numbers<[1], [0], [0], [1], [0, 0, 1, 1], [], []>} : vector<104x2304xbf16>, vector<2304x256xbf16>, vector<104x256xf32> -> vector<104x256xf32>
    %7 = arith.addf %3, %6 : vector<104x256xf32>
    %c0_6 = arith.constant 0 : index
    %c0_7 = arith.constant 0 : index
    %8 = vector.load %arg8[%c0_6, %c0_7] : memref<104x256xf32, #tpu.memory_space<vmem>>, vector<104x256xf32>
    tpu.vector_store %arg8[%c0_6, %c0_7], %7 {strides = array<i32>} : memref<104x256xf32, #tpu.memory_space<vmem>>, vector<104x256xf32>,
    %c0_i32_8 = arith.constant 0 : i32
    %9 = arith.cmpi eq, %arg2, %c0_i32_8 : i32
    %10 = arith.extui %9 : i1 to i32
    %c0_i32_9 = arith.constant 0 : i32
    %11 = arith.cmpi ne, %10, %c0_i32_9 : i32
    scf.if %11 {
      %c0_10 = arith.constant 0 : index
      %c0_11 = arith.constant 0 : index
      %12 = vector.load %arg8[%c0_10, %c0_11] : memref<104x256xf32, #tpu.memory_space<vmem>>, vector<104x256xf32>
      %c0_12 = arith.constant 0 : index
      %c0_13 = arith.constant 0 : index
      %13 = vector.load %arg5[%c0_12, %c0_13] : memref<1x256xf32, #tpu.memory_space<vmem>>, vector<1x256xf32>
      %14 = vector.broadcast %13 : vector<1x256xf32> to vector<104x256xf32>
      %15 = arith.mulf %12, %14 : vector<104x256xf32>
      %c0_14 = arith.constant 0 : index
      %c0_15 = arith.constant 0 : index
      %16 = vector.load %arg6[%c0_14, %c0_15] : memref<1x256xf32, #tpu.memory_space<vmem>>, vector<1x256xf32>
      %17 = vector.broadcast %16 : vector<1x256xf32> to vector<104x256xf32>
      %18 = arith.addf %15, %17 : vector<104x256xf32>
      %cst_16 = arith.constant 0.000000e+00 : f32
      %19 = vector.broadcast %cst_16 : f32 to vector<104x256xf32>
      %20 = arith.maximumf %18, %19 : vector<104x256xf32>
      %21 = arith.truncf %20 : vector<104x256xf32> to vector<104x256xbf16>
      %c0_17 = arith.constant 0 : index
      %c0_18 = arith.constant 0 : index
      %22 = vector.load %arg7[%c0_17, %c0_18] : memref<104x256xbf16, #tpu.memory_space<vmem>>, vector<104x256xbf16>
      tpu.vector_store %arg7[%c0_17, %c0_18], %21 {strides = array<i32>} : memref<104x256xbf16, #tpu.memory_space<vmem>>, vector<104x256xbf16>,
    } else {
    }
    return
  }
  func.func @transform_0(%arg0: i32, %arg1: i32, %arg2: i32) -> (i32, i32) {
    %c0_i32 = arith.constant 0 : i32
    return %arg0, %arg2 : i32, i32
  }
  func.func @transform_1(%arg0: i32, %arg1: i32, %arg2: i32) -> (i32, i32) {
    %c0_i32 = arith.constant 0 : i32
    return %arg2, %arg1 : i32, i32
  }
  func.func @transform_2(%arg0: i32, %arg1: i32, %arg2: i32) -> (i32, i32) {
    %c0_i32 = arith.constant 0 : i32
    %c0_i32_0 = arith.constant 0 : i32
    return %c0_i32, %arg1 : i32, i32
  }
  func.func @transform_3(%arg0: i32, %arg1: i32, %arg2: i32) -> (i32, i32) {
    %c0_i32 = arith.constant 0 : i32
    %c0_i32_0 = arith.constant 0 : i32
    return %c0_i32, %arg1 : i32, i32
  }
  func.func @transform_4(%arg0: i32, %arg1: i32, %arg2: i32) -> (i32, i32) {
    %c0_i32 = arith.constant 0 : i32
    return %arg0, %arg1 : i32, i32
  }
}

module attributes {stable_mosaic.version = 11 : i64} {
  func.func @_gemm_epilogue_kernel(%arg0: i32, %arg1: i32, %arg2: i32, %arg3: memref<392x1152xbf16, #tpu.memory_space<vmem>>, %arg4: memref<1152x128xbf16, #tpu.memory_space<vmem>>, %arg5: memref<1x128xf32, #tpu.memory_space<vmem>>, %arg6: memref<1x128xf32, #tpu.memory_space<vmem>>, %arg7: memref<392x128xf32, #tpu.memory_space<vmem>>, %arg8: memref<392x128xf32, #tpu.memory_space<vmem>>) attributes {dimension_semantics = [#tpu.dimension_semantics<parallel>, #tpu.dimension_semantics<parallel>, #tpu.dimension_semantics<arbitrary>], iteration_bounds = array<i64: 1, 1, 1>, scalar_prefetch = 0 : i64, scratch_operands = 1 : i64, tpu.core_type = #tpu.core_type<tc>, window_params = [{transform_indices = @transform_0, window_bounds = array<i64: 392, 1152>}, {transform_indices = @transform_1, window_bounds = array<i64: 1152, 128>}, {transform_indices = @transform_2, window_bounds = array<i64: 1, 128>}, {transform_indices = @transform_3, window_bounds = array<i64: 1, 128>}, {transform_indices = @transform_4, window_bounds = array<i64: 392, 128>}]} {
    %c0_i32 = arith.constant 0 : i32
    %0 = arith.cmpi eq, %arg2, %c0_i32 : i32
    %1 = arith.extui %0 : i1 to i32
    %c0_i32_0 = arith.constant 0 : i32
    %2 = arith.cmpi ne, %1, %c0_i32_0 : i32
    scf.if %2 {
      %cst_10 = arith.constant 0.000000e+00 : f32
      %12 = vector.broadcast %cst_10 : f32 to vector<392x128xf32>
      %c0_11 = arith.constant 0 : index
      %c0_12 = arith.constant 0 : index
      %13 = vector.load %arg8[%c0_11, %c0_12] : memref<392x128xf32, #tpu.memory_space<vmem>>, vector<392x128xf32>
      tpu.vector_store %arg8[%c0_11, %c0_12], %12 {strides = array<i32>} : memref<392x128xf32, #tpu.memory_space<vmem>>, vector<392x128xf32>,
    } else {
    }
    %c0 = arith.constant 0 : index
    %c0_1 = arith.constant 0 : index
    %3 = vector.load %arg8[%c0, %c0_1] : memref<392x128xf32, #tpu.memory_space<vmem>>, vector<392x128xf32>
    %c0_2 = arith.constant 0 : index
    %c0_3 = arith.constant 0 : index
    %4 = vector.load %arg3[%c0_2, %c0_3] : memref<392x1152xbf16, #tpu.memory_space<vmem>>, vector<392x1152xbf16>
    %c0_4 = arith.constant 0 : index
    %c0_5 = arith.constant 0 : index
    %5 = vector.load %arg4[%c0_4, %c0_5] : memref<1152x128xbf16, #tpu.memory_space<vmem>>, vector<1152x128xbf16>
    %cst = arith.constant dense<0.000000e+00> : vector<392x128xf32>
    %6 = tpu.matmul %4, %5, %cst {dimension_numbers = #tpu.dot_dimension_numbers<[1], [0], [0], [1], [0, 0, 1, 1], [], []>} : vector<392x1152xbf16>, vector<1152x128xbf16>, vector<392x128xf32> -> vector<392x128xf32>
    %7 = arith.addf %3, %6 : vector<392x128xf32>
    %c0_6 = arith.constant 0 : index
    %c0_7 = arith.constant 0 : index
    %8 = vector.load %arg8[%c0_6, %c0_7] : memref<392x128xf32, #tpu.memory_space<vmem>>, vector<392x128xf32>
    tpu.vector_store %arg8[%c0_6, %c0_7], %7 {strides = array<i32>} : memref<392x128xf32, #tpu.memory_space<vmem>>, vector<392x128xf32>,
    %c0_i32_8 = arith.constant 0 : i32
    %9 = arith.cmpi eq, %arg2, %c0_i32_8 : i32
    %10 = arith.extui %9 : i1 to i32
    %c0_i32_9 = arith.constant 0 : i32
    %11 = arith.cmpi ne, %10, %c0_i32_9 : i32
    scf.if %11 {
      %c0_10 = arith.constant 0 : index
      %c0_11 = arith.constant 0 : index
      %12 = vector.load %arg8[%c0_10, %c0_11] : memref<392x128xf32, #tpu.memory_space<vmem>>, vector<392x128xf32>
      %c0_12 = arith.constant 0 : index
      %c0_13 = arith.constant 0 : index
      %13 = vector.load %arg5[%c0_12, %c0_13] : memref<1x128xf32, #tpu.memory_space<vmem>>, vector<1x128xf32>
      %14 = vector.broadcast %13 : vector<1x128xf32> to vector<392x128xf32>
      %15 = arith.mulf %12, %14 : vector<392x128xf32>
      %c0_14 = arith.constant 0 : index
      %c0_15 = arith.constant 0 : index
      %16 = vector.load %arg6[%c0_14, %c0_15] : memref<1x128xf32, #tpu.memory_space<vmem>>, vector<1x128xf32>
      %17 = vector.broadcast %16 : vector<1x128xf32> to vector<392x128xf32>
      %18 = arith.addf %15, %17 : vector<392x128xf32>
      %19 = math.tanh %18 : vector<392x128xf32>
      %c0_16 = arith.constant 0 : index
      %c0_17 = arith.constant 0 : index
      %20 = vector.load %arg7[%c0_16, %c0_17] : memref<392x128xf32, #tpu.memory_space<vmem>>, vector<392x128xf32>
      tpu.vector_store %arg7[%c0_16, %c0_17], %19 {strides = array<i32>} : memref<392x128xf32, #tpu.memory_space<vmem>>, vector<392x128xf32>,
    } else {
    }
    return
  }
  func.func @transform_0(%arg0: i32, %arg1: i32, %arg2: i32) -> (i32, i32) {
    %c0_i32 = arith.constant 0 : i32
    return %arg0, %arg2 : i32, i32
  }
  func.func @transform_1(%arg0: i32, %arg1: i32, %arg2: i32) -> (i32, i32) {
    %c0_i32 = arith.constant 0 : i32
    return %arg2, %arg1 : i32, i32
  }
  func.func @transform_2(%arg0: i32, %arg1: i32, %arg2: i32) -> (i32, i32) {
    %c0_i32 = arith.constant 0 : i32
    %c0_i32_0 = arith.constant 0 : i32
    return %c0_i32, %arg1 : i32, i32
  }
  func.func @transform_3(%arg0: i32, %arg1: i32, %arg2: i32) -> (i32, i32) {
    %c0_i32 = arith.constant 0 : i32
    %c0_i32_0 = arith.constant 0 : i32
    return %c0_i32, %arg1 : i32, i32
  }
  func.func @transform_4(%arg0: i32, %arg1: i32, %arg2: i32) -> (i32, i32) {
    %c0_i32 = arith.constant 0 : i32
    return %arg0, %arg1 : i32, i32
  }
}

</mosaic_0001>

<llo_original>
// kernel: netG_28_forward.3
$region0: #{netG_28_forward.3}
  #allocation0 [shape = 'u32[]', space=smem, size = 0x4, offset = 0x4, fixed_abs, tag = 'smem constant byte address 0x4 - core index']
  #allocation1 [shape = 'u32[144,128]{1,0:T(1,128)}', space=vmem, size = 0x12000, scoped, tag = 'internal scratch']
  #allocation2 [shape = 'f32[8,1792]{1,0:T(8,128)}', space=vmem, size = 0xe000, scoped, tag = 'scratch operand']
  %s0 = inlined_call_operand.vmem [shape: bf16[8,128], index: 0, kind: input, shape index: {}]
  %s1 = inlined_call_operand.hbm [shape: bf16[128,12544], index: 1, kind: input, shape index: {}]
  %s2 = inlined_call_operand.hbm [shape: f32[1,12544], index: 2, kind: input, shape index: {}]
  %s3 = inlined_call_operand.hbm [shape: f32[1,12544], index: 3, kind: input, shape index: {}]
  %s4 = inlined_call_operand.vmem [shape: bf16[8,12544], index: 4, kind: output, shape index: {}]
  %s5 = sld [smem:[#allocation0]]
  $region69: #{netG_28_forward.3} parent=0
    _
  %s7 = ssub.s32 1, %s5
  %s8 = scalar_select 0, %s7, %s5
  $region1: #{netG_28_forward.3} parent=0
    #allocation3 [shape = 'u8[917504]{0}', space=vmem, size = 0xe0000, scoped, tag = 'input window, operand 1']
    #allocation4 [shape = 's32[2]{0}', space=sflag, size = 0x8, scoped, tag = 'scoped memory for netG_28_forward.3']
    #allocation5 [shape = 'u8[14336]{0}', space=vmem, size = 0x3800, scoped, tag = 'input window, operand 2']
    #allocation6 [shape = 's32[2]{0}', space=sflag, size = 0x8, scoped, tag = 'scoped memory for netG_28_forward.3']
    #allocation7 [shape = 'u8[14336]{0}', space=vmem, size = 0x3800, scoped, tag = 'input window, operand 3']
    %9 = vsyncpa [#allocation4], 0
    %s10 = scalar_lea.sflag [#allocation4], 1
    %11 = vsyncpa %s10, 0
    %12 = vsyncpa [#allocation6], 0
    %s13 = scalar_lea.sflag [#allocation6], 1
    %14 = vsyncpa %s13, 0
    loop: start=0, step=1, limit=9
    $region2: #{netG_28_forward.3} parent=1 // loop_pre_header
      _
    $region3: #{netG_28_forward.3} parent=1 // loop_header
      %s16 = sphi 0, %s20
      %p17 = scmp.ge.s32.totalorder %s16, 9
      %s23 = sphi 0, %s42
      %s24 = sphi 0, %s38
      %s25 = sphi 0, %s34
      %s26 = sphi 0, %s23
      %s27 = sphi 0, %s24
      %s28 = sphi 0, %s25
      %s29 = sphi 0, %s26
      %s30 = sphi 0, %s27
      %s31 = sphi 0, %s28
      %s47 = sphi 0, %s49
      %s50 = sphi 0, %s47
      %s51 = sphi 0, %s50
      %s67 = sphi 0, %s51
      %s75 = sphi 0, %s77
      %s78 = sphi 0, %s75
      %s79 = sphi 0, %s78
      %s95 = sphi 0, %s79
      %s101 = sphi 0, %s103
      %s104 = sphi 0, %s101
      %s105 = sphi 0, %s104
      %s121 = sphi 0, %s105
      %s127 = sphi 0, %s129
      %s130 = sphi 0, %s127
      %s131 = sphi 0, %s130
      %s147 = sphi 0, %s131
      %s155 = sphi 0, %s157
      %s158 = sphi 0, %s155
      %s159 = sphi 0, %s158
      %s175 = sphi 0, %s159
    $region4: #{netG_28_forward.3} parent=1 // loop_header_branch
      %19 = sbr.rel (%p17) target = $region8
    $region5: #{netG_28_forward.3} parent=1 // loop_body
      %s21 = ssub.s32 %s16, 1
      %s22 = ssub.s32 %s16, 2
      %s32 = sadd.s32 1, %s25
      %p33 = scmp.ge.s32.totalorder %s32, 1
      %s34 = scalar_select %p33, 0, %s32
      %s35 = sadd.s32 1, %s24
      %s36 = scalar_select %p33, %s35, %s24
      %p37 = scmp.ge.s32.totalorder %s36, 7
      %s38 = scalar_select %p37, 0, %s36
      %s39 = sadd.s32 1, %s23
      %s40 = scalar_select %p37, %s39, %s23
      %p41 = scmp.ge.s32.totalorder %s40, 1
      %s42 = scalar_select %p41, 0, %s40
      %s43 = ssub.s32 %s23, %s42
      %s44 = ssub.s32 %s25, %s34
      %s45 = sor.u32 %s43, %s44
      %p46 = scmp.eq.s32.totalorder %s45, 0
      %s48 = sadd.s32 %s47, 1
      %s49 = scalar_select %p46, %s47, %s48
      %p52 = pneg %p46
      %p53 = scmp.eq.s32.totalorder %s16, 6
      %p54 = por %p52, %p53
      %p55 = scmp.ne.s32.totalorder %s47, %s50
      %p56 = scmp.eq.s32.totalorder %s16, 0
      %p57 = por %p55, %p56
      %p58 = scmp.ne.s32.totalorder %s47, %s50
      %p59 = scmp.eq.s32.totalorder %s21, 6
      %p60 = por %p58, %p59
      %p61 = scmp.ne.s32.totalorder %s50, %s51
      %p62 = scmp.eq.s32.totalorder %s21, 0
      %p63 = por %p61, %p62
      %p64 = scmp.ne.s32.totalorder %s50, %s51
      %p65 = scmp.eq.s32.totalorder %s22, 6
      %p66 = por %p64, %p65
      %p68 = scmp.ne.s32.totalorder %s51, %s67
      %p69 = scmp.eq.s32.totalorder %s22, 0
      %p70 = por %p68, %p69
      %s71 = ssub.s32 %s25, %s34
      %s72 = ssub.s32 %s24, %s38
      %s73 = sor.u32 %s71, %s72
      %p74 = scmp.eq.s32.totalorder %s73, 0
      %s76 = sadd.s32 %s75, 1
      %s77 = scalar_select %p74, %s75, %s76
      %p80 = pneg %p74
      %p81 = scmp.eq.s32.totalorder %s16, 6
      %p82 = por %p80, %p81
      %p83 = scmp.ne.s32.totalorder %s75, %s78
      %p84 = scmp.eq.s32.totalorder %s16, 0
      %p85 = por %p83, %p84
      %p86 = scmp.ne.s32.totalorder %s75, %s78
      %p87 = scmp.eq.s32.totalorder %s21, 6
      %p88 = por %p86, %p87
      %p89 = scmp.ne.s32.totalorder %s78, %s79
      %p90 = scmp.eq.s32.totalorder %s21, 0
      %p91 = por %p89, %p90
      %p92 = scmp.ne.s32.totalorder %s78, %s79
      %p93 = scmp.eq.s32.totalorder %s22, 6
      %p94 = por %p92, %p93
      %p96 = scmp.ne.s32.totalorder %s79, %s95
      %p97 = scmp.eq.s32.totalorder %s22, 0
      %p98 = por %p96, %p97
      %s99 = ssub.s32 %s24, %s38
      %p100 = scmp.eq.s32.totalorder %s99, 0
      %s102 = sadd.s32 %s101, 1
      %s103 = scalar_select %p100, %s101, %s102
      %p106 = pneg %p100
      %p107 = scmp.eq.s32.totalorder %s16, 6
      %p108 = por %p106, %p107
      %p109 = scmp.ne.s32.totalorder %s101, %s104
      %p110 = scmp.eq.s32.totalorder %s16, 0
      %p111 = por %p109, %p110
      %p112 = scmp.ne.s32.totalorder %s101, %s104
      %p113 = scmp.eq.s32.totalorder %s21, 6
      %p114 = por %p112, %p113
      %p115 = scmp.ne.s32.totalorder %s104, %s105
      %p116 = scmp.eq.s32.totalorder %s21, 0
      %p117 = por %p115, %p116
      %p118 = scmp.ne.s32.totalorder %s104, %s105
      %p119 = scmp.eq.s32.totalorder %s22, 6
      %p120 = por %p118, %p119
      %p122 = scmp.ne.s32.totalorder %s105, %s121
      %p123 = scmp.eq.s32.totalorder %s22, 0
      %p124 = por %p122, %p123
      %s125 = ssub.s32 %s24, %s38
      %p126 = scmp.eq.s32.totalorder %s125, 0
      %s128 = sadd.s32 %s127, 1
      %s129 = scalar_select %p126, %s127, %s128
      %p132 = pneg %p126
      %p133 = scmp.eq.s32.totalorder %s16, 6
      %p134 = por %p132, %p133
      %p135 = scmp.ne.s32.totalorder %s127, %s130
      %p136 = scmp.eq.s32.totalorder %s16, 0
      %p137 = por %p135, %p136
      %p138 = scmp.ne.s32.totalorder %s127, %s130
      %p139 = scmp.eq.s32.totalorder %s21, 6
      %p140 = por %p138, %p139
      %p141 = scmp.ne.s32.totalorder %s130, %s131
      %p142 = scmp.eq.s32.totalorder %s21, 0
      %p143 = por %p141, %p142
      %p144 = scmp.ne.s32.totalorder %s130, %s131
      %p145 = scmp.eq.s32.totalorder %s22, 6
      %p146 = por %p144, %p145
      %p148 = scmp.ne.s32.totalorder %s131, %s147
      %p149 = scmp.eq.s32.totalorder %s22, 0
      %p150 = por %p148, %p149
      %s151 = ssub.s32 %s23, %s42
      %s152 = ssub.s32 %s24, %s38
      %s153 = sor.u32 %s151, %s152
      %p154 = scmp.eq.s32.totalorder %s153, 0
      %s156 = sadd.s32 %s155, 1
      %s157 = scalar_select %p154, %s155, %s156
      %p160 = pneg %p154
      %p161 = scmp.eq.s32.totalorder %s16, 6
      %p162 = por %p160, %p161
      %p163 = scmp.ne.s32.totalorder %s155, %s158
      %p164 = scmp.eq.s32.totalorder %s16, 0
      %p165 = por %p163, %p164
      %p166 = scmp.ne.s32.totalorder %s155, %s158
      %p167 = scmp.eq.s32.totalorder %s21, 6
      %p168 = por %p166, %p167
      %p169 = scmp.ne.s32.totalorder %s158, %s159
      %p170 = scmp.eq.s32.totalorder %s21, 0
      %p171 = por %p169, %p170
      %p172 = scmp.ne.s32.totalorder %s158, %s159
      %p173 = scmp.eq.s32.totalorder %s22, 6
      %p174 = por %p172, %p173
      %p176 = scmp.ne.s32.totalorder %s159, %s175
      %p177 = scmp.eq.s32.totalorder %s22, 0
      %p178 = por %p176, %p177
      %p179 = scmp.le.s32.totalorder 1, %s16
      %p180 = scmp.lt.s32.totalorder %s16, 8
      %p181 = pnand %p179, %p180
      %p182 = pneg %p181
      // Predicated region
      $region9: #{netG_28_forward.3} parent=5 // pred_check
        _
      $region10: #{netG_28_forward.3} parent=5 // pred_check_branch
        %184 = sbr.rel (%p181) target = $region12
      $region11: #{netG_28_forward.3} parent=5 // pred_region
        %s185 = ssub.s32 %s16, 1
        // Predicated region
        $region13: #{netG_28_forward.3} parent=11 // pred_check
          %p186 = pneg %p63
        $region14: #{netG_28_forward.3} parent=11 // pred_check_branch
          %188 = sbr.rel (%p186) target = $region16
        $region15: #{netG_28_forward.3} parent=11 // pred_region
          %p189 = scmp.lt.s32.totalorder %s26, 0
          %s190 = scalar_select %p189, %s26, 0
          %p191 = scmp.lt.s32.totalorder %s28, 0
          %s192 = scalar_select %p191, %s28, 0
          %s193 = sadd.s32 %s192, %s190
          %s194 = smul.addr %s193, 4
          %s195 = scalar_lea.vmem %s0, %s194
        $region16: #{netG_28_forward.3} parent=11 // pred_fallthru
          _
      $region12: #{netG_28_forward.3} parent=5 // pred_fallthru
        _
      %p196 = scmp.lt.s32.totalorder %s16, 7
      // Predicated region
      $region17: #{netG_28_forward.3} parent=5 // pred_check
        %p197 = pneg %p196
      $region18: #{netG_28_forward.3} parent=5 // pred_check_branch
        %199 = sbr.rel (%p197) target = $region20
      $region19: #{netG_28_forward.3} parent=5 // pred_region
        // Predicated region
        $region21: #{netG_28_forward.3} parent=19 // pred_check
          %p200 = pneg %p85
        $region22: #{netG_28_forward.3} parent=19 // pred_check_branch
          %202 = sbr.rel (%p200) target = $region24
        $region23: #{netG_28_forward.3} parent=19 // pred_region
          %s203 = sand.u32 %s75, 1
          %s204 = scalar_lea.sflag [#allocation4], %s203
          %s205 = sand.u32 %s75, 1
          %s206 = smul.addr %s205, 896
          %s207 = scalar_lea.vmem [#allocation3], %s206
          %s208 = smul.u32 16, %s25
          %s209 = smul.u32 14, %s24
          %s211 = ssub.s32 14336, 14336
          %212 = vsyncadd %s204, %s211
          %s213 = smul.addr %s208, 98
          %s214 = sadd.s32 %s209, %s213
          %s215 = smul.addr %s214, 64
          %s216 = scalar_lea.hbm %s1, %s215
          %s217 = sshll.u32 %s207, 4
          %s218 = int_to_ptr.vmem [resolvable:$true] %s217
          %223 = dma.hbm_to_vmem [thread:$0]  %s216, 14336, %s218, %s204, 6272, 896, 56
        $region24: #{netG_28_forward.3} parent=19 // pred_fallthru
          _
        // Predicated region
        $region25: #{netG_28_forward.3} parent=19 // pred_check
          %p224 = pneg %p111
        $region26: #{netG_28_forward.3} parent=19 // pred_check_branch
          %226 = sbr.rel (%p224) target = $region28
        $region27: #{netG_28_forward.3} parent=19 // pred_region
          %s227 = sand.u32 %s16, 1
          %s228 = scalar_lea.sflag [#allocation6], %s227
          %s229 = sand.u32 %s101, 1
          %s230 = smul.addr %s229, 14
          %s231 = scalar_lea.vmem [#allocation5], %s230
          %s232 = smul.u32 14, %s24
          %s234 = ssub.s32 224, 224
          %235 = vsyncadd %s228, %s234
          %s236 = smul.addr %s232, 16
          %s237 = scalar_lea.hbm %s2, %s236
          %s239 = sshll.u32 %s231, 4
          %s240 = int_to_ptr.vmem [resolvable:$true] %s239
          %242 = dma.hbm_to_vmem [thread:$0]  %s237, 224, %s240, %s228
        $region28: #{netG_28_forward.3} parent=19 // pred_fallthru
          _
        // Predicated region
        $region29: #{netG_28_forward.3} parent=19 // pred_check
          %p243 = pneg %p137
        $region30: #{netG_28_forward.3} parent=19 // pred_check_branch
          %245 = sbr.rel (%p243) target = $region32
        $region31: #{netG_28_forward.3} parent=19 // pred_region
          %s246 = sand.u32 %s16, 1
          %s247 = scalar_lea.sflag [#allocation6], %s246
          %s248 = sand.u32 %s127, 1
          %s249 = smul.addr %s248, 14
          %s250 = scalar_lea.vmem [#allocation7], %s249
          %s251 = smul.u32 14, %s24
          %s253 = ssub.s32 224, 224
          %254 = vsyncadd %s247, %s253
          %s255 = smul.addr %s251, 16
          %s256 = scalar_lea.hbm %s3, %s255
          %s258 = sshll.u32 %s250, 4
          %s259 = int_to_ptr.vmem [resolvable:$true] %s258
          %261 = dma.hbm_to_vmem [thread:$0]  %s256, 224, %s259, %s247
        $region32: #{netG_28_forward.3} parent=19 // pred_fallthru
          _
      $region20: #{netG_28_forward.3} parent=5 // pred_fallthru
        _
      %p262 = scmp.le.s32.totalorder 1, %s16
      %p263 = scmp.lt.s32.totalorder %s16, 8
      %p264 = pnand %p262, %p263
      %p265 = pneg %p264
      // Predicated region
      $region33: #{netG_28_forward.3} parent=5 // pred_check
        _
      $region34: #{netG_28_forward.3} parent=5 // pred_check_branch
        %267 = sbr.rel (%p264) target = $region36
      $region35: #{netG_28_forward.3} parent=5 // pred_region
        %s268 = ssub.s32 %s16, 1
        %s269 = sand.u32 %s78, 1
        %s270 = scalar_lea.sflag [#allocation4], %s269
        %s271 = sand.u32 %s78, 1
        %s272 = smul.addr %s271, 896
        %s273 = scalar_lea.vmem [#allocation3], %s272
        // Predicated region
        $region37: #{netG_28_forward.3} parent=35 // pred_check
          %p274 = pneg %p91
        $region38: #{netG_28_forward.3} parent=35 // pred_check_branch
          %276 = sbr.rel (%p274) target = $region40
        $region39: #{netG_28_forward.3} parent=35 // pred_region
          %277 = dma.done %s270, 14336
        $region40: #{netG_28_forward.3} parent=35 // pred_fallthru
          _
        %s278 = sand.u32 %s21, 1
        %s279 = scalar_lea.sflag [#allocation6], %s278
        %s280 = sand.u32 %s104, 1
        %s281 = smul.addr %s280, 14
        %s282 = scalar_lea.vmem [#allocation5], %s281
        // Predicated region
        $region41: #{netG_28_forward.3} parent=35 // pred_check
          %p283 = pneg %p117
        $region42: #{netG_28_forward.3} parent=35 // pred_check_branch
          %285 = sbr.rel (%p283) target = $region44
        $region43: #{netG_28_forward.3} parent=35 // pred_region
          %286 = dma.done %s279, 224
        $region44: #{netG_28_forward.3} parent=35 // pred_fallthru
          _
        %s287 = sand.u32 %s21, 1
        %s288 = scalar_lea.sflag [#allocation6], %s287
        %s289 = sand.u32 %s130, 1
        %s290 = smul.addr %s289, 14
        %s291 = scalar_lea.vmem [#allocation7], %s290
        // Predicated region
        $region45: #{netG_28_forward.3} parent=35 // pred_check
          %p292 = pneg %p143
        $region46: #{netG_28_forward.3} parent=35 // pred_check_branch
          %294 = sbr.rel (%p292) target = $region48
        $region47: #{netG_28_forward.3} parent=35 // pred_region
          %295 = dma.done %s288, 224
        $region48: #{netG_28_forward.3} parent=35 // pred_fallthru
          _
        %p296 = scmp.lt.s32.totalorder %s26, 0
        %s297 = scalar_select %p296, %s26, 0
        %p298 = scmp.lt.s32.totalorder %s28, 0
        %s299 = scalar_select %p298, %s28, 0
        %s300 = sadd.s32 %s299, %s297
        %s301 = smul.addr %s300, 4
        %s302 = scalar_lea.vmem %s0, %s301
        %p303 = pneg %p63
        %p304 = pneg %p60
        %s305 = sand.u32 %s78, 1
        %s306 = scalar_lea.sflag [#allocation4], %s305
        %s307 = sand.u32 %s78, 1
        %s308 = smul.addr %s307, 896
        %s309 = scalar_lea.vmem [#allocation3], %s308
        %p310 = pneg %p91
        %p311 = pneg %p88
        %s312 = sand.u32 %s21, 1
        %s313 = scalar_lea.sflag [#allocation6], %s312
        %s314 = sand.u32 %s104, 1
        %s315 = smul.addr %s314, 14
        %s316 = scalar_lea.vmem [#allocation5], %s315
        %p317 = pneg %p117
        %p318 = pneg %p114
        %s319 = sand.u32 %s21, 1
        %s320 = scalar_lea.sflag [#allocation6], %s319
        %s321 = sand.u32 %s130, 1
        %s322 = smul.addr %s321, 14
        %s323 = scalar_lea.vmem [#allocation7], %s322
        %p324 = pneg %p143
        %p325 = pneg %p140
        %p326 = pneg %p171
        %p327 = pneg %p168
        %s328 = smul.u32 14, %s27
        %p329 = scmp.lt.s32.totalorder %s26, 0
        %s330 = scalar_select %p329, %s26, 0
        %p331 = scmp.lt.s32.totalorder %s328, 97
        %s332 = scalar_select %p331, %s328, 97
        %s333 = smul.addr %s330, 98
        %s334 = sadd.s32 %s332, %s333
        %s335 = smul.addr %s334, 4
        %s336 = scalar_lea.vmem %s4, %s335
        %p337 = scmp.lt.s32.totalorder %s26, 0
        %s338 = scalar_select %p337, %s26, 0
        %p339 = scmp.lt.s32.totalorder %s28, 0
        %s340 = scalar_select %p339, %s28, 0
        %s341 = sadd.s32 %s340, %s338
        %s342 = smul.addr %s341, 4
        %s343 = scalar_lea.vmem %s0, %s342
        %s344 = smul.u32 16, %s28
        %s345 = smul.u32 14, %s27
        %s346 = smul.u32 14, %s27
        %s347 = smul.u32 14, %s27
        %s348 = smul.u32 14, %s27
        %p349 = scmp.lt.s32.totalorder %s26, 0
        %s350 = scalar_select %p349, %s26, 0
        %p351 = scmp.lt.s32.totalorder %s348, 97
        %s352 = scalar_select %p351, %s348, 97
        %s353 = smul.addr %s350, 98
        %s354 = sadd.s32 %s352, %s353
        %s355 = smul.addr %s354, 4
        %s356 = scalar_lea.vmem %s4, %s355
        %s357 = smul.u32 14, %s27
        %p359 = scmp.eq.s32.totalorder %s28, 0
        // Predicated region
        $region49: #{netG_28_forward.3} parent=35 // pred_check
          %p360 = pneg %p359
        $region50: #{netG_28_forward.3} parent=35 // pred_check_branch
          %362 = sbr.rel (%p360) target = $region52
        $region51: #{netG_28_forward.3} parent=35 // pred_region
          %363 = vst [vmem:[#allocation2] sm:$0xff] 0.0
          %364 = vst [vmem:[#allocation2 + $0x8] sm:$0xff] 0.0
          %365 = vst [vmem:[#allocation2 + $0x10] sm:$0xff] 0.0
          %366 = vst [vmem:[#allocation2 + $0x18] sm:$0xff] 0.0
          %367 = vst [vmem:[#allocation2 + $0x20] sm:$0xff] 0.0
          %368 = vst [vmem:[#allocation2 + $0x28] sm:$0xff] 0.0
          %369 = vst [vmem:[#allocation2 + $0x30] sm:$0xff] 0.0
          %370 = vst [vmem:[#allocation2 + $0x38] sm:$0xff] 0.0
          %371 = vst [vmem:[#allocation2 + $0x40] sm:$0xff] 0.0
          %372 = vst [vmem:[#allocation2 + $0x48] sm:$0xff] 0.0
          %373 = vst [vmem:[#allocation2 + $0x50] sm:$0xff] 0.0
          %374 = vst [vmem:[#allocation2 + $0x58] sm:$0xff] 0.0
          %375 = vst [vmem:[#allocation2 + $0x60] sm:$0xff] 0.0
          %376 = vst [vmem:[#allocation2 + $0x68] sm:$0xff] 0.0
        $region52: #{netG_28_forward.3} parent=35 // pred_fallthru
          _
        %v377 = vld [vmem:[#allocation2] sm:$0xff]
        %v378 = vld [vmem:[#allocation2 + $0x8] sm:$0xff]
        %v379 = vld [vmem:[#allocation2 + $0x10] sm:$0xff]
        %v380 = vld [vmem:[#allocation2 + $0x18] sm:$0xff]
        %v381 = vld [vmem:[#allocation2 + $0x20] sm:$0xff]
        %v382 = vld [vmem:[#allocation2 + $0x28] sm:$0xff]
        %v383 = vld [vmem:[#allocation2 + $0x30] sm:$0xff]
        %v384 = vld [vmem:[#allocation2 + $0x38] sm:$0xff]
        %v385 = vld [vmem:[#allocation2 + $0x40] sm:$0xff]
        %v386 = vld [vmem:[#allocation2 + $0x48] sm:$0xff]
        %v387 = vld [vmem:[#allocation2 + $0x50] sm:$0xff]
        %v388 = vld [vmem:[#allocation2 + $0x58] sm:$0xff]
        %v389 = vld [vmem:[#allocation2 + $0x60] sm:$0xff]
        %v390 = vld [vmem:[#allocation2 + $0x68] sm:$0xff]
        %v391 = vld [vmem:[%s343] sm:$0xf]
        %v392 = vld [vmem:[%s273] sm:$0xff]
        %v393 = vld [vmem:[%s273 + $0x8] sm:$0xff]
        %v394 = vld [vmem:[%s273 + $0x10] sm:$0xff]
        %v395 = vld [vmem:[%s273 + $0x18] sm:$0xff]
        %v396 = vld [vmem:[%s273 + $0x20] sm:$0xff]
        %v397 = vld [vmem:[%s273 + $0x28] sm:$0xff]
        %v398 = vld [vmem:[%s273 + $0x30] sm:$0xff]
        %v399 = vld [vmem:[%s273 + $0x38] sm:$0xff]
        %v400 = vld [vmem:[%s273 + $0x40] sm:$0xff]
        %v401 = vld [vmem:[%s273 + $0x48] sm:$0xff]
        %v402 = vld [vmem:[%s273 + $0x50] sm:$0xff]
        %v403 = vld [vmem:[%s273 + $0x58] sm:$0xff]
        %v404 = vld [vmem:[%s273 + $0x60] sm:$0xff]
        %v405 = vld [vmem:[%s273 + $0x68] sm:$0xff]
        %v406 = vld [vmem:[%s273 + $0x70] sm:$0xff]
        %v407 = vld [vmem:[%s273 + $0x78] sm:$0xff]
        %v408 = vld [vmem:[%s273 + $0x80] sm:$0xff]
        %v409 = vld [vmem:[%s273 + $0x88] sm:$0xff]
        %v410 = vld [vmem:[%s273 + $0x90] sm:$0xff]
        %v411 = vld [vmem:[%s273 + $0x98] sm:$0xff]
        %v412 = vld [vmem:[%s273 + $0xa0] sm:$0xff]
        %v413 = vld [vmem:[%s273 + $0xa8] sm:$0xff]
        %v414 = vld [vmem:[%s273 + $0xb0] sm:$0xff]
        %v415 = vld [vmem:[%s273 + $0xb8] sm:$0xff]
        %v416 = vld [vmem:[%s273 + $0xc0] sm:$0xff]
        %v417 = vld [vmem:[%s273 + $0xc8] sm:$0xff]
        %v418 = vld [vmem:[%s273 + $0xd0] sm:$0xff]
        %v419 = vld [vmem:[%s273 + $0xd8] sm:$0xff]
        %v420 = vld [vmem:[%s273 + $0xe0] sm:$0xff]
        %v421 = vld [vmem:[%s273 + $0xe8] sm:$0xff]
        %v422 = vld [vmem:[%s273 + $0xf0] sm:$0xff]
        %v423 = vld [vmem:[%s273 + $0xf8] sm:$0xff]
        %v424 = vld [vmem:[%s273 + $0x100] sm:$0xff]
        %v425 = vld [vmem:[%s273 + $0x108] sm:$0xff]
        %v426 = vld [vmem:[%s273 + $0x110] sm:$0xff]
        %v427 = vld [vmem:[%s273 + $0x118] sm:$0xff]
        %v428 = vld [vmem:[%s273 + $0x120] sm:$0xff]
        %v429 = vld [vmem:[%s273 + $0x128] sm:$0xff]
        %v430 = vld [vmem:[%s273 + $0x130] sm:$0xff]
        %v431 = vld [vmem:[%s273 + $0x138] sm:$0xff]
        %v432 = vld [vmem:[%s273 + $0x140] sm:$0xff]
        %v433 = vld [vmem:[%s273 + $0x148] sm:$0xff]
        %v434 = vld [vmem:[%s273 + $0x150] sm:$0xff]
        %v435 = vld [vmem:[%s273 + $0x158] sm:$0xff]
        %v436 = vld [vmem:[%s273 + $0x160] sm:$0xff]
        %v437 = vld [vmem:[%s273 + $0x168] sm:$0xff]
        %v438 = vld [vmem:[%s273 + $0x170] sm:$0xff]
        %v439 = vld [vmem:[%s273 + $0x178] sm:$0xff]
        %v440 = vld [vmem:[%s273 + $0x180] sm:$0xff]
        %v441 = vld [vmem:[%s273 + $0x188] sm:$0xff]
        %v442 = vld [vmem:[%s273 + $0x190] sm:$0xff]
        %v443 = vld [vmem:[%s273 + $0x198] sm:$0xff]
        %v444 = vld [vmem:[%s273 + $0x1a0] sm:$0xff]
        %v445 = vld [vmem:[%s273 + $0x1a8] sm:$0xff]
        %v446 = vld [vmem:[%s273 + $0x1b0] sm:$0xff]
        %v447 = vld [vmem:[%s273 + $0x1b8] sm:$0xff]
        %v448 = vld [vmem:[%s273 + $0x1c0] sm:$0xff]
        %v449 = vld [vmem:[%s273 + $0x1c8] sm:$0xff]
        %v450 = vld [vmem:[%s273 + $0x1d0] sm:$0xff]
        %v451 = vld [vmem:[%s273 + $0x1d8] sm:$0xff]
        %v452 = vld [vmem:[%s273 + $0x1e0] sm:$0xff]
        %v453 = vld [vmem:[%s273 + $0x1e8] sm:$0xff]
        %v454 = vld [vmem:[%s273 + $0x1f0] sm:$0xff]
        %v455 = vld [vmem:[%s273 + $0x1f8] sm:$0xff]
        %v456 = vld [vmem:[%s273 + $0x200] sm:$0xff]
        %v457 = vld [vmem:[%s273 + $0x208] sm:$0xff]
        %v458 = vld [vmem:[%s273 + $0x210] sm:$0xff]
        %v459 = vld [vmem:[%s273 + $0x218] sm:$0xff]
        %v460 = vld [vmem:[%s273 + $0x220] sm:$0xff]
        %v461 = vld [vmem:[%s273 + $0x228] sm:$0xff]
        %v462 = vld [vmem:[%s273 + $0x230] sm:$0xff]
        %v463 = vld [vmem:[%s273 + $0x238] sm:$0xff]
        %v464 = vld [vmem:[%s273 + $0x240] sm:$0xff]
        %v465 = vld [vmem:[%s273 + $0x248] sm:$0xff]
        %v466 = vld [vmem:[%s273 + $0x250] sm:$0xff]
        %v467 = vld [vmem:[%s273 + $0x258] sm:$0xff]
        %v468 = vld [vmem:[%s273 + $0x260] sm:$0xff]
        %v469 = vld [vmem:[%s273 + $0x268] sm:$0xff]
        %v470 = vld [vmem:[%s273 + $0x270] sm:$0xff]
        %v471 = vld [vmem:[%s273 + $0x278] sm:$0xff]
        %v472 = vld [vmem:[%s273 + $0x280] sm:$0xff]
        %v473 = vld [vmem:[%s273 + $0x288] sm:$0xff]
        %v474 = vld [vmem:[%s273 + $0x290] sm:$0xff]
        %v475 = vld [vmem:[%s273 + $0x298] sm:$0xff]
        %v476 = vld [vmem:[%s273 + $0x2a0] sm:$0xff]
        %v477 = vld [vmem:[%s273 + $0x2a8] sm:$0xff]
        %v478 = vld [vmem:[%s273 + $0x2b0] sm:$0xff]
        %v479 = vld [vmem:[%s273 + $0x2b8] sm:$0xff]
        %v480 = vld [vmem:[%s273 + $0x2c0] sm:$0xff]
        %v481 = vld [vmem:[%s273 + $0x2c8] sm:$0xff]
        %v482 = vld [vmem:[%s273 + $0x2d0] sm:$0xff]
        %v483 = vld [vmem:[%s273 + $0x2d8] sm:$0xff]
        %v484 = vld [vmem:[%s273 + $0x2e0] sm:$0xff]
        %v485 = vld [vmem:[%s273 + $0x2e8] sm:$0xff]
        %v486 = vld [vmem:[%s273 + $0x2f0] sm:$0xff]
        %v487 = vld [vmem:[%s273 + $0x2f8] sm:$0xff]
        %v488 = vld [vmem:[%s273 + $0x300] sm:$0xff]
        %v489 = vld [vmem:[%s273 + $0x308] sm:$0xff]
        %v490 = vld [vmem:[%s273 + $0x310] sm:$0xff]
        %v491 = vld [vmem:[%s273 + $0x318] sm:$0xff]
        %v492 = vld [vmem:[%s273 + $0x320] sm:$0xff]
        %v493 = vld [vmem:[%s273 + $0x328] sm:$0xff]
        %v494 = vld [vmem:[%s273 + $0x330] sm:$0xff]
        %v495 = vld [vmem:[%s273 + $0x338] sm:$0xff]
        %v496 = vld [vmem:[%s273 + $0x340] sm:$0xff]
        %v497 = vld [vmem:[%s273 + $0x348] sm:$0xff]
        %v498 = vld [vmem:[%s273 + $0x350] sm:$0xff]
        %v499 = vld [vmem:[%s273 + $0x358] sm:$0xff]
        %v500 = vld [vmem:[%s273 + $0x360] sm:$0xff]
        %v501 = vld [vmem:[%s273 + $0x368] sm:$0xff]
        %v502 = vld [vmem:[%s273 + $0x370] sm:$0xff]
        %v503 = vld [vmem:[%s273 + $0x378] sm:$0xff]
        %v616 = vunpack.c.l.b16 %v392
        %v617 = vunpack.c.h.b16 %v392
        %v618 = vunpack.c.l.b16 %v393
        %v619 = vunpack.c.h.b16 %v393
        %v620 = vunpack.c.l.b16 %v394
        %v621 = vunpack.c.h.b16 %v394
        %v622 = vunpack.c.l.b16 %v395
        %v623 = vunpack.c.h.b16 %v395
        %v624 = vunpack.c.l.b16 %v396
        %v625 = vunpack.c.h.b16 %v396
        %v626 = vunpack.c.l.b16 %v397
        %v627 = vunpack.c.h.b16 %v397
        %v628 = vunpack.c.l.b16 %v398
        %v629 = vunpack.c.h.b16 %v398
        %v630 = vunpack.c.l.b16 %v399
        %v631 = vunpack.c.h.b16 %v399
        %v632 = vunpack.c.l.b16 %v400
        %v633 = vunpack.c.h.b16 %v400
        %v634 = vunpack.c.l.b16 %v401
        %v635 = vunpack.c.h.b16 %v401
        %v636 = vunpack.c.l.b16 %v402
        %v637 = vunpack.c.h.b16 %v402
        %v638 = vunpack.c.l.b16 %v403
        %v639 = vunpack.c.h.b16 %v403
        %v640 = vunpack.c.l.b16 %v404
        %v641 = vunpack.c.h.b16 %v404
        %v642 = vunpack.c.l.b16 %v405
        %v643 = vunpack.c.h.b16 %v405
        %v644 = vunpack.c.l.b16 %v406
        %v645 = vunpack.c.h.b16 %v406
        %v646 = vunpack.c.l.b16 %v407
        %v647 = vunpack.c.h.b16 %v407
        %v648 = vunpack.c.l.b16 %v408
        %v649 = vunpack.c.h.b16 %v408
        %v650 = vunpack.c.l.b16 %v409
        %v651 = vunpack.c.h.b16 %v409
        %v652 = vunpack.c.l.b16 %v410
        %v653 = vunpack.c.h.b16 %v410
        %v654 = vunpack.c.l.b16 %v411
        %v655 = vunpack.c.h.b16 %v411
        %v656 = vunpack.c.l.b16 %v412
        %v657 = vunpack.c.h.b16 %v412
        %v658 = vunpack.c.l.b16 %v413
        %v659 = vunpack.c.h.b16 %v413
        %v660 = vunpack.c.l.b16 %v414
        %v661 = vunpack.c.h.b16 %v414
        %v662 = vunpack.c.l.b16 %v415
        %v663 = vunpack.c.h.b16 %v415
        %v664 = vunpack.c.l.b16 %v416
        %v665 = vunpack.c.h.b16 %v416
        %v666 = vunpack.c.l.b16 %v417
        %v667 = vunpack.c.h.b16 %v417
        %v668 = vunpack.c.l.b16 %v418
        %v669 = vunpack.c.h.b16 %v418
        %v670 = vunpack.c.l.b16 %v419
        %v671 = vunpack.c.h.b16 %v419
        %v672 = vunpack.c.l.b16 %v420
        %v673 = vunpack.c.h.b16 %v420
        %v674 = vunpack.c.l.b16 %v421
        %v675 = vunpack.c.h.b16 %v421
        %v676 = vunpack.c.l.b16 %v422
        %v677 = vunpack.c.h.b16 %v422
        %v678 = vunpack.c.l.b16 %v423
        %v679 = vunpack.c.h.b16 %v423
        %v680 = vunpack.c.l.b16 %v424
        %v681 = vunpack.c.h.b16 %v424
        %v682 = vunpack.c.l.b16 %v425
        %v683 = vunpack.c.h.b16 %v425
        %v684 = vunpack.c.l.b16 %v426
        %v685 = vunpack.c.h.b16 %v426
        %v686 = vunpack.c.l.b16 %v427
        %v687 = vunpack.c.h.b16 %v427
        %v688 = vunpack.c.l.b16 %v428
        %v689 = vunpack.c.h.b16 %v428
        %v690 = vunpack.c.l.b16 %v429
        %v691 = vunpack.c.h.b16 %v429
        %v692 = vunpack.c.l.b16 %v430
        %v693 = vunpack.c.h.b16 %v430
        %v694 = vunpack.c.l.b16 %v431
        %v695 = vunpack.c.h.b16 %v431
        %v696 = vunpack.c.l.b16 %v432
        %v697 = vunpack.c.h.b16 %v432
        %v698 = vunpack.c.l.b16 %v433
        %v699 = vunpack.c.h.b16 %v433
        %v700 = vunpack.c.l.b16 %v434
        %v701 = vunpack.c.h.b16 %v434
        %v702 = vunpack.c.l.b16 %v435
        %v703 = vunpack.c.h.b16 %v435
        %v704 = vunpack.c.l.b16 %v436
        %v705 = vunpack.c.h.b16 %v436
        %v706 = vunpack.c.l.b16 %v437
        %v707 = vunpack.c.h.b16 %v437
        %v708 = vunpack.c.l.b16 %v438
        %v709 = vunpack.c.h.b16 %v438
        %v710 = vunpack.c.l.b16 %v439
        %v711 = vunpack.c.h.b16 %v439
        %v712 = vunpack.c.l.b16 %v440
        %v713 = vunpack.c.h.b16 %v440
        %v714 = vunpack.c.l.b16 %v441
        %v715 = vunpack.c.h.b16 %v441
        %v716 = vunpack.c.l.b16 %v442
        %v717 = vunpack.c.h.b16 %v442
        %v718 = vunpack.c.l.b16 %v443
        %v719 = vunpack.c.h.b16 %v443
        %v720 = vunpack.c.l.b16 %v444
        %v721 = vunpack.c.h.b16 %v444
        %v722 = vunpack.c.l.b16 %v445
        %v723 = vunpack.c.h.b16 %v445
        %v724 = vunpack.c.l.b16 %v446
        %v725 = vunpack.c.h.b16 %v446
        %v726 = vunpack.c.l.b16 %v447
        %v727 = vunpack.c.h.b16 %v447
        %v728 = vunpack.c.l.b16 %v448
        %v729 = vunpack.c.h.b16 %v448
        %v730 = vunpack.c.l.b16 %v449
        %v731 = vunpack.c.h.b16 %v449
        %v732 = vunpack.c.l.b16 %v450
        %v733 = vunpack.c.h.b16 %v450
        %v734 = vunpack.c.l.b16 %v451
        %v735 = vunpack.c.h.b16 %v451
        %v736 = vunpack.c.l.b16 %v452
        %v737 = vunpack.c.h.b16 %v452
        %v738 = vunpack.c.l.b16 %v453
        %v739 = vunpack.c.h.b16 %v453
        %v740 = vunpack.c.l.b16 %v454
        %v741 = vunpack.c.h.b16 %v454
        %v742 = vunpack.c.l.b16 %v455
        %v743 = vunpack.c.h.b16 %v455
        %v744 = vunpack.c.l.b16 %v456
        %v745 = vunpack.c.h.b16 %v456
        %v746 = vunpack.c.l.b16 %v457
        %v747 = vunpack.c.h.b16 %v457
        %v748 = vunpack.c.l.b16 %v458
        %v749 = vunpack.c.h.b16 %v458
        %v750 = vunpack.c.l.b16 %v459
        %v751 = vunpack.c.h.b16 %v459
        %v752 = vunpack.c.l.b16 %v460
        %v753 = vunpack.c.h.b16 %v460
        %v754 = vunpack.c.l.b16 %v461
        %v755 = vunpack.c.h.b16 %v461
        %v756 = vunpack.c.l.b16 %v462
        %v757 = vunpack.c.h.b16 %v462
        %v758 = vunpack.c.l.b16 %v463
        %v759 = vunpack.c.h.b16 %v463
        %v760 = vunpack.c.l.b16 %v464
        %v761 = vunpack.c.h.b16 %v464
        %v762 = vunpack.c.l.b16 %v465
        %v763 = vunpack.c.h.b16 %v465
        %v764 = vunpack.c.l.b16 %v466
        %v765 = vunpack.c.h.b16 %v466
        %v766 = vunpack.c.l.b16 %v467
        %v767 = vunpack.c.h.b16 %v467
        %v768 = vunpack.c.l.b16 %v468
        %v769 = vunpack.c.h.b16 %v468
        %v770 = vunpack.c.l.b16 %v469
        %v771 = vunpack.c.h.b16 %v469
        %v772 = vunpack.c.l.b16 %v470
        %v773 = vunpack.c.h.b16 %v470
        %v774 = vunpack.c.l.b16 %v471
        %v775 = vunpack.c.h.b16 %v471
        %v776 = vunpack.c.l.b16 %v472
        %v777 = vunpack.c.h.b16 %v472
        %v778 = vunpack.c.l.b16 %v473
        %v779 = vunpack.c.h.b16 %v473
        %v780 = vunpack.c.l.b16 %v474
        %v781 = vunpack.c.h.b16 %v474
        %v782 = vunpack.c.l.b16 %v475
        %v783 = vunpack.c.h.b16 %v475
        %v784 = vunpack.c.l.b16 %v476
        %v785 = vunpack.c.h.b16 %v476
        %v786 = vunpack.c.l.b16 %v477
        %v787 = vunpack.c.h.b16 %v477
        %v788 = vunpack.c.l.b16 %v478
        %v789 = vunpack.c.h.b16 %v478
        %v790 = vunpack.c.l.b16 %v479
        %v791 = vunpack.c.h.b16 %v479
        %v792 = vunpack.c.l.b16 %v480
        %v793 = vunpack.c.h.b16 %v480
        %v794 = vunpack.c.l.b16 %v481
        %v795 = vunpack.c.h.b16 %v481
        %v796 = vunpack.c.l.b16 %v482
        %v797 = vunpack.c.h.b16 %v482
        %v798 = vunpack.c.l.b16 %v483
        %v799 = vunpack.c.h.b16 %v483
        %v800 = vunpack.c.l.b16 %v484
        %v801 = vunpack.c.h.b16 %v484
        %v802 = vunpack.c.l.b16 %v485
        %v803 = vunpack.c.h.b16 %v485
        %v804 = vunpack.c.l.b16 %v486
        %v805 = vunpack.c.h.b16 %v486
        %v806 = vunpack.c.l.b16 %v487
        %v807 = vunpack.c.h.b16 %v487
        %v808 = vunpack.c.l.b16 %v488
        %v809 = vunpack.c.h.b16 %v488
        %v810 = vunpack.c.l.b16 %v489
        %v811 = vunpack.c.h.b16 %v489
        %v812 = vunpack.c.l.b16 %v490
        %v813 = vunpack.c.h.b16 %v490
        %v814 = vunpack.c.l.b16 %v491
        %v815 = vunpack.c.h.b16 %v491
        %v816 = vunpack.c.l.b16 %v492
        %v817 = vunpack.c.h.b16 %v492
        %v818 = vunpack.c.l.b16 %v493
        %v819 = vunpack.c.h.b16 %v493
        %v820 = vunpack.c.l.b16 %v494
        %v821 = vunpack.c.h.b16 %v494
        %v822 = vunpack.c.l.b16 %v495
        %v823 = vunpack.c.h.b16 %v495
        %v824 = vunpack.c.l.b16 %v496
        %v825 = vunpack.c.h.b16 %v496
        %v826 = vunpack.c.l.b16 %v497
        %v827 = vunpack.c.h.b16 %v497
        %v828 = vunpack.c.l.b16 %v498
        %v829 = vunpack.c.h.b16 %v498
        %v830 = vunpack.c.l.b16 %v499
        %v831 = vunpack.c.h.b16 %v499
        %v832 = vunpack.c.l.b16 %v500
        %v833 = vunpack.c.h.b16 %v500
        %v834 = vunpack.c.l.b16 %v501
        %v835 = vunpack.c.h.b16 %v501
        %v836 = vunpack.c.l.b16 %v502
        %v837 = vunpack.c.h.b16 %v502
        %v838 = vunpack.c.l.b16 %v503
        %v839 = vunpack.c.h.b16 %v503
        %v840 = vpack.c.b16 %v630, %v616
        %v841 = vpack.c.b16 %v631, %v617
        %v842 = vpack.c.b16 %v632, %v618
        %v843 = vpack.c.b16 %v633, %v619
        %v844 = vpack.c.b16 %v634, %v620
        %v845 = vpack.c.b16 %v635, %v621
        %v846 = vpack.c.b16 %v636, %v622
        %v847 = vpack.c.b16 %v637, %v623
        %v848 = vpack.c.b16 %v638, %v624
        %v849 = vpack.c.b16 %v639, %v625
        %v850 = vpack.c.b16 %v640, %v626
        %v851 = vpack.c.b16 %v641, %v627
        %v852 = vpack.c.b16 %v642, %v628
        %v853 = vpack.c.b16 %v643, %v629
        %v854 = vpack.c.b16 %v658, %v644
        %v855 = vpack.c.b16 %v659, %v645
        %v856 = vpack.c.b16 %v660, %v646
        %v857 = vpack.c.b16 %v661, %v647
        %v858 = vpack.c.b16 %v662, %v648
        %v859 = vpack.c.b16 %v663, %v649
        %v860 = vpack.c.b16 %v664, %v650
        %v861 = vpack.c.b16 %v665, %v651
        %v862 = vpack.c.b16 %v666, %v652
        %v863 = vpack.c.b16 %v667, %v653
        %v864 = vpack.c.b16 %v668, %v654
        %v865 = vpack.c.b16 %v669, %v655
        %v866 = vpack.c.b16 %v670, %v656
        %v867 = vpack.c.b16 %v671, %v657
        %v868 = vpack.c.b16 %v686, %v672
        %v869 = vpack.c.b16 %v687, %v673
        %v870 = vpack.c.b16 %v688, %v674
        %v871 = vpack.c.b16 %v689, %v675
        %v872 = vpack.c.b16 %v690, %v676
        %v873 = vpack.c.b16 %v691, %v677
        %v874 = vpack.c.b16 %v692, %v678
        %v875 = vpack.c.b16 %v693, %v679
        %v876 = vpack.c.b16 %v694, %v680
        %v877 = vpack.c.b16 %v695, %v681
        %v878 = vpack.c.b16 %v696, %v682
        %v879 = vpack.c.b16 %v697, %v683
        %v880 = vpack.c.b16 %v698, %v684
        %v881 = vpack.c.b16 %v699, %v685
        %v882 = vpack.c.b16 %v714, %v700
        %v883 = vpack.c.b16 %v715, %v701
        %v884 = vpack.c.b16 %v716, %v702
        %v885 = vpack.c.b16 %v717, %v703
        %v886 = vpack.c.b16 %v718, %v704
        %v887 = vpack.c.b16 %v719, %v705
        %v888 = vpack.c.b16 %v720, %v706
        %v889 = vpack.c.b16 %v721, %v707
        %v890 = vpack.c.b16 %v722, %v708
        %v891 = vpack.c.b16 %v723, %v709
        %v892 = vpack.c.b16 %v724, %v710
        %v893 = vpack.c.b16 %v725, %v711
        %v894 = vpack.c.b16 %v726, %v712
        %v895 = vpack.c.b16 %v727, %v713
        %v896 = vpack.c.b16 %v742, %v728
        %v897 = vpack.c.b16 %v743, %v729
        %v898 = vpack.c.b16 %v744, %v730
        %v899 = vpack.c.b16 %v745, %v731
        %v900 = vpack.c.b16 %v746, %v732
        %v901 = vpack.c.b16 %v747, %v733
        %v902 = vpack.c.b16 %v748, %v734
        %v903 = vpack.c.b16 %v749, %v735
        %v904 = vpack.c.b16 %v750, %v736
        %v905 = vpack.c.b16 %v751, %v737
        %v906 = vpack.c.b16 %v752, %v738
        %v907 = vpack.c.b16 %v753, %v739
        %v908 = vpack.c.b16 %v754, %v740
        %v909 = vpack.c.b16 %v755, %v741
        %v910 = vpack.c.b16 %v770, %v756
        %v911 = vpack.c.b16 %v771, %v757
        %v912 = vpack.c.b16 %v772, %v758
        %v913 = vpack.c.b16 %v773, %v759
        %v914 = vpack.c.b16 %v774, %v760
        %v915 = vpack.c.b16 %v775, %v761
        %v916 = vpack.c.b16 %v776, %v762
        %v917 = vpack.c.b16 %v777, %v763
        %v918 = vpack.c.b16 %v778, %v764
        %v919 = vpack.c.b16 %v779, %v765
        %v920 = vpack.c.b16 %v780, %v766
        %v921 = vpack.c.b16 %v781, %v767
        %v922 = vpack.c.b16 %v782, %v768
        %v923 = vpack.c.b16 %v783, %v769
        %v924 = vpack.c.b16 %v798, %v784
        %v925 = vpack.c.b16 %v799, %v785
        %v926 = vpack.c.b16 %v800, %v786
        %v927 = vpack.c.b16 %v801, %v787
        %v928 = vpack.c.b16 %v802, %v788
        %v929 = vpack.c.b16 %v803, %v789
        %v930 = vpack.c.b16 %v804, %v790
        %v931 = vpack.c.b16 %v805, %v791
        %v932 = vpack.c.b16 %v806, %v792
        %v933 = vpack.c.b16 %v807, %v793
        %v934 = vpack.c.b16 %v808, %v794
        %v935 = vpack.c.b16 %v809, %v795
        %v936 = vpack.c.b16 %v810, %v796
        %v937 = vpack.c.b16 %v811, %v797
        %v938 = vpack.c.b16 %v826, %v812
        %v939 = vpack.c.b16 %v827, %v813
        %v940 = vpack.c.b16 %v828, %v814
        %v941 = vpack.c.b16 %v829, %v815
        %v942 = vpack.c.b16 %v830, %v816
        %v943 = vpack.c.b16 %v831, %v817
        %v944 = vpack.c.b16 %v832, %v818
        %v945 = vpack.c.b16 %v833, %v819
        %v946 = vpack.c.b16 %v834, %v820
        %v947 = vpack.c.b16 %v835, %v821
        %v948 = vpack.c.b16 %v836, %v822
        %v949 = vpack.c.b16 %v837, %v823
        %v950 = vpack.c.b16 %v838, %v824
        %v951 = vpack.c.b16 %v839, %v825
        %1064 = vmatprep.subr.bf16.mxu0 %v841
        %1065 = vmatpush1.bf16.msra.mxu0 %v840
        %1066 = vmatprep.subr.bf16.mxu0 %v855
        %1067 = vmatpush1.bf16.msra.mxu0 %v854
        %1068 = vmatprep.subr.bf16.mxu0 %v869
        %1069 = vmatpush1.bf16.msra.mxu0 %v868
        %1070 = vmatprep.subr.bf16.mxu0 %v883
        %1071 = vmatpush1.bf16.msra.mxu0 %v882
        %1072 = vmatprep.subr.bf16.mxu0 %v897
        %1073 = vmatpush1.bf16.msra.mxu0 %v896
        %1074 = vmatprep.subr.bf16.mxu0 %v911
        %1075 = vmatpush1.bf16.msra.mxu0 %v910
        %1076 = vmatprep.subr.bf16.mxu0 %v925
        %1077 = vmatpush1.bf16.msra.mxu0 %v924
        %1078 = vmatprep.subr.bf16.mxu0 %v939
        %1079 = vmatpush1.bf16.msra.mxu0 %v938
        %1080 = vmatprep.subr.bf16.mxu0 0
        %1081 = vmatpush1.bf16.msra.mxu0 0
        %1082 = vmatprep.subr.bf16.mxu0 0
        %1083 = vmatpush1.bf16.msra.mxu0 0
        %1084 = vmatprep.subr.bf16.mxu0 0
        %1085 = vmatpush1.bf16.msra.mxu0 0
        %1086 = vmatprep.subr.bf16.mxu0 0
        %1087 = vmatpush1.bf16.msra.mxu0 0
        %1088 = vmatprep.subr.bf16.mxu0 0
        %1089 = vmatpush1.bf16.msra.mxu0 0
        %1090 = vmatprep.subr.bf16.mxu0 0
        %1091 = vmatpush1.bf16.msra.mxu0 0
        %1092 = vmatprep.subr.bf16.mxu0 0
        %1093 = vmatpush1.bf16.msra.mxu0 0
        %1094 = vmatprep.subr.bf16.mxu0 0
        %1095 = vmatpush1.bf16.msra.mxu0 0
        %1096 = vmatprep.mubr.bf16.mxu0 0
        %1097 = vmatmul.mubr.bf16.gmra.mrb[0].mxu0 %v391
        %v1098 = vpop.f32.mrb[0].mxu0
        %v1099 = vadd.f32 0.0, %v1098
        %v1100 = vpop.f32.mrb[0].mxu0
        %v1101 = vadd.f32 0.0, %v1100
        %v1102 = vpop.f32.mrb[0].mxu0
        %v1103 = vpop.f32.mrb[0].mxu0
        %1104 = vdwg.mxu0
        %1105 = vmatprep.subr.bf16.mxu0 %v843
        %1106 = vmatpush1.bf16.msra.mxu0 %v842
        %1107 = vmatprep.subr.bf16.mxu0 %v857
        %1108 = vmatpush1.bf16.msra.mxu0 %v856
        %1109 = vmatprep.subr.bf16.mxu0 %v871
        %1110 = vmatpush1.bf16.msra.mxu0 %v870
        %1111 = vmatprep.subr.bf16.mxu0 %v885
        %1112 = vmatpush1.bf16.msra.mxu0 %v884
        %1113 = vmatprep.subr.bf16.mxu0 %v899
        %1114 = vmatpush1.bf16.msra.mxu0 %v898
        %1115 = vmatprep.subr.bf16.mxu0 %v913
        %1116 = vmatpush1.bf16.msra.mxu0 %v912
        %1117 = vmatprep.subr.bf16.mxu0 %v927
        %1118 = vmatpush1.bf16.msra.mxu0 %v926
        %1119 = vmatprep.subr.bf16.mxu0 %v941
        %1120 = vmatpush1.bf16.msra.mxu0 %v940
        %1121 = vmatprep.subr.bf16.mxu0 0
        %1122 = vmatpush1.bf16.msra.mxu0 0
        %1123 = vmatprep.subr.bf16.mxu0 0
        %1124 = vmatpush1.bf16.msra.mxu0 0
        %1125 = vmatprep.subr.bf16.mxu0 0
        %1126 = vmatpush1.bf16.msra.mxu0 0
        %1127 = vmatprep.subr.bf16.mxu0 0
        %1128 = vmatpush1.bf16.msra.mxu0 0
        %1129 = vmatprep.subr.bf16.mxu0 0
        %1130 = vmatpush1.bf16.msra.mxu0 0
        %1131 = vmatprep.subr.bf16.mxu0 0
        %1132 = vmatpush1.bf16.msra.mxu0 0
        %1133 = vmatprep.subr.bf16.mxu0 0
        %1134 = vmatpush1.bf16.msra.mxu0 0
        %1135 = vmatprep.subr.bf16.mxu0 0
        %1136 = vmatpush1.bf16.msra.mxu0 0
        %1137 = vmatprep.mubr.bf16.mxu0 0
        %1138 = vmatmul.mubr.bf16.gmra.mrb[0].mxu0 %v391
        %v1139 = vpop.f32.mrb[0].mxu0
        %v1140 = vadd.f32 0.0, %v1139
        %v1141 = vpop.f32.mrb[0].mxu0
        %v1142 = vadd.f32 0.0, %v1141
        %v1143 = vpop.f32.mrb[0].mxu0
        %v1144 = vpop.f32.mrb[0].mxu0
        %1145 = vdwg.mxu0
        %1146 = vmatprep.subr.bf16.mxu0 %v845
        %1147 = vmatpush1.bf16.msra.mxu0 %v844
        %1148 = vmatprep.subr.bf16.mxu0 %v859
        %1149 = vmatpush1.bf16.msra.mxu0 %v858
        %1150 = vmatprep.subr.bf16.mxu0 %v873
        %1151 = vmatpush1.bf16.msra.mxu0 %v872
        %1152 = vmatprep.subr.bf16.mxu0 %v887
        %1153 = vmatpush1.bf16.msra.mxu0 %v886
        %1154 = vmatprep.subr.bf16.mxu0 %v901
        %1155 = vmatpush1.bf16.msra.mxu0 %v900
        %1156 = vmatprep.subr.bf16.mxu0 %v915
        %1157 = vmatpush1.bf16.msra.mxu0 %v914
        %1158 = vmatprep.subr.bf16.mxu0 %v929
        %1159 = vmatpush1.bf16.msra.mxu0 %v928
        %1160 = vmatprep.subr.bf16.mxu0 %v943
        %1161 = vmatpush1.bf16.msra.mxu0 %v942
        %1162 = vmatprep.subr.bf16.mxu0 0
        %1163 = vmatpush1.bf16.msra.mxu0 0
        %1164 = vmatprep.subr.bf16.mxu0 0
        %1165 = vmatpush1.bf16.msra.mxu0 0
        %1166 = vmatprep.subr.bf16.mxu0 0
        %1167 = vmatpush1.bf16.msra.mxu0 0
        %1168 = vmatprep.subr.bf16.mxu0 0
        %1169 = vmatpush1.bf16.msra.mxu0 0
        %1170 = vmatprep.subr.bf16.mxu0 0
        %1171 = vmatpush1.bf16.msra.mxu0 0
        %1172 = vmatprep.subr.bf16.mxu0 0
        %1173 = vmatpush1.bf16.msra.mxu0 0
        %1174 = vmatprep.subr.bf16.mxu0 0
        %1175 = vmatpush1.bf16.msra.mxu0 0
        %1176 = vmatprep.subr.bf16.mxu0 0
        %1177 = vmatpush1.bf16.msra.mxu0 0
        %1178 = vmatprep.mubr.bf16.mxu0 0
        %1179 = vmatmul.mubr.bf16.gmra.mrb[0].mxu0 %v391
        %v1180 = vpop.f32.mrb[0].mxu0
        %v1181 = vadd.f32 0.0, %v1180
        %v1182 = vpop.f32.mrb[0].mxu0
        %v1183 = vadd.f32 0.0, %v1182
        %v1184 = vpop.f32.mrb[0].mxu0
        %v1185 = vpop.f32.mrb[0].mxu0
        %1186 = vdwg.mxu0
        %1187 = vmatprep.subr.bf16.mxu0 %v847
        %1188 = vmatpush1.bf16.msra.mxu0 %v846
        %1189 = vmatprep.subr.bf16.mxu0 %v861
        %1190 = vmatpush1.bf16.msra.mxu0 %v860
        %1191 = vmatprep.subr.bf16.mxu0 %v875
        %1192 = vmatpush1.bf16.msra.mxu0 %v874
        %1193 = vmatprep.subr.bf16.mxu0 %v889
        %1194 = vmatpush1.bf16.msra.mxu0 %v888
        %1195 = vmatprep.subr.bf16.mxu0 %v903
        %1196 = vmatpush1.bf16.msra.mxu0 %v902
        %1197 = vmatprep.subr.bf16.mxu0 %v917
        %1198 = vmatpush1.bf16.msra.mxu0 %v916
        %1199 = vmatprep.subr.bf16.mxu0 %v931
        %1200 = vmatpush1.bf16.msra.mxu0 %v930
        %1201 = vmatprep.subr.bf16.mxu0 %v945
        %1202 = vmatpush1.bf16.msra.mxu0 %v944
        %1203 = vmatprep.subr.bf16.mxu0 0
        %1204 = vmatpush1.bf16.msra.mxu0 0
        %1205 = vmatprep.subr.bf16.mxu0 0
        %1206 = vmatpush1.bf16.msra.mxu0 0
        %1207 = vmatprep.subr.bf16.mxu0 0
        %1208 = vmatpush1.bf16.msra.mxu0 0
        %1209 = vmatprep.subr.bf16.mxu0 0
        %1210 = vmatpush1.bf16.msra.mxu0 0
        %1211 = vmatprep.subr.bf16.mxu0 0
        %1212 = vmatpush1.bf16.msra.mxu0 0
        %1213 = vmatprep.subr.bf16.mxu0 0
        %1214 = vmatpush1.bf16.msra.mxu0 0
        %1215 = vmatprep.subr.bf16.mxu0 0
        %1216 = vmatpush1.bf16.msra.mxu0 0
        %1217 = vmatprep.subr.bf16.mxu0 0
        %1218 = vmatpush1.bf16.msra.mxu0 0
        %1219 = vmatprep.mubr.bf16.mxu0 0
        %1220 = vmatmul.mubr.bf16.gmra.mrb[0].mxu0 %v391
        %v1221 = vpop.f32.mrb[0].mxu0
        %v1222 = vadd.f32 0.0, %v1221
        %v1223 = vpop.f32.mrb[0].mxu0
        %v1224 = vadd.f32 0.0, %v1223
        %v1225 = vpop.f32.mrb[0].mxu0
        %v1226 = vpop.f32.mrb[0].mxu0
        %1227 = vdwg.mxu0
        %1228 = vmatprep.subr.bf16.mxu0 %v849
        %1229 = vmatpush1.bf16.msra.mxu0 %v848
        %1230 = vmatprep.subr.bf16.mxu0 %v863
        %1231 = vmatpush1.bf16.msra.mxu0 %v862
        %1232 = vmatprep.subr.bf16.mxu0 %v877
        %1233 = vmatpush1.bf16.msra.mxu0 %v876
        %1234 = vmatprep.subr.bf16.mxu0 %v891
        %1235 = vmatpush1.bf16.msra.mxu0 %v890
        %1236 = vmatprep.subr.bf16.mxu0 %v905
        %1237 = vmatpush1.bf16.msra.mxu0 %v904
        %1238 = vmatprep.subr.bf16.mxu0 %v919
        %1239 = vmatpush1.bf16.msra.mxu0 %v918
        %1240 = vmatprep.subr.bf16.mxu0 %v933
        %1241 = vmatpush1.bf16.msra.mxu0 %v932
        %1242 = vmatprep.subr.bf16.mxu0 %v947
        %1243 = vmatpush1.bf16.msra.mxu0 %v946
        %1244 = vmatprep.subr.bf16.mxu0 0
        %1245 = vmatpush1.bf16.msra.mxu0 0
        %1246 = vmatprep.subr.bf16.mxu0 0
        %1247 = vmatpush1.bf16.msra.mxu0 0
        %1248 = vmatprep.subr.bf16.mxu0 0
        %1249 = vmatpush1.bf16.msra.mxu0 0
        %1250 = vmatprep.subr.bf16.mxu0 0
        %1251 = vmatpush1.bf16.msra.mxu0 0
        %1252 = vmatprep.subr.bf16.mxu0 0
        %1253 = vmatpush1.bf16.msra.mxu0 0
        %1254 = vmatprep.subr.bf16.mxu0 0
        %1255 = vmatpush1.bf16.msra.mxu0 0
        %1256 = vmatprep.subr.bf16.mxu0 0
        %1257 = vmatpush1.bf16.msra.mxu0 0
        %1258 = vmatprep.subr.bf16.mxu0 0
        %1259 = vmatpush1.bf16.msra.mxu0 0
        %1260 = vmatprep.mubr.bf16.mxu0 0
        %1261 = vmatmul.mubr.bf16.gmra.mrb[0].mxu0 %v391
        %v1262 = vpop.f32.mrb[0].mxu0
        %v1263 = vadd.f32 0.0, %v1262
        %v1264 = vpop.f32.mrb[0].mxu0
        %v1265 = vadd.f32 0.0, %v1264
        %v1266 = vpop.f32.mrb[0].mxu0
        %v1267 = vpop.f32.mrb[0].mxu0
        %1268 = vdwg.mxu0
        %1269 = vmatprep.subr.bf16.mxu0 %v851
        %1270 = vmatpush1.bf16.msra.mxu0 %v850
        %1271 = vmatprep.subr.bf16.mxu0 %v865
        %1272 = vmatpush1.bf16.msra.mxu0 %v864
        %1273 = vmatprep.subr.bf16.mxu0 %v879
        %1274 = vmatpush1.bf16.msra.mxu0 %v878
        %1275 = vmatprep.subr.bf16.mxu0 %v893
        %1276 = vmatpush1.bf16.msra.mxu0 %v892
        %1277 = vmatprep.subr.bf16.mxu0 %v907
        %1278 = vmatpush1.bf16.msra.mxu0 %v906
        %1279 = vmatprep.subr.bf16.mxu0 %v921
        %1280 = vmatpush1.bf16.msra.mxu0 %v920
        %1281 = vmatprep.subr.bf16.mxu0 %v935
        %1282 = vmatpush1.bf16.msra.mxu0 %v934
        %1283 = vmatprep.subr.bf16.mxu0 %v949
        %1284 = vmatpush1.bf16.msra.mxu0 %v948
        %1285 = vmatprep.subr.bf16.mxu0 0
        %1286 = vmatpush1.bf16.msra.mxu0 0
        %1287 = vmatprep.subr.bf16.mxu0 0
        %1288 = vmatpush1.bf16.msra.mxu0 0
        %1289 = vmatprep.subr.bf16.mxu0 0
        %1290 = vmatpush1.bf16.msra.mxu0 0
        %1291 = vmatprep.subr.bf16.mxu0 0
        %1292 = vmatpush1.bf16.msra.mxu0 0
        %1293 = vmatprep.subr.bf16.mxu0 0
        %1294 = vmatpush1.bf16.msra.mxu0 0
        %1295 = vmatprep.subr.bf16.mxu0 0
        %1296 = vmatpush1.bf16.msra.mxu0 0
        %1297 = vmatprep.subr.bf16.mxu0 0
        %1298 = vmatpush1.bf16.msra.mxu0 0
        %1299 = vmatprep.subr.bf16.mxu0 0
        %1300 = vmatpush1.bf16.msra.mxu0 0
        %1301 = vmatprep.mubr.bf16.mxu0 0
        %1302 = vmatmul.mubr.bf16.gmra.mrb[0].mxu0 %v391
        %v1303 = vpop.f32.mrb[0].mxu0
        %v1304 = vadd.f32 0.0, %v1303
        %v1305 = vpop.f32.mrb[0].mxu0
        %v1306 = vadd.f32 0.0, %v1305
        %v1307 = vpop.f32.mrb[0].mxu0
        %v1308 = vpop.f32.mrb[0].mxu0
        %1309 = vdwg.mxu0
        %1310 = vmatprep.subr.bf16.mxu0 %v853
        %1311 = vmatpush1.bf16.msra.mxu0 %v852
        %1312 = vmatprep.subr.bf16.mxu0 %v867
        %1313 = vmatpush1.bf16.msra.mxu0 %v866
        %1314 = vmatprep.subr.bf16.mxu0 %v881
        %1315 = vmatpush1.bf16.msra.mxu0 %v880
        %1316 = vmatprep.subr.bf16.mxu0 %v895
        %1317 = vmatpush1.bf16.msra.mxu0 %v894
        %1318 = vmatprep.subr.bf16.mxu0 %v909
        %1319 = vmatpush1.bf16.msra.mxu0 %v908
        %1320 = vmatprep.subr.bf16.mxu0 %v923
        %1321 = vmatpush1.bf16.msra.mxu0 %v922
        %1322 = vmatprep.subr.bf16.mxu0 %v937
        %1323 = vmatpush1.bf16.msra.mxu0 %v936
        %1324 = vmatprep.subr.bf16.mxu0 %v951
        %1325 = vmatpush1.bf16.msra.mxu0 %v950
        %1326 = vmatprep.subr.bf16.mxu0 0
        %1327 = vmatpush1.bf16.msra.mxu0 0
        %1328 = vmatprep.subr.bf16.mxu0 0
        %1329 = vmatpush1.bf16.msra.mxu0 0
        %1330 = vmatprep.subr.bf16.mxu0 0
        %1331 = vmatpush1.bf16.msra.mxu0 0
        %1332 = vmatprep.subr.bf16.mxu0 0
        %1333 = vmatpush1.bf16.msra.mxu0 0
        %1334 = vmatprep.subr.bf16.mxu0 0
        %1335 = vmatpush1.bf16.msra.mxu0 0
        %1336 = vmatprep.subr.bf16.mxu0 0
        %1337 = vmatpush1.bf16.msra.mxu0 0
        %1338 = vmatprep.subr.bf16.mxu0 0
        %1339 = vmatpush1.bf16.msra.mxu0 0
        %1340 = vmatprep.subr.bf16.mxu0 0
        %1341 = vmatpush1.bf16.msra.mxu0 0
        %1342 = vmatprep.mubr.bf16.mxu0 0
        %1343 = vmatmul.mubr.bf16.gmra.mrb[0].mxu0 %v391
        %v1344 = vpop.f32.mrb[0].mxu0
        %v1345 = vadd.f32 0.0, %v1344
        %v1346 = vpop.f32.mrb[0].mxu0
        %v1347 = vadd.f32 0.0, %v1346
        %v1348 = vpop.f32.mrb[0].mxu0
        %v1349 = vpop.f32.mrb[0].mxu0
        %1350 = vdwg.mxu0
        %v1351 = vadd.f32 %v377, %v1099
        %v1352 = vadd.f32 %v378, %v1101
        %v1353 = vadd.f32 %v379, %v1140
        %v1354 = vadd.f32 %v380, %v1142
        %v1355 = vadd.f32 %v381, %v1181
        %v1356 = vadd.f32 %v382, %v1183
        %v1357 = vadd.f32 %v383, %v1222
        %v1358 = vadd.f32 %v384, %v1224
        %v1359 = vadd.f32 %v385, %v1263
        %v1360 = vadd.f32 %v386, %v1265
        %v1361 = vadd.f32 %v387, %v1304
        %v1362 = vadd.f32 %v388, %v1306
        %v1363 = vadd.f32 %v389, %v1345
        %v1364 = vadd.f32 %v390, %v1347
        %1365 = vst [vmem:[#allocation2] sm:$0xff] %v1351
        %1366 = vst [vmem:[#allocation2 + $0x8] sm:$0xff] %v1352
        %1367 = vst [vmem:[#allocation2 + $0x10] sm:$0xff] %v1353
        %1368 = vst [vmem:[#allocation2 + $0x18] sm:$0xff] %v1354
        %1369 = vst [vmem:[#allocation2 + $0x20] sm:$0xff] %v1355
        %1370 = vst [vmem:[#allocation2 + $0x28] sm:$0xff] %v1356
        %1371 = vst [vmem:[#allocation2 + $0x30] sm:$0xff] %v1357
        %1372 = vst [vmem:[#allocation2 + $0x38] sm:$0xff] %v1358
        %1373 = vst [vmem:[#allocation2 + $0x40] sm:$0xff] %v1359
        %1374 = vst [vmem:[#allocation2 + $0x48] sm:$0xff] %v1360
        %1375 = vst [vmem:[#allocation2 + $0x50] sm:$0xff] %v1361
        %1376 = vst [vmem:[#allocation2 + $0x58] sm:$0xff] %v1362
        %1377 = vst [vmem:[#allocation2 + $0x60] sm:$0xff] %v1363
        %1378 = vst [vmem:[#allocation2 + $0x68] sm:$0xff] %v1364
        // Predicated region
        $region53: #{netG_28_forward.3} parent=35 // pred_check
          %p1379 = pneg %p359
        $region54: #{netG_28_forward.3} parent=35 // pred_check_branch
          %1381 = sbr.rel (%p1379) target = $region56
        $region55: #{netG_28_forward.3} parent=35 // pred_region
          %v1382 = vld [vmem:[#allocation2] sm:$0xff]
          %v1383 = vld [vmem:[#allocation2 + $0x8] sm:$0xff]
          %v1384 = vld [vmem:[#allocation2 + $0x10] sm:$0xff]
          %v1385 = vld [vmem:[#allocation2 + $0x18] sm:$0xff]
          %v1386 = vld [vmem:[#allocation2 + $0x20] sm:$0xff]
          %v1387 = vld [vmem:[#allocation2 + $0x28] sm:$0xff]
          %v1388 = vld [vmem:[#allocation2 + $0x30] sm:$0xff]
          %v1389 = vld [vmem:[#allocation2 + $0x38] sm:$0xff]
          %v1390 = vld [vmem:[#allocation2 + $0x40] sm:$0xff]
          %v1391 = vld [vmem:[#allocation2 + $0x48] sm:$0xff]
          %v1392 = vld [vmem:[#allocation2 + $0x50] sm:$0xff]
          %v1393 = vld [vmem:[#allocation2 + $0x58] sm:$0xff]
          %v1394 = vld [vmem:[#allocation2 + $0x60] sm:$0xff]
          %v1395 = vld [vmem:[#allocation2 + $0x68] sm:$0xff]
          %v1396 = vld [vmem:[%s282] sm:$0xff]
          %v1397 = vld [vmem:[%s282 + $0x8] sm:$0x3f]
          %v1400 = vlaneseq
          %v1401 = vshrl.u32 %v1400, 7
          %v1402 = vsub.s32 0, %v1401
          %v1403 = vrot.slane %v1396, %v1402
          %v1404 = vlaneseq
          %v1405 = vshrl.u32 %v1404, 7
          %v1406 = vsub.s32 1, %v1405
          %v1407 = vrot.slane %v1396, %v1406
          %v1408 = vlaneseq
          %v1409 = vshrl.u32 %v1408, 7
          %v1410 = vsub.s32 2, %v1409
          %v1411 = vrot.slane %v1396, %v1410
          %v1412 = vlaneseq
          %v1413 = vshrl.u32 %v1412, 7
          %v1414 = vsub.s32 3, %v1413
          %v1415 = vrot.slane %v1396, %v1414
          %v1416 = vlaneseq
          %v1417 = vshrl.u32 %v1416, 7
          %v1418 = vsub.s32 4, %v1417
          %v1419 = vrot.slane %v1396, %v1418
          %v1420 = vlaneseq
          %v1421 = vshrl.u32 %v1420, 7
          %v1422 = vsub.s32 5, %v1421
          %v1423 = vrot.slane %v1396, %v1422
          %v1424 = vlaneseq
          %v1425 = vshrl.u32 %v1424, 7
          %v1426 = vsub.s32 6, %v1425
          %v1427 = vrot.slane %v1396, %v1426
          %v1428 = vlaneseq
          %v1429 = vshrl.u32 %v1428, 7
          %v1430 = vsub.s32 7, %v1429
          %v1431 = vrot.slane %v1396, %v1430
          %v1432 = vlaneseq
          %v1433 = vshrl.u32 %v1432, 7
          %v1434 = vsub.s32 0, %v1433
          %v1435 = vrot.slane %v1397, %v1434
          %v1436 = vlaneseq
          %v1437 = vshrl.u32 %v1436, 7
          %v1438 = vsub.s32 1, %v1437
          %v1439 = vrot.slane %v1397, %v1438
          %v1440 = vlaneseq
          %v1441 = vshrl.u32 %v1440, 7
          %v1442 = vsub.s32 2, %v1441
          %v1443 = vrot.slane %v1397, %v1442
          %v1444 = vlaneseq
          %v1445 = vshrl.u32 %v1444, 7
          %v1446 = vsub.s32 3, %v1445
          %v1447 = vrot.slane %v1397, %v1446
          %v1448 = vlaneseq
          %v1449 = vshrl.u32 %v1448, 7
          %v1450 = vsub.s32 4, %v1449
          %v1451 = vrot.slane %v1397, %v1450
          %v1452 = vlaneseq
          %v1453 = vshrl.u32 %v1452, 7
          %v1454 = vsub.s32 5, %v1453
          %v1455 = vrot.slane %v1397, %v1454
          %v1470 = vmul.f32 %v1382, %v1403
          %v1471 = vmul.f32 %v1383, %v1407
          %v1472 = vmul.f32 %v1384, %v1411
          %v1473 = vmul.f32 %v1385, %v1415
          %v1474 = vmul.f32 %v1386, %v1419
          %v1475 = vmul.f32 %v1387, %v1423
          %v1476 = vmul.f32 %v1388, %v1427
          %v1477 = vmul.f32 %v1389, %v1431
          %v1478 = vmul.f32 %v1390, %v1435
          %v1479 = vmul.f32 %v1391, %v1439
          %v1480 = vmul.f32 %v1392, %v1443
          %v1481 = vmul.f32 %v1393, %v1447
          %v1482 = vmul.f32 %v1394, %v1451
          %v1483 = vmul.f32 %v1395, %v1455
          %v1484 = vld [vmem:[%s291] sm:$0xff]
          %v1485 = vld [vmem:[%s291 + $0x8] sm:$0x3f]
          %v1488 = vlaneseq
          %v1489 = vshrl.u32 %v1488, 7
          %v1490 = vsub.s32 0, %v1489
          %v1491 = vrot.slane %v1484, %v1490
          %v1492 = vlaneseq
          %v1493 = vshrl.u32 %v1492, 7
          %v1494 = vsub.s32 1, %v1493
          %v1495 = vrot.slane %v1484, %v1494
          %v1496 = vlaneseq
          %v1497 = vshrl.u32 %v1496, 7
          %v1498 = vsub.s32 2, %v1497
          %v1499 = vrot.slane %v1484, %v1498
          %v1500 = vlaneseq
          %v1501 = vshrl.u32 %v1500, 7
          %v1502 = vsub.s32 3, %v1501
          %v1503 = vrot.slane %v1484, %v1502
          %v1504 = vlaneseq
          %v1505 = vshrl.u32 %v1504, 7
          %v1506 = vsub.s32 4, %v1505
          %v1507 = vrot.slane %v1484, %v1506
          %v1508 = vlaneseq
          %v1509 = vshrl.u32 %v1508, 7
          %v1510 = vsub.s32 5, %v1509
          %v1511 = vrot.slane %v1484, %v1510
          %v1512 = vlaneseq
          %v1513 = vshrl.u32 %v1512, 7
          %v1514 = vsub.s32 6, %v1513
          %v1515 = vrot.slane %v1484, %v1514
          %v1516 = vlaneseq
          %v1517 = vshrl.u32 %v1516, 7
          %v1518 = vsub.s32 7, %v1517
          %v1519 = vrot.slane %v1484, %v1518
          %v1520 = vlaneseq
          %v1521 = vshrl.u32 %v1520, 7
          %v1522 = vsub.s32 0, %v1521
          %v1523 = vrot.slane %v1485, %v1522
          %v1524 = vlaneseq
          %v1525 = vshrl.u32 %v1524, 7
          %v1526 = vsub.s32 1, %v1525
          %v1527 = vrot.slane %v1485, %v1526
          %v1528 = vlaneseq
          %v1529 = vshrl.u32 %v1528, 7
          %v1530 = vsub.s32 2, %v1529
          %v1531 = vrot.slane %v1485, %v1530
          %v1532 = vlaneseq
          %v1533 = vshrl.u32 %v1532, 7
          %v1534 = vsub.s32 3, %v1533
          %v1535 = vrot.slane %v1485, %v1534
          %v1536 = vlaneseq
          %v1537 = vshrl.u32 %v1536, 7
          %v1538 = vsub.s32 4, %v1537
          %v1539 = vrot.slane %v1485, %v1538
          %v1540 = vlaneseq
          %v1541 = vshrl.u32 %v1540, 7
          %v1542 = vsub.s32 5, %v1541
          %v1543 = vrot.slane %v1485, %v1542
          %v1558 = vadd.f32 %v1470, %v1491
          %v1559 = vadd.f32 %v1471, %v1495
          %v1560 = vadd.f32 %v1472, %v1499
          %v1561 = vadd.f32 %v1473, %v1503
          %v1562 = vadd.f32 %v1474, %v1507
          %v1563 = vadd.f32 %v1475, %v1511
          %v1564 = vadd.f32 %v1476, %v1515
          %v1565 = vadd.f32 %v1477, %v1519
          %v1566 = vadd.f32 %v1478, %v1523
          %v1567 = vadd.f32 %v1479, %v1527
          %v1568 = vadd.f32 %v1480, %v1531
          %v1569 = vadd.f32 %v1481, %v1535
          %v1570 = vadd.f32 %v1482, %v1539
          %v1571 = vadd.f32 %v1483, %v1543
          %v1572 = vmax.f32 %v1558, 0.0
          %v1573 = vmax.f32 %v1559, 0.0
          %v1574 = vmax.f32 %v1560, 0.0
          %v1575 = vmax.f32 %v1561, 0.0
          %v1576 = vmax.f32 %v1562, 0.0
          %v1577 = vmax.f32 %v1563, 0.0
          %v1578 = vmax.f32 %v1564, 0.0
          %v1579 = vmax.f32 %v1565, 0.0
          %v1580 = vmax.f32 %v1566, 0.0
          %v1581 = vmax.f32 %v1567, 0.0
          %v1582 = vmax.f32 %v1568, 0.0
          %v1583 = vmax.f32 %v1569, 0.0
          %v1584 = vmax.f32 %v1570, 0.0
          %v1585 = vmax.f32 %v1571, 0.0
          %v1586 = vpack.c.bf16 %v1572, %v1572
          %v1587 = vpack.c.bf16 %v1573, %v1573
          %v1588 = vpack.c.bf16 %v1574, %v1574
          %v1589 = vpack.c.bf16 %v1575, %v1575
          %v1590 = vpack.c.bf16 %v1576, %v1576
          %v1591 = vpack.c.bf16 %v1577, %v1577
          %v1592 = vpack.c.bf16 %v1578, %v1578
          %v1593 = vpack.c.bf16 %v1579, %v1579
          %v1594 = vpack.c.bf16 %v1580, %v1580
          %v1595 = vpack.c.bf16 %v1581, %v1581
          %v1596 = vpack.c.bf16 %v1582, %v1582
          %v1597 = vpack.c.bf16 %v1583, %v1583
          %v1598 = vpack.c.bf16 %v1584, %v1584
          %v1599 = vpack.c.bf16 %v1585, %v1585
          %v1614 = vunpack.c.l.b16 %v1586
          %v1615 = vunpack.c.l.b16 %v1587
          %v1616 = vunpack.c.l.b16 %v1588
          %v1617 = vunpack.c.l.b16 %v1589
          %v1618 = vunpack.c.l.b16 %v1590
          %v1619 = vunpack.c.l.b16 %v1591
          %v1620 = vunpack.c.l.b16 %v1592
          %v1621 = vunpack.c.l.b16 %v1593
          %v1622 = vunpack.c.l.b16 %v1594
          %v1623 = vunpack.c.l.b16 %v1595
          %v1624 = vunpack.c.l.b16 %v1596
          %v1625 = vunpack.c.l.b16 %v1597
          %v1626 = vunpack.c.l.b16 %v1598
          %v1627 = vunpack.c.l.b16 %v1599
          %v1628 = vpack.c.b16 %v1615, %v1614
          %v1629 = vpack.c.b16 %v1617, %v1616
          %v1630 = vpack.c.b16 %v1619, %v1618
          %v1631 = vpack.c.b16 %v1621, %v1620
          %v1632 = vpack.c.b16 %v1623, %v1622
          %v1633 = vpack.c.b16 %v1625, %v1624
          %v1634 = vpack.c.b16 %v1627, %v1626
          %1642 = vst [vmem:[%s356] sm:$0xff] %v1628
          %1643 = vst [vmem:[%s356 + $0x8] sm:$0xff] %v1629
          %1644 = vst [vmem:[%s356 + $0x10] sm:$0xff] %v1630
          %1645 = vst [vmem:[%s356 + $0x18] sm:$0xff] %v1631
          %1646 = vst [vmem:[%s356 + $0x20] sm:$0xff] %v1632
          %1647 = vst [vmem:[%s356 + $0x28] sm:$0xff] %v1633
          %1648 = vst [vmem:[%s356 + $0x30] sm:$0xff] %v1634
        $region56: #{netG_28_forward.3} parent=35 // pred_fallthru
          _
        %s1649 = smul.u32 14, %s27
        %p1650 = scmp.lt.s32.totalorder %s26, 0
        %s1651 = scalar_select %p1650, %s26, 0
        %p1652 = scmp.lt.s32.totalorder %s1649, 97
        %s1653 = scalar_select %p1652, %s1649, 97
        %s1654 = smul.addr %s1651, 98
        %s1655 = sadd.s32 %s1653, %s1654
        %s1656 = smul.addr %s1655, 4
        %s1657 = scalar_lea.vmem %s4, %s1656
        // Predicated region
        $region57: #{netG_28_forward.3} parent=35 // pred_check
          %p1658 = pneg %p168
        $region58: #{netG_28_forward.3} parent=35 // pred_check_branch
          %1660 = sbr.rel (%p1658) target = $region60
        $region59: #{netG_28_forward.3} parent=35 // pred_region
          %s1661 = smul.u32 14, %s27
        $region60: #{netG_28_forward.3} parent=35 // pred_fallthru
          _
      $region36: #{netG_28_forward.3} parent=5 // pred_fallthru
        _
      %p1662 = scmp.le.s32.totalorder 2, %s16
      // Predicated region
      $region61: #{netG_28_forward.3} parent=5 // pred_check
        %p1663 = pneg %p1662
      $region62: #{netG_28_forward.3} parent=5 // pred_check_branch
        %1665 = sbr.rel (%p1663) target = $region64
      $region63: #{netG_28_forward.3} parent=5 // pred_region
        %s1666 = ssub.s32 %s16, 2
        // Predicated region
        $region65: #{netG_28_forward.3} parent=63 // pred_check
          %p1667 = pneg %p174
        $region66: #{netG_28_forward.3} parent=63 // pred_check_branch
          %1669 = sbr.rel (%p1667) target = $region68
        $region67: #{netG_28_forward.3} parent=63 // pred_region
          %s1670 = smul.u32 14, %s30
          %p1671 = scmp.lt.s32.totalorder %s29, 0
          %s1672 = scalar_select %p1671, %s29, 0
          %p1673 = scmp.lt.s32.totalorder %s1670, 97
          %s1674 = scalar_select %p1673, %s1670, 97
          %s1675 = smul.addr %s1672, 98
          %s1676 = sadd.s32 %s1674, %s1675
          %s1677 = smul.addr %s1676, 4
          %s1678 = scalar_lea.vmem %s4, %s1677
        $region68: #{netG_28_forward.3} parent=63 // pred_fallthru
          _
      $region64: #{netG_28_forward.3} parent=5 // pred_fallthru
        _
    $region6: #{netG_28_forward.3} parent=1 // loop_footer
      %s20 = sadd.s32 1, %s16
    $region7: #{netG_28_forward.3} parent=1 // loop_footer_branch
      %15 = sbr.rel target = $region3
    $region8: #{netG_28_forward.3} parent=1 // loop_exit
      _
    %1679 = vsyncpa [#allocation4], 1
    %s1680 = scalar_lea.sflag [#allocation4], 1
    %1681 = vsyncpa %s1680, 1
    %1682 = vsyncpa [#allocation6], 1
    %s1683 = scalar_lea.sflag [#allocation6], 1
    %1684 = vsyncpa %s1683, 1

// kernel: netG_28_forward.4
$region0: #{netG_28_forward.4}
  #allocation0 [shape = 'u32[]', space=smem, size = 0x4, offset = 0x4, fixed_abs, tag = 'smem constant byte address 0x4 - core index']
  #allocation1 [shape = 'u32[144,128]{1,0:T(1,128)}', space=vmem, size = 0x12000, scoped, tag = 'internal scratch']
  #allocation2 [shape = 'f32[104,256]{1,0:T(8,128)}', space=vmem, size = 0x1a000, scoped, tag = 'scratch operand']
  %s0 = inlined_call_operand.vmem [shape: bf16[104,2304], index: 0, kind: input, shape index: {}]
  %s1 = inlined_call_operand.vmem [shape: bf16[2304,512], index: 1, kind: input, shape index: {}]
  %s2 = inlined_call_operand.vmem [shape: f32[1,512], index: 2, kind: input, shape index: {}]
  %s3 = inlined_call_operand.vmem [shape: f32[1,512], index: 3, kind: input, shape index: {}]
  %s4 = inlined_call_operand.vmem [shape: bf16[104,512], index: 4, kind: output, shape index: {}]
  %s5 = sld [smem:[#allocation0]]
  $region129: #{netG_28_forward.4} parent=0
    _
  %s7 = ssub.s32 1, %s5
  %s8 = scalar_select 0, %s7, %s5
  $region1: #{netG_28_forward.4} parent=0
    #allocation3 [shape = 'u8[2359296]{0}', space=vmem, size = 0x240000, scoped, tag = 'input window, operand 1']
    #allocation4 [shape = 'u8[106496]{0}', space=vmem, size = 0x1a000, scoped, tag = 'output window, operand 0']
    loop: start=0, step=1, limit=4
    $region2: #{netG_28_forward.4} parent=1 // loop_pre_header
      _
    $region3: #{netG_28_forward.4} parent=1 // loop_header
      %s10 = sphi 0, %s14
      %p11 = scmp.ge.s32.totalorder %s10, 4
      %s17 = sphi 0, %s36
      %s18 = sphi 0, %s32
      %s19 = sphi 0, %s28
      %s20 = sphi 0, %s17
      %s21 = sphi 0, %s18
      %s22 = sphi 0, %s19
      %s23 = sphi 0, %s20
      %s24 = sphi 0, %s21
      %s25 = sphi 0, %s22
      %s41 = sphi 0, %s43
      %s44 = sphi 0, %s41
      %s45 = sphi 0, %s44
      %s61 = sphi 0, %s45
      %s69 = sphi 0, %s71
      %s72 = sphi 0, %s69
      %s73 = sphi 0, %s72
      %s89 = sphi 0, %s73
      %s95 = sphi 0, %s97
      %s98 = sphi 0, %s95
      %s99 = sphi 0, %s98
      %s115 = sphi 0, %s99
      %s121 = sphi 0, %s123
      %s124 = sphi 0, %s121
      %s125 = sphi 0, %s124
      %s141 = sphi 0, %s125
      %s149 = sphi 0, %s151
      %s152 = sphi 0, %s149
      %s153 = sphi 0, %s152
      %s169 = sphi 0, %s153
    $region4: #{netG_28_forward.4} parent=1 // loop_header_branch
      %13 = sbr.rel (%p11) target = $region8
    $region5: #{netG_28_forward.4} parent=1 // loop_body
      %s15 = ssub.s32 %s10, 1
      %s16 = ssub.s32 %s10, 2
      %s26 = sadd.s32 1, %s19
      %p27 = scmp.ge.s32.totalorder %s26, 1
      %s28 = scalar_select %p27, 0, %s26
      %s29 = sadd.s32 1, %s18
      %s30 = scalar_select %p27, %s29, %s18
      %p31 = scmp.ge.s32.totalorder %s30, 2
      %s32 = scalar_select %p31, 0, %s30
      %s33 = sadd.s32 1, %s17
      %s34 = scalar_select %p31, %s33, %s17
      %p35 = scmp.ge.s32.totalorder %s34, 1
      %s36 = scalar_select %p35, 0, %s34
      %s37 = ssub.s32 %s17, %s36
      %s38 = ssub.s32 %s19, %s28
      %s39 = sor.u32 %s37, %s38
      %p40 = scmp.eq.s32.totalorder %s39, 0
      %s42 = sadd.s32 %s41, 1
      %s43 = scalar_select %p40, %s41, %s42
      %p46 = pneg %p40
      %p47 = scmp.eq.s32.totalorder %s10, 1
      %p48 = por %p46, %p47
      %p49 = scmp.ne.s32.totalorder %s41, %s44
      %p50 = scmp.eq.s32.totalorder %s10, 0
      %p51 = por %p49, %p50
      %p52 = scmp.ne.s32.totalorder %s41, %s44
      %p53 = scmp.eq.s32.totalorder %s15, 1
      %p54 = por %p52, %p53
      %p55 = scmp.ne.s32.totalorder %s44, %s45
      %p56 = scmp.eq.s32.totalorder %s15, 0
      %p57 = por %p55, %p56
      %p58 = scmp.ne.s32.totalorder %s44, %s45
      %p59 = scmp.eq.s32.totalorder %s16, 1
      %p60 = por %p58, %p59
      %p62 = scmp.ne.s32.totalorder %s45, %s61
      %p63 = scmp.eq.s32.totalorder %s16, 0
      %p64 = por %p62, %p63
      %s65 = ssub.s32 %s19, %s28
      %s66 = ssub.s32 %s18, %s32
      %s67 = sor.u32 %s65, %s66
      %p68 = scmp.eq.s32.totalorder %s67, 0
      %s70 = sadd.s32 %s69, 1
      %s71 = scalar_select %p68, %s69, %s70
      %p74 = pneg %p68
      %p75 = scmp.eq.s32.totalorder %s10, 1
      %p76 = por %p74, %p75
      %p77 = scmp.ne.s32.totalorder %s69, %s72
      %p78 = scmp.eq.s32.totalorder %s10, 0
      %p79 = por %p77, %p78
      %p80 = scmp.ne.s32.totalorder %s69, %s72
      %p81 = scmp.eq.s32.totalorder %s15, 1
      %p82 = por %p80, %p81
      %p83 = scmp.ne.s32.totalorder %s72, %s73
      %p84 = scmp.eq.s32.totalorder %s15, 0
      %p85 = por %p83, %p84
      %p86 = scmp.ne.s32.totalorder %s72, %s73
      %p87 = scmp.eq.s32.totalorder %s16, 1
      %p88 = por %p86, %p87
      %p90 = scmp.ne.s32.totalorder %s73, %s89
      %p91 = scmp.eq.s32.totalorder %s16, 0
      %p92 = por %p90, %p91
      %s93 = ssub.s32 %s18, %s32
      %p94 = scmp.eq.s32.totalorder %s93, 0
      %s96 = sadd.s32 %s95, 1
      %s97 = scalar_select %p94, %s95, %s96
      %p100 = pneg %p94
      %p101 = scmp.eq.s32.totalorder %s10, 1
      %p102 = por %p100, %p101
      %p103 = scmp.ne.s32.totalorder %s95, %s98
      %p104 = scmp.eq.s32.totalorder %s10, 0
      %p105 = por %p103, %p104
      %p106 = scmp.ne.s32.totalorder %s95, %s98
      %p107 = scmp.eq.s32.totalorder %s15, 1
      %p108 = por %p106, %p107
      %p109 = scmp.ne.s32.totalorder %s98, %s99
      %p110 = scmp.eq.s32.totalorder %s15, 0
      %p111 = por %p109, %p110
      %p112 = scmp.ne.s32.totalorder %s98, %s99
      %p113 = scmp.eq.s32.totalorder %s16, 1
      %p114 = por %p112, %p113
      %p116 = scmp.ne.s32.totalorder %s99, %s115
      %p117 = scmp.eq.s32.totalorder %s16, 0
      %p118 = por %p116, %p117
      %s119 = ssub.s32 %s18, %s32
      %p120 = scmp.eq.s32.totalorder %s119, 0
      %s122 = sadd.s32 %s121, 1
      %s123 = scalar_select %p120, %s121, %s122
      %p126 = pneg %p120
      %p127 = scmp.eq.s32.totalorder %s10, 1
      %p128 = por %p126, %p127
      %p129 = scmp.ne.s32.totalorder %s121, %s124
      %p130 = scmp.eq.s32.totalorder %s10, 0
      %p131 = por %p129, %p130
      %p132 = scmp.ne.s32.totalorder %s121, %s124
      %p133 = scmp.eq.s32.totalorder %s15, 1
      %p134 = por %p132, %p133
      %p135 = scmp.ne.s32.totalorder %s124, %s125
      %p136 = scmp.eq.s32.totalorder %s15, 0
      %p137 = por %p135, %p136
      %p138 = scmp.ne.s32.totalorder %s124, %s125
      %p139 = scmp.eq.s32.totalorder %s16, 1
      %p140 = por %p138, %p139
      %p142 = scmp.ne.s32.totalorder %s125, %s141
      %p143 = scmp.eq.s32.totalorder %s16, 0
      %p144 = por %p142, %p143
      %s145 = ssub.s32 %s17, %s36
      %s146 = ssub.s32 %s18, %s32
      %s147 = sor.u32 %s145, %s146
      %p148 = scmp.eq.s32.totalorder %s147, 0
      %s150 = sadd.s32 %s149, 1
      %s151 = scalar_select %p148, %s149, %s150
      %p154 = pneg %p148
      %p155 = scmp.eq.s32.totalorder %s10, 1
      %p156 = por %p154, %p155
      %p157 = scmp.ne.s32.totalorder %s149, %s152
      %p158 = scmp.eq.s32.totalorder %s10, 0
      %p159 = por %p157, %p158
      %p160 = scmp.ne.s32.totalorder %s149, %s152
      %p161 = scmp.eq.s32.totalorder %s15, 1
      %p162 = por %p160, %p161
      %p163 = scmp.ne.s32.totalorder %s152, %s153
      %p164 = scmp.eq.s32.totalorder %s15, 0
      %p165 = por %p163, %p164
      %p166 = scmp.ne.s32.totalorder %s152, %s153
      %p167 = scmp.eq.s32.totalorder %s16, 1
      %p168 = por %p166, %p167
      %p170 = scmp.ne.s32.totalorder %s153, %s169
      %p171 = scmp.eq.s32.totalorder %s16, 0
      %p172 = por %p170, %p171
      %p173 = scmp.le.s32.totalorder 1, %s10
      %p174 = scmp.lt.s32.totalorder %s10, 3
      %p175 = pnand %p173, %p174
      %p176 = pneg %p175
      // Predicated region
      $region9: #{netG_28_forward.4} parent=5 // pred_check
        _
      $region10: #{netG_28_forward.4} parent=5 // pred_check_branch
        %178 = sbr.rel (%p175) target = $region12
      $region11: #{netG_28_forward.4} parent=5 // pred_region
        %s179 = ssub.s32 %s10, 1
        // Predicated region
        $region13: #{netG_28_forward.4} parent=11 // pred_check
          %p180 = pneg %p57
        $region14: #{netG_28_forward.4} parent=11 // pred_check_branch
          %182 = sbr.rel (%p180) target = $region16
        $region15: #{netG_28_forward.4} parent=11 // pred_region
          %s183 = smul.u32 13, %s20
          %s184 = smul.u32 18, %s22
          %p185 = scmp.lt.s32.totalorder %s183, 12
          %s186 = scalar_select %p185, %s183, 12
          %p187 = scmp.lt.s32.totalorder %s184, 17
          %s188 = scalar_select %p187, %s184, 17
          %s189 = smul.addr %s186, 18
          %s190 = sadd.s32 %s188, %s189
          %s191 = smul.addr %s190, 4
          %s192 = scalar_lea.vmem %s0, %s191
          %s193 = smul.u32 13, %s20
          %s194 = smul.u32 18, %s22
        $region16: #{netG_28_forward.4} parent=11 // pred_fallthru
          _
      $region12: #{netG_28_forward.4} parent=5 // pred_fallthru
        _
      %p195 = scmp.lt.s32.totalorder %s10, 2
      // Predicated region
      $region17: #{netG_28_forward.4} parent=5 // pred_check
        %p196 = pneg %p195
      $region18: #{netG_28_forward.4} parent=5 // pred_check_branch
        %198 = sbr.rel (%p196) target = $region20
      $region19: #{netG_28_forward.4} parent=5 // pred_region
        // Predicated region
        $region21: #{netG_28_forward.4} parent=19 // pred_check
          %p199 = pneg %p79
        $region22: #{netG_28_forward.4} parent=19 // pred_check_branch
          %201 = sbr.rel (%p199) target = $region24
        $region23: #{netG_28_forward.4} parent=19 // pred_region
          %s202 = sand.u32 %s69, 1
          %s203 = sand.u32 %s69, 1
          %s204 = smul.addr %s203, 2304
          %s205 = scalar_lea.vmem [#allocation3], %s204
          %s206 = smul.u32 288, %s19
          %s207 = smul.u32 2, %s18
          %s208 = smul.addr %s206, 4
          %s209 = sadd.s32 %s207, %s208
          %s210 = smul.addr %s209, 4
          %s211 = scalar_lea.vmem %s1, %s210
          // Predicated region
          $region25: #{netG_28_forward.4} parent=23 // pred_check
            _
          $region26: #{netG_28_forward.4} parent=23 // pred_check_branch
            %213 = sbr.rel (0) target = $region28
          $region27: #{netG_28_forward.4} parent=23 // pred_region
            // Predicated region
            $region29: #{netG_28_forward.4} parent=27 // pred_check
              _
            $region30: #{netG_28_forward.4} parent=27 // pred_check_branch
              %215 = sbr.rel (0) target = $region32
            $region31: #{netG_28_forward.4} parent=27 // pred_region
              // Predicated region
              $region44: #{netG_28_forward.4} parent=31 // pred_check
                _
              $region45: #{netG_28_forward.4} parent=31 // pred_check_branch
                %804 = sbr.rel (0) target = $region47
              $region46: #{netG_28_forward.4} parent=31 // pred_region
                loop: start=0, step=1, limit=1
                $region48: #{netG_28_forward.4} parent=46 // loop_pre_header
                  _
                $region49: #{netG_28_forward.4} parent=46 // loop_header
                  %s806 = sphi 0, %s810
                  %p807 = scmp.ge.s32.totalorder %s806, 1
                  %s811 = sphi %s211, %s211
                  %s812 = sphi %s205, %s205
                $region50: #{netG_28_forward.4} parent=46 // loop_header_branch
                  %809 = sbr.rel (%p807) target = $region54
                $region51: #{netG_28_forward.4} parent=46 // loop_body
                  %v813 = vld [vmem:[%s811] sm:$0xff]
                  %814 = vst [vmem:[%s812] sm:$0xff] %v813
                  %v815 = vld [vmem:[%s811 + $0x10] sm:$0xff]
                  %816 = vst [vmem:[%s812 + $0x8] sm:$0xff] %v815
                  %v817 = vld [vmem:[%s811 + $0x20] sm:$0xff]
                  %818 = vst [vmem:[%s812 + $0x10] sm:$0xff] %v817
                  %v819 = vld [vmem:[%s811 + $0x30] sm:$0xff]
                  %820 = vst [vmem:[%s812 + $0x18] sm:$0xff] %v819
                  %v821 = vld [vmem:[%s811 + $0x40] sm:$0xff]
                  %822 = vst [vmem:[%s812 + $0x20] sm:$0xff] %v821
                  %v823 = vld [vmem:[%s811 + $0x50] sm:$0xff]
                  %824 = vst [vmem:[%s812 + $0x28] sm:$0xff] %v823
                  %v825 = vld [vmem:[%s811 + $0x60] sm:$0xff]
                  %826 = vst [vmem:[%s812 + $0x30] sm:$0xff] %v825
                  %v827 = vld [vmem:[%s811 + $0x70] sm:$0xff]
                  %828 = vst [vmem:[%s812 + $0x38] sm:$0xff] %v827
                  %v829 = vld [vmem:[%s811 + $0x80] sm:$0xff]
                  %830 = vst [vmem:[%s812 + $0x40] sm:$0xff] %v829
                  %v831 = vld [vmem:[%s811 + $0x90] sm:$0xff]
                  %832 = vst [vmem:[%s812 + $0x48] sm:$0xff] %v831
                  %v833 = vld [vmem:[%s811 + $0xa0] sm:$0xff]
                  %834 = vst [vmem:[%s812 + $0x50] sm:$0xff] %v833
                  %v835 = vld [vmem:[%s811 + $0xb0] sm:$0xff]
                  %836 = vst [vmem:[%s812 + $0x58] sm:$0xff] %v835
                  %v837 = vld [vmem:[%s811 + $0xc0] sm:$0xff]
                  %838 = vst [vmem:[%s812 + $0x60] sm:$0xff] %v837
                  %v839 = vld [vmem:[%s811 + $0xd0] sm:$0xff]
                  %840 = vst [vmem:[%s812 + $0x68] sm:$0xff] %v839
                  %v841 = vld [vmem:[%s811 + $0xe0] sm:$0xff]
                  %842 = vst [vmem:[%s812 + $0x70] sm:$0xff] %v841
                  %v843 = vld [vmem:[%s811 + $0xf0] sm:$0xff]
                  %844 = vst [vmem:[%s812 + $0x78] sm:$0xff] %v843
                  %v845 = vld [vmem:[%s811 + $0x100] sm:$0xff]
                  %846 = vst [vmem:[%s812 + $0x80] sm:$0xff] %v845
                  %v847 = vld [vmem:[%s811 + $0x110] sm:$0xff]
                  %848 = vst [vmem:[%s812 + $0x88] sm:$0xff] %v847
                  %v849 = vld [vmem:[%s811 + $0x120] sm:$0xff]
                  %850 = vst [vmem:[%s812 + $0x90] sm:$0xff] %v849
                  %v851 = vld [vmem:[%s811 + $0x130] sm:$0xff]
                  %852 = vst [vmem:[%s812 + $0x98] sm:$0xff] %v851
                  %v853 = vld [vmem:[%s811 + $0x140] sm:$0xff]
                  %854 = vst [vmem:[%s812 + $0xa0] sm:$0xff] %v853
                  %v855 = vld [vmem:[%s811 + $0x150] sm:$0xff]
                  %856 = vst [vmem:[%s812 + $0xa8] sm:$0xff] %v855
                  %v857 = vld [vmem:[%s811 + $0x160] sm:$0xff]
                  %858 = vst [vmem:[%s812 + $0xb0] sm:$0xff] %v857
                  %v859 = vld [vmem:[%s811 + $0x170] sm:$0xff]
                  %860 = vst [vmem:[%s812 + $0xb8] sm:$0xff] %v859
                  %v861 = vld [vmem:[%s811 + $0x180] sm:$0xff]
                  %862 = vst [vmem:[%s812 + $0xc0] sm:$0xff] %v861
                  %v863 = vld [vmem:[%s811 + $0x190] sm:$0xff]
                  %864 = vst [vmem:[%s812 + $0xc8] sm:$0xff] %v863
                  %v865 = vld [vmem:[%s811 + $0x1a0] sm:$0xff]
                  %866 = vst [vmem:[%s812 + $0xd0] sm:$0xff] %v865
                  %v867 = vld [vmem:[%s811 + $0x1b0] sm:$0xff]
                  %868 = vst [vmem:[%s812 + $0xd8] sm:$0xff] %v867
                  %v869 = vld [vmem:[%s811 + $0x1c0] sm:$0xff]
                  %870 = vst [vmem:[%s812 + $0xe0] sm:$0xff] %v869
                  %v871 = vld [vmem:[%s811 + $0x1d0] sm:$0xff]
                  %872 = vst [vmem:[%s812 + $0xe8] sm:$0xff] %v871
                  %v873 = vld [vmem:[%s811 + $0x1e0] sm:$0xff]
                  %874 = vst [vmem:[%s812 + $0xf0] sm:$0xff] %v873
                  %v875 = vld [vmem:[%s811 + $0x1f0] sm:$0xff]
                  %876 = vst [vmem:[%s812 + $0xf8] sm:$0xff] %v875
                  %v877 = vld [vmem:[%s811 + $0x200] sm:$0xff]
                  %878 = vst [vmem:[%s812 + $0x100] sm:$0xff] %v877
                  %v879 = vld [vmem:[%s811 + $0x210] sm:$0xff]
                  %880 = vst [vmem:[%s812 + $0x108] sm:$0xff] %v879
                  %v881 = vld [vmem:[%s811 + $0x220] sm:$0xff]
                  %882 = vst [vmem:[%s812 + $0x110] sm:$0xff] %v881
                  %v883 = vld [vmem:[%s811 + $0x230] sm:$0xff]
                  %884 = vst [vmem:[%s812 + $0x118] sm:$0xff] %v883
                  %v885 = vld [vmem:[%s811 + $0x240] sm:$0xff]
                  %886 = vst [vmem:[%s812 + $0x120] sm:$0xff] %v885
                  %v887 = vld [vmem:[%s811 + $0x250] sm:$0xff]
                  %888 = vst [vmem:[%s812 + $0x128] sm:$0xff] %v887
                  %v889 = vld [vmem:[%s811 + $0x260] sm:$0xff]
                  %890 = vst [vmem:[%s812 + $0x130] sm:$0xff] %v889
                  %v891 = vld [vmem:[%s811 + $0x270] sm:$0xff]
                  %892 = vst [vmem:[%s812 + $0x138] sm:$0xff] %v891
                  %v893 = vld [vmem:[%s811 + $0x280] sm:$0xff]
                  %894 = vst [vmem:[%s812 + $0x140] sm:$0xff] %v893
                  %v895 = vld [vmem:[%s811 + $0x290] sm:$0xff]
                  %896 = vst [vmem:[%s812 + $0x148] sm:$0xff] %v895
                  %v897 = vld [vmem:[%s811 + $0x2a0] sm:$0xff]
                  %898 = vst [vmem:[%s812 + $0x150] sm:$0xff] %v897
                  %v899 = vld [vmem:[%s811 + $0x2b0] sm:$0xff]
                  %900 = vst [vmem:[%s812 + $0x158] sm:$0xff] %v899
                  %v901 = vld [vmem:[%s811 + $0x2c0] sm:$0xff]
                  %902 = vst [vmem:[%s812 + $0x160] sm:$0xff] %v901
                  %v903 = vld [vmem:[%s811 + $0x2d0] sm:$0xff]
                  %904 = vst [vmem:[%s812 + $0x168] sm:$0xff] %v903
                  %v905 = vld [vmem:[%s811 + $0x2e0] sm:$0xff]
                  %906 = vst [vmem:[%s812 + $0x170] sm:$0xff] %v905
                  %v907 = vld [vmem:[%s811 + $0x2f0] sm:$0xff]
                  %908 = vst [vmem:[%s812 + $0x178] sm:$0xff] %v907
                  %v909 = vld [vmem:[%s811 + $0x300] sm:$0xff]
                  %910 = vst [vmem:[%s812 + $0x180] sm:$0xff] %v909
                  %v911 = vld [vmem:[%s811 + $0x310] sm:$0xff]
                  %912 = vst [vmem:[%s812 + $0x188] sm:$0xff] %v911
                  %v913 = vld [vmem:[%s811 + $0x320] sm:$0xff]
                  %914 = vst [vmem:[%s812 + $0x190] sm:$0xff] %v913
                  %v915 = vld [vmem:[%s811 + $0x330] sm:$0xff]
                  %916 = vst [vmem:[%s812 + $0x198] sm:$0xff] %v915
                  %v917 = vld [vmem:[%s811 + $0x340] sm:$0xff]
                  %918 = vst [vmem:[%s812 + $0x1a0] sm:$0xff] %v917
                  %v919 = vld [vmem:[%s811 + $0x350] sm:$0xff]
                  %920 = vst [vmem:[%s812 + $0x1a8] sm:$0xff] %v919
                  %v921 = vld [vmem:[%s811 + $0x360] sm:$0xff]
                  %922 = vst [vmem:[%s812 + $0x1b0] sm:$0xff] %v921
                  %v923 = vld [vmem:[%s811 + $0x370] sm:$0xff]
                  %924 = vst [vmem:[%s812 + $0x1b8] sm:$0xff] %v923
                  %v925 = vld [vmem:[%s811 + $0x380] sm:$0xff]
                  %926 = vst [vmem:[%s812 + $0x1c0] sm:$0xff] %v925
                  %v927 = vld [vmem:[%s811 + $0x390] sm:$0xff]
                  %928 = vst [vmem:[%s812 + $0x1c8] sm:$0xff] %v927
                  %v929 = vld [vmem:[%s811 + $0x3a0] sm:$0xff]
                  %930 = vst [vmem:[%s812 + $0x1d0] sm:$0xff] %v929
                  %v931 = vld [vmem:[%s811 + $0x3b0] sm:$0xff]
                  %932 = vst [vmem:[%s812 + $0x1d8] sm:$0xff] %v931
                  %v933 = vld [vmem:[%s811 + $0x3c0] sm:$0xff]
                  %934 = vst [vmem:[%s812 + $0x1e0] sm:$0xff] %v933
                  %v935 = vld [vmem:[%s811 + $0x3d0] sm:$0xff]
                  %936 = vst [vmem:[%s812 + $0x1e8] sm:$0xff] %v935
                  %v937 = vld [vmem:[%s811 + $0x3e0] sm:$0xff]
                  %938 = vst [vmem:[%s812 + $0x1f0] sm:$0xff] %v937
                  %v939 = vld [vmem:[%s811 + $0x3f0] sm:$0xff]
                  %940 = vst [vmem:[%s812 + $0x1f8] sm:$0xff] %v939
                  %v941 = vld [vmem:[%s811 + $0x400] sm:$0xff]
                  %942 = vst [vmem:[%s812 + $0x200] sm:$0xff] %v941
                  %v943 = vld [vmem:[%s811 + $0x410] sm:$0xff]
                  %944 = vst [vmem:[%s812 + $0x208] sm:$0xff] %v943
                  %v945 = vld [vmem:[%s811 + $0x420] sm:$0xff]
                  %946 = vst [vmem:[%s812 + $0x210] sm:$0xff] %v945
                  %v947 = vld [vmem:[%s811 + $0x430] sm:$0xff]
                  %948 = vst [vmem:[%s812 + $0x218] sm:$0xff] %v947
                  %v949 = vld [vmem:[%s811 + $0x440] sm:$0xff]
                  %950 = vst [vmem:[%s812 + $0x220] sm:$0xff] %v949
                  %v951 = vld [vmem:[%s811 + $0x450] sm:$0xff]
                  %952 = vst [vmem:[%s812 + $0x228] sm:$0xff] %v951
                  %v953 = vld [vmem:[%s811 + $0x460] sm:$0xff]
                  %954 = vst [vmem:[%s812 + $0x230] sm:$0xff] %v953
                  %v955 = vld [vmem:[%s811 + $0x470] sm:$0xff]
                  %956 = vst [vmem:[%s812 + $0x238] sm:$0xff] %v955
                  %v957 = vld [vmem:[%s811 + $0x480] sm:$0xff]
                  %958 = vst [vmem:[%s812 + $0x240] sm:$0xff] %v957
                  %v959 = vld [vmem:[%s811 + $0x490] sm:$0xff]
                  %960 = vst [vmem:[%s812 + $0x248] sm:$0xff] %v959
                  %v961 = vld [vmem:[%s811 + $0x4a0] sm:$0xff]
                  %962 = vst [vmem:[%s812 + $0x250] sm:$0xff] %v961
                  %v963 = vld [vmem:[%s811 + $0x4b0] sm:$0xff]
                  %964 = vst [vmem:[%s812 + $0x258] sm:$0xff] %v963
                  %v965 = vld [vmem:[%s811 + $0x4c0] sm:$0xff]
                  %966 = vst [vmem:[%s812 + $0x260] sm:$0xff] %v965
                  %v967 = vld [vmem:[%s811 + $0x4d0] sm:$0xff]
                  %968 = vst [vmem:[%s812 + $0x268] sm:$0xff] %v967
                  %v969 = vld [vmem:[%s811 + $0x4e0] sm:$0xff]
                  %970 = vst [vmem:[%s812 + $0x270] sm:$0xff] %v969
                  %v971 = vld [vmem:[%s811 + $0x4f0] sm:$0xff]
                  %972 = vst [vmem:[%s812 + $0x278] sm:$0xff] %v971
                  %v973 = vld [vmem:[%s811 + $0x500] sm:$0xff]
                  %974 = vst [vmem:[%s812 + $0x280] sm:$0xff] %v973
                  %v975 = vld [vmem:[%s811 + $0x510] sm:$0xff]
                  %976 = vst [vmem:[%s812 + $0x288] sm:$0xff] %v975
                  %v977 = vld [vmem:[%s811 + $0x520] sm:$0xff]
                  %978 = vst [vmem:[%s812 + $0x290] sm:$0xff] %v977
                  %v979 = vld [vmem:[%s811 + $0x530] sm:$0xff]
                  %980 = vst [vmem:[%s812 + $0x298] sm:$0xff] %v979
                  %v981 = vld [vmem:[%s811 + $0x540] sm:$0xff]
                  %982 = vst [vmem:[%s812 + $0x2a0] sm:$0xff] %v981
                  %v983 = vld [vmem:[%s811 + $0x550] sm:$0xff]
                  %984 = vst [vmem:[%s812 + $0x2a8] sm:$0xff] %v983
                  %v985 = vld [vmem:[%s811 + $0x560] sm:$0xff]
                  %986 = vst [vmem:[%s812 + $0x2b0] sm:$0xff] %v985
                  %v987 = vld [vmem:[%s811 + $0x570] sm:$0xff]
                  %988 = vst [vmem:[%s812 + $0x2b8] sm:$0xff] %v987
                  %v989 = vld [vmem:[%s811 + $0x580] sm:$0xff]
                  %990 = vst [vmem:[%s812 + $0x2c0] sm:$0xff] %v989
                  %v991 = vld [vmem:[%s811 + $0x590] sm:$0xff]
                  %992 = vst [vmem:[%s812 + $0x2c8] sm:$0xff] %v991
                  %v993 = vld [vmem:[%s811 + $0x5a0] sm:$0xff]
                  %994 = vst [vmem:[%s812 + $0x2d0] sm:$0xff] %v993
                  %v995 = vld [vmem:[%s811 + $0x5b0] sm:$0xff]
                  %996 = vst [vmem:[%s812 + $0x2d8] sm:$0xff] %v995
                  %v997 = vld [vmem:[%s811 + $0x5c0] sm:$0xff]
                  %998 = vst [vmem:[%s812 + $0x2e0] sm:$0xff] %v997
                  %v999 = vld [vmem:[%s811 + $0x5d0] sm:$0xff]
                  %1000 = vst [vmem:[%s812 + $0x2e8] sm:$0xff] %v999
                  %v1001 = vld [vmem:[%s811 + $0x5e0] sm:$0xff]
                  %1002 = vst [vmem:[%s812 + $0x2f0] sm:$0xff] %v1001
                  %v1003 = vld [vmem:[%s811 + $0x5f0] sm:$0xff]
                  %1004 = vst [vmem:[%s812 + $0x2f8] sm:$0xff] %v1003
                  %v1005 = vld [vmem:[%s811 + $0x600] sm:$0xff]
                  %1006 = vst [vmem:[%s812 + $0x300] sm:$0xff] %v1005
                  %v1007 = vld [vmem:[%s811 + $0x610] sm:$0xff]
                  %1008 = vst [vmem:[%s812 + $0x308] sm:$0xff] %v1007
                  %v1009 = vld [vmem:[%s811 + $0x620] sm:$0xff]
                  %1010 = vst [vmem:[%s812 + $0x310] sm:$0xff] %v1009
                  %v1011 = vld [vmem:[%s811 + $0x630] sm:$0xff]
                  %1012 = vst [vmem:[%s812 + $0x318] sm:$0xff] %v1011
                  %v1013 = vld [vmem:[%s811 + $0x640] sm:$0xff]
                  %1014 = vst [vmem:[%s812 + $0x320] sm:$0xff] %v1013
                  %v1015 = vld [vmem:[%s811 + $0x650] sm:$0xff]
                  %1016 = vst [vmem:[%s812 + $0x328] sm:$0xff] %v1015
                  %v1017 = vld [vmem:[%s811 + $0x660] sm:$0xff]
                  %1018 = vst [vmem:[%s812 + $0x330] sm:$0xff] %v1017
                  %v1019 = vld [vmem:[%s811 + $0x670] sm:$0xff]
                  %1020 = vst [vmem:[%s812 + $0x338] sm:$0xff] %v1019
                  %v1021 = vld [vmem:[%s811 + $0x680] sm:$0xff]
                  %1022 = vst [vmem:[%s812 + $0x340] sm:$0xff] %v1021
                  %v1023 = vld [vmem:[%s811 + $0x690] sm:$0xff]
                  %1024 = vst [vmem:[%s812 + $0x348] sm:$0xff] %v1023
                  %v1025 = vld [vmem:[%s811 + $0x6a0] sm:$0xff]
                  %1026 = vst [vmem:[%s812 + $0x350] sm:$0xff] %v1025
                  %v1027 = vld [vmem:[%s811 + $0x6b0] sm:$0xff]
                  %1028 = vst [vmem:[%s812 + $0x358] sm:$0xff] %v1027
                  %v1029 = vld [vmem:[%s811 + $0x6c0] sm:$0xff]
                  %1030 = vst [vmem:[%s812 + $0x360] sm:$0xff] %v1029
                  %v1031 = vld [vmem:[%s811 + $0x6d0] sm:$0xff]
                  %1032 = vst [vmem:[%s812 + $0x368] sm:$0xff] %v1031
                  %v1033 = vld [vmem:[%s811 + $0x6e0] sm:$0xff]
                  %1034 = vst [vmem:[%s812 + $0x370] sm:$0xff] %v1033
                  %v1035 = vld [vmem:[%s811 + $0x6f0] sm:$0xff]
                  %1036 = vst [vmem:[%s812 + $0x378] sm:$0xff] %v1035
                  %v1037 = vld [vmem:[%s811 + $0x700] sm:$0xff]
                  %1038 = vst [vmem:[%s812 + $0x380] sm:$0xff] %v1037
                  %v1039 = vld [vmem:[%s811 + $0x710] sm:$0xff]
                  %1040 = vst [vmem:[%s812 + $0x388] sm:$0xff] %v1039
                  %v1041 = vld [vmem:[%s811 + $0x720] sm:$0xff]
                  %1042 = vst [vmem:[%s812 + $0x390] sm:$0xff] %v1041
                  %v1043 = vld [vmem:[%s811 + $0x730] sm:$0xff]
                  %1044 = vst [vmem:[%s812 + $0x398] sm:$0xff] %v1043
                  %v1045 = vld [vmem:[%s811 + $0x740] sm:$0xff]
                  %1046 = vst [vmem:[%s812 + $0x3a0] sm:$0xff] %v1045
                  %v1047 = vld [vmem:[%s811 + $0x750] sm:$0xff]
                  %1048 = vst [vmem:[%s812 + $0x3a8] sm:$0xff] %v1047
                  %v1049 = vld [vmem:[%s811 + $0x760] sm:$0xff]
                  %1050 = vst [vmem:[%s812 + $0x3b0] sm:$0xff] %v1049
                  %v1051 = vld [vmem:[%s811 + $0x770] sm:$0xff]
                  %1052 = vst [vmem:[%s812 + $0x3b8] sm:$0xff] %v1051
                  %v1053 = vld [vmem:[%s811 + $0x780] sm:$0xff]
                  %1054 = vst [vmem:[%s812 + $0x3c0] sm:$0xff] %v1053
                  %v1055 = vld [vmem:[%s811 + $0x790] sm:$0xff]
                  %1056 = vst [vmem:[%s812 + $0x3c8] sm:$0xff] %v1055
                  %v1057 = vld [vmem:[%s811 + $0x7a0] sm:$0xff]
                  %1058 = vst [vmem:[%s812 + $0x3d0] sm:$0xff] %v1057
                  %v1059 = vld [vmem:[%s811 + $0x7b0] sm:$0xff]
                  %1060 = vst [vmem:[%s812 + $0x3d8] sm:$0xff] %v1059
                  %v1061 = vld [vmem:[%s811 + $0x7c0] sm:$0xff]
                  %1062 = vst [vmem:[%s812 + $0x3e0] sm:$0xff] %v1061
                  %v1063 = vld [vmem:[%s811 + $0x7d0] sm:$0xff]
                  %1064 = vst [vmem:[%s812 + $0x3e8] sm:$0xff] %v1063
                  %v1065 = vld [vmem:[%s811 + $0x7e0] sm:$0xff]
                  %1066 = vst [vmem:[%s812 + $0x3f0] sm:$0xff] %v1065
                  %v1067 = vld [vmem:[%s811 + $0x7f0] sm:$0xff]
                  %1068 = vst [vmem:[%s812 + $0x3f8] sm:$0xff] %v1067
                  %v1069 = vld [vmem:[%s811 + $0x800] sm:$0xff]
                  %1070 = vst [vmem:[%s812 + $0x400] sm:$0xff] %v1069
                  %v1071 = vld [vmem:[%s811 + $0x810] sm:$0xff]
                  %1072 = vst [vmem:[%s812 + $0x408] sm:$0xff] %v1071
                  %v1073 = vld [vmem:[%s811 + $0x820] sm:$0xff]
                  %1074 = vst [vmem:[%s812 + $0x410] sm:$0xff] %v1073
                  %v1075 = vld [vmem:[%s811 + $0x830] sm:$0xff]
                  %1076 = vst [vmem:[%s812 + $0x418] sm:$0xff] %v1075
                  %v1077 = vld [vmem:[%s811 + $0x840] sm:$0xff]
                  %1078 = vst [vmem:[%s812 + $0x420] sm:$0xff] %v1077
                  %v1079 = vld [vmem:[%s811 + $0x850] sm:$0xff]
                  %1080 = vst [vmem:[%s812 + $0x428] sm:$0xff] %v1079
                  %v1081 = vld [vmem:[%s811 + $0x860] sm:$0xff]
                  %1082 = vst [vmem:[%s812 + $0x430] sm:$0xff] %v1081
                  %v1083 = vld [vmem:[%s811 + $0x870] sm:$0xff]
                  %1084 = vst [vmem:[%s812 + $0x438] sm:$0xff] %v1083
                  %v1085 = vld [vmem:[%s811 + $0x880] sm:$0xff]
                  %1086 = vst [vmem:[%s812 + $0x440] sm:$0xff] %v1085
                  %v1087 = vld [vmem:[%s811 + $0x890] sm:$0xff]
                  %1088 = vst [vmem:[%s812 + $0x448] sm:$0xff] %v1087
                  %v1089 = vld [vmem:[%s811 + $0x8a0] sm:$0xff]
                  %1090 = vst [vmem:[%s812 + $0x450] sm:$0xff] %v1089
                  %v1091 = vld [vmem:[%s811 + $0x8b0] sm:$0xff]
                  %1092 = vst [vmem:[%s812 + $0x458] sm:$0xff] %v1091
                  %v1093 = vld [vmem:[%s811 + $0x8c0] sm:$0xff]
                  %1094 = vst [vmem:[%s812 + $0x460] sm:$0xff] %v1093
                  %v1095 = vld [vmem:[%s811 + $0x8d0] sm:$0xff]
                  %1096 = vst [vmem:[%s812 + $0x468] sm:$0xff] %v1095
                  %v1097 = vld [vmem:[%s811 + $0x8e0] sm:$0xff]
                  %1098 = vst [vmem:[%s812 + $0x470] sm:$0xff] %v1097
                  %v1099 = vld [vmem:[%s811 + $0x8f0] sm:$0xff]
                  %1100 = vst [vmem:[%s812 + $0x478] sm:$0xff] %v1099
                  %v1101 = vld [vmem:[%s811 + $0x900] sm:$0xff]
                  %1102 = vst [vmem:[%s812 + $0x480] sm:$0xff] %v1101
                  %v1103 = vld [vmem:[%s811 + $0x910] sm:$0xff]
                  %1104 = vst [vmem:[%s812 + $0x488] sm:$0xff] %v1103
                  %v1105 = vld [vmem:[%s811 + $0x920] sm:$0xff]
                  %1106 = vst [vmem:[%s812 + $0x490] sm:$0xff] %v1105
                  %v1107 = vld [vmem:[%s811 + $0x930] sm:$0xff]
                  %1108 = vst [vmem:[%s812 + $0x498] sm:$0xff] %v1107
                  %v1109 = vld [vmem:[%s811 + $0x940] sm:$0xff]
                  %1110 = vst [vmem:[%s812 + $0x4a0] sm:$0xff] %v1109
                  %v1111 = vld [vmem:[%s811 + $0x950] sm:$0xff]
                  %1112 = vst [vmem:[%s812 + $0x4a8] sm:$0xff] %v1111
                  %v1113 = vld [vmem:[%s811 + $0x960] sm:$0xff]
                  %1114 = vst [vmem:[%s812 + $0x4b0] sm:$0xff] %v1113
                  %v1115 = vld [vmem:[%s811 + $0x970] sm:$0xff]
                  %1116 = vst [vmem:[%s812 + $0x4b8] sm:$0xff] %v1115
                  %v1117 = vld [vmem:[%s811 + $0x980] sm:$0xff]
                  %1118 = vst [vmem:[%s812 + $0x4c0] sm:$0xff] %v1117
                  %v1119 = vld [vmem:[%s811 + $0x990] sm:$0xff]
                  %1120 = vst [vmem:[%s812 + $0x4c8] sm:$0xff] %v1119
                  %v1121 = vld [vmem:[%s811 + $0x9a0] sm:$0xff]
                  %1122 = vst [vmem:[%s812 + $0x4d0] sm:$0xff] %v1121
                  %v1123 = vld [vmem:[%s811 + $0x9b0] sm:$0xff]
                  %1124 = vst [vmem:[%s812 + $0x4d8] sm:$0xff] %v1123
                  %v1125 = vld [vmem:[%s811 + $0x9c0] sm:$0xff]
                  %1126 = vst [vmem:[%s812 + $0x4e0] sm:$0xff] %v1125
                  %v1127 = vld [vmem:[%s811 + $0x9d0] sm:$0xff]
                  %1128 = vst [vmem:[%s812 + $0x4e8] sm:$0xff] %v1127
                  %v1129 = vld [vmem:[%s811 + $0x9e0] sm:$0xff]
                  %1130 = vst [vmem:[%s812 + $0x4f0] sm:$0xff] %v1129
                  %v1131 = vld [vmem:[%s811 + $0x9f0] sm:$0xff]
                  %1132 = vst [vmem:[%s812 + $0x4f8] sm:$0xff] %v1131
                  %v1133 = vld [vmem:[%s811 + $0xa00] sm:$0xff]
                  %1134 = vst [vmem:[%s812 + $0x500] sm:$0xff] %v1133
                  %v1135 = vld [vmem:[%s811 + $0xa10] sm:$0xff]
                  %1136 = vst [vmem:[%s812 + $0x508] sm:$0xff] %v1135
                  %v1137 = vld [vmem:[%s811 + $0xa20] sm:$0xff]
                  %1138 = vst [vmem:[%s812 + $0x510] sm:$0xff] %v1137
                  %v1139 = vld [vmem:[%s811 + $0xa30] sm:$0xff]
                  %1140 = vst [vmem:[%s812 + $0x518] sm:$0xff] %v1139
                  %v1141 = vld [vmem:[%s811 + $0xa40] sm:$0xff]
                  %1142 = vst [vmem:[%s812 + $0x520] sm:$0xff] %v1141
                  %v1143 = vld [vmem:[%s811 + $0xa50] sm:$0xff]
                  %1144 = vst [vmem:[%s812 + $0x528] sm:$0xff] %v1143
                  %v1145 = vld [vmem:[%s811 + $0xa60] sm:$0xff]
                  %1146 = vst [vmem:[%s812 + $0x530] sm:$0xff] %v1145
                  %v1147 = vld [vmem:[%s811 + $0xa70] sm:$0xff]
                  %1148 = vst [vmem:[%s812 + $0x538] sm:$0xff] %v1147
                  %v1149 = vld [vmem:[%s811 + $0xa80] sm:$0xff]
                  %1150 = vst [vmem:[%s812 + $0x540] sm:$0xff] %v1149
                  %v1151 = vld [vmem:[%s811 + $0xa90] sm:$0xff]
                  %1152 = vst [vmem:[%s812 + $0x548] sm:$0xff] %v1151
                  %v1153 = vld [vmem:[%s811 + $0xaa0] sm:$0xff]
                  %1154 = vst [vmem:[%s812 + $0x550] sm:$0xff] %v1153
                  %v1155 = vld [vmem:[%s811 + $0xab0] sm:$0xff]
                  %1156 = vst [vmem:[%s812 + $0x558] sm:$0xff] %v1155
                  %v1157 = vld [vmem:[%s811 + $0xac0] sm:$0xff]
                  %1158 = vst [vmem:[%s812 + $0x560] sm:$0xff] %v1157
                  %v1159 = vld [vmem:[%s811 + $0xad0] sm:$0xff]
                  %1160 = vst [vmem:[%s812 + $0x568] sm:$0xff] %v1159
                  %v1161 = vld [vmem:[%s811 + $0xae0] sm:$0xff]
                  %1162 = vst [vmem:[%s812 + $0x570] sm:$0xff] %v1161
                  %v1163 = vld [vmem:[%s811 + $0xaf0] sm:$0xff]
                  %1164 = vst [vmem:[%s812 + $0x578] sm:$0xff] %v1163
                  %v1165 = vld [vmem:[%s811 + $0xb00] sm:$0xff]
                  %1166 = vst [vmem:[%s812 + $0x580] sm:$0xff] %v1165
                  %v1167 = vld [vmem:[%s811 + $0xb10] sm:$0xff]
                  %1168 = vst [vmem:[%s812 + $0x588] sm:$0xff] %v1167
                  %v1169 = vld [vmem:[%s811 + $0xb20] sm:$0xff]
                  %1170 = vst [vmem:[%s812 + $0x590] sm:$0xff] %v1169
                  %v1171 = vld [vmem:[%s811 + $0xb30] sm:$0xff]
                  %1172 = vst [vmem:[%s812 + $0x598] sm:$0xff] %v1171
                  %v1173 = vld [vmem:[%s811 + $0xb40] sm:$0xff]
                  %1174 = vst [vmem:[%s812 + $0x5a0] sm:$0xff] %v1173
                  %v1175 = vld [vmem:[%s811 + $0xb50] sm:$0xff]
                  %1176 = vst [vmem:[%s812 + $0x5a8] sm:$0xff] %v1175
                  %v1177 = vld [vmem:[%s811 + $0xb60] sm:$0xff]
                  %1178 = vst [vmem:[%s812 + $0x5b0] sm:$0xff] %v1177
                  %v1179 = vld [vmem:[%s811 + $0xb70] sm:$0xff]
                  %1180 = vst [vmem:[%s812 + $0x5b8] sm:$0xff] %v1179
                  %v1181 = vld [vmem:[%s811 + $0xb80] sm:$0xff]
                  %1182 = vst [vmem:[%s812 + $0x5c0] sm:$0xff] %v1181
                  %v1183 = vld [vmem:[%s811 + $0xb90] sm:$0xff]
                  %1184 = vst [vmem:[%s812 + $0x5c8] sm:$0xff] %v1183
                  %v1185 = vld [vmem:[%s811 + $0xba0] sm:$0xff]
                  %1186 = vst [vmem:[%s812 + $0x5d0] sm:$0xff] %v1185
                  %v1187 = vld [vmem:[%s811 + $0xbb0] sm:$0xff]
                  %1188 = vst [vmem:[%s812 + $0x5d8] sm:$0xff] %v1187
                  %v1189 = vld [vmem:[%s811 + $0xbc0] sm:$0xff]
                  %1190 = vst [vmem:[%s812 + $0x5e0] sm:$0xff] %v1189
                  %v1191 = vld [vmem:[%s811 + $0xbd0] sm:$0xff]
                  %1192 = vst [vmem:[%s812 + $0x5e8] sm:$0xff] %v1191
                  %v1193 = vld [vmem:[%s811 + $0xbe0] sm:$0xff]
                  %1194 = vst [vmem:[%s812 + $0x5f0] sm:$0xff] %v1193
                  %v1195 = vld [vmem:[%s811 + $0xbf0] sm:$0xff]
                  %1196 = vst [vmem:[%s812 + $0x5f8] sm:$0xff] %v1195
                  %v1197 = vld [vmem:[%s811 + $0xc00] sm:$0xff]
                  %1198 = vst [vmem:[%s812 + $0x600] sm:$0xff] %v1197
                  %v1199 = vld [vmem:[%s811 + $0xc10] sm:$0xff]
                  %1200 = vst [vmem:[%s812 + $0x608] sm:$0xff] %v1199
                  %v1201 = vld [vmem:[%s811 + $0xc20] sm:$0xff]
                  %1202 = vst [vmem:[%s812 + $0x610] sm:$0xff] %v1201
                  %v1203 = vld [vmem:[%s811 + $0xc30] sm:$0xff]
                  %1204 = vst [vmem:[%s812 + $0x618] sm:$0xff] %v1203
                  %v1205 = vld [vmem:[%s811 + $0xc40] sm:$0xff]
                  %1206 = vst [vmem:[%s812 + $0x620] sm:$0xff] %v1205
                  %v1207 = vld [vmem:[%s811 + $0xc50] sm:$0xff]
                  %1208 = vst [vmem:[%s812 + $0x628] sm:$0xff] %v1207
                  %v1209 = vld [vmem:[%s811 + $0xc60] sm:$0xff]
                  %1210 = vst [vmem:[%s812 + $0x630] sm:$0xff] %v1209
                  %v1211 = vld [vmem:[%s811 + $0xc70] sm:$0xff]
                  %1212 = vst [vmem:[%s812 + $0x638] sm:$0xff] %v1211
                  %v1213 = vld [vmem:[%s811 + $0xc80] sm:$0xff]
                  %1214 = vst [vmem:[%s812 + $0x640] sm:$0xff] %v1213
                  %v1215 = vld [vmem:[%s811 + $0xc90] sm:$0xff]
                  %1216 = vst [vmem:[%s812 + $0x648] sm:$0xff] %v1215
                  %v1217 = vld [vmem:[%s811 + $0xca0] sm:$0xff]
                  %1218 = vst [vmem:[%s812 + $0x650] sm:$0xff] %v1217
                  %v1219 = vld [vmem:[%s811 + $0xcb0] sm:$0xff]
                  %1220 = vst [vmem:[%s812 + $0x658] sm:$0xff] %v1219
                  %v1221 = vld [vmem:[%s811 + $0xcc0] sm:$0xff]
                  %1222 = vst [vmem:[%s812 + $0x660] sm:$0xff] %v1221
                  %v1223 = vld [vmem:[%s811 + $0xcd0] sm:$0xff]
                  %1224 = vst [vmem:[%s812 + $0x668] sm:$0xff] %v1223
                  %v1225 = vld [vmem:[%s811 + $0xce0] sm:$0xff]
                  %1226 = vst [vmem:[%s812 + $0x670] sm:$0xff] %v1225
                  %v1227 = vld [vmem:[%s811 + $0xcf0] sm:$0xff]
                  %1228 = vst [vmem:[%s812 + $0x678] sm:$0xff] %v1227
                  %v1229 = vld [vmem:[%s811 + $0xd00] sm:$0xff]
                  %1230 = vst [vmem:[%s812 + $0x680] sm:$0xff] %v1229
                  %v1231 = vld [vmem:[%s811 + $0xd10] sm:$0xff]
                  %1232 = vst [vmem:[%s812 + $0x688] sm:$0xff] %v1231
                  %v1233 = vld [vmem:[%s811 + $0xd20] sm:$0xff]
                  %1234 = vst [vmem:[%s812 + $0x690] sm:$0xff] %v1233
                  %v1235 = vld [vmem:[%s811 + $0xd30] sm:$0xff]
                  %1236 = vst [vmem:[%s812 + $0x698] sm:$0xff] %v1235
                  %v1237 = vld [vmem:[%s811 + $0xd40] sm:$0xff]
                  %1238 = vst [vmem:[%s812 + $0x6a0] sm:$0xff] %v1237
                  %v1239 = vld [vmem:[%s811 + $0xd50] sm:$0xff]
                  %1240 = vst [vmem:[%s812 + $0x6a8] sm:$0xff] %v1239
                  %v1241 = vld [vmem:[%s811 + $0xd60] sm:$0xff]
                  %1242 = vst [vmem:[%s812 + $0x6b0] sm:$0xff] %v1241
                  %v1243 = vld [vmem:[%s811 + $0xd70] sm:$0xff]
                  %1244 = vst [vmem:[%s812 + $0x6b8] sm:$0xff] %v1243
                  %v1245 = vld [vmem:[%s811 + $0xd80] sm:$0xff]
                  %1246 = vst [vmem:[%s812 + $0x6c0] sm:$0xff] %v1245
                  %v1247 = vld [vmem:[%s811 + $0xd90] sm:$0xff]
                  %1248 = vst [vmem:[%s812 + $0x6c8] sm:$0xff] %v1247
                  %v1249 = vld [vmem:[%s811 + $0xda0] sm:$0xff]
                  %1250 = vst [vmem:[%s812 + $0x6d0] sm:$0xff] %v1249
                  %v1251 = vld [vmem:[%s811 + $0xdb0] sm:$0xff]
                  %1252 = vst [vmem:[%s812 + $0x6d8] sm:$0xff] %v1251
                  %v1253 = vld [vmem:[%s811 + $0xdc0] sm:$0xff]
                  %1254 = vst [vmem:[%s812 + $0x6e0] sm:$0xff] %v1253
                  %v1255 = vld [vmem:[%s811 + $0xdd0] sm:$0xff]
                  %1256 = vst [vmem:[%s812 + $0x6e8] sm:$0xff] %v1255
                  %v1257 = vld [vmem:[%s811 + $0xde0] sm:$0xff]
                  %1258 = vst [vmem:[%s812 + $0x6f0] sm:$0xff] %v1257
                  %v1259 = vld [vmem:[%s811 + $0xdf0] sm:$0xff]
                  %1260 = vst [vmem:[%s812 + $0x6f8] sm:$0xff] %v1259
                  %v1261 = vld [vmem:[%s811 + $0xe00] sm:$0xff]
                  %1262 = vst [vmem:[%s812 + $0x700] sm:$0xff] %v1261
                  %v1263 = vld [vmem:[%s811 + $0xe10] sm:$0xff]
                  %1264 = vst [vmem:[%s812 + $0x708] sm:$0xff] %v1263
                  %v1265 = vld [vmem:[%s811 + $0xe20] sm:$0xff]
                  %1266 = vst [vmem:[%s812 + $0x710] sm:$0xff] %v1265
                  %v1267 = vld [vmem:[%s811 + $0xe30] sm:$0xff]
                  %1268 = vst [vmem:[%s812 + $0x718] sm:$0xff] %v1267
                  %v1269 = vld [vmem:[%s811 + $0xe40] sm:$0xff]
                  %1270 = vst [vmem:[%s812 + $0x720] sm:$0xff] %v1269
                  %v1271 = vld [vmem:[%s811 + $0xe50] sm:$0xff]
                  %1272 = vst [vmem:[%s812 + $0x728] sm:$0xff] %v1271
                  %v1273 = vld [vmem:[%s811 + $0xe60] sm:$0xff]
                  %1274 = vst [vmem:[%s812 + $0x730] sm:$0xff] %v1273
                  %v1275 = vld [vmem:[%s811 + $0xe70] sm:$0xff]
                  %1276 = vst [vmem:[%s812 + $0x738] sm:$0xff] %v1275
                  %v1277 = vld [vmem:[%s811 + $0xe80] sm:$0xff]
                  %1278 = vst [vmem:[%s812 + $0x740] sm:$0xff] %v1277
                  %v1279 = vld [vmem:[%s811 + $0xe90] sm:$0xff]
                  %1280 = vst [vmem:[%s812 + $0x748] sm:$0xff] %v1279
                  %v1281 = vld [vmem:[%s811 + $0xea0] sm:$0xff]
                  %1282 = vst [vmem:[%s812 + $0x750] sm:$0xff] %v1281
                  %v1283 = vld [vmem:[%s811 + $0xeb0] sm:$0xff]
                  %1284 = vst [vmem:[%s812 + $0x758] sm:$0xff] %v1283
                  %v1285 = vld [vmem:[%s811 + $0xec0] sm:$0xff]
                  %1286 = vst [vmem:[%s812 + $0x760] sm:$0xff] %v1285
                  %v1287 = vld [vmem:[%s811 + $0xed0] sm:$0xff]
                  %1288 = vst [vmem:[%s812 + $0x768] sm:$0xff] %v1287
                  %v1289 = vld [vmem:[%s811 + $0xee0] sm:$0xff]
                  %1290 = vst [vmem:[%s812 + $0x770] sm:$0xff] %v1289
                  %v1291 = vld [vmem:[%s811 + $0xef0] sm:$0xff]
                  %1292 = vst [vmem:[%s812 + $0x778] sm:$0xff] %v1291
                  %v1293 = vld [vmem:[%s811 + $0xf00] sm:$0xff]
                  %1294 = vst [vmem:[%s812 + $0x780] sm:$0xff] %v1293
                  %v1295 = vld [vmem:[%s811 + $0xf10] sm:$0xff]
                  %1296 = vst [vmem:[%s812 + $0x788] sm:$0xff] %v1295
                  %v1297 = vld [vmem:[%s811 + $0xf20] sm:$0xff]
                  %1298 = vst [vmem:[%s812 + $0x790] sm:$0xff] %v1297
                  %v1299 = vld [vmem:[%s811 + $0xf30] sm:$0xff]
                  %1300 = vst [vmem:[%s812 + $0x798] sm:$0xff] %v1299
                  %v1301 = vld [vmem:[%s811 + $0xf40] sm:$0xff]
                  %1302 = vst [vmem:[%s812 + $0x7a0] sm:$0xff] %v1301
                  %v1303 = vld [vmem:[%s811 + $0xf50] sm:$0xff]
                  %1304 = vst [vmem:[%s812 + $0x7a8] sm:$0xff] %v1303
                  %v1305 = vld [vmem:[%s811 + $0xf60] sm:$0xff]
                  %1306 = vst [vmem:[%s812 + $0x7b0] sm:$0xff] %v1305
                  %v1307 = vld [vmem:[%s811 + $0xf70] sm:$0xff]
                  %1308 = vst [vmem:[%s812 + $0x7b8] sm:$0xff] %v1307
                  %v1309 = vld [vmem:[%s811 + $0xf80] sm:$0xff]
                  %1310 = vst [vmem:[%s812 + $0x7c0] sm:$0xff] %v1309
                  %v1311 = vld [vmem:[%s811 + $0xf90] sm:$0xff]
                  %1312 = vst [vmem:[%s812 + $0x7c8] sm:$0xff] %v1311
                  %v1313 = vld [vmem:[%s811 + $0xfa0] sm:$0xff]
                  %1314 = vst [vmem:[%s812 + $0x7d0] sm:$0xff] %v1313
                  %v1315 = vld [vmem:[%s811 + $0xfb0] sm:$0xff]
                  %1316 = vst [vmem:[%s812 + $0x7d8] sm:$0xff] %v1315
                  %v1317 = vld [vmem:[%s811 + $0xfc0] sm:$0xff]
                  %1318 = vst [vmem:[%s812 + $0x7e0] sm:$0xff] %v1317
                  %v1319 = vld [vmem:[%s811 + $0xfd0] sm:$0xff]
                  %1320 = vst [vmem:[%s812 + $0x7e8] sm:$0xff] %v1319
                  %v1321 = vld [vmem:[%s811 + $0xfe0] sm:$0xff]
                  %1322 = vst [vmem:[%s812 + $0x7f0] sm:$0xff] %v1321
                  %v1323 = vld [vmem:[%s811 + $0xff0] sm:$0xff]
                  %1324 = vst [vmem:[%s812 + $0x7f8] sm:$0xff] %v1323
                  %v1325 = vld [vmem:[%s811 + $0x1000] sm:$0xff]
                  %1326 = vst [vmem:[%s812 + $0x800] sm:$0xff] %v1325
                  %v1327 = vld [vmem:[%s811 + $0x1010] sm:$0xff]
                  %1328 = vst [vmem:[%s812 + $0x808] sm:$0xff] %v1327
                  %v1329 = vld [vmem:[%s811 + $0x1020] sm:$0xff]
                  %1330 = vst [vmem:[%s812 + $0x810] sm:$0xff] %v1329
                  %v1331 = vld [vmem:[%s811 + $0x1030] sm:$0xff]
                  %1332 = vst [vmem:[%s812 + $0x818] sm:$0xff] %v1331
                  %v1333 = vld [vmem:[%s811 + $0x1040] sm:$0xff]
                  %1334 = vst [vmem:[%s812 + $0x820] sm:$0xff] %v1333
                  %v1335 = vld [vmem:[%s811 + $0x1050] sm:$0xff]
                  %1336 = vst [vmem:[%s812 + $0x828] sm:$0xff] %v1335
                  %v1337 = vld [vmem:[%s811 + $0x1060] sm:$0xff]
                  %1338 = vst [vmem:[%s812 + $0x830] sm:$0xff] %v1337
                  %v1339 = vld [vmem:[%s811 + $0x1070] sm:$0xff]
                  %1340 = vst [vmem:[%s812 + $0x838] sm:$0xff] %v1339
                  %v1341 = vld [vmem:[%s811 + $0x1080] sm:$0xff]
                  %1342 = vst [vmem:[%s812 + $0x840] sm:$0xff] %v1341
                  %v1343 = vld [vmem:[%s811 + $0x1090] sm:$0xff]
                  %1344 = vst [vmem:[%s812 + $0x848] sm:$0xff] %v1343
                  %v1345 = vld [vmem:[%s811 + $0x10a0] sm:$0xff]
                  %1346 = vst [vmem:[%s812 + $0x850] sm:$0xff] %v1345
                  %v1347 = vld [vmem:[%s811 + $0x10b0] sm:$0xff]
                  %1348 = vst [vmem:[%s812 + $0x858] sm:$0xff] %v1347
                  %v1349 = vld [vmem:[%s811 + $0x10c0] sm:$0xff]
                  %1350 = vst [vmem:[%s812 + $0x860] sm:$0xff] %v1349
                  %v1351 = vld [vmem:[%s811 + $0x10d0] sm:$0xff]
                  %1352 = vst [vmem:[%s812 + $0x868] sm:$0xff] %v1351
                  %v1353 = vld [vmem:[%s811 + $0x10e0] sm:$0xff]
                  %1354 = vst [vmem:[%s812 + $0x870] sm:$0xff] %v1353
                  %v1355 = vld [vmem:[%s811 + $0x10f0] sm:$0xff]
                  %1356 = vst [vmem:[%s812 + $0x878] sm:$0xff] %v1355
                  %v1357 = vld [vmem:[%s811 + $0x1100] sm:$0xff]
                  %1358 = vst [vmem:[%s812 + $0x880] sm:$0xff] %v1357
                  %v1359 = vld [vmem:[%s811 + $0x1110] sm:$0xff]
                  %1360 = vst [vmem:[%s812 + $0x888] sm:$0xff] %v1359
                  %v1361 = vld [vmem:[%s811 + $0x1120] sm:$0xff]
                  %1362 = vst [vmem:[%s812 + $0x890] sm:$0xff] %v1361
                  %v1363 = vld [vmem:[%s811 + $0x1130] sm:$0xff]
                  %1364 = vst [vmem:[%s812 + $0x898] sm:$0xff] %v1363
                  %v1365 = vld [vmem:[%s811 + $0x1140] sm:$0xff]
                  %1366 = vst [vmem:[%s812 + $0x8a0] sm:$0xff] %v1365
                  %v1367 = vld [vmem:[%s811 + $0x1150] sm:$0xff]
                  %1368 = vst [vmem:[%s812 + $0x8a8] sm:$0xff] %v1367
                  %v1369 = vld [vmem:[%s811 + $0x1160] sm:$0xff]
                  %1370 = vst [vmem:[%s812 + $0x8b0] sm:$0xff] %v1369
                  %v1371 = vld [vmem:[%s811 + $0x1170] sm:$0xff]
                  %1372 = vst [vmem:[%s812 + $0x8b8] sm:$0xff] %v1371
                  %v1373 = vld [vmem:[%s811 + $0x1180] sm:$0xff]
                  %1374 = vst [vmem:[%s812 + $0x8c0] sm:$0xff] %v1373
                  %v1375 = vld [vmem:[%s811 + $0x1190] sm:$0xff]
                  %1376 = vst [vmem:[%s812 + $0x8c8] sm:$0xff] %v1375
                  %v1377 = vld [vmem:[%s811 + $0x11a0] sm:$0xff]
                  %1378 = vst [vmem:[%s812 + $0x8d0] sm:$0xff] %v1377
                  %v1379 = vld [vmem:[%s811 + $0x11b0] sm:$0xff]
                  %1380 = vst [vmem:[%s812 + $0x8d8] sm:$0xff] %v1379
                  %v1381 = vld [vmem:[%s811 + $0x11c0] sm:$0xff]
                  %1382 = vst [vmem:[%s812 + $0x8e0] sm:$0xff] %v1381
                  %v1383 = vld [vmem:[%s811 + $0x11d0] sm:$0xff]
                  %1384 = vst [vmem:[%s812 + $0x8e8] sm:$0xff] %v1383
                  %v1385 = vld [vmem:[%s811 + $0x11e0] sm:$0xff]
                  %1386 = vst [vmem:[%s812 + $0x8f0] sm:$0xff] %v1385
                  %v1387 = vld [vmem:[%s811 + $0x11f0] sm:$0xff]
                  %1388 = vst [vmem:[%s812 + $0x8f8] sm:$0xff] %v1387
                $region52: #{netG_28_forward.4} parent=46 // loop_footer
                  %s810 = sadd.s32 1, %s806
                $region53: #{netG_28_forward.4} parent=46 // loop_footer_branch
                  %805 = sbr.rel target = $region49
                $region54: #{netG_28_forward.4} parent=46 // loop_exit
                  _
              $region47: #{netG_28_forward.4} parent=31 // pred_fallthru
                _
              // Predicated region
              $region55: #{netG_28_forward.4} parent=31 // pred_check
                _
              $region56: #{netG_28_forward.4} parent=31 // pred_check_branch
                %1390 = sbr.rel target = $region58
              $region57: #{netG_28_forward.4} parent=31 // pred_region
                _
              $region58: #{netG_28_forward.4} parent=31 // pred_fallthru
                _
            $region32: #{netG_28_forward.4} parent=27 // pred_fallthru
              _
            // Predicated region
            $region33: #{netG_28_forward.4} parent=27 // pred_check
              _
            $region34: #{netG_28_forward.4} parent=27 // pred_check_branch
              %217 = sbr.rel target = $region36
            $region35: #{netG_28_forward.4} parent=27 // pred_region
              loop: start=0, step=1, limit=1
              $region37: #{netG_28_forward.4} parent=35 // loop_pre_header
                _
              $region38: #{netG_28_forward.4} parent=35 // loop_header
                %s220 = sphi 0, %s224
                %p221 = scmp.ge.s32.totalorder %s220, 1
                %s225 = sphi %s211, %s211
                %s226 = sphi %s205, %s205
              $region39: #{netG_28_forward.4} parent=35 // loop_header_branch
                %223 = sbr.rel (%p221) target = $region43
              $region40: #{netG_28_forward.4} parent=35 // loop_body
                %v227 = vld [vmem:[%s225] sm:$0xff]
                %228 = vst [vmem:[%s226] sm:$0xff] %v227
                %v229 = vld [vmem:[%s225 + $0x10] sm:$0xff]
                %230 = vst [vmem:[%s226 + $0x8] sm:$0xff] %v229
                %v231 = vld [vmem:[%s225 + $0x20] sm:$0xff]
                %232 = vst [vmem:[%s226 + $0x10] sm:$0xff] %v231
                %v233 = vld [vmem:[%s225 + $0x30] sm:$0xff]
                %234 = vst [vmem:[%s226 + $0x18] sm:$0xff] %v233
                %v235 = vld [vmem:[%s225 + $0x40] sm:$0xff]
                %236 = vst [vmem:[%s226 + $0x20] sm:$0xff] %v235
                %v237 = vld [vmem:[%s225 + $0x50] sm:$0xff]
                %238 = vst [vmem:[%s226 + $0x28] sm:$0xff] %v237
                %v239 = vld [vmem:[%s225 + $0x60] sm:$0xff]
                %240 = vst [vmem:[%s226 + $0x30] sm:$0xff] %v239
                %v241 = vld [vmem:[%s225 + $0x70] sm:$0xff]
                %242 = vst [vmem:[%s226 + $0x38] sm:$0xff] %v241
                %v243 = vld [vmem:[%s225 + $0x80] sm:$0xff]
                %244 = vst [vmem:[%s226 + $0x40] sm:$0xff] %v243
                %v245 = vld [vmem:[%s225 + $0x90] sm:$0xff]
                %246 = vst [vmem:[%s226 + $0x48] sm:$0xff] %v245
                %v247 = vld [vmem:[%s225 + $0xa0] sm:$0xff]
                %248 = vst [vmem:[%s226 + $0x50] sm:$0xff] %v247
                %v249 = vld [vmem:[%s225 + $0xb0] sm:$0xff]
                %250 = vst [vmem:[%s226 + $0x58] sm:$0xff] %v249
                %v251 = vld [vmem:[%s225 + $0xc0] sm:$0xff]
                %252 = vst [vmem:[%s226 + $0x60] sm:$0xff] %v251
                %v253 = vld [vmem:[%s225 + $0xd0] sm:$0xff]
                %254 = vst [vmem:[%s226 + $0x68] sm:$0xff] %v253
                %v255 = vld [vmem:[%s225 + $0xe0] sm:$0xff]
                %256 = vst [vmem:[%s226 + $0x70] sm:$0xff] %v255
                %v257 = vld [vmem:[%s225 + $0xf0] sm:$0xff]
                %258 = vst [vmem:[%s226 + $0x78] sm:$0xff] %v257
                %v259 = vld [vmem:[%s225 + $0x100] sm:$0xff]
                %260 = vst [vmem:[%s226 + $0x80] sm:$0xff] %v259
                %v261 = vld [vmem:[%s225 + $0x110] sm:$0xff]
                %262 = vst [vmem:[%s226 + $0x88] sm:$0xff] %v261
                %v263 = vld [vmem:[%s225 + $0x120] sm:$0xff]
                %264 = vst [vmem:[%s226 + $0x90] sm:$0xff] %v263
                %v265 = vld [vmem:[%s225 + $0x130] sm:$0xff]
                %266 = vst [vmem:[%s226 + $0x98] sm:$0xff] %v265
                %v267 = vld [vmem:[%s225 + $0x140] sm:$0xff]
                %268 = vst [vmem:[%s226 + $0xa0] sm:$0xff] %v267
                %v269 = vld [vmem:[%s225 + $0x150] sm:$0xff]
                %270 = vst [vmem:[%s226 + $0xa8] sm:$0xff] %v269
                %v271 = vld [vmem:[%s225 + $0x160] sm:$0xff]
                %272 = vst [vmem:[%s226 + $0xb0] sm:$0xff] %v271
                %v273 = vld [vmem:[%s225 + $0x170] sm:$0xff]
                %274 = vst [vmem:[%s226 + $0xb8] sm:$0xff] %v273
                %v275 = vld [vmem:[%s225 + $0x180] sm:$0xff]
                %276 = vst [vmem:[%s226 + $0xc0] sm:$0xff] %v275
                %v277 = vld [vmem:[%s225 + $0x190] sm:$0xff]
                %278 = vst [vmem:[%s226 + $0xc8] sm:$0xff] %v277
                %v279 = vld [vmem:[%s225 + $0x1a0] sm:$0xff]
                %280 = vst [vmem:[%s226 + $0xd0] sm:$0xff] %v279
                %v281 = vld [vmem:[%s225 + $0x1b0] sm:$0xff]
                %282 = vst [vmem:[%s226 + $0xd8] sm:$0xff] %v281
                %v283 = vld [vmem:[%s225 + $0x1c0] sm:$0xff]
                %284 = vst [vmem:[%s226 + $0xe0] sm:$0xff] %v283
                %v285 = vld [vmem:[%s225 + $0x1d0] sm:$0xff]
                %286 = vst [vmem:[%s226 + $0xe8] sm:$0xff] %v285
                %v287 = vld [vmem:[%s225 + $0x1e0] sm:$0xff]
                %288 = vst [vmem:[%s226 + $0xf0] sm:$0xff] %v287
                %v289 = vld [vmem:[%s225 + $0x1f0] sm:$0xff]
                %290 = vst [vmem:[%s226 + $0xf8] sm:$0xff] %v289
                %v291 = vld [vmem:[%s225 + $0x200] sm:$0xff]
                %292 = vst [vmem:[%s226 + $0x100] sm:$0xff] %v291
                %v293 = vld [vmem:[%s225 + $0x210] sm:$0xff]
                %294 = vst [vmem:[%s226 + $0x108] sm:$0xff] %v293
                %v295 = vld [vmem:[%s225 + $0x220] sm:$0xff]
                %296 = vst [vmem:[%s226 + $0x110] sm:$0xff] %v295
                %v297 = vld [vmem:[%s225 + $0x230] sm:$0xff]
                %298 = vst [vmem:[%s226 + $0x118] sm:$0xff] %v297
                %v299 = vld [vmem:[%s225 + $0x240] sm:$0xff]
                %300 = vst [vmem:[%s226 + $0x120] sm:$0xff] %v299
                %v301 = vld [vmem:[%s225 + $0x250] sm:$0xff]
                %302 = vst [vmem:[%s226 + $0x128] sm:$0xff] %v301
                %v303 = vld [vmem:[%s225 + $0x260] sm:$0xff]
                %304 = vst [vmem:[%s226 + $0x130] sm:$0xff] %v303
                %v305 = vld [vmem:[%s225 + $0x270] sm:$0xff]
                %306 = vst [vmem:[%s226 + $0x138] sm:$0xff] %v305
                %v307 = vld [vmem:[%s225 + $0x280] sm:$0xff]
                %308 = vst [vmem:[%s226 + $0x140] sm:$0xff] %v307
                %v309 = vld [vmem:[%s225 + $0x290] sm:$0xff]
                %310 = vst [vmem:[%s226 + $0x148] sm:$0xff] %v309
                %v311 = vld [vmem:[%s225 + $0x2a0] sm:$0xff]
                %312 = vst [vmem:[%s226 + $0x150] sm:$0xff] %v311
                %v313 = vld [vmem:[%s225 + $0x2b0] sm:$0xff]
                %314 = vst [vmem:[%s226 + $0x158] sm:$0xff] %v313
                %v315 = vld [vmem:[%s225 + $0x2c0] sm:$0xff]
                %316 = vst [vmem:[%s226 + $0x160] sm:$0xff] %v315
                %v317 = vld [vmem:[%s225 + $0x2d0] sm:$0xff]
                %318 = vst [vmem:[%s226 + $0x168] sm:$0xff] %v317
                %v319 = vld [vmem:[%s225 + $0x2e0] sm:$0xff]
                %320 = vst [vmem:[%s226 + $0x170] sm:$0xff] %v319
                %v321 = vld [vmem:[%s225 + $0x2f0] sm:$0xff]
                %322 = vst [vmem:[%s226 + $0x178] sm:$0xff] %v321
                %v323 = vld [vmem:[%s225 + $0x300] sm:$0xff]
                %324 = vst [vmem:[%s226 + $0x180] sm:$0xff] %v323
                %v325 = vld [vmem:[%s225 + $0x310] sm:$0xff]
                %326 = vst [vmem:[%s226 + $0x188] sm:$0xff] %v325
                %v327 = vld [vmem:[%s225 + $0x320] sm:$0xff]
                %328 = vst [vmem:[%s226 + $0x190] sm:$0xff] %v327
                %v329 = vld [vmem:[%s225 + $0x330] sm:$0xff]
                %330 = vst [vmem:[%s226 + $0x198] sm:$0xff] %v329
                %v331 = vld [vmem:[%s225 + $0x340] sm:$0xff]
                %332 = vst [vmem:[%s226 + $0x1a0] sm:$0xff] %v331
                %v333 = vld [vmem:[%s225 + $0x350] sm:$0xff]
                %334 = vst [vmem:[%s226 + $0x1a8] sm:$0xff] %v333
                %v335 = vld [vmem:[%s225 + $0x360] sm:$0xff]
                %336 = vst [vmem:[%s226 + $0x1b0] sm:$0xff] %v335
                %v337 = vld [vmem:[%s225 + $0x370] sm:$0xff]
                %338 = vst [vmem:[%s226 + $0x1b8] sm:$0xff] %v337
                %v339 = vld [vmem:[%s225 + $0x380] sm:$0xff]
                %340 = vst [vmem:[%s226 + $0x1c0] sm:$0xff] %v339
                %v341 = vld [vmem:[%s225 + $0x390] sm:$0xff]
                %342 = vst [vmem:[%s226 + $0x1c8] sm:$0xff] %v341
                %v343 = vld [vmem:[%s225 + $0x3a0] sm:$0xff]
                %344 = vst [vmem:[%s226 + $0x1d0] sm:$0xff] %v343
                %v345 = vld [vmem:[%s225 + $0x3b0] sm:$0xff]
                %346 = vst [vmem:[%s226 + $0x1d8] sm:$0xff] %v345
                %v347 = vld [vmem:[%s225 + $0x3c0] sm:$0xff]
                %348 = vst [vmem:[%s226 + $0x1e0] sm:$0xff] %v347
                %v349 = vld [vmem:[%s225 + $0x3d0] sm:$0xff]
                %350 = vst [vmem:[%s226 + $0x1e8] sm:$0xff] %v349
                %v351 = vld [vmem:[%s225 + $0x3e0] sm:$0xff]
                %352 = vst [vmem:[%s226 + $0x1f0] sm:$0xff] %v351
                %v353 = vld [vmem:[%s225 + $0x3f0] sm:$0xff]
                %354 = vst [vmem:[%s226 + $0x1f8] sm:$0xff] %v353
                %v355 = vld [vmem:[%s225 + $0x400] sm:$0xff]
                %356 = vst [vmem:[%s226 + $0x200] sm:$0xff] %v355
                %v357 = vld [vmem:[%s225 + $0x410] sm:$0xff]
                %358 = vst [vmem:[%s226 + $0x208] sm:$0xff] %v357
                %v359 = vld [vmem:[%s225 + $0x420] sm:$0xff]
                %360 = vst [vmem:[%s226 + $0x210] sm:$0xff] %v359
                %v361 = vld [vmem:[%s225 + $0x430] sm:$0xff]
                %362 = vst [vmem:[%s226 + $0x218] sm:$0xff] %v361
                %v363 = vld [vmem:[%s225 + $0x440] sm:$0xff]
                %364 = vst [vmem:[%s226 + $0x220] sm:$0xff] %v363
                %v365 = vld [vmem:[%s225 + $0x450] sm:$0xff]
                %366 = vst [vmem:[%s226 + $0x228] sm:$0xff] %v365
                %v367 = vld [vmem:[%s225 + $0x460] sm:$0xff]
                %368 = vst [vmem:[%s226 + $0x230] sm:$0xff] %v367
                %v369 = vld [vmem:[%s225 + $0x470] sm:$0xff]
                %370 = vst [vmem:[%s226 + $0x238] sm:$0xff] %v369
                %v371 = vld [vmem:[%s225 + $0x480] sm:$0xff]
                %372 = vst [vmem:[%s226 + $0x240] sm:$0xff] %v371
                %v373 = vld [vmem:[%s225 + $0x490] sm:$0xff]
                %374 = vst [vmem:[%s226 + $0x248] sm:$0xff] %v373
                %v375 = vld [vmem:[%s225 + $0x4a0] sm:$0xff]
                %376 = vst [vmem:[%s226 + $0x250] sm:$0xff] %v375
                %v377 = vld [vmem:[%s225 + $0x4b0] sm:$0xff]
                %378 = vst [vmem:[%s226 + $0x258] sm:$0xff] %v377
                %v379 = vld [vmem:[%s225 + $0x4c0] sm:$0xff]
                %380 = vst [vmem:[%s226 + $0x260] sm:$0xff] %v379
                %v381 = vld [vmem:[%s225 + $0x4d0] sm:$0xff]
                %382 = vst [vmem:[%s226 + $0x268] sm:$0xff] %v381
                %v383 = vld [vmem:[%s225 + $0x4e0] sm:$0xff]
                %384 = vst [vmem:[%s226 + $0x270] sm:$0xff] %v383
                %v385 = vld [vmem:[%s225 + $0x4f0] sm:$0xff]
                %386 = vst [vmem:[%s226 + $0x278] sm:$0xff] %v385
                %v387 = vld [vmem:[%s225 + $0x500] sm:$0xff]
                %388 = vst [vmem:[%s226 + $0x280] sm:$0xff] %v387
                %v389 = vld [vmem:[%s225 + $0x510] sm:$0xff]
                %390 = vst [vmem:[%s226 + $0x288] sm:$0xff] %v389
                %v391 = vld [vmem:[%s225 + $0x520] sm:$0xff]
                %392 = vst [vmem:[%s226 + $0x290] sm:$0xff] %v391
                %v393 = vld [vmem:[%s225 + $0x530] sm:$0xff]
                %394 = vst [vmem:[%s226 + $0x298] sm:$0xff] %v393
                %v395 = vld [vmem:[%s225 + $0x540] sm:$0xff]
                %396 = vst [vmem:[%s226 + $0x2a0] sm:$0xff] %v395
                %v397 = vld [vmem:[%s225 + $0x550] sm:$0xff]
                %398 = vst [vmem:[%s226 + $0x2a8] sm:$0xff] %v397
                %v399 = vld [vmem:[%s225 + $0x560] sm:$0xff]
                %400 = vst [vmem:[%s226 + $0x2b0] sm:$0xff] %v399
                %v401 = vld [vmem:[%s225 + $0x570] sm:$0xff]
                %402 = vst [vmem:[%s226 + $0x2b8] sm:$0xff] %v401
                %v403 = vld [vmem:[%s225 + $0x580] sm:$0xff]
                %404 = vst [vmem:[%s226 + $0x2c0] sm:$0xff] %v403
                %v405 = vld [vmem:[%s225 + $0x590] sm:$0xff]
                %406 = vst [vmem:[%s226 + $0x2c8] sm:$0xff] %v405
                %v407 = vld [vmem:[%s225 + $0x5a0] sm:$0xff]
                %408 = vst [vmem:[%s226 + $0x2d0] sm:$0xff] %v407
                %v409 = vld [vmem:[%s225 + $0x5b0] sm:$0xff]
                %410 = vst [vmem:[%s226 + $0x2d8] sm:$0xff] %v409
                %v411 = vld [vmem:[%s225 + $0x5c0] sm:$0xff]
                %412 = vst [vmem:[%s226 + $0x2e0] sm:$0xff] %v411
                %v413 = vld [vmem:[%s225 + $0x5d0] sm:$0xff]
                %414 = vst [vmem:[%s226 + $0x2e8] sm:$0xff] %v413
                %v415 = vld [vmem:[%s225 + $0x5e0] sm:$0xff]
                %416 = vst [vmem:[%s226 + $0x2f0] sm:$0xff] %v415
                %v417 = vld [vmem:[%s225 + $0x5f0] sm:$0xff]
                %418 = vst [vmem:[%s226 + $0x2f8] sm:$0xff] %v417
                %v419 = vld [vmem:[%s225 + $0x600] sm:$0xff]
                %420 = vst [vmem:[%s226 + $0x300] sm:$0xff] %v419
                %v421 = vld [vmem:[%s225 + $0x610] sm:$0xff]
                %422 = vst [vmem:[%s226 + $0x308] sm:$0xff] %v421
                %v423 = vld [vmem:[%s225 + $0x620] sm:$0xff]
                %424 = vst [vmem:[%s226 + $0x310] sm:$0xff] %v423
                %v425 = vld [vmem:[%s225 + $0x630] sm:$0xff]
                %426 = vst [vmem:[%s226 + $0x318] sm:$0xff] %v425
                %v427 = vld [vmem:[%s225 + $0x640] sm:$0xff]
                %428 = vst [vmem:[%s226 + $0x320] sm:$0xff] %v427
                %v429 = vld [vmem:[%s225 + $0x650] sm:$0xff]
                %430 = vst [vmem:[%s226 + $0x328] sm:$0xff] %v429
                %v431 = vld [vmem:[%s225 + $0x660] sm:$0xff]
                %432 = vst [vmem:[%s226 + $0x330] sm:$0xff] %v431
                %v433 = vld [vmem:[%s225 + $0x670] sm:$0xff]
                %434 = vst [vmem:[%s226 + $0x338] sm:$0xff] %v433
                %v435 = vld [vmem:[%s225 + $0x680] sm:$0xff]
                %436 = vst [vmem:[%s226 + $0x340] sm:$0xff] %v435
                %v437 = vld [vmem:[%s225 + $0x690] sm:$0xff]
                %438 = vst [vmem:[%s226 + $0x348] sm:$0xff] %v437
                %v439 = vld [vmem:[%s225 + $0x6a0] sm:$0xff]
                %440 = vst [vmem:[%s226 + $0x350] sm:$0xff] %v439
                %v441 = vld [vmem:[%s225 + $0x6b0] sm:$0xff]
                %442 = vst [vmem:[%s226 + $0x358] sm:$0xff] %v441
                %v443 = vld [vmem:[%s225 + $0x6c0] sm:$0xff]
                %444 = vst [vmem:[%s226 + $0x360] sm:$0xff] %v443
                %v445 = vld [vmem:[%s225 + $0x6d0] sm:$0xff]
                %446 = vst [vmem:[%s226 + $0x368] sm:$0xff] %v445
                %v447 = vld [vmem:[%s225 + $0x6e0] sm:$0xff]
                %448 = vst [vmem:[%s226 + $0x370] sm:$0xff] %v447
                %v449 = vld [vmem:[%s225 + $0x6f0] sm:$0xff]
                %450 = vst [vmem:[%s226 + $0x378] sm:$0xff] %v449
                %v451 = vld [vmem:[%s225 + $0x700] sm:$0xff]
                %452 = vst [vmem:[%s226 + $0x380] sm:$0xff] %v451
                %v453 = vld [vmem:[%s225 + $0x710] sm:$0xff]
                %454 = vst [vmem:[%s226 + $0x388] sm:$0xff] %v453
                %v455 = vld [vmem:[%s225 + $0x720] sm:$0xff]
                %456 = vst [vmem:[%s226 + $0x390] sm:$0xff] %v455
                %v457 = vld [vmem:[%s225 + $0x730] sm:$0xff]
                %458 = vst [vmem:[%s226 + $0x398] sm:$0xff] %v457
                %v459 = vld [vmem:[%s225 + $0x740] sm:$0xff]
                %460 = vst [vmem:[%s226 + $0x3a0] sm:$0xff] %v459
                %v461 = vld [vmem:[%s225 + $0x750] sm:$0xff]
                %462 = vst [vmem:[%s226 + $0x3a8] sm:$0xff] %v461
                %v463 = vld [vmem:[%s225 + $0x760] sm:$0xff]
                %464 = vst [vmem:[%s226 + $0x3b0] sm:$0xff] %v463
                %v465 = vld [vmem:[%s225 + $0x770] sm:$0xff]
                %466 = vst [vmem:[%s226 + $0x3b8] sm:$0xff] %v465
                %v467 = vld [vmem:[%s225 + $0x780] sm:$0xff]
                %468 = vst [vmem:[%s226 + $0x3c0] sm:$0xff] %v467
                %v469 = vld [vmem:[%s225 + $0x790] sm:$0xff]
                %470 = vst [vmem:[%s226 + $0x3c8] sm:$0xff] %v469
                %v471 = vld [vmem:[%s225 + $0x7a0] sm:$0xff]
                %472 = vst [vmem:[%s226 + $0x3d0] sm:$0xff] %v471
                %v473 = vld [vmem:[%s225 + $0x7b0] sm:$0xff]
                %474 = vst [vmem:[%s226 + $0x3d8] sm:$0xff] %v473
                %v475 = vld [vmem:[%s225 + $0x7c0] sm:$0xff]
                %476 = vst [vmem:[%s226 + $0x3e0] sm:$0xff] %v475
                %v477 = vld [vmem:[%s225 + $0x7d0] sm:$0xff]
                %478 = vst [vmem:[%s226 + $0x3e8] sm:$0xff] %v477
                %v479 = vld [vmem:[%s225 + $0x7e0] sm:$0xff]
                %480 = vst [vmem:[%s226 + $0x3f0] sm:$0xff] %v479
                %v481 = vld [vmem:[%s225 + $0x7f0] sm:$0xff]
                %482 = vst [vmem:[%s226 + $0x3f8] sm:$0xff] %v481
                %v483 = vld [vmem:[%s225 + $0x800] sm:$0xff]
                %484 = vst [vmem:[%s226 + $0x400] sm:$0xff] %v483
                %v485 = vld [vmem:[%s225 + $0x810] sm:$0xff]
                %486 = vst [vmem:[%s226 + $0x408] sm:$0xff] %v485
                %v487 = vld [vmem:[%s225 + $0x820] sm:$0xff]
                %488 = vst [vmem:[%s226 + $0x410] sm:$0xff] %v487
                %v489 = vld [vmem:[%s225 + $0x830] sm:$0xff]
                %490 = vst [vmem:[%s226 + $0x418] sm:$0xff] %v489
                %v491 = vld [vmem:[%s225 + $0x840] sm:$0xff]
                %492 = vst [vmem:[%s226 + $0x420] sm:$0xff] %v491
                %v493 = vld [vmem:[%s225 + $0x850] sm:$0xff]
                %494 = vst [vmem:[%s226 + $0x428] sm:$0xff] %v493
                %v495 = vld [vmem:[%s225 + $0x860] sm:$0xff]
                %496 = vst [vmem:[%s226 + $0x430] sm:$0xff] %v495
                %v497 = vld [vmem:[%s225 + $0x870] sm:$0xff]
                %498 = vst [vmem:[%s226 + $0x438] sm:$0xff] %v497
                %v499 = vld [vmem:[%s225 + $0x880] sm:$0xff]
                %500 = vst [vmem:[%s226 + $0x440] sm:$0xff] %v499
                %v501 = vld [vmem:[%s225 + $0x890] sm:$0xff]
                %502 = vst [vmem:[%s226 + $0x448] sm:$0xff] %v501
                %v503 = vld [vmem:[%s225 + $0x8a0] sm:$0xff]
                %504 = vst [vmem:[%s226 + $0x450] sm:$0xff] %v503
                %v505 = vld [vmem:[%s225 + $0x8b0] sm:$0xff]
                %506 = vst [vmem:[%s226 + $0x458] sm:$0xff] %v505
                %v507 = vld [vmem:[%s225 + $0x8c0] sm:$0xff]
                %508 = vst [vmem:[%s226 + $0x460] sm:$0xff] %v507
                %v509 = vld [vmem:[%s225 + $0x8d0] sm:$0xff]
                %510 = vst [vmem:[%s226 + $0x468] sm:$0xff] %v509
                %v511 = vld [vmem:[%s225 + $0x8e0] sm:$0xff]
                %512 = vst [vmem:[%s226 + $0x470] sm:$0xff] %v511
                %v513 = vld [vmem:[%s225 + $0x8f0] sm:$0xff]
                %514 = vst [vmem:[%s226 + $0x478] sm:$0xff] %v513
                %v515 = vld [vmem:[%s225 + $0x900] sm:$0xff]
                %516 = vst [vmem:[%s226 + $0x480] sm:$0xff] %v515
                %v517 = vld [vmem:[%s225 + $0x910] sm:$0xff]
                %518 = vst [vmem:[%s226 + $0x488] sm:$0xff] %v517
                %v519 = vld [vmem:[%s225 + $0x920] sm:$0xff]
                %520 = vst [vmem:[%s226 + $0x490] sm:$0xff] %v519
                %v521 = vld [vmem:[%s225 + $0x930] sm:$0xff]
                %522 = vst [vmem:[%s226 + $0x498] sm:$0xff] %v521
                %v523 = vld [vmem:[%s225 + $0x940] sm:$0xff]
                %524 = vst [vmem:[%s226 + $0x4a0] sm:$0xff] %v523
                %v525 = vld [vmem:[%s225 + $0x950] sm:$0xff]
                %526 = vst [vmem:[%s226 + $0x4a8] sm:$0xff] %v525
                %v527 = vld [vmem:[%s225 + $0x960] sm:$0xff]
                %528 = vst [vmem:[%s226 + $0x4b0] sm:$0xff] %v527
                %v529 = vld [vmem:[%s225 + $0x970] sm:$0xff]
                %530 = vst [vmem:[%s226 + $0x4b8] sm:$0xff] %v529
                %v531 = vld [vmem:[%s225 + $0x980] sm:$0xff]
                %532 = vst [vmem:[%s226 + $0x4c0] sm:$0xff] %v531
                %v533 = vld [vmem:[%s225 + $0x990] sm:$0xff]
                %534 = vst [vmem:[%s226 + $0x4c8] sm:$0xff] %v533
                %v535 = vld [vmem:[%s225 + $0x9a0] sm:$0xff]
                %536 = vst [vmem:[%s226 + $0x4d0] sm:$0xff] %v535
                %v537 = vld [vmem:[%s225 + $0x9b0] sm:$0xff]
                %538 = vst [vmem:[%s226 + $0x4d8] sm:$0xff] %v537
                %v539 = vld [vmem:[%s225 + $0x9c0] sm:$0xff]
                %540 = vst [vmem:[%s226 + $0x4e0] sm:$0xff] %v539
                %v541 = vld [vmem:[%s225 + $0x9d0] sm:$0xff]
                %542 = vst [vmem:[%s226 + $0x4e8] sm:$0xff] %v541
                %v543 = vld [vmem:[%s225 + $0x9e0] sm:$0xff]
                %544 = vst [vmem:[%s226 + $0x4f0] sm:$0xff] %v543
                %v545 = vld [vmem:[%s225 + $0x9f0] sm:$0xff]
                %546 = vst [vmem:[%s226 + $0x4f8] sm:$0xff] %v545
                %v547 = vld [vmem:[%s225 + $0xa00] sm:$0xff]
                %548 = vst [vmem:[%s226 + $0x500] sm:$0xff] %v547
                %v549 = vld [vmem:[%s225 + $0xa10] sm:$0xff]
                %550 = vst [vmem:[%s226 + $0x508] sm:$0xff] %v549
                %v551 = vld [vmem:[%s225 + $0xa20] sm:$0xff]
                %552 = vst [vmem:[%s226 + $0x510] sm:$0xff] %v551
                %v553 = vld [vmem:[%s225 + $0xa30] sm:$0xff]
                %554 = vst [vmem:[%s226 + $0x518] sm:$0xff] %v553
                %v555 = vld [vmem:[%s225 + $0xa40] sm:$0xff]
                %556 = vst [vmem:[%s226 + $0x520] sm:$0xff] %v555
                %v557 = vld [vmem:[%s225 + $0xa50] sm:$0xff]
                %558 = vst [vmem:[%s226 + $0x528] sm:$0xff] %v557
                %v559 = vld [vmem:[%s225 + $0xa60] sm:$0xff]
                %560 = vst [vmem:[%s226 + $0x530] sm:$0xff] %v559
                %v561 = vld [vmem:[%s225 + $0xa70] sm:$0xff]
                %562 = vst [vmem:[%s226 + $0x538] sm:$0xff] %v561
                %v563 = vld [vmem:[%s225 + $0xa80] sm:$0xff]
                %564 = vst [vmem:[%s226 + $0x540] sm:$0xff] %v563
                %v565 = vld [vmem:[%s225 + $0xa90] sm:$0xff]
                %566 = vst [vmem:[%s226 + $0x548] sm:$0xff] %v565
                %v567 = vld [vmem:[%s225 + $0xaa0] sm:$0xff]
                %568 = vst [vmem:[%s226 + $0x550] sm:$0xff] %v567
                %v569 = vld [vmem:[%s225 + $0xab0] sm:$0xff]
                %570 = vst [vmem:[%s226 + $0x558] sm:$0xff] %v569
                %v571 = vld [vmem:[%s225 + $0xac0] sm:$0xff]
                %572 = vst [vmem:[%s226 + $0x560] sm:$0xff] %v571
                %v573 = vld [vmem:[%s225 + $0xad0] sm:$0xff]
                %574 = vst [vmem:[%s226 + $0x568] sm:$0xff] %v573
                %v575 = vld [vmem:[%s225 + $0xae0] sm:$0xff]
                %576 = vst [vmem:[%s226 + $0x570] sm:$0xff] %v575
                %v577 = vld [vmem:[%s225 + $0xaf0] sm:$0xff]
                %578 = vst [vmem:[%s226 + $0x578] sm:$0xff] %v577
                %v579 = vld [vmem:[%s225 + $0xb00] sm:$0xff]
                %580 = vst [vmem:[%s226 + $0x580] sm:$0xff] %v579
                %v581 = vld [vmem:[%s225 + $0xb10] sm:$0xff]
                %582 = vst [vmem:[%s226 + $0x588] sm:$0xff] %v581
                %v583 = vld [vmem:[%s225 + $0xb20] sm:$0xff]
                %584 = vst [vmem:[%s226 + $0x590] sm:$0xff] %v583
                %v585 = vld [vmem:[%s225 + $0xb30] sm:$0xff]
                %586 = vst [vmem:[%s226 + $0x598] sm:$0xff] %v585
                %v587 = vld [vmem:[%s225 + $0xb40] sm:$0xff]
                %588 = vst [vmem:[%s226 + $0x5a0] sm:$0xff] %v587
                %v589 = vld [vmem:[%s225 + $0xb50] sm:$0xff]
                %590 = vst [vmem:[%s226 + $0x5a8] sm:$0xff] %v589
                %v591 = vld [vmem:[%s225 + $0xb60] sm:$0xff]
                %592 = vst [vmem:[%s226 + $0x5b0] sm:$0xff] %v591
                %v593 = vld [vmem:[%s225 + $0xb70] sm:$0xff]
                %594 = vst [vmem:[%s226 + $0x5b8] sm:$0xff] %v593
                %v595 = vld [vmem:[%s225 + $0xb80] sm:$0xff]
                %596 = vst [vmem:[%s226 + $0x5c0] sm:$0xff] %v595
                %v597 = vld [vmem:[%s225 + $0xb90] sm:$0xff]
                %598 = vst [vmem:[%s226 + $0x5c8] sm:$0xff] %v597
                %v599 = vld [vmem:[%s225 + $0xba0] sm:$0xff]
                %600 = vst [vmem:[%s226 + $0x5d0] sm:$0xff] %v599
                %v601 = vld [vmem:[%s225 + $0xbb0] sm:$0xff]
                %602 = vst [vmem:[%s226 + $0x5d8] sm:$0xff] %v601
                %v603 = vld [vmem:[%s225 + $0xbc0] sm:$0xff]
                %604 = vst [vmem:[%s226 + $0x5e0] sm:$0xff] %v603
                %v605 = vld [vmem:[%s225 + $0xbd0] sm:$0xff]
                %606 = vst [vmem:[%s226 + $0x5e8] sm:$0xff] %v605
                %v607 = vld [vmem:[%s225 + $0xbe0] sm:$0xff]
                %608 = vst [vmem:[%s226 + $0x5f0] sm:$0xff] %v607
                %v609 = vld [vmem:[%s225 + $0xbf0] sm:$0xff]
                %610 = vst [vmem:[%s226 + $0x5f8] sm:$0xff] %v609
                %v611 = vld [vmem:[%s225 + $0xc00] sm:$0xff]
                %612 = vst [vmem:[%s226 + $0x600] sm:$0xff] %v611
                %v613 = vld [vmem:[%s225 + $0xc10] sm:$0xff]
                %614 = vst [vmem:[%s226 + $0x608] sm:$0xff] %v613
                %v615 = vld [vmem:[%s225 + $0xc20] sm:$0xff]
                %616 = vst [vmem:[%s226 + $0x610] sm:$0xff] %v615
                %v617 = vld [vmem:[%s225 + $0xc30] sm:$0xff]
                %618 = vst [vmem:[%s226 + $0x618] sm:$0xff] %v617
                %v619 = vld [vmem:[%s225 + $0xc40] sm:$0xff]
                %620 = vst [vmem:[%s226 + $0x620] sm:$0xff] %v619
                %v621 = vld [vmem:[%s225 + $0xc50] sm:$0xff]
                %622 = vst [vmem:[%s226 + $0x628] sm:$0xff] %v621
                %v623 = vld [vmem:[%s225 + $0xc60] sm:$0xff]
                %624 = vst [vmem:[%s226 + $0x630] sm:$0xff] %v623
                %v625 = vld [vmem:[%s225 + $0xc70] sm:$0xff]
                %626 = vst [vmem:[%s226 + $0x638] sm:$0xff] %v625
                %v627 = vld [vmem:[%s225 + $0xc80] sm:$0xff]
                %628 = vst [vmem:[%s226 + $0x640] sm:$0xff] %v627
                %v629 = vld [vmem:[%s225 + $0xc90] sm:$0xff]
                %630 = vst [vmem:[%s226 + $0x648] sm:$0xff] %v629
                %v631 = vld [vmem:[%s225 + $0xca0] sm:$0xff]
                %632 = vst [vmem:[%s226 + $0x650] sm:$0xff] %v631
                %v633 = vld [vmem:[%s225 + $0xcb0] sm:$0xff]
                %634 = vst [vmem:[%s226 + $0x658] sm:$0xff] %v633
                %v635 = vld [vmem:[%s225 + $0xcc0] sm:$0xff]
                %636 = vst [vmem:[%s226 + $0x660] sm:$0xff] %v635
                %v637 = vld [vmem:[%s225 + $0xcd0] sm:$0xff]
                %638 = vst [vmem:[%s226 + $0x668] sm:$0xff] %v637
                %v639 = vld [vmem:[%s225 + $0xce0] sm:$0xff]
                %640 = vst [vmem:[%s226 + $0x670] sm:$0xff] %v639
                %v641 = vld [vmem:[%s225 + $0xcf0] sm:$0xff]
                %642 = vst [vmem:[%s226 + $0x678] sm:$0xff] %v641
                %v643 = vld [vmem:[%s225 + $0xd00] sm:$0xff]
                %644 = vst [vmem:[%s226 + $0x680] sm:$0xff] %v643
                %v645 = vld [vmem:[%s225 + $0xd10] sm:$0xff]
                %646 = vst [vmem:[%s226 + $0x688] sm:$0xff] %v645
                %v647 = vld [vmem:[%s225 + $0xd20] sm:$0xff]
                %648 = vst [vmem:[%s226 + $0x690] sm:$0xff] %v647
                %v649 = vld [vmem:[%s225 + $0xd30] sm:$0xff]
                %650 = vst [vmem:[%s226 + $0x698] sm:$0xff] %v649
                %v651 = vld [vmem:[%s225 + $0xd40] sm:$0xff]
                %652 = vst [vmem:[%s226 + $0x6a0] sm:$0xff] %v651
                %v653 = vld [vmem:[%s225 + $0xd50] sm:$0xff]
                %654 = vst [vmem:[%s226 + $0x6a8] sm:$0xff] %v653
                %v655 = vld [vmem:[%s225 + $0xd60] sm:$0xff]
                %656 = vst [vmem:[%s226 + $0x6b0] sm:$0xff] %v655
                %v657 = vld [vmem:[%s225 + $0xd70] sm:$0xff]
                %658 = vst [vmem:[%s226 + $0x6b8] sm:$0xff] %v657
                %v659 = vld [vmem:[%s225 + $0xd80] sm:$0xff]
                %660 = vst [vmem:[%s226 + $0x6c0] sm:$0xff] %v659
                %v661 = vld [vmem:[%s225 + $0xd90] sm:$0xff]
                %662 = vst [vmem:[%s226 + $0x6c8] sm:$0xff] %v661
                %v663 = vld [vmem:[%s225 + $0xda0] sm:$0xff]
                %664 = vst [vmem:[%s226 + $0x6d0] sm:$0xff] %v663
                %v665 = vld [vmem:[%s225 + $0xdb0] sm:$0xff]
                %666 = vst [vmem:[%s226 + $0x6d8] sm:$0xff] %v665
                %v667 = vld [vmem:[%s225 + $0xdc0] sm:$0xff]
                %668 = vst [vmem:[%s226 + $0x6e0] sm:$0xff] %v667
                %v669 = vld [vmem:[%s225 + $0xdd0] sm:$0xff]
                %670 = vst [vmem:[%s226 + $0x6e8] sm:$0xff] %v669
                %v671 = vld [vmem:[%s225 + $0xde0] sm:$0xff]
                %672 = vst [vmem:[%s226 + $0x6f0] sm:$0xff] %v671
                %v673 = vld [vmem:[%s225 + $0xdf0] sm:$0xff]
                %674 = vst [vmem:[%s226 + $0x6f8] sm:$0xff] %v673
                %v675 = vld [vmem:[%s225 + $0xe00] sm:$0xff]
                %676 = vst [vmem:[%s226 + $0x700] sm:$0xff] %v675
                %v677 = vld [vmem:[%s225 + $0xe10] sm:$0xff]
                %678 = vst [vmem:[%s226 + $0x708] sm:$0xff] %v677
                %v679 = vld [vmem:[%s225 + $0xe20] sm:$0xff]
                %680 = vst [vmem:[%s226 + $0x710] sm:$0xff] %v679
                %v681 = vld [vmem:[%s225 + $0xe30] sm:$0xff]
                %682 = vst [vmem:[%s226 + $0x718] sm:$0xff] %v681
                %v683 = vld [vmem:[%s225 + $0xe40] sm:$0xff]
                %684 = vst [vmem:[%s226 + $0x720] sm:$0xff] %v683
                %v685 = vld [vmem:[%s225 + $0xe50] sm:$0xff]
                %686 = vst [vmem:[%s226 + $0x728] sm:$0xff] %v685
                %v687 = vld [vmem:[%s225 + $0xe60] sm:$0xff]
                %688 = vst [vmem:[%s226 + $0x730] sm:$0xff] %v687
                %v689 = vld [vmem:[%s225 + $0xe70] sm:$0xff]
                %690 = vst [vmem:[%s226 + $0x738] sm:$0xff] %v689
                %v691 = vld [vmem:[%s225 + $0xe80] sm:$0xff]
                %692 = vst [vmem:[%s226 + $0x740] sm:$0xff] %v691
                %v693 = vld [vmem:[%s225 + $0xe90] sm:$0xff]
                %694 = vst [vmem:[%s226 + $0x748] sm:$0xff] %v693
                %v695 = vld [vmem:[%s225 + $0xea0] sm:$0xff]
                %696 = vst [vmem:[%s226 + $0x750] sm:$0xff] %v695
                %v697 = vld [vmem:[%s225 + $0xeb0] sm:$0xff]
                %698 = vst [vmem:[%s226 + $0x758] sm:$0xff] %v697
                %v699 = vld [vmem:[%s225 + $0xec0] sm:$0xff]
                %700 = vst [vmem:[%s226 + $0x760] sm:$0xff] %v699
                %v701 = vld [vmem:[%s225 + $0xed0] sm:$0xff]
                %702 = vst [vmem:[%s226 + $0x768] sm:$0xff] %v701
                %v703 = vld [vmem:[%s225 + $0xee0] sm:$0xff]
                %704 = vst [vmem:[%s226 + $0x770] sm:$0xff] %v703
                %v705 = vld [vmem:[%s225 + $0xef0] sm:$0xff]
                %706 = vst [vmem:[%s226 + $0x778] sm:$0xff] %v705
                %v707 = vld [vmem:[%s225 + $0xf00] sm:$0xff]
                %708 = vst [vmem:[%s226 + $0x780] sm:$0xff] %v707
                %v709 = vld [vmem:[%s225 + $0xf10] sm:$0xff]
                %710 = vst [vmem:[%s226 + $0x788] sm:$0xff] %v709
                %v711 = vld [vmem:[%s225 + $0xf20] sm:$0xff]
                %712 = vst [vmem:[%s226 + $0x790] sm:$0xff] %v711
                %v713 = vld [vmem:[%s225 + $0xf30] sm:$0xff]
                %714 = vst [vmem:[%s226 + $0x798] sm:$0xff] %v713
                %v715 = vld [vmem:[%s225 + $0xf40] sm:$0xff]
                %716 = vst [vmem:[%s226 + $0x7a0] sm:$0xff] %v715
                %v717 = vld [vmem:[%s225 + $0xf50] sm:$0xff]
                %718 = vst [vmem:[%s226 + $0x7a8] sm:$0xff] %v717
                %v719 = vld [vmem:[%s225 + $0xf60] sm:$0xff]
                %720 = vst [vmem:[%s226 + $0x7b0] sm:$0xff] %v719
                %v721 = vld [vmem:[%s225 + $0xf70] sm:$0xff]
                %722 = vst [vmem:[%s226 + $0x7b8] sm:$0xff] %v721
                %v723 = vld [vmem:[%s225 + $0xf80] sm:$0xff]
                %724 = vst [vmem:[%s226 + $0x7c0] sm:$0xff] %v723
                %v725 = vld [vmem:[%s225 + $0xf90] sm:$0xff]
                %726 = vst [vmem:[%s226 + $0x7c8] sm:$0xff] %v725
                %v727 = vld [vmem:[%s225 + $0xfa0] sm:$0xff]
                %728 = vst [vmem:[%s226 + $0x7d0] sm:$0xff] %v727
                %v729 = vld [vmem:[%s225 + $0xfb0] sm:$0xff]
                %730 = vst [vmem:[%s226 + $0x7d8] sm:$0xff] %v729
                %v731 = vld [vmem:[%s225 + $0xfc0] sm:$0xff]
                %732 = vst [vmem:[%s226 + $0x7e0] sm:$0xff] %v731
                %v733 = vld [vmem:[%s225 + $0xfd0] sm:$0xff]
                %734 = vst [vmem:[%s226 + $0x7e8] sm:$0xff] %v733
                %v735 = vld [vmem:[%s225 + $0xfe0] sm:$0xff]
                %736 = vst [vmem:[%s226 + $0x7f0] sm:$0xff] %v735
                %v737 = vld [vmem:[%s225 + $0xff0] sm:$0xff]
                %738 = vst [vmem:[%s226 + $0x7f8] sm:$0xff] %v737
                %v739 = vld [vmem:[%s225 + $0x1000] sm:$0xff]
                %740 = vst [vmem:[%s226 + $0x800] sm:$0xff] %v739
                %v741 = vld [vmem:[%s225 + $0x1010] sm:$0xff]
                %742 = vst [vmem:[%s226 + $0x808] sm:$0xff] %v741
                %v743 = vld [vmem:[%s225 + $0x1020] sm:$0xff]
                %744 = vst [vmem:[%s226 + $0x810] sm:$0xff] %v743
                %v745 = vld [vmem:[%s225 + $0x1030] sm:$0xff]
                %746 = vst [vmem:[%s226 + $0x818] sm:$0xff] %v745
                %v747 = vld [vmem:[%s225 + $0x1040] sm:$0xff]
                %748 = vst [vmem:[%s226 + $0x820] sm:$0xff] %v747
                %v749 = vld [vmem:[%s225 + $0x1050] sm:$0xff]
                %750 = vst [vmem:[%s226 + $0x828] sm:$0xff] %v749
                %v751 = vld [vmem:[%s225 + $0x1060] sm:$0xff]
                %752 = vst [vmem:[%s226 + $0x830] sm:$0xff] %v751
                %v753 = vld [vmem:[%s225 + $0x1070] sm:$0xff]
                %754 = vst [vmem:[%s226 + $0x838] sm:$0xff] %v753
                %v755 = vld [vmem:[%s225 + $0x1080] sm:$0xff]
                %756 = vst [vmem:[%s226 + $0x840] sm:$0xff] %v755
                %v757 = vld [vmem:[%s225 + $0x1090] sm:$0xff]
                %758 = vst [vmem:[%s226 + $0x848] sm:$0xff] %v757
                %v759 = vld [vmem:[%s225 + $0x10a0] sm:$0xff]
                %760 = vst [vmem:[%s226 + $0x850] sm:$0xff] %v759
                %v761 = vld [vmem:[%s225 + $0x10b0] sm:$0xff]
                %762 = vst [vmem:[%s226 + $0x858] sm:$0xff] %v761
                %v763 = vld [vmem:[%s225 + $0x10c0] sm:$0xff]
                %764 = vst [vmem:[%s226 + $0x860] sm:$0xff] %v763
                %v765 = vld [vmem:[%s225 + $0x10d0] sm:$0xff]
                %766 = vst [vmem:[%s226 + $0x868] sm:$0xff] %v765
                %v767 = vld [vmem:[%s225 + $0x10e0] sm:$0xff]
                %768 = vst [vmem:[%s226 + $0x870] sm:$0xff] %v767
                %v769 = vld [vmem:[%s225 + $0x10f0] sm:$0xff]
                %770 = vst [vmem:[%s226 + $0x878] sm:$0xff] %v769
                %v771 = vld [vmem:[%s225 + $0x1100] sm:$0xff]
                %772 = vst [vmem:[%s226 + $0x880] sm:$0xff] %v771
                %v773 = vld [vmem:[%s225 + $0x1110] sm:$0xff]
                %774 = vst [vmem:[%s226 + $0x888] sm:$0xff] %v773
                %v775 = vld [vmem:[%s225 + $0x1120] sm:$0xff]
                %776 = vst [vmem:[%s226 + $0x890] sm:$0xff] %v775
                %v777 = vld [vmem:[%s225 + $0x1130] sm:$0xff]
                %778 = vst [vmem:[%s226 + $0x898] sm:$0xff] %v777
                %v779 = vld [vmem:[%s225 + $0x1140] sm:$0xff]
                %780 = vst [vmem:[%s226 + $0x8a0] sm:$0xff] %v779
                %v781 = vld [vmem:[%s225 + $0x1150] sm:$0xff]
                %782 = vst [vmem:[%s226 + $0x8a8] sm:$0xff] %v781
                %v783 = vld [vmem:[%s225 + $0x1160] sm:$0xff]
                %784 = vst [vmem:[%s226 + $0x8b0] sm:$0xff] %v783
                %v785 = vld [vmem:[%s225 + $0x1170] sm:$0xff]
                %786 = vst [vmem:[%s226 + $0x8b8] sm:$0xff] %v785
                %v787 = vld [vmem:[%s225 + $0x1180] sm:$0xff]
                %788 = vst [vmem:[%s226 + $0x8c0] sm:$0xff] %v787
                %v789 = vld [vmem:[%s225 + $0x1190] sm:$0xff]
                %790 = vst [vmem:[%s226 + $0x8c8] sm:$0xff] %v789
                %v791 = vld [vmem:[%s225 + $0x11a0] sm:$0xff]
                %792 = vst [vmem:[%s226 + $0x8d0] sm:$0xff] %v791
                %v793 = vld [vmem:[%s225 + $0x11b0] sm:$0xff]
                %794 = vst [vmem:[%s226 + $0x8d8] sm:$0xff] %v793
                %v795 = vld [vmem:[%s225 + $0x11c0] sm:$0xff]
                %796 = vst [vmem:[%s226 + $0x8e0] sm:$0xff] %v795
                %v797 = vld [vmem:[%s225 + $0x11d0] sm:$0xff]
                %798 = vst [vmem:[%s226 + $0x8e8] sm:$0xff] %v797
                %v799 = vld [vmem:[%s225 + $0x11e0] sm:$0xff]
                %800 = vst [vmem:[%s226 + $0x8f0] sm:$0xff] %v799
                %v801 = vld [vmem:[%s225 + $0x11f0] sm:$0xff]
                %802 = vst [vmem:[%s226 + $0x8f8] sm:$0xff] %v801
              $region41: #{netG_28_forward.4} parent=35 // loop_footer
                %s224 = sadd.s32 1, %s220
              $region42: #{netG_28_forward.4} parent=35 // loop_footer_branch
                %219 = sbr.rel target = $region38
              $region43: #{netG_28_forward.4} parent=35 // loop_exit
                _
            $region36: #{netG_28_forward.4} parent=27 // pred_fallthru
              _
          $region28: #{netG_28_forward.4} parent=23 // pred_fallthru
            _
          %1391 = vnop
        $region24: #{netG_28_forward.4} parent=19 // pred_fallthru
          _
        // Predicated region
        $region59: #{netG_28_forward.4} parent=19 // pred_check
          %p1392 = pneg %p105
        $region60: #{netG_28_forward.4} parent=19 // pred_check_branch
          %1394 = sbr.rel (%p1392) target = $region62
        $region61: #{netG_28_forward.4} parent=19 // pred_region
          %s1395 = smul.u32 2, %s18
          %p1396 = scmp.lt.s32.totalorder %s1395, 3
          %s1397 = scalar_select %p1396, %s1395, 3
          %s1398 = scalar_lea.vmem %s2, %s1397
          %s1399 = smul.u32 2, %s18
        $region62: #{netG_28_forward.4} parent=19 // pred_fallthru
          _
        // Predicated region
        $region63: #{netG_28_forward.4} parent=19 // pred_check
          %p1400 = pneg %p131
        $region64: #{netG_28_forward.4} parent=19 // pred_check_branch
          %1402 = sbr.rel (%p1400) target = $region66
        $region65: #{netG_28_forward.4} parent=19 // pred_region
          %s1403 = smul.u32 2, %s18
          %p1404 = scmp.lt.s32.totalorder %s1403, 3
          %s1405 = scalar_select %p1404, %s1403, 3
          %s1406 = scalar_lea.vmem %s3, %s1405
          %s1407 = smul.u32 2, %s18
        $region66: #{netG_28_forward.4} parent=19 // pred_fallthru
          _
      $region20: #{netG_28_forward.4} parent=5 // pred_fallthru
        _
      %p1408 = scmp.le.s32.totalorder 1, %s10
      %p1409 = scmp.lt.s32.totalorder %s10, 3
      %p1410 = pnand %p1408, %p1409
      %p1411 = pneg %p1410
      // Predicated region
      $region67: #{netG_28_forward.4} parent=5 // pred_check
        _
      $region68: #{netG_28_forward.4} parent=5 // pred_check_branch
        %1413 = sbr.rel (%p1410) target = $region70
      $region69: #{netG_28_forward.4} parent=5 // pred_region
        %s1414 = ssub.s32 %s10, 1
        %s1415 = sand.u32 %s72, 1
        %s1416 = sand.u32 %s72, 1
        %s1417 = smul.addr %s1416, 2304
        %s1418 = scalar_lea.vmem [#allocation3], %s1417
        // Predicated region
        $region71: #{netG_28_forward.4} parent=69 // pred_check
          %p1419 = pneg %p85
        $region72: #{netG_28_forward.4} parent=69 // pred_check_branch
          %1421 = sbr.rel (%p1419) target = $region74
        $region73: #{netG_28_forward.4} parent=69 // pred_region
          _
        $region74: #{netG_28_forward.4} parent=69 // pred_fallthru
          _
        %s1422 = smul.u32 13, %s20
        %s1423 = smul.u32 18, %s22
        %p1424 = scmp.lt.s32.totalorder %s1422, 12
        %s1425 = scalar_select %p1424, %s1422, 12
        %p1426 = scmp.lt.s32.totalorder %s1423, 17
        %s1427 = scalar_select %p1426, %s1423, 17
        %s1428 = smul.addr %s1425, 18
        %s1429 = sadd.s32 %s1427, %s1428
        %s1430 = smul.addr %s1429, 4
        %s1431 = scalar_lea.vmem %s0, %s1430
        %p1432 = pneg %p57
        %p1433 = pneg %p54
        %s1434 = sand.u32 %s72, 1
        %s1435 = sand.u32 %s72, 1
        %s1436 = smul.addr %s1435, 2304
        %s1437 = scalar_lea.vmem [#allocation3], %s1436
        %p1438 = pneg %p85
        %p1439 = pneg %p82
        %s1440 = smul.u32 2, %s21
        %p1441 = scmp.lt.s32.totalorder %s1440, 3
        %s1442 = scalar_select %p1441, %s1440, 3
        %s1443 = scalar_lea.vmem %s2, %s1442
        %p1444 = pneg %p111
        %p1445 = pneg %p108
        %s1446 = smul.u32 2, %s21
        %p1447 = scmp.lt.s32.totalorder %s1446, 3
        %s1448 = scalar_select %p1447, %s1446, 3
        %s1449 = scalar_lea.vmem %s3, %s1448
        %p1450 = pneg %p137
        %p1451 = pneg %p134
        %p1452 = pneg %p165
        %p1453 = pneg %p162
        %s1454 = sand.u32 %s152, 1
        %s1455 = sand.u32 %s152, 1
        %s1456 = smul.addr %s1455, 104
        %s1457 = scalar_lea.vmem [#allocation4], %s1456
        %s1458 = smul.u32 13, %s20
        %s1459 = smul.u32 18, %s22
        %p1460 = scmp.lt.s32.totalorder %s1458, 12
        %s1461 = scalar_select %p1460, %s1458, 12
        %p1462 = scmp.lt.s32.totalorder %s1459, 17
        %s1463 = scalar_select %p1462, %s1459, 17
        %s1464 = smul.addr %s1461, 18
        %s1465 = sadd.s32 %s1463, %s1464
        %s1466 = smul.addr %s1465, 4
        %s1467 = scalar_lea.vmem %s0, %s1466
        %s1468 = smul.u32 13, %s20
        %s1469 = smul.u32 18, %s22
        %s1470 = smul.u32 288, %s22
        %s1471 = smul.u32 2, %s21
        %s1472 = smul.u32 2, %s21
        %p1473 = scmp.lt.s32.totalorder %s1472, 3
        %s1474 = scalar_select %p1473, %s1472, 3
        %s1475 = scalar_lea.vmem %s2, %s1474
        %s1476 = smul.u32 2, %s21
        %s1477 = smul.u32 2, %s21
        %p1478 = scmp.lt.s32.totalorder %s1477, 3
        %s1479 = scalar_select %p1478, %s1477, 3
        %s1480 = scalar_lea.vmem %s3, %s1479
        %s1481 = smul.u32 2, %s21
        %s1482 = smul.u32 13, %s20
        %s1483 = smul.u32 2, %s21
        %p1484 = scmp.eq.s32.totalorder %s22, 0
        // Predicated region
        $region75: #{netG_28_forward.4} parent=69 // pred_check
          %p1485 = pneg %p1484
        $region76: #{netG_28_forward.4} parent=69 // pred_check_branch
          %1487 = sbr.rel (%p1485) target = $region78
        $region77: #{netG_28_forward.4} parent=69 // pred_region
          %1488 = vst [vmem:[#allocation2] sm:$0xff] 0.0
          %1489 = vst [vmem:[#allocation2 + $0x8] sm:$0xff] 0.0
          %1490 = vst [vmem:[#allocation2 + $0x10] sm:$0xff] 0.0
          %1491 = vst [vmem:[#allocation2 + $0x18] sm:$0xff] 0.0
          %1492 = vst [vmem:[#allocation2 + $0x20] sm:$0xff] 0.0
          %1493 = vst [vmem:[#allocation2 + $0x28] sm:$0xff] 0.0
          %1494 = vst [vmem:[#allocation2 + $0x30] sm:$0xff] 0.0
          %1495 = vst [vmem:[#allocation2 + $0x38] sm:$0xff] 0.0
          %1496 = vst [vmem:[#allocation2 + $0x40] sm:$0xff] 0.0
          %1497 = vst [vmem:[#allocation2 + $0x48] sm:$0xff] 0.0
          %1498 = vst [vmem:[#allocation2 + $0x50] sm:$0xff] 0.0
          %1499 = vst [vmem:[#allocation2 + $0x58] sm:$0xff] 0.0
          %1500 = vst [vmem:[#allocation2 + $0x60] sm:$0xff] 0.0
          %1501 = vst [vmem:[#allocation2 + $0x68] sm:$0xff] 0.0
          %1502 = vst [vmem:[#allocation2 + $0x70] sm:$0xff] 0.0
          %1503 = vst [vmem:[#allocation2 + $0x78] sm:$0xff] 0.0
          %1504 = vst [vmem:[#allocation2 + $0x80] sm:$0xff] 0.0
          %1505 = vst [vmem:[#allocation2 + $0x88] sm:$0xff] 0.0
          %1506 = vst [vmem:[#allocation2 + $0x90] sm:$0xff] 0.0
          %1507 = vst [vmem:[#allocation2 + $0x98] sm:$0xff] 0.0
          %1508 = vst [vmem:[#allocation2 + $0xa0] sm:$0xff] 0.0
          %1509 = vst [vmem:[#allocation2 + $0xa8] sm:$0xff] 0.0
          %1510 = vst [vmem:[#allocation2 + $0xb0] sm:$0xff] 0.0
          %1511 = vst [vmem:[#allocation2 + $0xb8] sm:$0xff] 0.0
          %1512 = vst [vmem:[#allocation2 + $0xc0] sm:$0xff] 0.0
          %1513 = vst [vmem:[#allocation2 + $0xc8] sm:$0xff] 0.0
        $region78: #{netG_28_forward.4} parent=69 // pred_fallthru
          _
        %v1514 = vld [vmem:[#allocation2] sm:$0xff]
        %v1515 = vld [vmem:[#allocation2 + $0x8] sm:$0xff]
        %v1516 = vld [vmem:[#allocation2 + $0x10] sm:$0xff]
        %v1517 = vld [vmem:[#allocation2 + $0x18] sm:$0xff]
        %v1518 = vld [vmem:[#allocation2 + $0x20] sm:$0xff]
        %v1519 = vld [vmem:[#allocation2 + $0x28] sm:$0xff]
        %v1520 = vld [vmem:[#allocation2 + $0x30] sm:$0xff]
        %v1521 = vld [vmem:[#allocation2 + $0x38] sm:$0xff]
        %v1522 = vld [vmem:[#allocation2 + $0x40] sm:$0xff]
        %v1523 = vld [vmem:[#allocation2 + $0x48] sm:$0xff]
        %v1524 = vld [vmem:[#allocation2 + $0x50] sm:$0xff]
        %v1525 = vld [vmem:[#allocation2 + $0x58] sm:$0xff]
        %v1526 = vld [vmem:[#allocation2 + $0x60] sm:$0xff]
        %v1527 = vld [vmem:[#allocation2 + $0x68] sm:$0xff]
        %v1528 = vld [vmem:[#allocation2 + $0x70] sm:$0xff]
        %v1529 = vld [vmem:[#allocation2 + $0x78] sm:$0xff]
        %v1530 = vld [vmem:[#allocation2 + $0x80] sm:$0xff]
        %v1531 = vld [vmem:[#allocation2 + $0x88] sm:$0xff]
        %v1532 = vld [vmem:[#allocation2 + $0x90] sm:$0xff]
        %v1533 = vld [vmem:[#allocation2 + $0x98] sm:$0xff]
        %v1534 = vld [vmem:[#allocation2 + $0xa0] sm:$0xff]
        %v1535 = vld [vmem:[#allocation2 + $0xa8] sm:$0xff]
        %v1536 = vld [vmem:[#allocation2 + $0xb0] sm:$0xff]
        %v1537 = vld [vmem:[#allocation2 + $0xb8] sm:$0xff]
        %v1538 = vld [vmem:[#allocation2 + $0xc0] sm:$0xff]
        %v1539 = vld [vmem:[#allocation2 + $0xc8] sm:$0xff]
        %v1540 = vld [vmem:[%s1467] sm:$0xff]
        %v1541 = vld [vmem:[%s1467 + $0x8] sm:$0xff]
        %v1542 = vld [vmem:[%s1467 + $0x10] sm:$0xff]
        %v1543 = vld [vmem:[%s1467 + $0x18] sm:$0xff]
        %v1544 = vld [vmem:[%s1467 + $0x20] sm:$0xff]
        %v1545 = vld [vmem:[%s1467 + $0x28] sm:$0xff]
        %v1546 = vld [vmem:[%s1467 + $0x30] sm:$0xff]
        %v1547 = vld [vmem:[%s1467 + $0x38] sm:$0xff]
        %v1548 = vld [vmem:[%s1467 + $0x40] sm:$0xff]
        %v1549 = vld [vmem:[%s1467 + $0x48] sm:$0xff]
        %v1550 = vld [vmem:[%s1467 + $0x50] sm:$0xff]
        %v1551 = vld [vmem:[%s1467 + $0x58] sm:$0xff]
        %v1552 = vld [vmem:[%s1467 + $0x60] sm:$0xff]
        %v1553 = vld [vmem:[%s1467 + $0x68] sm:$0xff]
        %v1554 = vld [vmem:[%s1467 + $0x70] sm:$0xff]
        %v1555 = vld [vmem:[%s1467 + $0x78] sm:$0xff]
        %v1556 = vld [vmem:[%s1467 + $0x80] sm:$0xff]
        %v1557 = vld [vmem:[%s1467 + $0x88] sm:$0xff]
        %v1558 = vld [vmem:[%s1467 + $0x90] sm:$0xff]
        %v1559 = vld [vmem:[%s1467 + $0x98] sm:$0xff]
        %v1560 = vld [vmem:[%s1467 + $0xa0] sm:$0xff]
        %v1561 = vld [vmem:[%s1467 + $0xa8] sm:$0xff]
        %v1562 = vld [vmem:[%s1467 + $0xb0] sm:$0xff]
        %v1563 = vld [vmem:[%s1467 + $0xb8] sm:$0xff]
        %v1564 = vld [vmem:[%s1467 + $0xc0] sm:$0xff]
        %v1565 = vld [vmem:[%s1467 + $0xc8] sm:$0xff]
        %v1566 = vld [vmem:[%s1467 + $0xd0] sm:$0xff]
        %v1567 = vld [vmem:[%s1467 + $0xd8] sm:$0xff]
        %v1568 = vld [vmem:[%s1467 + $0xe0] sm:$0xff]
        %v1569 = vld [vmem:[%s1467 + $0xe8] sm:$0xff]
        %v1570 = vld [vmem:[%s1467 + $0xf0] sm:$0xff]
        %v1571 = vld [vmem:[%s1467 + $0xf8] sm:$0xff]
        %v1572 = vld [vmem:[%s1467 + $0x100] sm:$0xff]
        %v1573 = vld [vmem:[%s1467 + $0x108] sm:$0xff]
        %v1574 = vld [vmem:[%s1467 + $0x110] sm:$0xff]
        %v1575 = vld [vmem:[%s1467 + $0x118] sm:$0xff]
        %v1576 = vld [vmem:[%s1467 + $0x120] sm:$0xff]
        %v1577 = vld [vmem:[%s1467 + $0x128] sm:$0xff]
        %v1578 = vld [vmem:[%s1467 + $0x130] sm:$0xff]
        %v1579 = vld [vmem:[%s1467 + $0x138] sm:$0xff]
        %v1580 = vld [vmem:[%s1467 + $0x140] sm:$0xff]
        %v1581 = vld [vmem:[%s1467 + $0x148] sm:$0xff]
        %v1582 = vld [vmem:[%s1467 + $0x150] sm:$0xff]
        %v1583 = vld [vmem:[%s1467 + $0x158] sm:$0xff]
        %v1584 = vld [vmem:[%s1467 + $0x160] sm:$0xff]
        %v1585 = vld [vmem:[%s1467 + $0x168] sm:$0xff]
        %v1586 = vld [vmem:[%s1467 + $0x170] sm:$0xff]
        %v1587 = vld [vmem:[%s1467 + $0x178] sm:$0xff]
        %v1588 = vld [vmem:[%s1467 + $0x180] sm:$0xff]
        %v1589 = vld [vmem:[%s1467 + $0x188] sm:$0xff]
        %v1590 = vld [vmem:[%s1467 + $0x190] sm:$0xff]
        %v1591 = vld [vmem:[%s1467 + $0x198] sm:$0xff]
        %v1592 = vld [vmem:[%s1467 + $0x1a0] sm:$0xff]
        %v1593 = vld [vmem:[%s1467 + $0x1a8] sm:$0xff]
        %v1594 = vld [vmem:[%s1467 + $0x1b0] sm:$0xff]
        %v1595 = vld [vmem:[%s1467 + $0x1b8] sm:$0xff]
        %v1596 = vld [vmem:[%s1467 + $0x1c0] sm:$0xff]
        %v1597 = vld [vmem:[%s1467 + $0x1c8] sm:$0xff]
        %v1598 = vld [vmem:[%s1467 + $0x1d0] sm:$0xff]
        %v1599 = vld [vmem:[%s1467 + $0x1d8] sm:$0xff]
        %v1600 = vld [vmem:[%s1467 + $0x1e0] sm:$0xff]
        %v1601 = vld [vmem:[%s1467 + $0x1e8] sm:$0xff]
        %v1602 = vld [vmem:[%s1467 + $0x1f0] sm:$0xff]
        %v1603 = vld [vmem:[%s1467 + $0x1f8] sm:$0xff]
        %v1604 = vld [vmem:[%s1467 + $0x200] sm:$0xff]
        %v1605 = vld [vmem:[%s1467 + $0x208] sm:$0xff]
        %v1606 = vld [vmem:[%s1467 + $0x210] sm:$0xff]
        %v1607 = vld [vmem:[%s1467 + $0x218] sm:$0xff]
        %v1608 = vld [vmem:[%s1467 + $0x220] sm:$0xff]
        %v1609 = vld [vmem:[%s1467 + $0x228] sm:$0xff]
        %v1610 = vld [vmem:[%s1467 + $0x230] sm:$0xff]
        %v1611 = vld [vmem:[%s1467 + $0x238] sm:$0xff]
        %v1612 = vld [vmem:[%s1467 + $0x240] sm:$0xff]
        %v1613 = vld [vmem:[%s1467 + $0x248] sm:$0xff]
        %v1614 = vld [vmem:[%s1467 + $0x250] sm:$0xff]
        %v1615 = vld [vmem:[%s1467 + $0x258] sm:$0xff]
        %v1616 = vld [vmem:[%s1467 + $0x260] sm:$0xff]
        %v1617 = vld [vmem:[%s1467 + $0x268] sm:$0xff]
        %v1618 = vld [vmem:[%s1467 + $0x270] sm:$0xff]
        %v1619 = vld [vmem:[%s1467 + $0x278] sm:$0xff]
        %v1620 = vld [vmem:[%s1467 + $0x280] sm:$0xff]
        %v1621 = vld [vmem:[%s1467 + $0x288] sm:$0xff]
        %v1622 = vld [vmem:[%s1467 + $0x290] sm:$0xff]
        %v1623 = vld [vmem:[%s1467 + $0x298] sm:$0xff]
        %v1624 = vld [vmem:[%s1467 + $0x2a0] sm:$0xff]
        %v1625 = vld [vmem:[%s1467 + $0x2a8] sm:$0xff]
        %v1626 = vld [vmem:[%s1467 + $0x2b0] sm:$0xff]
        %v1627 = vld [vmem:[%s1467 + $0x2b8] sm:$0xff]
        %v1628 = vld [vmem:[%s1467 + $0x2c0] sm:$0xff]
        %v1629 = vld [vmem:[%s1467 + $0x2c8] sm:$0xff]
        %v1630 = vld [vmem:[%s1467 + $0x2d0] sm:$0xff]
        %v1631 = vld [vmem:[%s1467 + $0x2d8] sm:$0xff]
        %v1632 = vld [vmem:[%s1467 + $0x2e0] sm:$0xff]
        %v1633 = vld [vmem:[%s1467 + $0x2e8] sm:$0xff]
        %v1634 = vld [vmem:[%s1467 + $0x2f0] sm:$0xff]
        %v1635 = vld [vmem:[%s1467 + $0x2f8] sm:$0xff]
        %v1636 = vld [vmem:[%s1467 + $0x300] sm:$0xff]
        %v1637 = vld [vmem:[%s1467 + $0x308] sm:$0xff]
        %v1638 = vld [vmem:[%s1467 + $0x310] sm:$0xff]
        %v1639 = vld [vmem:[%s1467 + $0x318] sm:$0xff]
        %v1640 = vld [vmem:[%s1467 + $0x320] sm:$0xff]
        %v1641 = vld [vmem:[%s1467 + $0x328] sm:$0xff]
        %v1642 = vld [vmem:[%s1467 + $0x330] sm:$0xff]
        %v1643 = vld [vmem:[%s1467 + $0x338] sm:$0xff]
        %v1644 = vld [vmem:[%s1467 + $0x340] sm:$0xff]
        %v1645 = vld [vmem:[%s1467 + $0x348] sm:$0xff]
        %v1646 = vld [vmem:[%s1467 + $0x350] sm:$0xff]
        %v1647 = vld [vmem:[%s1467 + $0x358] sm:$0xff]
        %v1648 = vld [vmem:[%s1467 + $0x360] sm:$0xff]
        %v1649 = vld [vmem:[%s1467 + $0x368] sm:$0xff]
        %v1650 = vld [vmem:[%s1467 + $0x370] sm:$0xff]
        %v1651 = vld [vmem:[%s1467 + $0x378] sm:$0xff]
        %v1652 = vld [vmem:[%s1467 + $0x380] sm:$0xff]
        %v1653 = vld [vmem:[%s1467 + $0x388] sm:$0xff]
        %v1654 = vld [vmem:[%s1467 + $0x390] sm:$0xff]
        %v1655 = vld [vmem:[%s1467 + $0x398] sm:$0xff]
        %v1656 = vld [vmem:[%s1467 + $0x3a0] sm:$0xff]
        %v1657 = vld [vmem:[%s1418] sm:$0xff]
        %v1658 = vld [vmem:[%s1418 + $0x8] sm:$0xff]
        %v1659 = vld [vmem:[%s1418 + $0x10] sm:$0xff]
        %v1660 = vld [vmem:[%s1418 + $0x18] sm:$0xff]
        %v1661 = vld [vmem:[%s1418 + $0x20] sm:$0xff]
        %v1662 = vld [vmem:[%s1418 + $0x28] sm:$0xff]
        %v1663 = vld [vmem:[%s1418 + $0x30] sm:$0xff]
        %v1664 = vld [vmem:[%s1418 + $0x38] sm:$0xff]
        %v1665 = vld [vmem:[%s1418 + $0x40] sm:$0xff]
        %v1666 = vld [vmem:[%s1418 + $0x48] sm:$0xff]
        %v1667 = vld [vmem:[%s1418 + $0x50] sm:$0xff]
        %v1668 = vld [vmem:[%s1418 + $0x58] sm:$0xff]
        %v1669 = vld [vmem:[%s1418 + $0x60] sm:$0xff]
        %v1670 = vld [vmem:[%s1418 + $0x68] sm:$0xff]
        %v1671 = vld [vmem:[%s1418 + $0x70] sm:$0xff]
        %v1672 = vld [vmem:[%s1418 + $0x78] sm:$0xff]
        %v1673 = vld [vmem:[%s1418 + $0x80] sm:$0xff]
        %v1674 = vld [vmem:[%s1418 + $0x88] sm:$0xff]
        %v1675 = vld [vmem:[%s1418 + $0x90] sm:$0xff]
        %v1676 = vld [vmem:[%s1418 + $0x98] sm:$0xff]
        %v1677 = vld [vmem:[%s1418 + $0xa0] sm:$0xff]
        %v1678 = vld [vmem:[%s1418 + $0xa8] sm:$0xff]
        %v1679 = vld [vmem:[%s1418 + $0xb0] sm:$0xff]
        %v1680 = vld [vmem:[%s1418 + $0xb8] sm:$0xff]
        %v1681 = vld [vmem:[%s1418 + $0xc0] sm:$0xff]
        %v1682 = vld [vmem:[%s1418 + $0xc8] sm:$0xff]
        %v1683 = vld [vmem:[%s1418 + $0xd0] sm:$0xff]
        %v1684 = vld [vmem:[%s1418 + $0xd8] sm:$0xff]
        %v1685 = vld [vmem:[%s1418 + $0xe0] sm:$0xff]
        %v1686 = vld [vmem:[%s1418 + $0xe8] sm:$0xff]
        %v1687 = vld [vmem:[%s1418 + $0xf0] sm:$0xff]
        %v1688 = vld [vmem:[%s1418 + $0xf8] sm:$0xff]
        %v1689 = vld [vmem:[%s1418 + $0x100] sm:$0xff]
        %v1690 = vld [vmem:[%s1418 + $0x108] sm:$0xff]
        %v1691 = vld [vmem:[%s1418 + $0x110] sm:$0xff]
        %v1692 = vld [vmem:[%s1418 + $0x118] sm:$0xff]
        %v1693 = vld [vmem:[%s1418 + $0x120] sm:$0xff]
        %v1694 = vld [vmem:[%s1418 + $0x128] sm:$0xff]
        %v1695 = vld [vmem:[%s1418 + $0x130] sm:$0xff]
        %v1696 = vld [vmem:[%s1418 + $0x138] sm:$0xff]
        %v1697 = vld [vmem:[%s1418 + $0x140] sm:$0xff]
        %v1698 = vld [vmem:[%s1418 + $0x148] sm:$0xff]
        %v1699 = vld [vmem:[%s1418 + $0x150] sm:$0xff]
        %v1700 = vld [vmem:[%s1418 + $0x158] sm:$0xff]
        %v1701 = vld [vmem:[%s1418 + $0x160] sm:$0xff]
        %v1702 = vld [vmem:[%s1418 + $0x168] sm:$0xff]
        %v1703 = vld [vmem:[%s1418 + $0x170] sm:$0xff]
        %v1704 = vld [vmem:[%s1418 + $0x178] sm:$0xff]
        %v1705 = vld [vmem:[%s1418 + $0x180] sm:$0xff]
        %v1706 = vld [vmem:[%s1418 + $0x188] sm:$0xff]
        %v1707 = vld [vmem:[%s1418 + $0x190] sm:$0xff]
        %v1708 = vld [vmem:[%s1418 + $0x198] sm:$0xff]
        %v1709 = vld [vmem:[%s1418 + $0x1a0] sm:$0xff]
        %v1710 = vld [vmem:[%s1418 + $0x1a8] sm:$0xff]
        %v1711 = vld [vmem:[%s1418 + $0x1b0] sm:$0xff]
        %v1712 = vld [vmem:[%s1418 + $0x1b8] sm:$0xff]
        %v1713 = vld [vmem:[%s1418 + $0x1c0] sm:$0xff]
        %v1714 = vld [vmem:[%s1418 + $0x1c8] sm:$0xff]
        %v1715 = vld [vmem:[%s1418 + $0x1d0] sm:$0xff]
        %v1716 = vld [vmem:[%s1418 + $0x1d8] sm:$0xff]
        %v1717 = vld [vmem:[%s1418 + $0x1e0] sm:$0xff]
        %v1718 = vld [vmem:[%s1418 + $0x1e8] sm:$0xff]
        %v1719 = vld [vmem:[%s1418 + $0x1f0] sm:$0xff]
        %v1720 = vld [vmem:[%s1418 + $0x1f8] sm:$0xff]
        %v1721 = vld [vmem:[%s1418 + $0x200] sm:$0xff]
        %v1722 = vld [vmem:[%s1418 + $0x208] sm:$0xff]
        %v1723 = vld [vmem:[%s1418 + $0x210] sm:$0xff]
        %v1724 = vld [vmem:[%s1418 + $0x218] sm:$0xff]
        %v1725 = vld [vmem:[%s1418 + $0x220] sm:$0xff]
        %v1726 = vld [vmem:[%s1418 + $0x228] sm:$0xff]
        %v1727 = vld [vmem:[%s1418 + $0x230] sm:$0xff]
        %v1728 = vld [vmem:[%s1418 + $0x238] sm:$0xff]
        %v1729 = vld [vmem:[%s1418 + $0x240] sm:$0xff]
        %v1730 = vld [vmem:[%s1418 + $0x248] sm:$0xff]
        %v1731 = vld [vmem:[%s1418 + $0x250] sm:$0xff]
        %v1732 = vld [vmem:[%s1418 + $0x258] sm:$0xff]
        %v1733 = vld [vmem:[%s1418 + $0x260] sm:$0xff]
        %v1734 = vld [vmem:[%s1418 + $0x268] sm:$0xff]
        %v1735 = vld [vmem:[%s1418 + $0x270] sm:$0xff]
        %v1736 = vld [vmem:[%s1418 + $0x278] sm:$0xff]
        %v1737 = vld [vmem:[%s1418 + $0x280] sm:$0xff]
        %v1738 = vld [vmem:[%s1418 + $0x288] sm:$0xff]
        %v1739 = vld [vmem:[%s1418 + $0x290] sm:$0xff]
        %v1740 = vld [vmem:[%s1418 + $0x298] sm:$0xff]
        %v1741 = vld [vmem:[%s1418 + $0x2a0] sm:$0xff]
        %v1742 = vld [vmem:[%s1418 + $0x2a8] sm:$0xff]
        %v1743 = vld [vmem:[%s1418 + $0x2b0] sm:$0xff]
        %v1744 = vld [vmem:[%s1418 + $0x2b8] sm:$0xff]
        %v1745 = vld [vmem:[%s1418 + $0x2c0] sm:$0xff]
        %v1746 = vld [vmem:[%s1418 + $0x2c8] sm:$0xff]
        %v1747 = vld [vmem:[%s1418 + $0x2d0] sm:$0xff]
        %v1748 = vld [vmem:[%s1418 + $0x2d8] sm:$0xff]
        %v1749 = vld [vmem:[%s1418 + $0x2e0] sm:$0xff]
        %v1750 = vld [vmem:[%s1418 + $0x2e8] sm:$0xff]
        %v1751 = vld [vmem:[%s1418 + $0x2f0] sm:$0xff]
        %v1752 = vld [vmem:[%s1418 + $0x2f8] sm:$0xff]
        %v1753 = vld [vmem:[%s1418 + $0x300] sm:$0xff]
        %v1754 = vld [vmem:[%s1418 + $0x308] sm:$0xff]
        %v1755 = vld [vmem:[%s1418 + $0x310] sm:$0xff]
        %v1756 = vld [vmem:[%s1418 + $0x318] sm:$0xff]
        %v1757 = vld [vmem:[%s1418 + $0x320] sm:$0xff]
        %v1758 = vld [vmem:[%s1418 + $0x328] sm:$0xff]
        %v1759 = vld [vmem:[%s1418 + $0x330] sm:$0xff]
        %v1760 = vld [vmem:[%s1418 + $0x338] sm:$0xff]
        %v1761 = vld [vmem:[%s1418 + $0x340] sm:$0xff]
        %v1762 = vld [vmem:[%s1418 + $0x348] sm:$0xff]
        %v1763 = vld [vmem:[%s1418 + $0x350] sm:$0xff]
        %v1764 = vld [vmem:[%s1418 + $0x358] sm:$0xff]
        %v1765 = vld [vmem:[%s1418 + $0x360] sm:$0xff]
        %v1766 = vld [vmem:[%s1418 + $0x368] sm:$0xff]
        %v1767 = vld [vmem:[%s1418 + $0x370] sm:$0xff]
        %v1768 = vld [vmem:[%s1418 + $0x378] sm:$0xff]
        %v1769 = vld [vmem:[%s1418 + $0x380] sm:$0xff]
        %v1770 = vld [vmem:[%s1418 + $0x388] sm:$0xff]
        %v1771 = vld [vmem:[%s1418 + $0x390] sm:$0xff]
        %v1772 = vld [vmem:[%s1418 + $0x398] sm:$0xff]
        %v1773 = vld [vmem:[%s1418 + $0x3a0] sm:$0xff]
        %v1774 = vld [vmem:[%s1418 + $0x3a8] sm:$0xff]
        %v1775 = vld [vmem:[%s1418 + $0x3b0] sm:$0xff]
        %v1776 = vld [vmem:[%s1418 + $0x3b8] sm:$0xff]
        %v1777 = vld [vmem:[%s1418 + $0x3c0] sm:$0xff]
        %v1778 = vld [vmem:[%s1418 + $0x3c8] sm:$0xff]
        %v1779 = vld [vmem:[%s1418 + $0x3d0] sm:$0xff]
        %v1780 = vld [vmem:[%s1418 + $0x3d8] sm:$0xff]
        %v1781 = vld [vmem:[%s1418 + $0x3e0] sm:$0xff]
        %v1782 = vld [vmem:[%s1418 + $0x3e8] sm:$0xff]
        %v1783 = vld [vmem:[%s1418 + $0x3f0] sm:$0xff]
        %v1784 = vld [vmem:[%s1418 + $0x3f8] sm:$0xff]
        %v1785 = vld [vmem:[%s1418 + $0x400] sm:$0xff]
        %v1786 = vld [vmem:[%s1418 + $0x408] sm:$0xff]
        %v1787 = vld [vmem:[%s1418 + $0x410] sm:$0xff]
        %v1788 = vld [vmem:[%s1418 + $0x418] sm:$0xff]
        %v1789 = vld [vmem:[%s1418 + $0x420] sm:$0xff]
        %v1790 = vld [vmem:[%s1418 + $0x428] sm:$0xff]
        %v1791 = vld [vmem:[%s1418 + $0x430] sm:$0xff]
        %v1792 = vld [vmem:[%s1418 + $0x438] sm:$0xff]
        %v1793 = vld [vmem:[%s1418 + $0x440] sm:$0xff]
        %v1794 = vld [vmem:[%s1418 + $0x448] sm:$0xff]
        %v1795 = vld [vmem:[%s1418 + $0x450] sm:$0xff]
        %v1796 = vld [vmem:[%s1418 + $0x458] sm:$0xff]
        %v1797 = vld [vmem:[%s1418 + $0x460] sm:$0xff]
        %v1798 = vld [vmem:[%s1418 + $0x468] sm:$0xff]
        %v1799 = vld [vmem:[%s1418 + $0x470] sm:$0xff]
        %v1800 = vld [vmem:[%s1418 + $0x478] sm:$0xff]
        %v1801 = vld [vmem:[%s1418 + $0x480] sm:$0xff]
        %v1802 = vld [vmem:[%s1418 + $0x488] sm:$0xff]
        %v1803 = vld [vmem:[%s1418 + $0x490] sm:$0xff]
        %v1804 = vld [vmem:[%s1418 + $0x498] sm:$0xff]
        %v1805 = vld [vmem:[%s1418 + $0x4a0] sm:$0xff]
        %v1806 = vld [vmem:[%s1418 + $0x4a8] sm:$0xff]
        %v1807 = vld [vmem:[%s1418 + $0x4b0] sm:$0xff]
        %v1808 = vld [vmem:[%s1418 + $0x4b8] sm:$0xff]
        %v1809 = vld [vmem:[%s1418 + $0x4c0] sm:$0xff]
        %v1810 = vld [vmem:[%s1418 + $0x4c8] sm:$0xff]
        %v1811 = vld [vmem:[%s1418 + $0x4d0] sm:$0xff]
        %v1812 = vld [vmem:[%s1418 + $0x4d8] sm:$0xff]
        %v1813 = vld [vmem:[%s1418 + $0x4e0] sm:$0xff]
        %v1814 = vld [vmem:[%s1418 + $0x4e8] sm:$0xff]
        %v1815 = vld [vmem:[%s1418 + $0x4f0] sm:$0xff]
        %v1816 = vld [vmem:[%s1418 + $0x4f8] sm:$0xff]
        %v1817 = vld [vmem:[%s1418 + $0x500] sm:$0xff]
        %v1818 = vld [vmem:[%s1418 + $0x508] sm:$0xff]
        %v1819 = vld [vmem:[%s1418 + $0x510] sm:$0xff]
        %v1820 = vld [vmem:[%s1418 + $0x518] sm:$0xff]
        %v1821 = vld [vmem:[%s1418 + $0x520] sm:$0xff]
        %v1822 = vld [vmem:[%s1418 + $0x528] sm:$0xff]
        %v1823 = vld [vmem:[%s1418 + $0x530] sm:$0xff]
        %v1824 = vld [vmem:[%s1418 + $0x538] sm:$0xff]
        %v1825 = vld [vmem:[%s1418 + $0x540] sm:$0xff]
        %v1826 = vld [vmem:[%s1418 + $0x548] sm:$0xff]
        %v1827 = vld [vmem:[%s1418 + $0x550] sm:$0xff]
        %v1828 = vld [vmem:[%s1418 + $0x558] sm:$0xff]
        %v1829 = vld [vmem:[%s1418 + $0x560] sm:$0xff]
        %v1830 = vld [vmem:[%s1418 + $0x568] sm:$0xff]
        %v1831 = vld [vmem:[%s1418 + $0x570] sm:$0xff]
        %v1832 = vld [vmem:[%s1418 + $0x578] sm:$0xff]
        %v1833 = vld [vmem:[%s1418 + $0x580] sm:$0xff]
        %v1834 = vld [vmem:[%s1418 + $0x588] sm:$0xff]
        %v1835 = vld [vmem:[%s1418 + $0x590] sm:$0xff]
        %v1836 = vld [vmem:[%s1418 + $0x598] sm:$0xff]
        %v1837 = vld [vmem:[%s1418 + $0x5a0] sm:$0xff]
        %v1838 = vld [vmem:[%s1418 + $0x5a8] sm:$0xff]
        %v1839 = vld [vmem:[%s1418 + $0x5b0] sm:$0xff]
        %v1840 = vld [vmem:[%s1418 + $0x5b8] sm:$0xff]
        %v1841 = vld [vmem:[%s1418 + $0x5c0] sm:$0xff]
        %v1842 = vld [vmem:[%s1418 + $0x5c8] sm:$0xff]
        %v1843 = vld [vmem:[%s1418 + $0x5d0] sm:$0xff]
        %v1844 = vld [vmem:[%s1418 + $0x5d8] sm:$0xff]
        %v1845 = vld [vmem:[%s1418 + $0x5e0] sm:$0xff]
        %v1846 = vld [vmem:[%s1418 + $0x5e8] sm:$0xff]
        %v1847 = vld [vmem:[%s1418 + $0x5f0] sm:$0xff]
        %v1848 = vld [vmem:[%s1418 + $0x5f8] sm:$0xff]
        %v1849 = vld [vmem:[%s1418 + $0x600] sm:$0xff]
        %v1850 = vld [vmem:[%s1418 + $0x608] sm:$0xff]
        %v1851 = vld [vmem:[%s1418 + $0x610] sm:$0xff]
        %v1852 = vld [vmem:[%s1418 + $0x618] sm:$0xff]
        %v1853 = vld [vmem:[%s1418 + $0x620] sm:$0xff]
        %v1854 = vld [vmem:[%s1418 + $0x628] sm:$0xff]
        %v1855 = vld [vmem:[%s1418 + $0x630] sm:$0xff]
        %v1856 = vld [vmem:[%s1418 + $0x638] sm:$0xff]
        %v1857 = vld [vmem:[%s1418 + $0x640] sm:$0xff]
        %v1858 = vld [vmem:[%s1418 + $0x648] sm:$0xff]
        %v1859 = vld [vmem:[%s1418 + $0x650] sm:$0xff]
        %v1860 = vld [vmem:[%s1418 + $0x658] sm:$0xff]
        %v1861 = vld [vmem:[%s1418 + $0x660] sm:$0xff]
        %v1862 = vld [vmem:[%s1418 + $0x668] sm:$0xff]
        %v1863 = vld [vmem:[%s1418 + $0x670] sm:$0xff]
        %v1864 = vld [vmem:[%s1418 + $0x678] sm:$0xff]
        %v1865 = vld [vmem:[%s1418 + $0x680] sm:$0xff]
        %v1866 = vld [vmem:[%s1418 + $0x688] sm:$0xff]
        %v1867 = vld [vmem:[%s1418 + $0x690] sm:$0xff]
        %v1868 = vld [vmem:[%s1418 + $0x698] sm:$0xff]
        %v1869 = vld [vmem:[%s1418 + $0x6a0] sm:$0xff]
        %v1870 = vld [vmem:[%s1418 + $0x6a8] sm:$0xff]
        %v1871 = vld [vmem:[%s1418 + $0x6b0] sm:$0xff]
        %v1872 = vld [vmem:[%s1418 + $0x6b8] sm:$0xff]
        %v1873 = vld [vmem:[%s1418 + $0x6c0] sm:$0xff]
        %v1874 = vld [vmem:[%s1418 + $0x6c8] sm:$0xff]
        %v1875 = vld [vmem:[%s1418 + $0x6d0] sm:$0xff]
        %v1876 = vld [vmem:[%s1418 + $0x6d8] sm:$0xff]
        %v1877 = vld [vmem:[%s1418 + $0x6e0] sm:$0xff]
        %v1878 = vld [vmem:[%s1418 + $0x6e8] sm:$0xff]
        %v1879 = vld [vmem:[%s1418 + $0x6f0] sm:$0xff]
        %v1880 = vld [vmem:[%s1418 + $0x6f8] sm:$0xff]
        %v1881 = vld [vmem:[%s1418 + $0x700] sm:$0xff]
        %v1882 = vld [vmem:[%s1418 + $0x708] sm:$0xff]
        %v1883 = vld [vmem:[%s1418 + $0x710] sm:$0xff]
        %v1884 = vld [vmem:[%s1418 + $0x718] sm:$0xff]
        %v1885 = vld [vmem:[%s1418 + $0x720] sm:$0xff]
        %v1886 = vld [vmem:[%s1418 + $0x728] sm:$0xff]
        %v1887 = vld [vmem:[%s1418 + $0x730] sm:$0xff]
        %v1888 = vld [vmem:[%s1418 + $0x738] sm:$0xff]
        %v1889 = vld [vmem:[%s1418 + $0x740] sm:$0xff]
        %v1890 = vld [vmem:[%s1418 + $0x748] sm:$0xff]
        %v1891 = vld [vmem:[%s1418 + $0x750] sm:$0xff]
        %v1892 = vld [vmem:[%s1418 + $0x758] sm:$0xff]
        %v1893 = vld [vmem:[%s1418 + $0x760] sm:$0xff]
        %v1894 = vld [vmem:[%s1418 + $0x768] sm:$0xff]
        %v1895 = vld [vmem:[%s1418 + $0x770] sm:$0xff]
        %v1896 = vld [vmem:[%s1418 + $0x778] sm:$0xff]
        %v1897 = vld [vmem:[%s1418 + $0x780] sm:$0xff]
        %v1898 = vld [vmem:[%s1418 + $0x788] sm:$0xff]
        %v1899 = vld [vmem:[%s1418 + $0x790] sm:$0xff]
        %v1900 = vld [vmem:[%s1418 + $0x798] sm:$0xff]
        %v1901 = vld [vmem:[%s1418 + $0x7a0] sm:$0xff]
        %v1902 = vld [vmem:[%s1418 + $0x7a8] sm:$0xff]
        %v1903 = vld [vmem:[%s1418 + $0x7b0] sm:$0xff]
        %v1904 = vld [vmem:[%s1418 + $0x7b8] sm:$0xff]
        %v1905 = vld [vmem:[%s1418 + $0x7c0] sm:$0xff]
        %v1906 = vld [vmem:[%s1418 + $0x7c8] sm:$0xff]
        %v1907 = vld [vmem:[%s1418 + $0x7d0] sm:$0xff]
        %v1908 = vld [vmem:[%s1418 + $0x7d8] sm:$0xff]
        %v1909 = vld [vmem:[%s1418 + $0x7e0] sm:$0xff]
        %v1910 = vld [vmem:[%s1418 + $0x7e8] sm:$0xff]
        %v1911 = vld [vmem:[%s1418 + $0x7f0] sm:$0xff]
        %v1912 = vld [vmem:[%s1418 + $0x7f8] sm:$0xff]
        %v1913 = vld [vmem:[%s1418 + $0x800] sm:$0xff]
        %v1914 = vld [vmem:[%s1418 + $0x808] sm:$0xff]
        %v1915 = vld [vmem:[%s1418 + $0x810] sm:$0xff]
        %v1916 = vld [vmem:[%s1418 + $0x818] sm:$0xff]
        %v1917 = vld [vmem:[%s1418 + $0x820] sm:$0xff]
        %v1918 = vld [vmem:[%s1418 + $0x828] sm:$0xff]
        %v1919 = vld [vmem:[%s1418 + $0x830] sm:$0xff]
        %v1920 = vld [vmem:[%s1418 + $0x838] sm:$0xff]
        %v1921 = vld [vmem:[%s1418 + $0x840] sm:$0xff]
        %v1922 = vld [vmem:[%s1418 + $0x848] sm:$0xff]
        %v1923 = vld [vmem:[%s1418 + $0x850] sm:$0xff]
        %v1924 = vld [vmem:[%s1418 + $0x858] sm:$0xff]
        %v1925 = vld [vmem:[%s1418 + $0x860] sm:$0xff]
        %v1926 = vld [vmem:[%s1418 + $0x868] sm:$0xff]
        %v1927 = vld [vmem:[%s1418 + $0x870] sm:$0xff]
        %v1928 = vld [vmem:[%s1418 + $0x878] sm:$0xff]
        %v1929 = vld [vmem:[%s1418 + $0x880] sm:$0xff]
        %v1930 = vld [vmem:[%s1418 + $0x888] sm:$0xff]
        %v1931 = vld [vmem:[%s1418 + $0x890] sm:$0xff]
        %v1932 = vld [vmem:[%s1418 + $0x898] sm:$0xff]
        %v1933 = vld [vmem:[%s1418 + $0x8a0] sm:$0xff]
        %v1934 = vld [vmem:[%s1418 + $0x8a8] sm:$0xff]
        %v1935 = vld [vmem:[%s1418 + $0x8b0] sm:$0xff]
        %v1936 = vld [vmem:[%s1418 + $0x8b8] sm:$0xff]
        %v1937 = vld [vmem:[%s1418 + $0x8c0] sm:$0xff]
        %v1938 = vld [vmem:[%s1418 + $0x8c8] sm:$0xff]
        %v1939 = vld [vmem:[%s1418 + $0x8d0] sm:$0xff]
        %v1940 = vld [vmem:[%s1418 + $0x8d8] sm:$0xff]
        %v1941 = vld [vmem:[%s1418 + $0x8e0] sm:$0xff]
        %v1942 = vld [vmem:[%s1418 + $0x8e8] sm:$0xff]
        %v1943 = vld [vmem:[%s1418 + $0x8f0] sm:$0xff]
        %v1944 = vld [vmem:[%s1418 + $0x8f8] sm:$0xff]
        %v2062 = vunpack.c.l.b16 %v1540
        %v2063 = vunpack.c.h.b16 %v1540
        %v2064 = vunpack.c.l.b16 %v1541
        %v2065 = vunpack.c.h.b16 %v1541
        %v2066 = vunpack.c.l.b16 %v1542
        %v2067 = vunpack.c.h.b16 %v1542
        %v2068 = vunpack.c.l.b16 %v1543
        %v2069 = vunpack.c.h.b16 %v1543
        %v2070 = vunpack.c.l.b16 %v1544
        %v2071 = vunpack.c.h.b16 %v1544
        %v2072 = vunpack.c.l.b16 %v1545
        %v2073 = vunpack.c.h.b16 %v1545
        %v2074 = vunpack.c.l.b16 %v1546
        %v2075 = vunpack.c.h.b16 %v1546
        %v2076 = vunpack.c.l.b16 %v1547
        %v2077 = vunpack.c.h.b16 %v1547
        %v2078 = vunpack.c.l.b16 %v1548
        %v2079 = vunpack.c.h.b16 %v1548
        %v2080 = vunpack.c.l.b16 %v1549
        %v2081 = vunpack.c.h.b16 %v1549
        %v2082 = vunpack.c.l.b16 %v1550
        %v2083 = vunpack.c.h.b16 %v1550
        %v2084 = vunpack.c.l.b16 %v1551
        %v2085 = vunpack.c.h.b16 %v1551
        %v2086 = vunpack.c.l.b16 %v1552
        %v2087 = vunpack.c.h.b16 %v1552
        %v2088 = vunpack.c.l.b16 %v1553
        %v2089 = vunpack.c.h.b16 %v1553
        %v2090 = vunpack.c.l.b16 %v1554
        %v2091 = vunpack.c.h.b16 %v1554
        %v2092 = vunpack.c.l.b16 %v1555
        %v2093 = vunpack.c.h.b16 %v1555
        %v2094 = vunpack.c.l.b16 %v1556
        %v2095 = vunpack.c.h.b16 %v1556
        %v2096 = vunpack.c.l.b16 %v1557
        %v2097 = vunpack.c.h.b16 %v1557
        %v2098 = vunpack.c.l.b16 %v1558
        %v2099 = vunpack.c.h.b16 %v1558
        %v2100 = vunpack.c.l.b16 %v1559
        %v2101 = vunpack.c.h.b16 %v1559
        %v2102 = vunpack.c.l.b16 %v1560
        %v2103 = vunpack.c.h.b16 %v1560
        %v2104 = vunpack.c.l.b16 %v1561
        %v2105 = vunpack.c.h.b16 %v1561
        %v2106 = vunpack.c.l.b16 %v1562
        %v2107 = vunpack.c.h.b16 %v1562
        %v2108 = vunpack.c.l.b16 %v1563
        %v2109 = vunpack.c.h.b16 %v1563
        %v2110 = vunpack.c.l.b16 %v1564
        %v2111 = vunpack.c.h.b16 %v1564
        %v2112 = vunpack.c.l.b16 %v1565
        %v2113 = vunpack.c.h.b16 %v1565
        %v2114 = vunpack.c.l.b16 %v1566
        %v2115 = vunpack.c.h.b16 %v1566
        %v2116 = vunpack.c.l.b16 %v1567
        %v2117 = vunpack.c.h.b16 %v1567
        %v2118 = vunpack.c.l.b16 %v1568
        %v2119 = vunpack.c.h.b16 %v1568
        %v2120 = vunpack.c.l.b16 %v1569
        %v2121 = vunpack.c.h.b16 %v1569
        %v2122 = vunpack.c.l.b16 %v1570
        %v2123 = vunpack.c.h.b16 %v1570
        %v2124 = vunpack.c.l.b16 %v1571
        %v2125 = vunpack.c.h.b16 %v1571
        %v2126 = vunpack.c.l.b16 %v1572
        %v2127 = vunpack.c.h.b16 %v1572
        %v2128 = vunpack.c.l.b16 %v1573
        %v2129 = vunpack.c.h.b16 %v1573
        %v2130 = vunpack.c.l.b16 %v1574
        %v2131 = vunpack.c.h.b16 %v1574
        %v2132 = vunpack.c.l.b16 %v1575
        %v2133 = vunpack.c.h.b16 %v1575
        %v2134 = vunpack.c.l.b16 %v1576
        %v2135 = vunpack.c.h.b16 %v1576
        %v2136 = vunpack.c.l.b16 %v1577
        %v2137 = vunpack.c.h.b16 %v1577
        %v2138 = vunpack.c.l.b16 %v1578
        %v2139 = vunpack.c.h.b16 %v1578
        %v2140 = vunpack.c.l.b16 %v1579
        %v2141 = vunpack.c.h.b16 %v1579
        %v2142 = vunpack.c.l.b16 %v1580
        %v2143 = vunpack.c.h.b16 %v1580
        %v2144 = vunpack.c.l.b16 %v1581
        %v2145 = vunpack.c.h.b16 %v1581
        %v2146 = vunpack.c.l.b16 %v1582
        %v2147 = vunpack.c.h.b16 %v1582
        %v2148 = vunpack.c.l.b16 %v1583
        %v2149 = vunpack.c.h.b16 %v1583
        %v2150 = vunpack.c.l.b16 %v1584
        %v2151 = vunpack.c.h.b16 %v1584
        %v2152 = vunpack.c.l.b16 %v1585
        %v2153 = vunpack.c.h.b16 %v1585
        %v2154 = vunpack.c.l.b16 %v1586
        %v2155 = vunpack.c.h.b16 %v1586
        %v2156 = vunpack.c.l.b16 %v1587
        %v2157 = vunpack.c.h.b16 %v1587
        %v2158 = vunpack.c.l.b16 %v1588
        %v2159 = vunpack.c.h.b16 %v1588
        %v2160 = vunpack.c.l.b16 %v1589
        %v2161 = vunpack.c.h.b16 %v1589
        %v2162 = vunpack.c.l.b16 %v1590
        %v2163 = vunpack.c.h.b16 %v1590
        %v2164 = vunpack.c.l.b16 %v1591
        %v2165 = vunpack.c.h.b16 %v1591
        %v2166 = vunpack.c.l.b16 %v1592
        %v2167 = vunpack.c.h.b16 %v1592
        %v2168 = vunpack.c.l.b16 %v1593
        %v2169 = vunpack.c.h.b16 %v1593
        %v2170 = vunpack.c.l.b16 %v1594
        %v2171 = vunpack.c.h.b16 %v1594
        %v2172 = vunpack.c.l.b16 %v1595
        %v2173 = vunpack.c.h.b16 %v1595
        %v2174 = vunpack.c.l.b16 %v1596
        %v2175 = vunpack.c.h.b16 %v1596
        %v2176 = vunpack.c.l.b16 %v1597
        %v2177 = vunpack.c.h.b16 %v1597
        %v2178 = vunpack.c.l.b16 %v1598
        %v2179 = vunpack.c.h.b16 %v1598
        %v2180 = vunpack.c.l.b16 %v1599
        %v2181 = vunpack.c.h.b16 %v1599
        %v2182 = vunpack.c.l.b16 %v1600
        %v2183 = vunpack.c.h.b16 %v1600
        %v2184 = vunpack.c.l.b16 %v1601
        %v2185 = vunpack.c.h.b16 %v1601
        %v2186 = vunpack.c.l.b16 %v1602
        %v2187 = vunpack.c.h.b16 %v1602
        %v2188 = vunpack.c.l.b16 %v1603
        %v2189 = vunpack.c.h.b16 %v1603
        %v2190 = vunpack.c.l.b16 %v1604
        %v2191 = vunpack.c.h.b16 %v1604
        %v2192 = vunpack.c.l.b16 %v1605
        %v2193 = vunpack.c.h.b16 %v1605
        %v2194 = vunpack.c.l.b16 %v1606
        %v2195 = vunpack.c.h.b16 %v1606
        %v2196 = vunpack.c.l.b16 %v1607
        %v2197 = vunpack.c.h.b16 %v1607
        %v2198 = vunpack.c.l.b16 %v1608
        %v2199 = vunpack.c.h.b16 %v1608
        %v2200 = vunpack.c.l.b16 %v1609
        %v2201 = vunpack.c.h.b16 %v1609
        %v2202 = vunpack.c.l.b16 %v1610
        %v2203 = vunpack.c.h.b16 %v1610
        %v2204 = vunpack.c.l.b16 %v1611
        %v2205 = vunpack.c.h.b16 %v1611
        %v2206 = vunpack.c.l.b16 %v1612
        %v2207 = vunpack.c.h.b16 %v1612
        %v2208 = vunpack.c.l.b16 %v1613
        %v2209 = vunpack.c.h.b16 %v1613
        %v2210 = vunpack.c.l.b16 %v1614
        %v2211 = vunpack.c.h.b16 %v1614
        %v2212 = vunpack.c.l.b16 %v1615
        %v2213 = vunpack.c.h.b16 %v1615
        %v2214 = vunpack.c.l.b16 %v1616
        %v2215 = vunpack.c.h.b16 %v1616
        %v2216 = vunpack.c.l.b16 %v1617
        %v2217 = vunpack.c.h.b16 %v1617
        %v2218 = vunpack.c.l.b16 %v1618
        %v2219 = vunpack.c.h.b16 %v1618
        %v2220 = vunpack.c.l.b16 %v1619
        %v2221 = vunpack.c.h.b16 %v1619
        %v2222 = vunpack.c.l.b16 %v1620
        %v2223 = vunpack.c.h.b16 %v1620
        %v2224 = vunpack.c.l.b16 %v1621
        %v2225 = vunpack.c.h.b16 %v1621
        %v2226 = vunpack.c.l.b16 %v1622
        %v2227 = vunpack.c.h.b16 %v1622
        %v2228 = vunpack.c.l.b16 %v1623
        %v2229 = vunpack.c.h.b16 %v1623
        %v2230 = vunpack.c.l.b16 %v1624
        %v2231 = vunpack.c.h.b16 %v1624
        %v2232 = vunpack.c.l.b16 %v1625
        %v2233 = vunpack.c.h.b16 %v1625
        %v2234 = vunpack.c.l.b16 %v1626
        %v2235 = vunpack.c.h.b16 %v1626
        %v2236 = vunpack.c.l.b16 %v1627
        %v2237 = vunpack.c.h.b16 %v1627
        %v2238 = vunpack.c.l.b16 %v1628
        %v2239 = vunpack.c.h.b16 %v1628
        %v2240 = vunpack.c.l.b16 %v1629
        %v2241 = vunpack.c.h.b16 %v1629
        %v2242 = vunpack.c.l.b16 %v1630
        %v2243 = vunpack.c.h.b16 %v1630
        %v2244 = vunpack.c.l.b16 %v1631
        %v2245 = vunpack.c.h.b16 %v1631
        %v2246 = vunpack.c.l.b16 %v1632
        %v2247 = vunpack.c.h.b16 %v1632
        %v2248 = vunpack.c.l.b16 %v1633
        %v2249 = vunpack.c.h.b16 %v1633
        %v2250 = vunpack.c.l.b16 %v1634
        %v2251 = vunpack.c.h.b16 %v1634
        %v2252 = vunpack.c.l.b16 %v1635
        %v2253 = vunpack.c.h.b16 %v1635
        %v2254 = vunpack.c.l.b16 %v1636
        %v2255 = vunpack.c.h.b16 %v1636
        %v2256 = vunpack.c.l.b16 %v1637
        %v2257 = vunpack.c.h.b16 %v1637
        %v2258 = vunpack.c.l.b16 %v1638
        %v2259 = vunpack.c.h.b16 %v1638
        %v2260 = vunpack.c.l.b16 %v1639
        %v2261 = vunpack.c.h.b16 %v1639
        %v2262 = vunpack.c.l.b16 %v1640
        %v2263 = vunpack.c.h.b16 %v1640
        %v2264 = vunpack.c.l.b16 %v1641
        %v2265 = vunpack.c.h.b16 %v1641
        %v2266 = vunpack.c.l.b16 %v1642
        %v2267 = vunpack.c.h.b16 %v1642
        %v2268 = vunpack.c.l.b16 %v1643
        %v2269 = vunpack.c.h.b16 %v1643
        %v2270 = vunpack.c.l.b16 %v1644
        %v2271 = vunpack.c.h.b16 %v1644
        %v2272 = vunpack.c.l.b16 %v1645
        %v2273 = vunpack.c.h.b16 %v1645
        %v2274 = vunpack.c.l.b16 %v1646
        %v2275 = vunpack.c.h.b16 %v1646
        %v2276 = vunpack.c.l.b16 %v1647
        %v2277 = vunpack.c.h.b16 %v1647
        %v2278 = vunpack.c.l.b16 %v1648
        %v2279 = vunpack.c.h.b16 %v1648
        %v2280 = vunpack.c.l.b16 %v1649
        %v2281 = vunpack.c.h.b16 %v1649
        %v2282 = vunpack.c.l.b16 %v1650
        %v2283 = vunpack.c.h.b16 %v1650
        %v2284 = vunpack.c.l.b16 %v1651
        %v2285 = vunpack.c.h.b16 %v1651
        %v2286 = vunpack.c.l.b16 %v1652
        %v2287 = vunpack.c.h.b16 %v1652
        %v2288 = vunpack.c.l.b16 %v1653
        %v2289 = vunpack.c.h.b16 %v1653
        %v2290 = vunpack.c.l.b16 %v1654
        %v2291 = vunpack.c.h.b16 %v1654
        %v2292 = vunpack.c.l.b16 %v1655
        %v2293 = vunpack.c.h.b16 %v1655
        %v2294 = vunpack.c.l.b16 %v1656
        %v2295 = vunpack.c.h.b16 %v1656
        %v2296 = vpack.c.b16 %v2080, %v2062
        %v2297 = vpack.c.b16 %v2081, %v2063
        %v2298 = vpack.c.b16 %v2082, %v2064
        %v2299 = vpack.c.b16 %v2083, %v2065
        %v2300 = vpack.c.b16 %v2084, %v2066
        %v2301 = vpack.c.b16 %v2085, %v2067
        %v2302 = vpack.c.b16 %v2086, %v2068
        %v2303 = vpack.c.b16 %v2087, %v2069
        %v2304 = vpack.c.b16 %v2088, %v2070
        %v2305 = vpack.c.b16 %v2089, %v2071
        %v2306 = vpack.c.b16 %v2090, %v2072
        %v2307 = vpack.c.b16 %v2091, %v2073
        %v2308 = vpack.c.b16 %v2092, %v2074
        %v2309 = vpack.c.b16 %v2093, %v2075
        %v2310 = vpack.c.b16 %v2094, %v2076
        %v2311 = vpack.c.b16 %v2095, %v2077
        %v2312 = vpack.c.b16 %v2096, %v2078
        %v2313 = vpack.c.b16 %v2097, %v2079
        %v2314 = vpack.c.b16 %v2116, %v2098
        %v2315 = vpack.c.b16 %v2117, %v2099
        %v2316 = vpack.c.b16 %v2118, %v2100
        %v2317 = vpack.c.b16 %v2119, %v2101
        %v2318 = vpack.c.b16 %v2120, %v2102
        %v2319 = vpack.c.b16 %v2121, %v2103
        %v2320 = vpack.c.b16 %v2122, %v2104
        %v2321 = vpack.c.b16 %v2123, %v2105
        %v2322 = vpack.c.b16 %v2124, %v2106
        %v2323 = vpack.c.b16 %v2125, %v2107
        %v2324 = vpack.c.b16 %v2126, %v2108
        %v2325 = vpack.c.b16 %v2127, %v2109
        %v2326 = vpack.c.b16 %v2128, %v2110
        %v2327 = vpack.c.b16 %v2129, %v2111
        %v2328 = vpack.c.b16 %v2130, %v2112
        %v2329 = vpack.c.b16 %v2131, %v2113
        %v2330 = vpack.c.b16 %v2132, %v2114
        %v2331 = vpack.c.b16 %v2133, %v2115
        %v2332 = vpack.c.b16 %v2152, %v2134
        %v2333 = vpack.c.b16 %v2153, %v2135
        %v2334 = vpack.c.b16 %v2154, %v2136
        %v2335 = vpack.c.b16 %v2155, %v2137
        %v2336 = vpack.c.b16 %v2156, %v2138
        %v2337 = vpack.c.b16 %v2157, %v2139
        %v2338 = vpack.c.b16 %v2158, %v2140
        %v2339 = vpack.c.b16 %v2159, %v2141
        %v2340 = vpack.c.b16 %v2160, %v2142
        %v2341 = vpack.c.b16 %v2161, %v2143
        %v2342 = vpack.c.b16 %v2162, %v2144
        %v2343 = vpack.c.b16 %v2163, %v2145
        %v2344 = vpack.c.b16 %v2164, %v2146
        %v2345 = vpack.c.b16 %v2165, %v2147
        %v2346 = vpack.c.b16 %v2166, %v2148
        %v2347 = vpack.c.b16 %v2167, %v2149
        %v2348 = vpack.c.b16 %v2168, %v2150
        %v2349 = vpack.c.b16 %v2169, %v2151
        %v2350 = vpack.c.b16 %v2188, %v2170
        %v2351 = vpack.c.b16 %v2189, %v2171
        %v2352 = vpack.c.b16 %v2190, %v2172
        %v2353 = vpack.c.b16 %v2191, %v2173
        %v2354 = vpack.c.b16 %v2192, %v2174
        %v2355 = vpack.c.b16 %v2193, %v2175
        %v2356 = vpack.c.b16 %v2194, %v2176
        %v2357 = vpack.c.b16 %v2195, %v2177
        %v2358 = vpack.c.b16 %v2196, %v2178
        %v2359 = vpack.c.b16 %v2197, %v2179
        %v2360 = vpack.c.b16 %v2198, %v2180
        %v2361 = vpack.c.b16 %v2199, %v2181
        %v2362 = vpack.c.b16 %v2200, %v2182
        %v2363 = vpack.c.b16 %v2201, %v2183
        %v2364 = vpack.c.b16 %v2202, %v2184
        %v2365 = vpack.c.b16 %v2203, %v2185
        %v2366 = vpack.c.b16 %v2204, %v2186
        %v2367 = vpack.c.b16 %v2205, %v2187
        %v2368 = vpack.c.b16 %v2224, %v2206
        %v2369 = vpack.c.b16 %v2225, %v2207
        %v2370 = vpack.c.b16 %v2226, %v2208
        %v2371 = vpack.c.b16 %v2227, %v2209
        %v2372 = vpack.c.b16 %v2228, %v2210
        %v2373 = vpack.c.b16 %v2229, %v2211
        %v2374 = vpack.c.b16 %v2230, %v2212
        %v2375 = vpack.c.b16 %v2231, %v2213
        %v2376 = vpack.c.b16 %v2232, %v2214
        %v2377 = vpack.c.b16 %v2233, %v2215
        %v2378 = vpack.c.b16 %v2234, %v2216
        %v2379 = vpack.c.b16 %v2235, %v2217
        %v2380 = vpack.c.b16 %v2236, %v2218
        %v2381 = vpack.c.b16 %v2237, %v2219
        %v2382 = vpack.c.b16 %v2238, %v2220
        %v2383 = vpack.c.b16 %v2239, %v2221
        %v2384 = vpack.c.b16 %v2240, %v2222
        %v2385 = vpack.c.b16 %v2241, %v2223
        %v2386 = vpack.c.b16 %v2260, %v2242
        %v2387 = vpack.c.b16 %v2261, %v2243
        %v2388 = vpack.c.b16 %v2262, %v2244
        %v2389 = vpack.c.b16 %v2263, %v2245
        %v2390 = vpack.c.b16 %v2264, %v2246
        %v2391 = vpack.c.b16 %v2265, %v2247
        %v2392 = vpack.c.b16 %v2266, %v2248
        %v2393 = vpack.c.b16 %v2267, %v2249
        %v2394 = vpack.c.b16 %v2268, %v2250
        %v2395 = vpack.c.b16 %v2269, %v2251
        %v2396 = vpack.c.b16 %v2270, %v2252
        %v2397 = vpack.c.b16 %v2271, %v2253
        %v2398 = vpack.c.b16 %v2272, %v2254
        %v2399 = vpack.c.b16 %v2273, %v2255
        %v2400 = vpack.c.b16 %v2274, %v2256
        %v2401 = vpack.c.b16 %v2275, %v2257
        %v2402 = vpack.c.b16 %v2276, %v2258
        %v2403 = vpack.c.b16 %v2277, %v2259
        %v2404 = vpack.c.b16 %v2278, %v2278
        %v2405 = vpack.c.b16 %v2279, %v2279
        %v2406 = vpack.c.b16 %v2280, %v2280
        %v2407 = vpack.c.b16 %v2281, %v2281
        %v2408 = vpack.c.b16 %v2282, %v2282
        %v2409 = vpack.c.b16 %v2283, %v2283
        %v2410 = vpack.c.b16 %v2284, %v2284
        %v2411 = vpack.c.b16 %v2285, %v2285
        %v2412 = vpack.c.b16 %v2286, %v2286
        %v2413 = vpack.c.b16 %v2287, %v2287
        %v2414 = vpack.c.b16 %v2288, %v2288
        %v2415 = vpack.c.b16 %v2289, %v2289
        %v2416 = vpack.c.b16 %v2290, %v2290
        %v2417 = vpack.c.b16 %v2291, %v2291
        %v2418 = vpack.c.b16 %v2292, %v2292
        %v2419 = vpack.c.b16 %v2293, %v2293
        %v2420 = vpack.c.b16 %v2294, %v2294
        %v2421 = vpack.c.b16 %v2295, %v2295
        %v2836 = vunpack.c.l.b16 %v1657
        %v2837 = vunpack.c.h.b16 %v1657
        %v2838 = vunpack.c.l.b16 %v1658
        %v2839 = vunpack.c.h.b16 %v1658
        %v2840 = vunpack.c.l.b16 %v1659
        %v2841 = vunpack.c.h.b16 %v1659
        %v2842 = vunpack.c.l.b16 %v1660
        %v2843 = vunpack.c.h.b16 %v1660
        %v2844 = vunpack.c.l.b16 %v1661
        %v2845 = vunpack.c.h.b16 %v1661
        %v2846 = vunpack.c.l.b16 %v1662
        %v2847 = vunpack.c.h.b16 %v1662
        %v2848 = vunpack.c.l.b16 %v1663
        %v2849 = vunpack.c.h.b16 %v1663
        %v2850 = vunpack.c.l.b16 %v1664
        %v2851 = vunpack.c.h.b16 %v1664
        %v2852 = vunpack.c.l.b16 %v1665
        %v2853 = vunpack.c.h.b16 %v1665
        %v2854 = vunpack.c.l.b16 %v1666
        %v2855 = vunpack.c.h.b16 %v1666
        %v2856 = vunpack.c.l.b16 %v1667
        %v2857 = vunpack.c.h.b16 %v1667
        %v2858 = vunpack.c.l.b16 %v1668
        %v2859 = vunpack.c.h.b16 %v1668
        %v2860 = vunpack.c.l.b16 %v1669
        %v2861 = vunpack.c.h.b16 %v1669
        %v2862 = vunpack.c.l.b16 %v1670
        %v2863 = vunpack.c.h.b16 %v1670
        %v2864 = vunpack.c.l.b16 %v1671
        %v2865 = vunpack.c.h.b16 %v1671
        %v2866 = vunpack.c.l.b16 %v1672
        %v2867 = vunpack.c.h.b16 %v1672
        %v2868 = vunpack.c.l.b16 %v1673
        %v2869 = vunpack.c.h.b16 %v1673
        %v2870 = vunpack.c.l.b16 %v1674
        %v2871 = vunpack.c.h.b16 %v1674
        %v2872 = vunpack.c.l.b16 %v1675
        %v2873 = vunpack.c.h.b16 %v1675
        %v2874 = vunpack.c.l.b16 %v1676
        %v2875 = vunpack.c.h.b16 %v1676
        %v2876 = vunpack.c.l.b16 %v1677
        %v2877 = vunpack.c.h.b16 %v1677
        %v2878 = vunpack.c.l.b16 %v1678
        %v2879 = vunpack.c.h.b16 %v1678
        %v2880 = vunpack.c.l.b16 %v1679
        %v2881 = vunpack.c.h.b16 %v1679
        %v2882 = vunpack.c.l.b16 %v1680
        %v2883 = vunpack.c.h.b16 %v1680
        %v2884 = vunpack.c.l.b16 %v1681
        %v2885 = vunpack.c.h.b16 %v1681
        %v2886 = vunpack.c.l.b16 %v1682
        %v2887 = vunpack.c.h.b16 %v1682
        %v2888 = vunpack.c.l.b16 %v1683
        %v2889 = vunpack.c.h.b16 %v1683
        %v2890 = vunpack.c.l.b16 %v1684
        %v2891 = vunpack.c.h.b16 %v1684
        %v2892 = vunpack.c.l.b16 %v1685
        %v2893 = vunpack.c.h.b16 %v1685
        %v2894 = vunpack.c.l.b16 %v1686
        %v2895 = vunpack.c.h.b16 %v1686
        %v2896 = vunpack.c.l.b16 %v1687
        %v2897 = vunpack.c.h.b16 %v1687
        %v2898 = vunpack.c.l.b16 %v1688
        %v2899 = vunpack.c.h.b16 %v1688
        %v2900 = vunpack.c.l.b16 %v1689
        %v2901 = vunpack.c.h.b16 %v1689
        %v2902 = vunpack.c.l.b16 %v1690
        %v2903 = vunpack.c.h.b16 %v1690
        %v2904 = vunpack.c.l.b16 %v1691
        %v2905 = vunpack.c.h.b16 %v1691
        %v2906 = vunpack.c.l.b16 %v1692
        %v2907 = vunpack.c.h.b16 %v1692
        %v2908 = vunpack.c.l.b16 %v1693
        %v2909 = vunpack.c.h.b16 %v1693
        %v2910 = vunpack.c.l.b16 %v1694
        %v2911 = vunpack.c.h.b16 %v1694
        %v2912 = vunpack.c.l.b16 %v1695
        %v2913 = vunpack.c.h.b16 %v1695
        %v2914 = vunpack.c.l.b16 %v1696
        %v2915 = vunpack.c.h.b16 %v1696
        %v2916 = vunpack.c.l.b16 %v1697
        %v2917 = vunpack.c.h.b16 %v1697
        %v2918 = vunpack.c.l.b16 %v1698
        %v2919 = vunpack.c.h.b16 %v1698
        %v2920 = vunpack.c.l.b16 %v1699
        %v2921 = vunpack.c.h.b16 %v1699
        %v2922 = vunpack.c.l.b16 %v1700
        %v2923 = vunpack.c.h.b16 %v1700
        %v2924 = vunpack.c.l.b16 %v1701
        %v2925 = vunpack.c.h.b16 %v1701
        %v2926 = vunpack.c.l.b16 %v1702
        %v2927 = vunpack.c.h.b16 %v1702
        %v2928 = vunpack.c.l.b16 %v1703
        %v2929 = vunpack.c.h.b16 %v1703
        %v2930 = vunpack.c.l.b16 %v1704
        %v2931 = vunpack.c.h.b16 %v1704
        %v2932 = vunpack.c.l.b16 %v1705
        %v2933 = vunpack.c.h.b16 %v1705
        %v2934 = vunpack.c.l.b16 %v1706
        %v2935 = vunpack.c.h.b16 %v1706
        %v2936 = vunpack.c.l.b16 %v1707
        %v2937 = vunpack.c.h.b16 %v1707
        %v2938 = vunpack.c.l.b16 %v1708
        %v2939 = vunpack.c.h.b16 %v1708
        %v2940 = vunpack.c.l.b16 %v1709
        %v2941 = vunpack.c.h.b16 %v1709
        %v2942 = vunpack.c.l.b16 %v1710
        %v2943 = vunpack.c.h.b16 %v1710
        %v2944 = vunpack.c.l.b16 %v1711
        %v2945 = vunpack.c.h.b16 %v1711
        %v2946 = vunpack.c.l.b16 %v1712
        %v2947 = vunpack.c.h.b16 %v1712
        %v2948 = vunpack.c.l.b16 %v1713
        %v2949 = vunpack.c.h.b16 %v1713
        %v2950 = vunpack.c.l.b16 %v1714
        %v2951 = vunpack.c.h.b16 %v1714
        %v2952 = vunpack.c.l.b16 %v1715
        %v2953 = vunpack.c.h.b16 %v1715
        %v2954 = vunpack.c.l.b16 %v1716
        %v2955 = vunpack.c.h.b16 %v1716
        %v2956 = vunpack.c.l.b16 %v1717
        %v2957 = vunpack.c.h.b16 %v1717
        %v2958 = vunpack.c.l.b16 %v1718
        %v2959 = vunpack.c.h.b16 %v1718
        %v2960 = vunpack.c.l.b16 %v1719
        %v2961 = vunpack.c.h.b16 %v1719
        %v2962 = vunpack.c.l.b16 %v1720
        %v2963 = vunpack.c.h.b16 %v1720
        %v2964 = vunpack.c.l.b16 %v1721
        %v2965 = vunpack.c.h.b16 %v1721
        %v2966 = vunpack.c.l.b16 %v1722
        %v2967 = vunpack.c.h.b16 %v1722
        %v2968 = vunpack.c.l.b16 %v1723
        %v2969 = vunpack.c.h.b16 %v1723
        %v2970 = vunpack.c.l.b16 %v1724
        %v2971 = vunpack.c.h.b16 %v1724
        %v2972 = vunpack.c.l.b16 %v1725
        %v2973 = vunpack.c.h.b16 %v1725
        %v2974 = vunpack.c.l.b16 %v1726
        %v2975 = vunpack.c.h.b16 %v1726
        %v2976 = vunpack.c.l.b16 %v1727
        %v2977 = vunpack.c.h.b16 %v1727
        %v2978 = vunpack.c.l.b16 %v1728
        %v2979 = vunpack.c.h.b16 %v1728
        %v2980 = vunpack.c.l.b16 %v1729
        %v2981 = vunpack.c.h.b16 %v1729
        %v2982 = vunpack.c.l.b16 %v1730
        %v2983 = vunpack.c.h.b16 %v1730
        %v2984 = vunpack.c.l.b16 %v1731
        %v2985 = vunpack.c.h.b16 %v1731
        %v2986 = vunpack.c.l.b16 %v1732
        %v2987 = vunpack.c.h.b16 %v1732
        %v2988 = vunpack.c.l.b16 %v1733
        %v2989 = vunpack.c.h.b16 %v1733
        %v2990 = vunpack.c.l.b16 %v1734
        %v2991 = vunpack.c.h.b16 %v1734
        %v2992 = vunpack.c.l.b16 %v1735
        %v2993 = vunpack.c.h.b16 %v1735
        %v2994 = vunpack.c.l.b16 %v1736
        %v2995 = vunpack.c.h.b16 %v1736
        %v2996 = vunpack.c.l.b16 %v1737
        %v2997 = vunpack.c.h.b16 %v1737
        %v2998 = vunpack.c.l.b16 %v1738
        %v2999 = vunpack.c.h.b16 %v1738
        %v3000 = vunpack.c.l.b16 %v1739
        %v3001 = vunpack.c.h.b16 %v1739
        %v3002 = vunpack.c.l.b16 %v1740
        %v3003 = vunpack.c.h.b16 %v1740
        %v3004 = vunpack.c.l.b16 %v1741
        %v3005 = vunpack.c.h.b16 %v1741
        %v3006 = vunpack.c.l.b16 %v1742
        %v3007 = vunpack.c.h.b16 %v1742
        %v3008 = vunpack.c.l.b16 %v1743
        %v3009 = vunpack.c.h.b16 %v1743
        %v3010 = vunpack.c.l.b16 %v1744
        %v3011 = vunpack.c.h.b16 %v1744
        %v3012 = vunpack.c.l.b16 %v1745
        %v3013 = vunpack.c.h.b16 %v1745
        %v3014 = vunpack.c.l.b16 %v1746
        %v3015 = vunpack.c.h.b16 %v1746
        %v3016 = vunpack.c.l.b16 %v1747
        %v3017 = vunpack.c.h.b16 %v1747
        %v3018 = vunpack.c.l.b16 %v1748
        %v3019 = vunpack.c.h.b16 %v1748
        %v3020 = vunpack.c.l.b16 %v1749
        %v3021 = vunpack.c.h.b16 %v1749
        %v3022 = vunpack.c.l.b16 %v1750
        %v3023 = vunpack.c.h.b16 %v1750
        %v3024 = vunpack.c.l.b16 %v1751
        %v3025 = vunpack.c.h.b16 %v1751
        %v3026 = vunpack.c.l.b16 %v1752
        %v3027 = vunpack.c.h.b16 %v1752
        %v3028 = vunpack.c.l.b16 %v1753
        %v3029 = vunpack.c.h.b16 %v1753
        %v3030 = vunpack.c.l.b16 %v1754
        %v3031 = vunpack.c.h.b16 %v1754
        %v3032 = vunpack.c.l.b16 %v1755
        %v3033 = vunpack.c.h.b16 %v1755
        %v3034 = vunpack.c.l.b16 %v1756
        %v3035 = vunpack.c.h.b16 %v1756
        %v3036 = vunpack.c.l.b16 %v1757
        %v3037 = vunpack.c.h.b16 %v1757
        %v3038 = vunpack.c.l.b16 %v1758
        %v3039 = vunpack.c.h.b16 %v1758
        %v3040 = vunpack.c.l.b16 %v1759
        %v3041 = vunpack.c.h.b16 %v1759
        %v3042 = vunpack.c.l.b16 %v1760
        %v3043 = vunpack.c.h.b16 %v1760
        %v3044 = vunpack.c.l.b16 %v1761
        %v3045 = vunpack.c.h.b16 %v1761
        %v3046 = vunpack.c.l.b16 %v1762
        %v3047 = vunpack.c.h.b16 %v1762
        %v3048 = vunpack.c.l.b16 %v1763
        %v3049 = vunpack.c.h.b16 %v1763
        %v3050 = vunpack.c.l.b16 %v1764
        %v3051 = vunpack.c.h.b16 %v1764
        %v3052 = vunpack.c.l.b16 %v1765
        %v3053 = vunpack.c.h.b16 %v1765
        %v3054 = vunpack.c.l.b16 %v1766
        %v3055 = vunpack.c.h.b16 %v1766
        %v3056 = vunpack.c.l.b16 %v1767
        %v3057 = vunpack.c.h.b16 %v1767
        %v3058 = vunpack.c.l.b16 %v1768
        %v3059 = vunpack.c.h.b16 %v1768
        %v3060 = vunpack.c.l.b16 %v1769
        %v3061 = vunpack.c.h.b16 %v1769
        %v3062 = vunpack.c.l.b16 %v1770
        %v3063 = vunpack.c.h.b16 %v1770
        %v3064 = vunpack.c.l.b16 %v1771
        %v3065 = vunpack.c.h.b16 %v1771
        %v3066 = vunpack.c.l.b16 %v1772
        %v3067 = vunpack.c.h.b16 %v1772
        %v3068 = vunpack.c.l.b16 %v1773
        %v3069 = vunpack.c.h.b16 %v1773
        %v3070 = vunpack.c.l.b16 %v1774
        %v3071 = vunpack.c.h.b16 %v1774
        %v3072 = vunpack.c.l.b16 %v1775
        %v3073 = vunpack.c.h.b16 %v1775
        %v3074 = vunpack.c.l.b16 %v1776
        %v3075 = vunpack.c.h.b16 %v1776
        %v3076 = vunpack.c.l.b16 %v1777
        %v3077 = vunpack.c.h.b16 %v1777
        %v3078 = vunpack.c.l.b16 %v1778
        %v3079 = vunpack.c.h.b16 %v1778
        %v3080 = vunpack.c.l.b16 %v1779
        %v3081 = vunpack.c.h.b16 %v1779
        %v3082 = vunpack.c.l.b16 %v1780
        %v3083 = vunpack.c.h.b16 %v1780
        %v3084 = vunpack.c.l.b16 %v1781
        %v3085 = vunpack.c.h.b16 %v1781
        %v3086 = vunpack.c.l.b16 %v1782
        %v3087 = vunpack.c.h.b16 %v1782
        %v3088 = vunpack.c.l.b16 %v1783
        %v3089 = vunpack.c.h.b16 %v1783
        %v3090 = vunpack.c.l.b16 %v1784
        %v3091 = vunpack.c.h.b16 %v1784
        %v3092 = vunpack.c.l.b16 %v1785
        %v3093 = vunpack.c.h.b16 %v1785
        %v3094 = vunpack.c.l.b16 %v1786
        %v3095 = vunpack.c.h.b16 %v1786
        %v3096 = vunpack.c.l.b16 %v1787
        %v3097 = vunpack.c.h.b16 %v1787
        %v3098 = vunpack.c.l.b16 %v1788
        %v3099 = vunpack.c.h.b16 %v1788
        %v3100 = vunpack.c.l.b16 %v1789
        %v3101 = vunpack.c.h.b16 %v1789
        %v3102 = vunpack.c.l.b16 %v1790
        %v3103 = vunpack.c.h.b16 %v1790
        %v3104 = vunpack.c.l.b16 %v1791
        %v3105 = vunpack.c.h.b16 %v1791
        %v3106 = vunpack.c.l.b16 %v1792
        %v3107 = vunpack.c.h.b16 %v1792
        %v3108 = vunpack.c.l.b16 %v1793
        %v3109 = vunpack.c.h.b16 %v1793
        %v3110 = vunpack.c.l.b16 %v1794
        %v3111 = vunpack.c.h.b16 %v1794
        %v3112 = vunpack.c.l.b16 %v1795
        %v3113 = vunpack.c.h.b16 %v1795
        %v3114 = vunpack.c.l.b16 %v1796
        %v3115 = vunpack.c.h.b16 %v1796
        %v3116 = vunpack.c.l.b16 %v1797
        %v3117 = vunpack.c.h.b16 %v1797
        %v3118 = vunpack.c.l.b16 %v1798
        %v3119 = vunpack.c.h.b16 %v1798
        %v3120 = vunpack.c.l.b16 %v1799
        %v3121 = vunpack.c.h.b16 %v1799
        %v3122 = vunpack.c.l.b16 %v1800
        %v3123 = vunpack.c.h.b16 %v1800
        %v3124 = vunpack.c.l.b16 %v1801
        %v3125 = vunpack.c.h.b16 %v1801
        %v3126 = vunpack.c.l.b16 %v1802
        %v3127 = vunpack.c.h.b16 %v1802
        %v3128 = vunpack.c.l.b16 %v1803
        %v3129 = vunpack.c.h.b16 %v1803
        %v3130 = vunpack.c.l.b16 %v1804
        %v3131 = vunpack.c.h.b16 %v1804
        %v3132 = vunpack.c.l.b16 %v1805
        %v3133 = vunpack.c.h.b16 %v1805
        %v3134 = vunpack.c.l.b16 %v1806
        %v3135 = vunpack.c.h.b16 %v1806
        %v3136 = vunpack.c.l.b16 %v1807
        %v3137 = vunpack.c.h.b16 %v1807
        %v3138 = vunpack.c.l.b16 %v1808
        %v3139 = vunpack.c.h.b16 %v1808
        %v3140 = vunpack.c.l.b16 %v1809
        %v3141 = vunpack.c.h.b16 %v1809
        %v3142 = vunpack.c.l.b16 %v1810
        %v3143 = vunpack.c.h.b16 %v1810
        %v3144 = vunpack.c.l.b16 %v1811
        %v3145 = vunpack.c.h.b16 %v1811
        %v3146 = vunpack.c.l.b16 %v1812
        %v3147 = vunpack.c.h.b16 %v1812
        %v3148 = vunpack.c.l.b16 %v1813
        %v3149 = vunpack.c.h.b16 %v1813
        %v3150 = vunpack.c.l.b16 %v1814
        %v3151 = vunpack.c.h.b16 %v1814
        %v3152 = vunpack.c.l.b16 %v1815
        %v3153 = vunpack.c.h.b16 %v1815
        %v3154 = vunpack.c.l.b16 %v1816
        %v3155 = vunpack.c.h.b16 %v1816
        %v3156 = vunpack.c.l.b16 %v1817
        %v3157 = vunpack.c.h.b16 %v1817
        %v3158 = vunpack.c.l.b16 %v1818
        %v3159 = vunpack.c.h.b16 %v1818
        %v3160 = vunpack.c.l.b16 %v1819
        %v3161 = vunpack.c.h.b16 %v1819
        %v3162 = vunpack.c.l.b16 %v1820
        %v3163 = vunpack.c.h.b16 %v1820
        %v3164 = vunpack.c.l.b16 %v1821
        %v3165 = vunpack.c.h.b16 %v1821
        %v3166 = vunpack.c.l.b16 %v1822
        %v3167 = vunpack.c.h.b16 %v1822
        %v3168 = vunpack.c.l.b16 %v1823
        %v3169 = vunpack.c.h.b16 %v1823
        %v3170 = vunpack.c.l.b16 %v1824
        %v3171 = vunpack.c.h.b16 %v1824
        %v3172 = vunpack.c.l.b16 %v1825
        %v3173 = vunpack.c.h.b16 %v1825
        %v3174 = vunpack.c.l.b16 %v1826
        %v3175 = vunpack.c.h.b16 %v1826
        %v3176 = vunpack.c.l.b16 %v1827
        %v3177 = vunpack.c.h.b16 %v1827
        %v3178 = vunpack.c.l.b16 %v1828
        %v3179 = vunpack.c.h.b16 %v1828
        %v3180 = vunpack.c.l.b16 %v1829
        %v3181 = vunpack.c.h.b16 %v1829
        %v3182 = vunpack.c.l.b16 %v1830
        %v3183 = vunpack.c.h.b16 %v1830
        %v3184 = vunpack.c.l.b16 %v1831
        %v3185 = vunpack.c.h.b16 %v1831
        %v3186 = vunpack.c.l.b16 %v1832
        %v3187 = vunpack.c.h.b16 %v1832
        %v3188 = vunpack.c.l.b16 %v1833
        %v3189 = vunpack.c.h.b16 %v1833
        %v3190 = vunpack.c.l.b16 %v1834
        %v3191 = vunpack.c.h.b16 %v1834
        %v3192 = vunpack.c.l.b16 %v1835
        %v3193 = vunpack.c.h.b16 %v1835
        %v3194 = vunpack.c.l.b16 %v1836
        %v3195 = vunpack.c.h.b16 %v1836
        %v3196 = vunpack.c.l.b16 %v1837
        %v3197 = vunpack.c.h.b16 %v1837
        %v3198 = vunpack.c.l.b16 %v1838
        %v3199 = vunpack.c.h.b16 %v1838
        %v3200 = vunpack.c.l.b16 %v1839
        %v3201 = vunpack.c.h.b16 %v1839
        %v3202 = vunpack.c.l.b16 %v1840
        %v3203 = vunpack.c.h.b16 %v1840
        %v3204 = vunpack.c.l.b16 %v1841
        %v3205 = vunpack.c.h.b16 %v1841
        %v3206 = vunpack.c.l.b16 %v1842
        %v3207 = vunpack.c.h.b16 %v1842
        %v3208 = vunpack.c.l.b16 %v1843
        %v3209 = vunpack.c.h.b16 %v1843
        %v3210 = vunpack.c.l.b16 %v1844
        %v3211 = vunpack.c.h.b16 %v1844
        %v3212 = vunpack.c.l.b16 %v1845
        %v3213 = vunpack.c.h.b16 %v1845
        %v3214 = vunpack.c.l.b16 %v1846
        %v3215 = vunpack.c.h.b16 %v1846
        %v3216 = vunpack.c.l.b16 %v1847
        %v3217 = vunpack.c.h.b16 %v1847
        %v3218 = vunpack.c.l.b16 %v1848
        %v3219 = vunpack.c.h.b16 %v1848
        %v3220 = vunpack.c.l.b16 %v1849
        %v3221 = vunpack.c.h.b16 %v1849
        %v3222 = vunpack.c.l.b16 %v1850
        %v3223 = vunpack.c.h.b16 %v1850
        %v3224 = vunpack.c.l.b16 %v1851
        %v3225 = vunpack.c.h.b16 %v1851
        %v3226 = vunpack.c.l.b16 %v1852
        %v3227 = vunpack.c.h.b16 %v1852
        %v3228 = vunpack.c.l.b16 %v1853
        %v3229 = vunpack.c.h.b16 %v1853
        %v3230 = vunpack.c.l.b16 %v1854
        %v3231 = vunpack.c.h.b16 %v1854
        %v3232 = vunpack.c.l.b16 %v1855
        %v3233 = vunpack.c.h.b16 %v1855
        %v3234 = vunpack.c.l.b16 %v1856
        %v3235 = vunpack.c.h.b16 %v1856
        %v3236 = vunpack.c.l.b16 %v1857
        %v3237 = vunpack.c.h.b16 %v1857
        %v3238 = vunpack.c.l.b16 %v1858
        %v3239 = vunpack.c.h.b16 %v1858
        %v3240 = vunpack.c.l.b16 %v1859
        %v3241 = vunpack.c.h.b16 %v1859
        %v3242 = vunpack.c.l.b16 %v1860
        %v3243 = vunpack.c.h.b16 %v1860
        %v3244 = vunpack.c.l.b16 %v1861
        %v3245 = vunpack.c.h.b16 %v1861
        %v3246 = vunpack.c.l.b16 %v1862
        %v3247 = vunpack.c.h.b16 %v1862
        %v3248 = vunpack.c.l.b16 %v1863
        %v3249 = vunpack.c.h.b16 %v1863
        %v3250 = vunpack.c.l.b16 %v1864
        %v3251 = vunpack.c.h.b16 %v1864
        %v3252 = vunpack.c.l.b16 %v1865
        %v3253 = vunpack.c.h.b16 %v1865
        %v3254 = vunpack.c.l.b16 %v1866
        %v3255 = vunpack.c.h.b16 %v1866
        %v3256 = vunpack.c.l.b16 %v1867
        %v3257 = vunpack.c.h.b16 %v1867
        %v3258 = vunpack.c.l.b16 %v1868
        %v3259 = vunpack.c.h.b16 %v1868
        %v3260 = vunpack.c.l.b16 %v1869
        %v3261 = vunpack.c.h.b16 %v1869
        %v3262 = vunpack.c.l.b16 %v1870
        %v3263 = vunpack.c.h.b16 %v1870
        %v3264 = vunpack.c.l.b16 %v1871
        %v3265 = vunpack.c.h.b16 %v1871
        %v3266 = vunpack.c.l.b16 %v1872
        %v3267 = vunpack.c.h.b16 %v1872
        %v3268 = vunpack.c.l.b16 %v1873
        %v3269 = vunpack.c.h.b16 %v1873
        %v3270 = vunpack.c.l.b16 %v1874
        %v3271 = vunpack.c.h.b16 %v1874
        %v3272 = vunpack.c.l.b16 %v1875
        %v3273 = vunpack.c.h.b16 %v1875
        %v3274 = vunpack.c.l.b16 %v1876
        %v3275 = vunpack.c.h.b16 %v1876
        %v3276 = vunpack.c.l.b16 %v1877
        %v3277 = vunpack.c.h.b16 %v1877
        %v3278 = vunpack.c.l.b16 %v1878
        %v3279 = vunpack.c.h.b16 %v1878
        %v3280 = vunpack.c.l.b16 %v1879
        %v3281 = vunpack.c.h.b16 %v1879
        %v3282 = vunpack.c.l.b16 %v1880
        %v3283 = vunpack.c.h.b16 %v1880
        %v3284 = vunpack.c.l.b16 %v1881
        %v3285 = vunpack.c.h.b16 %v1881
        %v3286 = vunpack.c.l.b16 %v1882
        %v3287 = vunpack.c.h.b16 %v1882
        %v3288 = vunpack.c.l.b16 %v1883
        %v3289 = vunpack.c.h.b16 %v1883
        %v3290 = vunpack.c.l.b16 %v1884
        %v3291 = vunpack.c.h.b16 %v1884
        %v3292 = vunpack.c.l.b16 %v1885
        %v3293 = vunpack.c.h.b16 %v1885
        %v3294 = vunpack.c.l.b16 %v1886
        %v3295 = vunpack.c.h.b16 %v1886
        %v3296 = vunpack.c.l.b16 %v1887
        %v3297 = vunpack.c.h.b16 %v1887
        %v3298 = vunpack.c.l.b16 %v1888
        %v3299 = vunpack.c.h.b16 %v1888
        %v3300 = vunpack.c.l.b16 %v1889
        %v3301 = vunpack.c.h.b16 %v1889
        %v3302 = vunpack.c.l.b16 %v1890
        %v3303 = vunpack.c.h.b16 %v1890
        %v3304 = vunpack.c.l.b16 %v1891
        %v3305 = vunpack.c.h.b16 %v1891
        %v3306 = vunpack.c.l.b16 %v1892
        %v3307 = vunpack.c.h.b16 %v1892
        %v3308 = vunpack.c.l.b16 %v1893
        %v3309 = vunpack.c.h.b16 %v1893
        %v3310 = vunpack.c.l.b16 %v1894
        %v3311 = vunpack.c.h.b16 %v1894
        %v3312 = vunpack.c.l.b16 %v1895
        %v3313 = vunpack.c.h.b16 %v1895
        %v3314 = vunpack.c.l.b16 %v1896
        %v3315 = vunpack.c.h.b16 %v1896
        %v3316 = vunpack.c.l.b16 %v1897
        %v3317 = vunpack.c.h.b16 %v1897
        %v3318 = vunpack.c.l.b16 %v1898
        %v3319 = vunpack.c.h.b16 %v1898
        %v3320 = vunpack.c.l.b16 %v1899
        %v3321 = vunpack.c.h.b16 %v1899
        %v3322 = vunpack.c.l.b16 %v1900
        %v3323 = vunpack.c.h.b16 %v1900
        %v3324 = vunpack.c.l.b16 %v1901
        %v3325 = vunpack.c.h.b16 %v1901
        %v3326 = vunpack.c.l.b16 %v1902
        %v3327 = vunpack.c.h.b16 %v1902
        %v3328 = vunpack.c.l.b16 %v1903
        %v3329 = vunpack.c.h.b16 %v1903
        %v3330 = vunpack.c.l.b16 %v1904
        %v3331 = vunpack.c.h.b16 %v1904
        %v3332 = vunpack.c.l.b16 %v1905
        %v3333 = vunpack.c.h.b16 %v1905
        %v3334 = vunpack.c.l.b16 %v1906
        %v3335 = vunpack.c.h.b16 %v1906
        %v3336 = vunpack.c.l.b16 %v1907
        %v3337 = vunpack.c.h.b16 %v1907
        %v3338 = vunpack.c.l.b16 %v1908
        %v3339 = vunpack.c.h.b16 %v1908
        %v3340 = vunpack.c.l.b16 %v1909
        %v3341 = vunpack.c.h.b16 %v1909
        %v3342 = vunpack.c.l.b16 %v1910
        %v3343 = vunpack.c.h.b16 %v1910
        %v3344 = vunpack.c.l.b16 %v1911
        %v3345 = vunpack.c.h.b16 %v1911
        %v3346 = vunpack.c.l.b16 %v1912
        %v3347 = vunpack.c.h.b16 %v1912
        %v3348 = vunpack.c.l.b16 %v1913
        %v3349 = vunpack.c.h.b16 %v1913
        %v3350 = vunpack.c.l.b16 %v1914
        %v3351 = vunpack.c.h.b16 %v1914
        %v3352 = vunpack.c.l.b16 %v1915
        %v3353 = vunpack.c.h.b16 %v1915
        %v3354 = vunpack.c.l.b16 %v1916
        %v3355 = vunpack.c.h.b16 %v1916
        %v3356 = vunpack.c.l.b16 %v1917
        %v3357 = vunpack.c.h.b16 %v1917
        %v3358 = vunpack.c.l.b16 %v1918
        %v3359 = vunpack.c.h.b16 %v1918
        %v3360 = vunpack.c.l.b16 %v1919
        %v3361 = vunpack.c.h.b16 %v1919
        %v3362 = vunpack.c.l.b16 %v1920
        %v3363 = vunpack.c.h.b16 %v1920
        %v3364 = vunpack.c.l.b16 %v1921
        %v3365 = vunpack.c.h.b16 %v1921
        %v3366 = vunpack.c.l.b16 %v1922
        %v3367 = vunpack.c.h.b16 %v1922
        %v3368 = vunpack.c.l.b16 %v1923
        %v3369 = vunpack.c.h.b16 %v1923
        %v3370 = vunpack.c.l.b16 %v1924
        %v3371 = vunpack.c.h.b16 %v1924
        %v3372 = vunpack.c.l.b16 %v1925
        %v3373 = vunpack.c.h.b16 %v1925
        %v3374 = vunpack.c.l.b16 %v1926
        %v3375 = vunpack.c.h.b16 %v1926
        %v3376 = vunpack.c.l.b16 %v1927
        %v3377 = vunpack.c.h.b16 %v1927
        %v3378 = vunpack.c.l.b16 %v1928
        %v3379 = vunpack.c.h.b16 %v1928
        %v3380 = vunpack.c.l.b16 %v1929
        %v3381 = vunpack.c.h.b16 %v1929
        %v3382 = vunpack.c.l.b16 %v1930
        %v3383 = vunpack.c.h.b16 %v1930
        %v3384 = vunpack.c.l.b16 %v1931
        %v3385 = vunpack.c.h.b16 %v1931
        %v3386 = vunpack.c.l.b16 %v1932
        %v3387 = vunpack.c.h.b16 %v1932
        %v3388 = vunpack.c.l.b16 %v1933
        %v3389 = vunpack.c.h.b16 %v1933
        %v3390 = vunpack.c.l.b16 %v1934
        %v3391 = vunpack.c.h.b16 %v1934
        %v3392 = vunpack.c.l.b16 %v1935
        %v3393 = vunpack.c.h.b16 %v1935
        %v3394 = vunpack.c.l.b16 %v1936
        %v3395 = vunpack.c.h.b16 %v1936
        %v3396 = vunpack.c.l.b16 %v1937
        %v3397 = vunpack.c.h.b16 %v1937
        %v3398 = vunpack.c.l.b16 %v1938
        %v3399 = vunpack.c.h.b16 %v1938
        %v3400 = vunpack.c.l.b16 %v1939
        %v3401 = vunpack.c.h.b16 %v1939
        %v3402 = vunpack.c.l.b16 %v1940
        %v3403 = vunpack.c.h.b16 %v1940
        %v3404 = vunpack.c.l.b16 %v1941
        %v3405 = vunpack.c.h.b16 %v1941
        %v3406 = vunpack.c.l.b16 %v1942
        %v3407 = vunpack.c.h.b16 %v1942
        %v3408 = vunpack.c.l.b16 %v1943
        %v3409 = vunpack.c.h.b16 %v1943
        %v3410 = vunpack.c.l.b16 %v1944
        %v3411 = vunpack.c.h.b16 %v1944
        %v3412 = vpack.c.b16 %v2838, %v2836
        %v3413 = vpack.c.b16 %v2839, %v2837
        %v3414 = vpack.c.b16 %v2842, %v2840
        %v3415 = vpack.c.b16 %v2843, %v2841
        %v3416 = vpack.c.b16 %v2846, %v2844
        %v3417 = vpack.c.b16 %v2847, %v2845
        %v3418 = vpack.c.b16 %v2850, %v2848
        %v3419 = vpack.c.b16 %v2851, %v2849
        %v3420 = vpack.c.b16 %v2854, %v2852
        %v3421 = vpack.c.b16 %v2855, %v2853
        %v3422 = vpack.c.b16 %v2858, %v2856
        %v3423 = vpack.c.b16 %v2859, %v2857
        %v3424 = vpack.c.b16 %v2862, %v2860
        %v3425 = vpack.c.b16 %v2863, %v2861
        %v3426 = vpack.c.b16 %v2866, %v2864
        %v3427 = vpack.c.b16 %v2867, %v2865
        %v3428 = vpack.c.b16 %v2870, %v2868
        %v3429 = vpack.c.b16 %v2871, %v2869
        %v3430 = vpack.c.b16 %v2874, %v2872
        %v3431 = vpack.c.b16 %v2875, %v2873
        %v3432 = vpack.c.b16 %v2878, %v2876
        %v3433 = vpack.c.b16 %v2879, %v2877
        %v3434 = vpack.c.b16 %v2882, %v2880
        %v3435 = vpack.c.b16 %v2883, %v2881
        %v3436 = vpack.c.b16 %v2886, %v2884
        %v3437 = vpack.c.b16 %v2887, %v2885
        %v3438 = vpack.c.b16 %v2890, %v2888
        %v3439 = vpack.c.b16 %v2891, %v2889
        %v3440 = vpack.c.b16 %v2894, %v2892
        %v3441 = vpack.c.b16 %v2895, %v2893
        %v3442 = vpack.c.b16 %v2898, %v2896
        %v3443 = vpack.c.b16 %v2899, %v2897
        %v3444 = vpack.c.b16 %v2902, %v2900
        %v3445 = vpack.c.b16 %v2903, %v2901
        %v3446 = vpack.c.b16 %v2906, %v2904
        %v3447 = vpack.c.b16 %v2907, %v2905
        %v3448 = vpack.c.b16 %v2910, %v2908
        %v3449 = vpack.c.b16 %v2911, %v2909
        %v3450 = vpack.c.b16 %v2914, %v2912
        %v3451 = vpack.c.b16 %v2915, %v2913
        %v3452 = vpack.c.b16 %v2918, %v2916
        %v3453 = vpack.c.b16 %v2919, %v2917
        %v3454 = vpack.c.b16 %v2922, %v2920
        %v3455 = vpack.c.b16 %v2923, %v2921
        %v3456 = vpack.c.b16 %v2926, %v2924
        %v3457 = vpack.c.b16 %v2927, %v2925
        %v3458 = vpack.c.b16 %v2930, %v2928
        %v3459 = vpack.c.b16 %v2931, %v2929
        %v3460 = vpack.c.b16 %v2934, %v2932
        %v3461 = vpack.c.b16 %v2935, %v2933
        %v3462 = vpack.c.b16 %v2938, %v2936
        %v3463 = vpack.c.b16 %v2939, %v2937
        %v3464 = vpack.c.b16 %v2942, %v2940
        %v3465 = vpack.c.b16 %v2943, %v2941
        %v3466 = vpack.c.b16 %v2946, %v2944
        %v3467 = vpack.c.b16 %v2947, %v2945
        %v3468 = vpack.c.b16 %v2950, %v2948
        %v3469 = vpack.c.b16 %v2951, %v2949
        %v3470 = vpack.c.b16 %v2954, %v2952
        %v3471 = vpack.c.b16 %v2955, %v2953
        %v3472 = vpack.c.b16 %v2958, %v2956
        %v3473 = vpack.c.b16 %v2959, %v2957
        %v3474 = vpack.c.b16 %v2962, %v2960
        %v3475 = vpack.c.b16 %v2963, %v2961
        %v3476 = vpack.c.b16 %v2966, %v2964
        %v3477 = vpack.c.b16 %v2967, %v2965
        %v3478 = vpack.c.b16 %v2970, %v2968
        %v3479 = vpack.c.b16 %v2971, %v2969
        %v3480 = vpack.c.b16 %v2974, %v2972
        %v3481 = vpack.c.b16 %v2975, %v2973
        %v3482 = vpack.c.b16 %v2978, %v2976
        %v3483 = vpack.c.b16 %v2979, %v2977
        %v3484 = vpack.c.b16 %v2982, %v2980
        %v3485 = vpack.c.b16 %v2983, %v2981
        %v3486 = vpack.c.b16 %v2986, %v2984
        %v3487 = vpack.c.b16 %v2987, %v2985
        %v3488 = vpack.c.b16 %v2990, %v2988
        %v3489 = vpack.c.b16 %v2991, %v2989
        %v3490 = vpack.c.b16 %v2994, %v2992
        %v3491 = vpack.c.b16 %v2995, %v2993
        %v3492 = vpack.c.b16 %v2998, %v2996
        %v3493 = vpack.c.b16 %v2999, %v2997
        %v3494 = vpack.c.b16 %v3002, %v3000
        %v3495 = vpack.c.b16 %v3003, %v3001
        %v3496 = vpack.c.b16 %v3006, %v3004
        %v3497 = vpack.c.b16 %v3007, %v3005
        %v3498 = vpack.c.b16 %v3010, %v3008
        %v3499 = vpack.c.b16 %v3011, %v3009
        %v3500 = vpack.c.b16 %v3014, %v3012
        %v3501 = vpack.c.b16 %v3015, %v3013
        %v3502 = vpack.c.b16 %v3018, %v3016
        %v3503 = vpack.c.b16 %v3019, %v3017
        %v3504 = vpack.c.b16 %v3022, %v3020
        %v3505 = vpack.c.b16 %v3023, %v3021
        %v3506 = vpack.c.b16 %v3026, %v3024
        %v3507 = vpack.c.b16 %v3027, %v3025
        %v3508 = vpack.c.b16 %v3030, %v3028
        %v3509 = vpack.c.b16 %v3031, %v3029
        %v3510 = vpack.c.b16 %v3034, %v3032
        %v3511 = vpack.c.b16 %v3035, %v3033
        %v3512 = vpack.c.b16 %v3038, %v3036
        %v3513 = vpack.c.b16 %v3039, %v3037
        %v3514 = vpack.c.b16 %v3042, %v3040
        %v3515 = vpack.c.b16 %v3043, %v3041
        %v3516 = vpack.c.b16 %v3046, %v3044
        %v3517 = vpack.c.b16 %v3047, %v3045
        %v3518 = vpack.c.b16 %v3050, %v3048
        %v3519 = vpack.c.b16 %v3051, %v3049
        %v3520 = vpack.c.b16 %v3054, %v3052
        %v3521 = vpack.c.b16 %v3055, %v3053
        %v3522 = vpack.c.b16 %v3058, %v3056
        %v3523 = vpack.c.b16 %v3059, %v3057
        %v3524 = vpack.c.b16 %v3062, %v3060
        %v3525 = vpack.c.b16 %v3063, %v3061
        %v3526 = vpack.c.b16 %v3066, %v3064
        %v3527 = vpack.c.b16 %v3067, %v3065
        %v3528 = vpack.c.b16 %v3070, %v3068
        %v3529 = vpack.c.b16 %v3071, %v3069
        %v3530 = vpack.c.b16 %v3074, %v3072
        %v3531 = vpack.c.b16 %v3075, %v3073
        %v3532 = vpack.c.b16 %v3078, %v3076
        %v3533 = vpack.c.b16 %v3079, %v3077
        %v3534 = vpack.c.b16 %v3082, %v3080
        %v3535 = vpack.c.b16 %v3083, %v3081
        %v3536 = vpack.c.b16 %v3086, %v3084
        %v3537 = vpack.c.b16 %v3087, %v3085
        %v3538 = vpack.c.b16 %v3090, %v3088
        %v3539 = vpack.c.b16 %v3091, %v3089
        %v3540 = vpack.c.b16 %v3094, %v3092
        %v3541 = vpack.c.b16 %v3095, %v3093
        %v3542 = vpack.c.b16 %v3098, %v3096
        %v3543 = vpack.c.b16 %v3099, %v3097
        %v3544 = vpack.c.b16 %v3102, %v3100
        %v3545 = vpack.c.b16 %v3103, %v3101
        %v3546 = vpack.c.b16 %v3106, %v3104
        %v3547 = vpack.c.b16 %v3107, %v3105
        %v3548 = vpack.c.b16 %v3110, %v3108
        %v3549 = vpack.c.b16 %v3111, %v3109
        %v3550 = vpack.c.b16 %v3114, %v3112
        %v3551 = vpack.c.b16 %v3115, %v3113
        %v3552 = vpack.c.b16 %v3118, %v3116
        %v3553 = vpack.c.b16 %v3119, %v3117
        %v3554 = vpack.c.b16 %v3122, %v3120
        %v3555 = vpack.c.b16 %v3123, %v3121
        %v3556 = vpack.c.b16 %v3126, %v3124
        %v3557 = vpack.c.b16 %v3127, %v3125
        %v3558 = vpack.c.b16 %v3130, %v3128
        %v3559 = vpack.c.b16 %v3131, %v3129
        %v3560 = vpack.c.b16 %v3134, %v3132
        %v3561 = vpack.c.b16 %v3135, %v3133
        %v3562 = vpack.c.b16 %v3138, %v3136
        %v3563 = vpack.c.b16 %v3139, %v3137
        %v3564 = vpack.c.b16 %v3142, %v3140
        %v3565 = vpack.c.b16 %v3143, %v3141
        %v3566 = vpack.c.b16 %v3146, %v3144
        %v3567 = vpack.c.b16 %v3147, %v3145
        %v3568 = vpack.c.b16 %v3150, %v3148
        %v3569 = vpack.c.b16 %v3151, %v3149
        %v3570 = vpack.c.b16 %v3154, %v3152
        %v3571 = vpack.c.b16 %v3155, %v3153
        %v3572 = vpack.c.b16 %v3158, %v3156
        %v3573 = vpack.c.b16 %v3159, %v3157
        %v3574 = vpack.c.b16 %v3162, %v3160
        %v3575 = vpack.c.b16 %v3163, %v3161
        %v3576 = vpack.c.b16 %v3166, %v3164
        %v3577 = vpack.c.b16 %v3167, %v3165
        %v3578 = vpack.c.b16 %v3170, %v3168
        %v3579 = vpack.c.b16 %v3171, %v3169
        %v3580 = vpack.c.b16 %v3174, %v3172
        %v3581 = vpack.c.b16 %v3175, %v3173
        %v3582 = vpack.c.b16 %v3178, %v3176
        %v3583 = vpack.c.b16 %v3179, %v3177
        %v3584 = vpack.c.b16 %v3182, %v3180
        %v3585 = vpack.c.b16 %v3183, %v3181
        %v3586 = vpack.c.b16 %v3186, %v3184
        %v3587 = vpack.c.b16 %v3187, %v3185
        %v3588 = vpack.c.b16 %v3190, %v3188
        %v3589 = vpack.c.b16 %v3191, %v3189
        %v3590 = vpack.c.b16 %v3194, %v3192
        %v3591 = vpack.c.b16 %v3195, %v3193
        %v3592 = vpack.c.b16 %v3198, %v3196
        %v3593 = vpack.c.b16 %v3199, %v3197
        %v3594 = vpack.c.b16 %v3202, %v3200
        %v3595 = vpack.c.b16 %v3203, %v3201
        %v3596 = vpack.c.b16 %v3206, %v3204
        %v3597 = vpack.c.b16 %v3207, %v3205
        %v3598 = vpack.c.b16 %v3210, %v3208
        %v3599 = vpack.c.b16 %v3211, %v3209
        %v3600 = vpack.c.b16 %v3214, %v3212
        %v3601 = vpack.c.b16 %v3215, %v3213
        %v3602 = vpack.c.b16 %v3218, %v3216
        %v3603 = vpack.c.b16 %v3219, %v3217
        %v3604 = vpack.c.b16 %v3222, %v3220
        %v3605 = vpack.c.b16 %v3223, %v3221
        %v3606 = vpack.c.b16 %v3226, %v3224
        %v3607 = vpack.c.b16 %v3227, %v3225
        %v3608 = vpack.c.b16 %v3230, %v3228
        %v3609 = vpack.c.b16 %v3231, %v3229
        %v3610 = vpack.c.b16 %v3234, %v3232
        %v3611 = vpack.c.b16 %v3235, %v3233
        %v3612 = vpack.c.b16 %v3238, %v3236
        %v3613 = vpack.c.b16 %v3239, %v3237
        %v3614 = vpack.c.b16 %v3242, %v3240
        %v3615 = vpack.c.b16 %v3243, %v3241
        %v3616 = vpack.c.b16 %v3246, %v3244
        %v3617 = vpack.c.b16 %v3247, %v3245
        %v3618 = vpack.c.b16 %v3250, %v3248
        %v3619 = vpack.c.b16 %v3251, %v3249
        %v3620 = vpack.c.b16 %v3254, %v3252
        %v3621 = vpack.c.b16 %v3255, %v3253
        %v3622 = vpack.c.b16 %v3258, %v3256
        %v3623 = vpack.c.b16 %v3259, %v3257
        %v3624 = vpack.c.b16 %v3262, %v3260
        %v3625 = vpack.c.b16 %v3263, %v3261
        %v3626 = vpack.c.b16 %v3266, %v3264
        %v3627 = vpack.c.b16 %v3267, %v3265
        %v3628 = vpack.c.b16 %v3270, %v3268
        %v3629 = vpack.c.b16 %v3271, %v3269
        %v3630 = vpack.c.b16 %v3274, %v3272
        %v3631 = vpack.c.b16 %v3275, %v3273
        %v3632 = vpack.c.b16 %v3278, %v3276
        %v3633 = vpack.c.b16 %v3279, %v3277
        %v3634 = vpack.c.b16 %v3282, %v3280
        %v3635 = vpack.c.b16 %v3283, %v3281
        %v3636 = vpack.c.b16 %v3286, %v3284
        %v3637 = vpack.c.b16 %v3287, %v3285
        %v3638 = vpack.c.b16 %v3290, %v3288
        %v3639 = vpack.c.b16 %v3291, %v3289
        %v3640 = vpack.c.b16 %v3294, %v3292
        %v3641 = vpack.c.b16 %v3295, %v3293
        %v3642 = vpack.c.b16 %v3298, %v3296
        %v3643 = vpack.c.b16 %v3299, %v3297
        %v3644 = vpack.c.b16 %v3302, %v3300
        %v3645 = vpack.c.b16 %v3303, %v3301
        %v3646 = vpack.c.b16 %v3306, %v3304
        %v3647 = vpack.c.b16 %v3307, %v3305
        %v3648 = vpack.c.b16 %v3310, %v3308
        %v3649 = vpack.c.b16 %v3311, %v3309
        %v3650 = vpack.c.b16 %v3314, %v3312
        %v3651 = vpack.c.b16 %v3315, %v3313
        %v3652 = vpack.c.b16 %v3318, %v3316
        %v3653 = vpack.c.b16 %v3319, %v3317
        %v3654 = vpack.c.b16 %v3322, %v3320
        %v3655 = vpack.c.b16 %v3323, %v3321
        %v3656 = vpack.c.b16 %v3326, %v3324
        %v3657 = vpack.c.b16 %v3327, %v3325
        %v3658 = vpack.c.b16 %v3330, %v3328
        %v3659 = vpack.c.b16 %v3331, %v3329
        %v3660 = vpack.c.b16 %v3334, %v3332
        %v3661 = vpack.c.b16 %v3335, %v3333
        %v3662 = vpack.c.b16 %v3338, %v3336
        %v3663 = vpack.c.b16 %v3339, %v3337
        %v3664 = vpack.c.b16 %v3342, %v3340
        %v3665 = vpack.c.b16 %v3343, %v3341
        %v3666 = vpack.c.b16 %v3346, %v3344
        %v3667 = vpack.c.b16 %v3347, %v3345
        %v3668 = vpack.c.b16 %v3350, %v3348
        %v3669 = vpack.c.b16 %v3351, %v3349
        %v3670 = vpack.c.b16 %v3354, %v3352
        %v3671 = vpack.c.b16 %v3355, %v3353
        %v3672 = vpack.c.b16 %v3358, %v3356
        %v3673 = vpack.c.b16 %v3359, %v3357
        %v3674 = vpack.c.b16 %v3362, %v3360
        %v3675 = vpack.c.b16 %v3363, %v3361
        %v3676 = vpack.c.b16 %v3366, %v3364
        %v3677 = vpack.c.b16 %v3367, %v3365
        %v3678 = vpack.c.b16 %v3370, %v3368
        %v3679 = vpack.c.b16 %v3371, %v3369
        %v3680 = vpack.c.b16 %v3374, %v3372
        %v3681 = vpack.c.b16 %v3375, %v3373
        %v3682 = vpack.c.b16 %v3378, %v3376
        %v3683 = vpack.c.b16 %v3379, %v3377
        %v3684 = vpack.c.b16 %v3382, %v3380
        %v3685 = vpack.c.b16 %v3383, %v3381
        %v3686 = vpack.c.b16 %v3386, %v3384
        %v3687 = vpack.c.b16 %v3387, %v3385
        %v3688 = vpack.c.b16 %v3390, %v3388
        %v3689 = vpack.c.b16 %v3391, %v3389
        %v3690 = vpack.c.b16 %v3394, %v3392
        %v3691 = vpack.c.b16 %v3395, %v3393
        %v3692 = vpack.c.b16 %v3398, %v3396
        %v3693 = vpack.c.b16 %v3399, %v3397
        %v3694 = vpack.c.b16 %v3402, %v3400
        %v3695 = vpack.c.b16 %v3403, %v3401
        %v3696 = vpack.c.b16 %v3406, %v3404
        %v3697 = vpack.c.b16 %v3407, %v3405
        %v3698 = vpack.c.b16 %v3410, %v3408
        %v3699 = vpack.c.b16 %v3411, %v3409
        %3988 = vmatprep.subr.bf16.mxu0 %v3413
        %3989 = vmatpush1.bf16.msra.mxu0 %v3412
        %3990 = vmatprep.subr.bf16.mxu0 %v3415
        %3991 = vmatpush1.bf16.msra.mxu0 %v3414
        %3992 = vmatprep.subr.bf16.mxu0 %v3417
        %3993 = vmatpush1.bf16.msra.mxu0 %v3416
        %3994 = vmatprep.subr.bf16.mxu0 %v3419
        %3995 = vmatpush1.bf16.msra.mxu0 %v3418
        %3996 = vmatprep.subr.bf16.mxu0 %v3421
        %3997 = vmatpush1.bf16.msra.mxu0 %v3420
        %3998 = vmatprep.subr.bf16.mxu0 %v3423
        %3999 = vmatpush1.bf16.msra.mxu0 %v3422
        %4000 = vmatprep.subr.bf16.mxu0 %v3425
        %4001 = vmatpush1.bf16.msra.mxu0 %v3424
        %4002 = vmatprep.subr.bf16.mxu0 %v3427
        %4003 = vmatpush1.bf16.msra.mxu0 %v3426
        %4004 = vmatprep.subr.bf16.mxu0 %v3429
        %4005 = vmatpush1.bf16.msra.mxu0 %v3428
        %4006 = vmatprep.subr.bf16.mxu0 %v3431
        %4007 = vmatpush1.bf16.msra.mxu0 %v3430
        %4008 = vmatprep.subr.bf16.mxu0 %v3433
        %4009 = vmatpush1.bf16.msra.mxu0 %v3432
        %4010 = vmatprep.subr.bf16.mxu0 %v3435
        %4011 = vmatpush1.bf16.msra.mxu0 %v3434
        %4012 = vmatprep.subr.bf16.mxu0 %v3437
        %4013 = vmatpush1.bf16.msra.mxu0 %v3436
        %4014 = vmatprep.subr.bf16.mxu0 %v3439
        %4015 = vmatpush1.bf16.msra.mxu0 %v3438
        %4016 = vmatprep.subr.bf16.mxu0 %v3441
        %4017 = vmatpush1.bf16.msra.mxu0 %v3440
        %4018 = vmatprep.subr.bf16.mxu0 %v3443
        %4019 = vmatpush1.bf16.msra.mxu0 %v3442
        %4020 = vmatprep.mubr.bf16.mxu0 %v2297
        %4021 = vmatmul.mubr.bf16.gmra.mrb[0].mxu0 %v2296
        %v4022 = vpop.f32.mrb[0].mxu0
        %v4023 = vadd.f32 0.0, %v4022
        %v4024 = vpop.f32.mrb[0].mxu0
        %v4025 = vadd.f32 0.0, %v4024
        %v4026 = vpop.f32.mrb[0].mxu0
        %v4027 = vadd.f32 0.0, %v4026
        %v4028 = vpop.f32.mrb[0].mxu0
        %v4029 = vadd.f32 0.0, %v4028
        %4030 = vmatprep.mubr.bf16.mxu0 %v2315
        %4031 = vmatmul.mubr.bf16.gmra.mrb[0].mxu0 %v2314
        %v4032 = vpop.f32.mrb[0].mxu0
        %v4033 = vadd.f32 0.0, %v4032
        %v4034 = vpop.f32.mrb[0].mxu0
        %v4035 = vadd.f32 0.0, %v4034
        %v4036 = vpop.f32.mrb[0].mxu0
        %v4037 = vadd.f32 0.0, %v4036
        %v4038 = vpop.f32.mrb[0].mxu0
        %v4039 = vadd.f32 0.0, %v4038
        %4040 = vmatprep.mubr.bf16.mxu0 %v2333
        %4041 = vmatmul.mubr.bf16.gmra.mrb[0].mxu0 %v2332
        %v4042 = vpop.f32.mrb[0].mxu0
        %v4043 = vadd.f32 0.0, %v4042
        %v4044 = vpop.f32.mrb[0].mxu0
        %v4045 = vadd.f32 0.0, %v4044
        %v4046 = vpop.f32.mrb[0].mxu0
        %v4047 = vadd.f32 0.0, %v4046
        %v4048 = vpop.f32.mrb[0].mxu0
        %v4049 = vadd.f32 0.0, %v4048
        %4050 = vmatprep.mubr.bf16.mxu0 %v2351
        %4051 = vmatmul.mubr.bf16.gmra.mrb[0].mxu0 %v2350
        %v4052 = vpop.f32.mrb[0].mxu0
        %v4053 = vadd.f32 0.0, %v4052
        %v4054 = vpop.f32.mrb[0].mxu0
        %v4055 = vadd.f32 0.0, %v4054
        %v4056 = vpop.f32.mrb[0].mxu0
        %v4057 = vadd.f32 0.0, %v4056
        %v4058 = vpop.f32.mrb[0].mxu0
        %v4059 = vadd.f32 0.0, %v4058
        %4060 = vmatprep.mubr.bf16.mxu0 %v2369
        %4061 = vmatmul.mubr.bf16.gmra.mrb[0].mxu0 %v2368
        %v4062 = vpop.f32.mrb[0].mxu0
        %v4063 = vadd.f32 0.0, %v4062
        %v4064 = vpop.f32.mrb[0].mxu0
        %v4065 = vadd.f32 0.0, %v4064
        %v4066 = vpop.f32.mrb[0].mxu0
        %v4067 = vadd.f32 0.0, %v4066
        %v4068 = vpop.f32.mrb[0].mxu0
        %v4069 = vadd.f32 0.0, %v4068
        %4070 = vmatprep.mubr.bf16.mxu0 %v2387
        %4071 = vmatmul.mubr.bf16.gmra.mrb[0].mxu0 %v2386
        %v4072 = vpop.f32.mrb[0].mxu0
        %v4073 = vadd.f32 0.0, %v4072
        %v4074 = vpop.f32.mrb[0].mxu0
        %v4075 = vadd.f32 0.0, %v4074
        %v4076 = vpop.f32.mrb[0].mxu0
        %v4077 = vadd.f32 0.0, %v4076
        %v4078 = vpop.f32.mrb[0].mxu0
        %v4079 = vadd.f32 0.0, %v4078
        %4080 = vmatprep.mubr.bf16.mxu0 %v2405
        %4081 = vmatmul.mubr.bf16.gmra.mrb[0].mxu0 %v2404
        %v4082 = vpop.f32.mrb[0].mxu0
        %v4083 = vadd.f32 0.0, %v4082
        %v4084 = vpop.f32.mrb[0].mxu0
        %v4085 = vadd.f32 0.0, %v4084
        %v4086 = vpop.f32.mrb[0].mxu0
        %v4087 = vpop.f32.mrb[0].mxu0
        %4088 = vdwg.mxu0
        %4089 = vmatprep.subr.bf16.mxu0 %v3445
        %4090 = vmatpush1.bf16.msra.mxu0 %v3444
        %4091 = vmatprep.subr.bf16.mxu0 %v3447
        %4092 = vmatpush1.bf16.msra.mxu0 %v3446
        %4093 = vmatprep.subr.bf16.mxu0 %v3449
        %4094 = vmatpush1.bf16.msra.mxu0 %v3448
        %4095 = vmatprep.subr.bf16.mxu0 %v3451
        %4096 = vmatpush1.bf16.msra.mxu0 %v3450
        %4097 = vmatprep.subr.bf16.mxu0 %v3453
        %4098 = vmatpush1.bf16.msra.mxu0 %v3452
        %4099 = vmatprep.subr.bf16.mxu0 %v3455
        %4100 = vmatpush1.bf16.msra.mxu0 %v3454
        %4101 = vmatprep.subr.bf16.mxu0 %v3457
        %4102 = vmatpush1.bf16.msra.mxu0 %v3456
        %4103 = vmatprep.subr.bf16.mxu0 %v3459
        %4104 = vmatpush1.bf16.msra.mxu0 %v3458
        %4105 = vmatprep.subr.bf16.mxu0 %v3461
        %4106 = vmatpush1.bf16.msra.mxu0 %v3460
        %4107 = vmatprep.subr.bf16.mxu0 %v3463
        %4108 = vmatpush1.bf16.msra.mxu0 %v3462
        %4109 = vmatprep.subr.bf16.mxu0 %v3465
        %4110 = vmatpush1.bf16.msra.mxu0 %v3464
        %4111 = vmatprep.subr.bf16.mxu0 %v3467
        %4112 = vmatpush1.bf16.msra.mxu0 %v3466
        %4113 = vmatprep.subr.bf16.mxu0 %v3469
        %4114 = vmatpush1.bf16.msra.mxu0 %v3468
        %4115 = vmatprep.subr.bf16.mxu0 %v3471
        %4116 = vmatpush1.bf16.msra.mxu0 %v3470
        %4117 = vmatprep.subr.bf16.mxu0 %v3473
        %4118 = vmatpush1.bf16.msra.mxu0 %v3472
        %4119 = vmatprep.subr.bf16.mxu0 %v3475
        %4120 = vmatpush1.bf16.msra.mxu0 %v3474
        %4121 = vmatprep.mubr.bf16.mxu0 %v2299
        %4122 = vmatmul.mubr.bf16.gmra.mrb[0].mxu0 %v2298
        %v4123 = vpop.f32.mrb[0].mxu0
        %v4124 = vadd.f32 %v4023, %v4123
        %v4125 = vpop.f32.mrb[0].mxu0
        %v4126 = vadd.f32 %v4025, %v4125
        %v4127 = vpop.f32.mrb[0].mxu0
        %v4128 = vadd.f32 %v4027, %v4127
        %v4129 = vpop.f32.mrb[0].mxu0
        %v4130 = vadd.f32 %v4029, %v4129
        %4131 = vmatprep.mubr.bf16.mxu0 %v2317
        %4132 = vmatmul.mubr.bf16.gmra.mrb[0].mxu0 %v2316
        %v4133 = vpop.f32.mrb[0].mxu0
        %v4134 = vadd.f32 %v4033, %v4133
        %v4135 = vpop.f32.mrb[0].mxu0
        %v4136 = vadd.f32 %v4035, %v4135
        %v4137 = vpop.f32.mrb[0].mxu0
        %v4138 = vadd.f32 %v4037, %v4137
        %v4139 = vpop.f32.mrb[0].mxu0
        %v4140 = vadd.f32 %v4039, %v4139
        %4141 = vmatprep.mubr.bf16.mxu0 %v2335
        %4142 = vmatmul.mubr.bf16.gmra.mrb[0].mxu0 %v2334
        %v4143 = vpop.f32.mrb[0].mxu0
        %v4144 = vadd.f32 %v4043, %v4143
        %v4145 = vpop.f32.mrb[0].mxu0
        %v4146 = vadd.f32 %v4045, %v4145
        %v4147 = vpop.f32.mrb[0].mxu0
        %v4148 = vadd.f32 %v4047, %v4147
        %v4149 = vpop.f32.mrb[0].mxu0
        %v4150 = vadd.f32 %v4049, %v4149
        %4151 = vmatprep.mubr.bf16.mxu0 %v2353
        %4152 = vmatmul.mubr.bf16.gmra.mrb[0].mxu0 %v2352
        %v4153 = vpop.f32.mrb[0].mxu0
        %v4154 = vadd.f32 %v4053, %v4153
        %v4155 = vpop.f32.mrb[0].mxu0
        %v4156 = vadd.f32 %v4055, %v4155
        %v4157 = vpop.f32.mrb[0].mxu0
        %v4158 = vadd.f32 %v4057, %v4157
        %v4159 = vpop.f32.mrb[0].mxu0
        %v4160 = vadd.f32 %v4059, %v4159
        %4161 = vmatprep.mubr.bf16.mxu0 %v2371
        %4162 = vmatmul.mubr.bf16.gmra.mrb[0].mxu0 %v2370
        %v4163 = vpop.f32.mrb[0].mxu0
        %v4164 = vadd.f32 %v4063, %v4163
        %v4165 = vpop.f32.mrb[0].mxu0
        %v4166 = vadd.f32 %v4065, %v4165
        %v4167 = vpop.f32.mrb[0].mxu0
        %v4168 = vadd.f32 %v4067, %v4167
        %v4169 = vpop.f32.mrb[0].mxu0
        %v4170 = vadd.f32 %v4069, %v4169
        %4171 = vmatprep.mubr.bf16.mxu0 %v2389
        %4172 = vmatmul.mubr.bf16.gmra.mrb[0].mxu0 %v2388
        %v4173 = vpop.f32.mrb[0].mxu0
        %v4174 = vadd.f32 %v4073, %v4173
        %v4175 = vpop.f32.mrb[0].mxu0
        %v4176 = vadd.f32 %v4075, %v4175
        %v4177 = vpop.f32.mrb[0].mxu0
        %v4178 = vadd.f32 %v4077, %v4177
        %v4179 = vpop.f32.mrb[0].mxu0
        %v4180 = vadd.f32 %v4079, %v4179
        %4181 = vmatprep.mubr.bf16.mxu0 %v2407
        %4182 = vmatmul.mubr.bf16.gmra.mrb[0].mxu0 %v2406
        %v4183 = vpop.f32.mrb[0].mxu0
        %v4184 = vadd.f32 %v4083, %v4183
        %v4185 = vpop.f32.mrb[0].mxu0
        %v4186 = vadd.f32 %v4085, %v4185
        %v4187 = vpop.f32.mrb[0].mxu0
        %v4188 = vpop.f32.mrb[0].mxu0
        %4189 = vdwg.mxu0
        %4190 = vmatprep.subr.bf16.mxu0 %v3477
        %4191 = vmatpush1.bf16.msra.mxu0 %v3476
        %4192 = vmatprep.subr.bf16.mxu0 %v3479
        %4193 = vmatpush1.bf16.msra.mxu0 %v3478
        %4194 = vmatprep.subr.bf16.mxu0 %v3481
        %4195 = vmatpush1.bf16.msra.mxu0 %v3480
        %4196 = vmatprep.subr.bf16.mxu0 %v3483
        %4197 = vmatpush1.bf16.msra.mxu0 %v3482
        %4198 = vmatprep.subr.bf16.mxu0 %v3485
        %4199 = vmatpush1.bf16.msra.mxu0 %v3484
        %4200 = vmatprep.subr.bf16.mxu0 %v3487
        %4201 = vmatpush1.bf16.msra.mxu0 %v3486
        %4202 = vmatprep.subr.bf16.mxu0 %v3489
        %4203 = vmatpush1.bf16.msra.mxu0 %v3488
        %4204 = vmatprep.subr.bf16.mxu0 %v3491
        %4205 = vmatpush1.bf16.msra.mxu0 %v3490
        %4206 = vmatprep.subr.bf16.mxu0 %v3493
        %4207 = vmatpush1.bf16.msra.mxu0 %v3492
        %4208 = vmatprep.subr.bf16.mxu0 %v3495
        %4209 = vmatpush1.bf16.msra.mxu0 %v3494
        %4210 = vmatprep.subr.bf16.mxu0 %v3497
        %4211 = vmatpush1.bf16.msra.mxu0 %v3496
        %4212 = vmatprep.subr.bf16.mxu0 %v3499
        %4213 = vmatpush1.bf16.msra.mxu0 %v3498
        %4214 = vmatprep.subr.bf16.mxu0 %v3501
        %4215 = vmatpush1.bf16.msra.mxu0 %v3500
        %4216 = vmatprep.subr.bf16.mxu0 %v3503
        %4217 = vmatpush1.bf16.msra.mxu0 %v3502
        %4218 = vmatprep.subr.bf16.mxu0 %v3505
        %4219 = vmatpush1.bf16.msra.mxu0 %v3504
        %4220 = vmatprep.subr.bf16.mxu0 %v3507
        %4221 = vmatpush1.bf16.msra.mxu0 %v3506
        %4222 = vmatprep.mubr.bf16.mxu0 %v2301
        %4223 = vmatmul.mubr.bf16.gmra.mrb[0].mxu0 %v2300
        %v4224 = vpop.f32.mrb[0].mxu0
        %v4225 = vadd.f32 %v4124, %v4224
        %v4226 = vpop.f32.mrb[0].mxu0
        %v4227 = vadd.f32 %v4126, %v4226
        %v4228 = vpop.f32.mrb[0].mxu0
        %v4229 = vadd.f32 %v4128, %v4228
        %v4230 = vpop.f32.mrb[0].mxu0
        %v4231 = vadd.f32 %v4130, %v4230
        %4232 = vmatprep.mubr.bf16.mxu0 %v2319
        %4233 = vmatmul.mubr.bf16.gmra.mrb[0].mxu0 %v2318
        %v4234 = vpop.f32.mrb[0].mxu0
        %v4235 = vadd.f32 %v4134, %v4234
        %v4236 = vpop.f32.mrb[0].mxu0
        %v4237 = vadd.f32 %v4136, %v4236
        %v4238 = vpop.f32.mrb[0].mxu0
        %v4239 = vadd.f32 %v4138, %v4238
        %v4240 = vpop.f32.mrb[0].mxu0
        %v4241 = vadd.f32 %v4140, %v4240
        %4242 = vmatprep.mubr.bf16.mxu0 %v2337
        %4243 = vmatmul.mubr.bf16.gmra.mrb[0].mxu0 %v2336
        %v4244 = vpop.f32.mrb[0].mxu0
        %v4245 = vadd.f32 %v4144, %v4244
        %v4246 = vpop.f32.mrb[0].mxu0
        %v4247 = vadd.f32 %v4146, %v4246
        %v4248 = vpop.f32.mrb[0].mxu0
        %v4249 = vadd.f32 %v4148, %v4248
        %v4250 = vpop.f32.mrb[0].mxu0
        %v4251 = vadd.f32 %v4150, %v4250
        %4252 = vmatprep.mubr.bf16.mxu0 %v2355
        %4253 = vmatmul.mubr.bf16.gmra.mrb[0].mxu0 %v2354
        %v4254 = vpop.f32.mrb[0].mxu0
        %v4255 = vadd.f32 %v4154, %v4254
        %v4256 = vpop.f32.mrb[0].mxu0
        %v4257 = vadd.f32 %v4156, %v4256
        %v4258 = vpop.f32.mrb[0].mxu0
        %v4259 = vadd.f32 %v4158, %v4258
        %v4260 = vpop.f32.mrb[0].mxu0
        %v4261 = vadd.f32 %v4160, %v4260
        %4262 = vmatprep.mubr.bf16.mxu0 %v2373
        %4263 = vmatmul.mubr.bf16.gmra.mrb[0].mxu0 %v2372
        %v4264 = vpop.f32.mrb[0].mxu0
        %v4265 = vadd.f32 %v4164, %v4264
        %v4266 = vpop.f32.mrb[0].mxu0
        %v4267 = vadd.f32 %v4166, %v4266
        %v4268 = vpop.f32.mrb[0].mxu0
        %v4269 = vadd.f32 %v4168, %v4268
        %v4270 = vpop.f32.mrb[0].mxu0
        %v4271 = vadd.f32 %v4170, %v4270
        %4272 = vmatprep.mubr.bf16.mxu0 %v2391
        %4273 = vmatmul.mubr.bf16.gmra.mrb[0].mxu0 %v2390
        %v4274 = vpop.f32.mrb[0].mxu0
        %v4275 = vadd.f32 %v4174, %v4274
        %v4276 = vpop.f32.mrb[0].mxu0
        %v4277 = vadd.f32 %v4176, %v4276
        %v4278 = vpop.f32.mrb[0].mxu0
        %v4279 = vadd.f32 %v4178, %v4278
        %v4280 = vpop.f32.mrb[0].mxu0
        %v4281 = vadd.f32 %v4180, %v4280
        %4282 = vmatprep.mubr.bf16.mxu0 %v2409
        %4283 = vmatmul.mubr.bf16.gmra.mrb[0].mxu0 %v2408
        %v4284 = vpop.f32.mrb[0].mxu0
        %v4285 = vadd.f32 %v4184, %v4284
        %v4286 = vpop.f32.mrb[0].mxu0
        %v4287 = vadd.f32 %v4186, %v4286
        %v4288 = vpop.f32.mrb[0].mxu0
        %v4289 = vpop.f32.mrb[0].mxu0
        %4290 = vdwg.mxu0
        %4291 = vmatprep.subr.bf16.mxu0 %v3509
        %4292 = vmatpush1.bf16.msra.mxu0 %v3508
        %4293 = vmatprep.subr.bf16.mxu0 %v3511
        %4294 = vmatpush1.bf16.msra.mxu0 %v3510
        %4295 = vmatprep.subr.bf16.mxu0 %v3513
        %4296 = vmatpush1.bf16.msra.mxu0 %v3512
        %4297 = vmatprep.subr.bf16.mxu0 %v3515
        %4298 = vmatpush1.bf16.msra.mxu0 %v3514
        %4299 = vmatprep.subr.bf16.mxu0 %v3517
        %4300 = vmatpush1.bf16.msra.mxu0 %v3516
        %4301 = vmatprep.subr.bf16.mxu0 %v3519
        %4302 = vmatpush1.bf16.msra.mxu0 %v3518
        %4303 = vmatprep.subr.bf16.mxu0 %v3521
        %4304 = vmatpush1.bf16.msra.mxu0 %v3520
        %4305 = vmatprep.subr.bf16.mxu0 %v3523
        %4306 = vmatpush1.bf16.msra.mxu0 %v3522
        %4307 = vmatprep.subr.bf16.mxu0 %v3525
        %4308 = vmatpush1.bf16.msra.mxu0 %v3524
        %4309 = vmatprep.subr.bf16.mxu0 %v3527
        %4310 = vmatpush1.bf16.msra.mxu0 %v3526
        %4311 = vmatprep.subr.bf16.mxu0 %v3529
        %4312 = vmatpush1.bf16.msra.mxu0 %v3528
        %4313 = vmatprep.subr.bf16.mxu0 %v3531
        %4314 = vmatpush1.bf16.msra.mxu0 %v3530
        %4315 = vmatprep.subr.bf16.mxu0 %v3533
        %4316 = vmatpush1.bf16.msra.mxu0 %v3532
        %4317 = vmatprep.subr.bf16.mxu0 %v3535
        %4318 = vmatpush1.bf16.msra.mxu0 %v3534
        %4319 = vmatprep.subr.bf16.mxu0 %v3537
        %4320 = vmatpush1.bf16.msra.mxu0 %v3536
        %4321 = vmatprep.subr.bf16.mxu0 %v3539
        %4322 = vmatpush1.bf16.msra.mxu0 %v3538
        %4323 = vmatprep.mubr.bf16.mxu0 %v2303
        %4324 = vmatmul.mubr.bf16.gmra.mrb[0].mxu0 %v2302
        %v4325 = vpop.f32.mrb[0].mxu0
        %v4326 = vadd.f32 %v4225, %v4325
        %v4327 = vpop.f32.mrb[0].mxu0
        %v4328 = vadd.f32 %v4227, %v4327
        %v4329 = vpop.f32.mrb[0].mxu0
        %v4330 = vadd.f32 %v4229, %v4329
        %v4331 = vpop.f32.mrb[0].mxu0
        %v4332 = vadd.f32 %v4231, %v4331
        %4333 = vmatprep.mubr.bf16.mxu0 %v2321
        %4334 = vmatmul.mubr.bf16.gmra.mrb[0].mxu0 %v2320
        %v4335 = vpop.f32.mrb[0].mxu0
        %v4336 = vadd.f32 %v4235, %v4335
        %v4337 = vpop.f32.mrb[0].mxu0
        %v4338 = vadd.f32 %v4237, %v4337
        %v4339 = vpop.f32.mrb[0].mxu0
        %v4340 = vadd.f32 %v4239, %v4339
        %v4341 = vpop.f32.mrb[0].mxu0
        %v4342 = vadd.f32 %v4241, %v4341
        %4343 = vmatprep.mubr.bf16.mxu0 %v2339
        %4344 = vmatmul.mubr.bf16.gmra.mrb[0].mxu0 %v2338
        %v4345 = vpop.f32.mrb[0].mxu0
        %v4346 = vadd.f32 %v4245, %v4345
        %v4347 = vpop.f32.mrb[0].mxu0
        %v4348 = vadd.f32 %v4247, %v4347
        %v4349 = vpop.f32.mrb[0].mxu0
        %v4350 = vadd.f32 %v4249, %v4349
        %v4351 = vpop.f32.mrb[0].mxu0
        %v4352 = vadd.f32 %v4251, %v4351
        %4353 = vmatprep.mubr.bf16.mxu0 %v2357
        %4354 = vmatmul.mubr.bf16.gmra.mrb[0].mxu0 %v2356
        %v4355 = vpop.f32.mrb[0].mxu0
        %v4356 = vadd.f32 %v4255, %v4355
        %v4357 = vpop.f32.mrb[0].mxu0
        %v4358 = vadd.f32 %v4257, %v4357
        %v4359 = vpop.f32.mrb[0].mxu0
        %v4360 = vadd.f32 %v4259, %v4359
        %v4361 = vpop.f32.mrb[0].mxu0
        %v4362 = vadd.f32 %v4261, %v4361
        %4363 = vmatprep.mubr.bf16.mxu0 %v2375
        %4364 = vmatmul.mubr.bf16.gmra.mrb[0].mxu0 %v2374
        %v4365 = vpop.f32.mrb[0].mxu0
        %v4366 = vadd.f32 %v4265, %v4365
        %v4367 = vpop.f32.mrb[0].mxu0
        %v4368 = vadd.f32 %v4267, %v4367
        %v4369 = vpop.f32.mrb[0].mxu0
        %v4370 = vadd.f32 %v4269, %v4369
        %v4371 = vpop.f32.mrb[0].mxu0
        %v4372 = vadd.f32 %v4271, %v4371
        %4373 = vmatprep.mubr.bf16.mxu0 %v2393
        %4374 = vmatmul.mubr.bf16.gmra.mrb[0].mxu0 %v2392
        %v4375 = vpop.f32.mrb[0].mxu0
        %v4376 = vadd.f32 %v4275, %v4375
        %v4377 = vpop.f32.mrb[0].mxu0
        %v4378 = vadd.f32 %v4277, %v4377
        %v4379 = vpop.f32.mrb[0].mxu0
        %v4380 = vadd.f32 %v4279, %v4379
        %v4381 = vpop.f32.mrb[0].mxu0
        %v4382 = vadd.f32 %v4281, %v4381
        %4383 = vmatprep.mubr.bf16.mxu0 %v2411
        %4384 = vmatmul.mubr.bf16.gmra.mrb[0].mxu0 %v2410
        %v4385 = vpop.f32.mrb[0].mxu0
        %v4386 = vadd.f32 %v4285, %v4385
        %v4387 = vpop.f32.mrb[0].mxu0
        %v4388 = vadd.f32 %v4287, %v4387
        %v4389 = vpop.f32.mrb[0].mxu0
        %v4390 = vpop.f32.mrb[0].mxu0
        %4391 = vdwg.mxu0
        %4392 = vmatprep.subr.bf16.mxu0 %v3541
        %4393 = vmatpush1.bf16.msra.mxu0 %v3540
        %4394 = vmatprep.subr.bf16.mxu0 %v3543
        %4395 = vmatpush1.bf16.msra.mxu0 %v3542
        %4396 = vmatprep.subr.bf16.mxu0 %v3545
        %4397 = vmatpush1.bf16.msra.mxu0 %v3544
        %4398 = vmatprep.subr.bf16.mxu0 %v3547
        %4399 = vmatpush1.bf16.msra.mxu0 %v3546
        %4400 = vmatprep.subr.bf16.mxu0 %v3549
        %4401 = vmatpush1.bf16.msra.mxu0 %v3548
        %4402 = vmatprep.subr.bf16.mxu0 %v3551
        %4403 = vmatpush1.bf16.msra.mxu0 %v3550
        %4404 = vmatprep.subr.bf16.mxu0 %v3553
        %4405 = vmatpush1.bf16.msra.mxu0 %v3552
        %4406 = vmatprep.subr.bf16.mxu0 %v3555
        %4407 = vmatpush1.bf16.msra.mxu0 %v3554
        %4408 = vmatprep.subr.bf16.mxu0 %v3557
        %4409 = vmatpush1.bf16.msra.mxu0 %v3556
        %4410 = vmatprep.subr.bf16.mxu0 %v3559
        %4411 = vmatpush1.bf16.msra.mxu0 %v3558
        %4412 = vmatprep.subr.bf16.mxu0 %v3561
        %4413 = vmatpush1.bf16.msra.mxu0 %v3560
        %4414 = vmatprep.subr.bf16.mxu0 %v3563
        %4415 = vmatpush1.bf16.msra.mxu0 %v3562
        %4416 = vmatprep.subr.bf16.mxu0 %v3565
        %4417 = vmatpush1.bf16.msra.mxu0 %v3564
        %4418 = vmatprep.subr.bf16.mxu0 %v3567
        %4419 = vmatpush1.bf16.msra.mxu0 %v3566
        %4420 = vmatprep.subr.bf16.mxu0 %v3569
        %4421 = vmatpush1.bf16.msra.mxu0 %v3568
        %4422 = vmatprep.subr.bf16.mxu0 %v3571
        %4423 = vmatpush1.bf16.msra.mxu0 %v3570
        %4424 = vmatprep.mubr.bf16.mxu0 %v2305
        %4425 = vmatmul.mubr.bf16.gmra.mrb[0].mxu0 %v2304
        %v4426 = vpop.f32.mrb[0].mxu0
        %v4427 = vadd.f32 %v4326, %v4426
        %v4428 = vpop.f32.mrb[0].mxu0
        %v4429 = vadd.f32 %v4328, %v4428
        %v4430 = vpop.f32.mrb[0].mxu0
        %v4431 = vadd.f32 %v4330, %v4430
        %v4432 = vpop.f32.mrb[0].mxu0
        %v4433 = vadd.f32 %v4332, %v4432
        %4434 = vmatprep.mubr.bf16.mxu0 %v2323
        %4435 = vmatmul.mubr.bf16.gmra.mrb[0].mxu0 %v2322
        %v4436 = vpop.f32.mrb[0].mxu0
        %v4437 = vadd.f32 %v4336, %v4436
        %v4438 = vpop.f32.mrb[0].mxu0
        %v4439 = vadd.f32 %v4338, %v4438
        %v4440 = vpop.f32.mrb[0].mxu0
        %v4441 = vadd.f32 %v4340, %v4440
        %v4442 = vpop.f32.mrb[0].mxu0
        %v4443 = vadd.f32 %v4342, %v4442
        %4444 = vmatprep.mubr.bf16.mxu0 %v2341
        %4445 = vmatmul.mubr.bf16.gmra.mrb[0].mxu0 %v2340
        %v4446 = vpop.f32.mrb[0].mxu0
        %v4447 = vadd.f32 %v4346, %v4446
        %v4448 = vpop.f32.mrb[0].mxu0
        %v4449 = vadd.f32 %v4348, %v4448
        %v4450 = vpop.f32.mrb[0].mxu0
        %v4451 = vadd.f32 %v4350, %v4450
        %v4452 = vpop.f32.mrb[0].mxu0
        %v4453 = vadd.f32 %v4352, %v4452
        %4454 = vmatprep.mubr.bf16.mxu0 %v2359
        %4455 = vmatmul.mubr.bf16.gmra.mrb[0].mxu0 %v2358
        %v4456 = vpop.f32.mrb[0].mxu0
        %v4457 = vadd.f32 %v4356, %v4456
        %v4458 = vpop.f32.mrb[0].mxu0
        %v4459 = vadd.f32 %v4358, %v4458
        %v4460 = vpop.f32.mrb[0].mxu0
        %v4461 = vadd.f32 %v4360, %v4460
        %v4462 = vpop.f32.mrb[0].mxu0
        %v4463 = vadd.f32 %v4362, %v4462
        %4464 = vmatprep.mubr.bf16.mxu0 %v2377
        %4465 = vmatmul.mubr.bf16.gmra.mrb[0].mxu0 %v2376
        %v4466 = vpop.f32.mrb[0].mxu0
        %v4467 = vadd.f32 %v4366, %v4466
        %v4468 = vpop.f32.mrb[0].mxu0
        %v4469 = vadd.f32 %v4368, %v4468
        %v4470 = vpop.f32.mrb[0].mxu0
        %v4471 = vadd.f32 %v4370, %v4470
        %v4472 = vpop.f32.mrb[0].mxu0
        %v4473 = vadd.f32 %v4372, %v4472
        %4474 = vmatprep.mubr.bf16.mxu0 %v2395
        %4475 = vmatmul.mubr.bf16.gmra.mrb[0].mxu0 %v2394
        %v4476 = vpop.f32.mrb[0].mxu0
        %v4477 = vadd.f32 %v4376, %v4476
        %v4478 = vpop.f32.mrb[0].mxu0
        %v4479 = vadd.f32 %v4378, %v4478
        %v4480 = vpop.f32.mrb[0].mxu0
        %v4481 = vadd.f32 %v4380, %v4480
        %v4482 = vpop.f32.mrb[0].mxu0
        %v4483 = vadd.f32 %v4382, %v4482
        %4484 = vmatprep.mubr.bf16.mxu0 %v2413
        %4485 = vmatmul.mubr.bf16.gmra.mrb[0].mxu0 %v2412
        %v4486 = vpop.f32.mrb[0].mxu0
        %v4487 = vadd.f32 %v4386, %v4486
        %v4488 = vpop.f32.mrb[0].mxu0
        %v4489 = vadd.f32 %v4388, %v4488
        %v4490 = vpop.f32.mrb[0].mxu0
        %v4491 = vpop.f32.mrb[0].mxu0
        %4492 = vdwg.mxu0
        %4493 = vmatprep.subr.bf16.mxu0 %v3573
        %4494 = vmatpush1.bf16.msra.mxu0 %v3572
        %4495 = vmatprep.subr.bf16.mxu0 %v3575
        %4496 = vmatpush1.bf16.msra.mxu0 %v3574
        %4497 = vmatprep.subr.bf16.mxu0 %v3577
        %4498 = vmatpush1.bf16.msra.mxu0 %v3576
        %4499 = vmatprep.subr.bf16.mxu0 %v3579
        %4500 = vmatpush1.bf16.msra.mxu0 %v3578
        %4501 = vmatprep.subr.bf16.mxu0 %v3581
        %4502 = vmatpush1.bf16.msra.mxu0 %v3580
        %4503 = vmatprep.subr.bf16.mxu0 %v3583
        %4504 = vmatpush1.bf16.msra.mxu0 %v3582
        %4505 = vmatprep.subr.bf16.mxu0 %v3585
        %4506 = vmatpush1.bf16.msra.mxu0 %v3584
        %4507 = vmatprep.subr.bf16.mxu0 %v3587
        %4508 = vmatpush1.bf16.msra.mxu0 %v3586
        %4509 = vmatprep.subr.bf16.mxu0 %v3589
        %4510 = vmatpush1.bf16.msra.mxu0 %v3588
        %4511 = vmatprep.subr.bf16.mxu0 %v3591
        %4512 = vmatpush1.bf16.msra.mxu0 %v3590
        %4513 = vmatprep.subr.bf16.mxu0 %v3593
        %4514 = vmatpush1.bf16.msra.mxu0 %v3592
        %4515 = vmatprep.subr.bf16.mxu0 %v3595
        %4516 = vmatpush1.bf16.msra.mxu0 %v3594
        %4517 = vmatprep.subr.bf16.mxu0 %v3597
        %4518 = vmatpush1.bf16.msra.mxu0 %v3596
        %4519 = vmatprep.subr.bf16.mxu0 %v3599
        %4520 = vmatpush1.bf16.msra.mxu0 %v3598
        %4521 = vmatprep.subr.bf16.mxu0 %v3601
        %4522 = vmatpush1.bf16.msra.mxu0 %v3600
        %4523 = vmatprep.subr.bf16.mxu0 %v3603
        %4524 = vmatpush1.bf16.msra.mxu0 %v3602
        %4525 = vmatprep.mubr.bf16.mxu0 %v2307
        %4526 = vmatmul.mubr.bf16.gmra.mrb[0].mxu0 %v2306
        %v4527 = vpop.f32.mrb[0].mxu0
        %v4528 = vadd.f32 %v4427, %v4527
        %v4529 = vpop.f32.mrb[0].mxu0
        %v4530 = vadd.f32 %v4429, %v4529
        %v4531 = vpop.f32.mrb[0].mxu0
        %v4532 = vadd.f32 %v4431, %v4531
        %v4533 = vpop.f32.mrb[0].mxu0
        %v4534 = vadd.f32 %v4433, %v4533
        %4535 = vmatprep.mubr.bf16.mxu0 %v2325
        %4536 = vmatmul.mubr.bf16.gmra.mrb[0].mxu0 %v2324
        %v4537 = vpop.f32.mrb[0].mxu0
        %v4538 = vadd.f32 %v4437, %v4537
        %v4539 = vpop.f32.mrb[0].mxu0
        %v4540 = vadd.f32 %v4439, %v4539
        %v4541 = vpop.f32.mrb[0].mxu0
        %v4542 = vadd.f32 %v4441, %v4541
        %v4543 = vpop.f32.mrb[0].mxu0
        %v4544 = vadd.f32 %v4443, %v4543
        %4545 = vmatprep.mubr.bf16.mxu0 %v2343
        %4546 = vmatmul.mubr.bf16.gmra.mrb[0].mxu0 %v2342
        %v4547 = vpop.f32.mrb[0].mxu0
        %v4548 = vadd.f32 %v4447, %v4547
        %v4549 = vpop.f32.mrb[0].mxu0
        %v4550 = vadd.f32 %v4449, %v4549
        %v4551 = vpop.f32.mrb[0].mxu0
        %v4552 = vadd.f32 %v4451, %v4551
        %v4553 = vpop.f32.mrb[0].mxu0
        %v4554 = vadd.f32 %v4453, %v4553
        %4555 = vmatprep.mubr.bf16.mxu0 %v2361
        %4556 = vmatmul.mubr.bf16.gmra.mrb[0].mxu0 %v2360
        %v4557 = vpop.f32.mrb[0].mxu0
        %v4558 = vadd.f32 %v4457, %v4557
        %v4559 = vpop.f32.mrb[0].mxu0
        %v4560 = vadd.f32 %v4459, %v4559
        %v4561 = vpop.f32.mrb[0].mxu0
        %v4562 = vadd.f32 %v4461, %v4561
        %v4563 = vpop.f32.mrb[0].mxu0
        %v4564 = vadd.f32 %v4463, %v4563
        %4565 = vmatprep.mubr.bf16.mxu0 %v2379
        %4566 = vmatmul.mubr.bf16.gmra.mrb[0].mxu0 %v2378
        %v4567 = vpop.f32.mrb[0].mxu0
        %v4568 = vadd.f32 %v4467, %v4567
        %v4569 = vpop.f32.mrb[0].mxu0
        %v4570 = vadd.f32 %v4469, %v4569
        %v4571 = vpop.f32.mrb[0].mxu0
        %v4572 = vadd.f32 %v4471, %v4571
        %v4573 = vpop.f32.mrb[0].mxu0
        %v4574 = vadd.f32 %v4473, %v4573
        %4575 = vmatprep.mubr.bf16.mxu0 %v2397
        %4576 = vmatmul.mubr.bf16.gmra.mrb[0].mxu0 %v2396
        %v4577 = vpop.f32.mrb[0].mxu0
        %v4578 = vadd.f32 %v4477, %v4577
        %v4579 = vpop.f32.mrb[0].mxu0
        %v4580 = vadd.f32 %v4479, %v4579
        %v4581 = vpop.f32.mrb[0].mxu0
        %v4582 = vadd.f32 %v4481, %v4581
        %v4583 = vpop.f32.mrb[0].mxu0
        %v4584 = vadd.f32 %v4483, %v4583
        %4585 = vmatprep.mubr.bf16.mxu0 %v2415
        %4586 = vmatmul.mubr.bf16.gmra.mrb[0].mxu0 %v2414
        %v4587 = vpop.f32.mrb[0].mxu0
        %v4588 = vadd.f32 %v4487, %v4587
        %v4589 = vpop.f32.mrb[0].mxu0
        %v4590 = vadd.f32 %v4489, %v4589
        %v4591 = vpop.f32.mrb[0].mxu0
        %v4592 = vpop.f32.mrb[0].mxu0
        %4593 = vdwg.mxu0
        %4594 = vmatprep.subr.bf16.mxu0 %v3605
        %4595 = vmatpush1.bf16.msra.mxu0 %v3604
        %4596 = vmatprep.subr.bf16.mxu0 %v3607
        %4597 = vmatpush1.bf16.msra.mxu0 %v3606
        %4598 = vmatprep.subr.bf16.mxu0 %v3609
        %4599 = vmatpush1.bf16.msra.mxu0 %v3608
        %4600 = vmatprep.subr.bf16.mxu0 %v3611
        %4601 = vmatpush1.bf16.msra.mxu0 %v3610
        %4602 = vmatprep.subr.bf16.mxu0 %v3613
        %4603 = vmatpush1.bf16.msra.mxu0 %v3612
        %4604 = vmatprep.subr.bf16.mxu0 %v3615
        %4605 = vmatpush1.bf16.msra.mxu0 %v3614
        %4606 = vmatprep.subr.bf16.mxu0 %v3617
        %4607 = vmatpush1.bf16.msra.mxu0 %v3616
        %4608 = vmatprep.subr.bf16.mxu0 %v3619
        %4609 = vmatpush1.bf16.msra.mxu0 %v3618
        %4610 = vmatprep.subr.bf16.mxu0 %v3621
        %4611 = vmatpush1.bf16.msra.mxu0 %v3620
        %4612 = vmatprep.subr.bf16.mxu0 %v3623
        %4613 = vmatpush1.bf16.msra.mxu0 %v3622
        %4614 = vmatprep.subr.bf16.mxu0 %v3625
        %4615 = vmatpush1.bf16.msra.mxu0 %v3624
        %4616 = vmatprep.subr.bf16.mxu0 %v3627
        %4617 = vmatpush1.bf16.msra.mxu0 %v3626
        %4618 = vmatprep.subr.bf16.mxu0 %v3629
        %4619 = vmatpush1.bf16.msra.mxu0 %v3628
        %4620 = vmatprep.subr.bf16.mxu0 %v3631
        %4621 = vmatpush1.bf16.msra.mxu0 %v3630
        %4622 = vmatprep.subr.bf16.mxu0 %v3633
        %4623 = vmatpush1.bf16.msra.mxu0 %v3632
        %4624 = vmatprep.subr.bf16.mxu0 %v3635
        %4625 = vmatpush1.bf16.msra.mxu0 %v3634
        %4626 = vmatprep.mubr.bf16.mxu0 %v2309
        %4627 = vmatmul.mubr.bf16.gmra.mrb[0].mxu0 %v2308
        %v4628 = vpop.f32.mrb[0].mxu0
        %v4629 = vadd.f32 %v4528, %v4628
        %v4630 = vpop.f32.mrb[0].mxu0
        %v4631 = vadd.f32 %v4530, %v4630
        %v4632 = vpop.f32.mrb[0].mxu0
        %v4633 = vadd.f32 %v4532, %v4632
        %v4634 = vpop.f32.mrb[0].mxu0
        %v4635 = vadd.f32 %v4534, %v4634
        %4636 = vmatprep.mubr.bf16.mxu0 %v2327
        %4637 = vmatmul.mubr.bf16.gmra.mrb[0].mxu0 %v2326
        %v4638 = vpop.f32.mrb[0].mxu0
        %v4639 = vadd.f32 %v4538, %v4638
        %v4640 = vpop.f32.mrb[0].mxu0
        %v4641 = vadd.f32 %v4540, %v4640
        %v4642 = vpop.f32.mrb[0].mxu0
        %v4643 = vadd.f32 %v4542, %v4642
        %v4644 = vpop.f32.mrb[0].mxu0
        %v4645 = vadd.f32 %v4544, %v4644
        %4646 = vmatprep.mubr.bf16.mxu0 %v2345
        %4647 = vmatmul.mubr.bf16.gmra.mrb[0].mxu0 %v2344
        %v4648 = vpop.f32.mrb[0].mxu0
        %v4649 = vadd.f32 %v4548, %v4648
        %v4650 = vpop.f32.mrb[0].mxu0
        %v4651 = vadd.f32 %v4550, %v4650
        %v4652 = vpop.f32.mrb[0].mxu0
        %v4653 = vadd.f32 %v4552, %v4652
        %v4654 = vpop.f32.mrb[0].mxu0
        %v4655 = vadd.f32 %v4554, %v4654
        %4656 = vmatprep.mubr.bf16.mxu0 %v2363
        %4657 = vmatmul.mubr.bf16.gmra.mrb[0].mxu0 %v2362
        %v4658 = vpop.f32.mrb[0].mxu0
        %v4659 = vadd.f32 %v4558, %v4658
        %v4660 = vpop.f32.mrb[0].mxu0
        %v4661 = vadd.f32 %v4560, %v4660
        %v4662 = vpop.f32.mrb[0].mxu0
        %v4663 = vadd.f32 %v4562, %v4662
        %v4664 = vpop.f32.mrb[0].mxu0
        %v4665 = vadd.f32 %v4564, %v4664
        %4666 = vmatprep.mubr.bf16.mxu0 %v2381
        %4667 = vmatmul.mubr.bf16.gmra.mrb[0].mxu0 %v2380
        %v4668 = vpop.f32.mrb[0].mxu0
        %v4669 = vadd.f32 %v4568, %v4668
        %v4670 = vpop.f32.mrb[0].mxu0
        %v4671 = vadd.f32 %v4570, %v4670
        %v4672 = vpop.f32.mrb[0].mxu0
        %v4673 = vadd.f32 %v4572, %v4672
        %v4674 = vpop.f32.mrb[0].mxu0
        %v4675 = vadd.f32 %v4574, %v4674
        %4676 = vmatprep.mubr.bf16.mxu0 %v2399
        %4677 = vmatmul.mubr.bf16.gmra.mrb[0].mxu0 %v2398
        %v4678 = vpop.f32.mrb[0].mxu0
        %v4679 = vadd.f32 %v4578, %v4678
        %v4680 = vpop.f32.mrb[0].mxu0
        %v4681 = vadd.f32 %v4580, %v4680
        %v4682 = vpop.f32.mrb[0].mxu0
        %v4683 = vadd.f32 %v4582, %v4682
        %v4684 = vpop.f32.mrb[0].mxu0
        %v4685 = vadd.f32 %v4584, %v4684
        %4686 = vmatprep.mubr.bf16.mxu0 %v2417
        %4687 = vmatmul.mubr.bf16.gmra.mrb[0].mxu0 %v2416
        %v4688 = vpop.f32.mrb[0].mxu0
        %v4689 = vadd.f32 %v4588, %v4688
        %v4690 = vpop.f32.mrb[0].mxu0
        %v4691 = vadd.f32 %v4590, %v4690
        %v4692 = vpop.f32.mrb[0].mxu0
        %v4693 = vpop.f32.mrb[0].mxu0
        %4694 = vdwg.mxu0
        %4695 = vmatprep.subr.bf16.mxu0 %v3637
        %4696 = vmatpush1.bf16.msra.mxu0 %v3636
        %4697 = vmatprep.subr.bf16.mxu0 %v3639
        %4698 = vmatpush1.bf16.msra.mxu0 %v3638
        %4699 = vmatprep.subr.bf16.mxu0 %v3641
        %4700 = vmatpush1.bf16.msra.mxu0 %v3640
        %4701 = vmatprep.subr.bf16.mxu0 %v3643
        %4702 = vmatpush1.bf16.msra.mxu0 %v3642
        %4703 = vmatprep.subr.bf16.mxu0 %v3645
        %4704 = vmatpush1.bf16.msra.mxu0 %v3644
        %4705 = vmatprep.subr.bf16.mxu0 %v3647
        %4706 = vmatpush1.bf16.msra.mxu0 %v3646
        %4707 = vmatprep.subr.bf16.mxu0 %v3649
        %4708 = vmatpush1.bf16.msra.mxu0 %v3648
        %4709 = vmatprep.subr.bf16.mxu0 %v3651
        %4710 = vmatpush1.bf16.msra.mxu0 %v3650
        %4711 = vmatprep.subr.bf16.mxu0 %v3653
        %4712 = vmatpush1.bf16.msra.mxu0 %v3652
        %4713 = vmatprep.subr.bf16.mxu0 %v3655
        %4714 = vmatpush1.bf16.msra.mxu0 %v3654
        %4715 = vmatprep.subr.bf16.mxu0 %v3657
        %4716 = vmatpush1.bf16.msra.mxu0 %v3656
        %4717 = vmatprep.subr.bf16.mxu0 %v3659
        %4718 = vmatpush1.bf16.msra.mxu0 %v3658
        %4719 = vmatprep.subr.bf16.mxu0 %v3661
        %4720 = vmatpush1.bf16.msra.mxu0 %v3660
        %4721 = vmatprep.subr.bf16.mxu0 %v3663
        %4722 = vmatpush1.bf16.msra.mxu0 %v3662
        %4723 = vmatprep.subr.bf16.mxu0 %v3665
        %4724 = vmatpush1.bf16.msra.mxu0 %v3664
        %4725 = vmatprep.subr.bf16.mxu0 %v3667
        %4726 = vmatpush1.bf16.msra.mxu0 %v3666
        %4727 = vmatprep.mubr.bf16.mxu0 %v2311
        %4728 = vmatmul.mubr.bf16.gmra.mrb[0].mxu0 %v2310
        %v4729 = vpop.f32.mrb[0].mxu0
        %v4730 = vadd.f32 %v4629, %v4729
        %v4731 = vpop.f32.mrb[0].mxu0
        %v4732 = vadd.f32 %v4631, %v4731
        %v4733 = vpop.f32.mrb[0].mxu0
        %v4734 = vadd.f32 %v4633, %v4733
        %v4735 = vpop.f32.mrb[0].mxu0
        %v4736 = vadd.f32 %v4635, %v4735
        %4737 = vmatprep.mubr.bf16.mxu0 %v2329
        %4738 = vmatmul.mubr.bf16.gmra.mrb[0].mxu0 %v2328
        %v4739 = vpop.f32.mrb[0].mxu0
        %v4740 = vadd.f32 %v4639, %v4739
        %v4741 = vpop.f32.mrb[0].mxu0
        %v4742 = vadd.f32 %v4641, %v4741
        %v4743 = vpop.f32.mrb[0].mxu0
        %v4744 = vadd.f32 %v4643, %v4743
        %v4745 = vpop.f32.mrb[0].mxu0
        %v4746 = vadd.f32 %v4645, %v4745
        %4747 = vmatprep.mubr.bf16.mxu0 %v2347
        %4748 = vmatmul.mubr.bf16.gmra.mrb[0].mxu0 %v2346
        %v4749 = vpop.f32.mrb[0].mxu0
        %v4750 = vadd.f32 %v4649, %v4749
        %v4751 = vpop.f32.mrb[0].mxu0
        %v4752 = vadd.f32 %v4651, %v4751
        %v4753 = vpop.f32.mrb[0].mxu0
        %v4754 = vadd.f32 %v4653, %v4753
        %v4755 = vpop.f32.mrb[0].mxu0
        %v4756 = vadd.f32 %v4655, %v4755
        %4757 = vmatprep.mubr.bf16.mxu0 %v2365
        %4758 = vmatmul.mubr.bf16.gmra.mrb[0].mxu0 %v2364
        %v4759 = vpop.f32.mrb[0].mxu0
        %v4760 = vadd.f32 %v4659, %v4759
        %v4761 = vpop.f32.mrb[0].mxu0
        %v4762 = vadd.f32 %v4661, %v4761
        %v4763 = vpop.f32.mrb[0].mxu0
        %v4764 = vadd.f32 %v4663, %v4763
        %v4765 = vpop.f32.mrb[0].mxu0
        %v4766 = vadd.f32 %v4665, %v4765
        %4767 = vmatprep.mubr.bf16.mxu0 %v2383
        %4768 = vmatmul.mubr.bf16.gmra.mrb[0].mxu0 %v2382
        %v4769 = vpop.f32.mrb[0].mxu0
        %v4770 = vadd.f32 %v4669, %v4769
        %v4771 = vpop.f32.mrb[0].mxu0
        %v4772 = vadd.f32 %v4671, %v4771
        %v4773 = vpop.f32.mrb[0].mxu0
        %v4774 = vadd.f32 %v4673, %v4773
        %v4775 = vpop.f32.mrb[0].mxu0
        %v4776 = vadd.f32 %v4675, %v4775
        %4777 = vmatprep.mubr.bf16.mxu0 %v2401
        %4778 = vmatmul.mubr.bf16.gmra.mrb[0].mxu0 %v2400
        %v4779 = vpop.f32.mrb[0].mxu0
        %v4780 = vadd.f32 %v4679, %v4779
        %v4781 = vpop.f32.mrb[0].mxu0
        %v4782 = vadd.f32 %v4681, %v4781
        %v4783 = vpop.f32.mrb[0].mxu0
        %v4784 = vadd.f32 %v4683, %v4783
        %v4785 = vpop.f32.mrb[0].mxu0
        %v4786 = vadd.f32 %v4685, %v4785
        %4787 = vmatprep.mubr.bf16.mxu0 %v2419
        %4788 = vmatmul.mubr.bf16.gmra.mrb[0].mxu0 %v2418
        %v4789 = vpop.f32.mrb[0].mxu0
        %v4790 = vadd.f32 %v4689, %v4789
        %v4791 = vpop.f32.mrb[0].mxu0
        %v4792 = vadd.f32 %v4691, %v4791
        %v4793 = vpop.f32.mrb[0].mxu0
        %v4794 = vpop.f32.mrb[0].mxu0
        %4795 = vdwg.mxu0
        %4796 = vmatprep.subr.bf16.mxu0 %v3669
        %4797 = vmatpush1.bf16.msra.mxu0 %v3668
        %4798 = vmatprep.subr.bf16.mxu0 %v3671
        %4799 = vmatpush1.bf16.msra.mxu0 %v3670
        %4800 = vmatprep.subr.bf16.mxu0 %v3673
        %4801 = vmatpush1.bf16.msra.mxu0 %v3672
        %4802 = vmatprep.subr.bf16.mxu0 %v3675
        %4803 = vmatpush1.bf16.msra.mxu0 %v3674
        %4804 = vmatprep.subr.bf16.mxu0 %v3677
        %4805 = vmatpush1.bf16.msra.mxu0 %v3676
        %4806 = vmatprep.subr.bf16.mxu0 %v3679
        %4807 = vmatpush1.bf16.msra.mxu0 %v3678
        %4808 = vmatprep.subr.bf16.mxu0 %v3681
        %4809 = vmatpush1.bf16.msra.mxu0 %v3680
        %4810 = vmatprep.subr.bf16.mxu0 %v3683
        %4811 = vmatpush1.bf16.msra.mxu0 %v3682
        %4812 = vmatprep.subr.bf16.mxu0 %v3685
        %4813 = vmatpush1.bf16.msra.mxu0 %v3684
        %4814 = vmatprep.subr.bf16.mxu0 %v3687
        %4815 = vmatpush1.bf16.msra.mxu0 %v3686
        %4816 = vmatprep.subr.bf16.mxu0 %v3689
        %4817 = vmatpush1.bf16.msra.mxu0 %v3688
        %4818 = vmatprep.subr.bf16.mxu0 %v3691
        %4819 = vmatpush1.bf16.msra.mxu0 %v3690
        %4820 = vmatprep.subr.bf16.mxu0 %v3693
        %4821 = vmatpush1.bf16.msra.mxu0 %v3692
        %4822 = vmatprep.subr.bf16.mxu0 %v3695
        %4823 = vmatpush1.bf16.msra.mxu0 %v3694
        %4824 = vmatprep.subr.bf16.mxu0 %v3697
        %4825 = vmatpush1.bf16.msra.mxu0 %v3696
        %4826 = vmatprep.subr.bf16.mxu0 %v3699
        %4827 = vmatpush1.bf16.msra.mxu0 %v3698
        %4828 = vmatprep.mubr.bf16.mxu0 %v2313
        %4829 = vmatmul.mubr.bf16.gmra.mrb[0].mxu0 %v2312
        %v4830 = vpop.f32.mrb[0].mxu0
        %v4831 = vadd.f32 %v4730, %v4830
        %v4832 = vpop.f32.mrb[0].mxu0
        %v4833 = vadd.f32 %v4732, %v4832
        %v4834 = vpop.f32.mrb[0].mxu0
        %v4835 = vadd.f32 %v4734, %v4834
        %v4836 = vpop.f32.mrb[0].mxu0
        %v4837 = vadd.f32 %v4736, %v4836
        %4838 = vmatprep.mubr.bf16.mxu0 %v2331
        %4839 = vmatmul.mubr.bf16.gmra.mrb[0].mxu0 %v2330
        %v4840 = vpop.f32.mrb[0].mxu0
        %v4841 = vadd.f32 %v4740, %v4840
        %v4842 = vpop.f32.mrb[0].mxu0
        %v4843 = vadd.f32 %v4742, %v4842
        %v4844 = vpop.f32.mrb[0].mxu0
        %v4845 = vadd.f32 %v4744, %v4844
        %v4846 = vpop.f32.mrb[0].mxu0
        %v4847 = vadd.f32 %v4746, %v4846
        %4848 = vmatprep.mubr.bf16.mxu0 %v2349
        %4849 = vmatmul.mubr.bf16.gmra.mrb[0].mxu0 %v2348
        %v4850 = vpop.f32.mrb[0].mxu0
        %v4851 = vadd.f32 %v4750, %v4850
        %v4852 = vpop.f32.mrb[0].mxu0
        %v4853 = vadd.f32 %v4752, %v4852
        %v4854 = vpop.f32.mrb[0].mxu0
        %v4855 = vadd.f32 %v4754, %v4854
        %v4856 = vpop.f32.mrb[0].mxu0
        %v4857 = vadd.f32 %v4756, %v4856
        %4858 = vmatprep.mubr.bf16.mxu0 %v2367
        %4859 = vmatmul.mubr.bf16.gmra.mrb[0].mxu0 %v2366
        %v4860 = vpop.f32.mrb[0].mxu0
        %v4861 = vadd.f32 %v4760, %v4860
        %v4862 = vpop.f32.mrb[0].mxu0
        %v4863 = vadd.f32 %v4762, %v4862
        %v4864 = vpop.f32.mrb[0].mxu0
        %v4865 = vadd.f32 %v4764, %v4864
        %v4866 = vpop.f32.mrb[0].mxu0
        %v4867 = vadd.f32 %v4766, %v4866
        %4868 = vmatprep.mubr.bf16.mxu0 %v2385
        %4869 = vmatmul.mubr.bf16.gmra.mrb[0].mxu0 %v2384
        %v4870 = vpop.f32.mrb[0].mxu0
        %v4871 = vadd.f32 %v4770, %v4870
        %v4872 = vpop.f32.mrb[0].mxu0
        %v4873 = vadd.f32 %v4772, %v4872
        %v4874 = vpop.f32.mrb[0].mxu0
        %v4875 = vadd.f32 %v4774, %v4874
        %v4876 = vpop.f32.mrb[0].mxu0
        %v4877 = vadd.f32 %v4776, %v4876
        %4878 = vmatprep.mubr.bf16.mxu0 %v2403
        %4879 = vmatmul.mubr.bf16.gmra.mrb[0].mxu0 %v2402
        %v4880 = vpop.f32.mrb[0].mxu0
        %v4881 = vadd.f32 %v4780, %v4880
        %v4882 = vpop.f32.mrb[0].mxu0
        %v4883 = vadd.f32 %v4782, %v4882
        %v4884 = vpop.f32.mrb[0].mxu0
        %v4885 = vadd.f32 %v4784, %v4884
        %v4886 = vpop.f32.mrb[0].mxu0
        %v4887 = vadd.f32 %v4786, %v4886
        %4888 = vmatprep.mubr.bf16.mxu0 %v2421
        %4889 = vmatmul.mubr.bf16.gmra.mrb[0].mxu0 %v2420
        %v4890 = vpop.f32.mrb[0].mxu0
        %v4891 = vadd.f32 %v4790, %v4890
        %v4892 = vpop.f32.mrb[0].mxu0
        %v4893 = vadd.f32 %v4792, %v4892
        %v4894 = vpop.f32.mrb[0].mxu0
        %v4895 = vpop.f32.mrb[0].mxu0
        %4896 = vdwg.mxu0
        %v4897 = vadd.f32 %v1514, %v4831
        %v4898 = vadd.f32 %v1515, %v4833
        %v4899 = vadd.f32 %v1516, %v4835
        %v4900 = vadd.f32 %v1517, %v4837
        %v4901 = vadd.f32 %v1518, %v4841
        %v4902 = vadd.f32 %v1519, %v4843
        %v4903 = vadd.f32 %v1520, %v4845
        %v4904 = vadd.f32 %v1521, %v4847
        %v4905 = vadd.f32 %v1522, %v4851
        %v4906 = vadd.f32 %v1523, %v4853
        %v4907 = vadd.f32 %v1524, %v4855
        %v4908 = vadd.f32 %v1525, %v4857
        %v4909 = vadd.f32 %v1526, %v4861
        %v4910 = vadd.f32 %v1527, %v4863
        %v4911 = vadd.f32 %v1528, %v4865
        %v4912 = vadd.f32 %v1529, %v4867
        %v4913 = vadd.f32 %v1530, %v4871
        %v4914 = vadd.f32 %v1531, %v4873
        %v4915 = vadd.f32 %v1532, %v4875
        %v4916 = vadd.f32 %v1533, %v4877
        %v4917 = vadd.f32 %v1534, %v4881
        %v4918 = vadd.f32 %v1535, %v4883
        %v4919 = vadd.f32 %v1536, %v4885
        %v4920 = vadd.f32 %v1537, %v4887
        %v4921 = vadd.f32 %v1538, %v4891
        %v4922 = vadd.f32 %v1539, %v4893
        %4923 = vst [vmem:[#allocation2] sm:$0xff] %v4897
        %4924 = vst [vmem:[#allocation2 + $0x8] sm:$0xff] %v4898
        %4925 = vst [vmem:[#allocation2 + $0x10] sm:$0xff] %v4899
        %4926 = vst [vmem:[#allocation2 + $0x18] sm:$0xff] %v4900
        %4927 = vst [vmem:[#allocation2 + $0x20] sm:$0xff] %v4901
        %4928 = vst [vmem:[#allocation2 + $0x28] sm:$0xff] %v4902
        %4929 = vst [vmem:[#allocation2 + $0x30] sm:$0xff] %v4903
        %4930 = vst [vmem:[#allocation2 + $0x38] sm:$0xff] %v4904
        %4931 = vst [vmem:[#allocation2 + $0x40] sm:$0xff] %v4905
        %4932 = vst [vmem:[#allocation2 + $0x48] sm:$0xff] %v4906
        %4933 = vst [vmem:[#allocation2 + $0x50] sm:$0xff] %v4907
        %4934 = vst [vmem:[#allocation2 + $0x58] sm:$0xff] %v4908
        %4935 = vst [vmem:[#allocation2 + $0x60] sm:$0xff] %v4909
        %4936 = vst [vmem:[#allocation2 + $0x68] sm:$0xff] %v4910
        %4937 = vst [vmem:[#allocation2 + $0x70] sm:$0xff] %v4911
        %4938 = vst [vmem:[#allocation2 + $0x78] sm:$0xff] %v4912
        %4939 = vst [vmem:[#allocation2 + $0x80] sm:$0xff] %v4913
        %4940 = vst [vmem:[#allocation2 + $0x88] sm:$0xff] %v4914
        %4941 = vst [vmem:[#allocation2 + $0x90] sm:$0xff] %v4915
        %4942 = vst [vmem:[#allocation2 + $0x98] sm:$0xff] %v4916
        %4943 = vst [vmem:[#allocation2 + $0xa0] sm:$0xff] %v4917
        %4944 = vst [vmem:[#allocation2 + $0xa8] sm:$0xff] %v4918
        %4945 = vst [vmem:[#allocation2 + $0xb0] sm:$0xff] %v4919
        %4946 = vst [vmem:[#allocation2 + $0xb8] sm:$0xff] %v4920
        %4947 = vst [vmem:[#allocation2 + $0xc0] sm:$0xff] %v4921
        %4948 = vst [vmem:[#allocation2 + $0xc8] sm:$0xff] %v4922
        // Predicated region
        $region79: #{netG_28_forward.4} parent=69 // pred_check
          %p4949 = pneg %p1484
        $region80: #{netG_28_forward.4} parent=69 // pred_check_branch
          %4951 = sbr.rel (%p4949) target = $region82
        $region81: #{netG_28_forward.4} parent=69 // pred_region
          %v4952 = vld [vmem:[#allocation2] sm:$0xff]
          %v4953 = vld [vmem:[#allocation2 + $0x8] sm:$0xff]
          %v4954 = vld [vmem:[#allocation2 + $0x10] sm:$0xff]
          %v4955 = vld [vmem:[#allocation2 + $0x18] sm:$0xff]
          %v4956 = vld [vmem:[#allocation2 + $0x20] sm:$0xff]
          %v4957 = vld [vmem:[#allocation2 + $0x28] sm:$0xff]
          %v4958 = vld [vmem:[#allocation2 + $0x30] sm:$0xff]
          %v4959 = vld [vmem:[#allocation2 + $0x38] sm:$0xff]
          %v4960 = vld [vmem:[#allocation2 + $0x40] sm:$0xff]
          %v4961 = vld [vmem:[#allocation2 + $0x48] sm:$0xff]
          %v4962 = vld [vmem:[#allocation2 + $0x50] sm:$0xff]
          %v4963 = vld [vmem:[#allocation2 + $0x58] sm:$0xff]
          %v4964 = vld [vmem:[#allocation2 + $0x60] sm:$0xff]
          %v4965 = vld [vmem:[#allocation2 + $0x68] sm:$0xff]
          %v4966 = vld [vmem:[#allocation2 + $0x70] sm:$0xff]
          %v4967 = vld [vmem:[#allocation2 + $0x78] sm:$0xff]
          %v4968 = vld [vmem:[#allocation2 + $0x80] sm:$0xff]
          %v4969 = vld [vmem:[#allocation2 + $0x88] sm:$0xff]
          %v4970 = vld [vmem:[#allocation2 + $0x90] sm:$0xff]
          %v4971 = vld [vmem:[#allocation2 + $0x98] sm:$0xff]
          %v4972 = vld [vmem:[#allocation2 + $0xa0] sm:$0xff]
          %v4973 = vld [vmem:[#allocation2 + $0xa8] sm:$0xff]
          %v4974 = vld [vmem:[#allocation2 + $0xb0] sm:$0xff]
          %v4975 = vld [vmem:[#allocation2 + $0xb8] sm:$0xff]
          %v4976 = vld [vmem:[#allocation2 + $0xc0] sm:$0xff]
          %v4977 = vld [vmem:[#allocation2 + $0xc8] sm:$0xff]
          %v4978 = vld [vmem:[%s1475] sm:$0x3]
          %v4980 = vlaneseq
          %v4981 = vshrl.u32 %v4980, 7
          %v4982 = vsub.s32 0, %v4981
          %v4983 = vrot.slane %v4978, %v4982
          %v4984 = vlaneseq
          %v4985 = vshrl.u32 %v4984, 7
          %v4986 = vsub.s32 1, %v4985
          %v4987 = vrot.slane %v4978, %v4986
          %v4990 = vmul.f32 %v4952, %v4983
          %v4991 = vmul.f32 %v4953, %v4987
          %v4992 = vmul.f32 %v4954, %v4983
          %v4993 = vmul.f32 %v4955, %v4987
          %v4994 = vmul.f32 %v4956, %v4983
          %v4995 = vmul.f32 %v4957, %v4987
          %v4996 = vmul.f32 %v4958, %v4983
          %v4997 = vmul.f32 %v4959, %v4987
          %v4998 = vmul.f32 %v4960, %v4983
          %v4999 = vmul.f32 %v4961, %v4987
          %v5000 = vmul.f32 %v4962, %v4983
          %v5001 = vmul.f32 %v4963, %v4987
          %v5002 = vmul.f32 %v4964, %v4983
          %v5003 = vmul.f32 %v4965, %v4987
          %v5004 = vmul.f32 %v4966, %v4983
          %v5005 = vmul.f32 %v4967, %v4987
          %v5006 = vmul.f32 %v4968, %v4983
          %v5007 = vmul.f32 %v4969, %v4987
          %v5008 = vmul.f32 %v4970, %v4983
          %v5009 = vmul.f32 %v4971, %v4987
          %v5010 = vmul.f32 %v4972, %v4983
          %v5011 = vmul.f32 %v4973, %v4987
          %v5012 = vmul.f32 %v4974, %v4983
          %v5013 = vmul.f32 %v4975, %v4987
          %v5014 = vmul.f32 %v4976, %v4983
          %v5015 = vmul.f32 %v4977, %v4987
          %v5016 = vld [vmem:[%s1480] sm:$0x3]
          %v5018 = vlaneseq
          %v5019 = vshrl.u32 %v5018, 7
          %v5020 = vsub.s32 0, %v5019
          %v5021 = vrot.slane %v5016, %v5020
          %v5022 = vlaneseq
          %v5023 = vshrl.u32 %v5022, 7
          %v5024 = vsub.s32 1, %v5023
          %v5025 = vrot.slane %v5016, %v5024
          %v5028 = vadd.f32 %v4990, %v5021
          %v5029 = vadd.f32 %v4991, %v5025
          %v5030 = vadd.f32 %v4992, %v5021
          %v5031 = vadd.f32 %v4993, %v5025
          %v5032 = vadd.f32 %v4994, %v5021
          %v5033 = vadd.f32 %v4995, %v5025
          %v5034 = vadd.f32 %v4996, %v5021
          %v5035 = vadd.f32 %v4997, %v5025
          %v5036 = vadd.f32 %v4998, %v5021
          %v5037 = vadd.f32 %v4999, %v5025
          %v5038 = vadd.f32 %v5000, %v5021
          %v5039 = vadd.f32 %v5001, %v5025
          %v5040 = vadd.f32 %v5002, %v5021
          %v5041 = vadd.f32 %v5003, %v5025
          %v5042 = vadd.f32 %v5004, %v5021
          %v5043 = vadd.f32 %v5005, %v5025
          %v5044 = vadd.f32 %v5006, %v5021
          %v5045 = vadd.f32 %v5007, %v5025
          %v5046 = vadd.f32 %v5008, %v5021
          %v5047 = vadd.f32 %v5009, %v5025
          %v5048 = vadd.f32 %v5010, %v5021
          %v5049 = vadd.f32 %v5011, %v5025
          %v5050 = vadd.f32 %v5012, %v5021
          %v5051 = vadd.f32 %v5013, %v5025
          %v5052 = vadd.f32 %v5014, %v5021
          %v5053 = vadd.f32 %v5015, %v5025
          %v5054 = vmax.f32 %v5028, 0.0
          %v5055 = vmax.f32 %v5029, 0.0
          %v5056 = vmax.f32 %v5030, 0.0
          %v5057 = vmax.f32 %v5031, 0.0
          %v5058 = vmax.f32 %v5032, 0.0
          %v5059 = vmax.f32 %v5033, 0.0
          %v5060 = vmax.f32 %v5034, 0.0
          %v5061 = vmax.f32 %v5035, 0.0
          %v5062 = vmax.f32 %v5036, 0.0
          %v5063 = vmax.f32 %v5037, 0.0
          %v5064 = vmax.f32 %v5038, 0.0
          %v5065 = vmax.f32 %v5039, 0.0
          %v5066 = vmax.f32 %v5040, 0.0
          %v5067 = vmax.f32 %v5041, 0.0
          %v5068 = vmax.f32 %v5042, 0.0
          %v5069 = vmax.f32 %v5043, 0.0
          %v5070 = vmax.f32 %v5044, 0.0
          %v5071 = vmax.f32 %v5045, 0.0
          %v5072 = vmax.f32 %v5046, 0.0
          %v5073 = vmax.f32 %v5047, 0.0
          %v5074 = vmax.f32 %v5048, 0.0
          %v5075 = vmax.f32 %v5049, 0.0
          %v5076 = vmax.f32 %v5050, 0.0
          %v5077 = vmax.f32 %v5051, 0.0
          %v5078 = vmax.f32 %v5052, 0.0
          %v5079 = vmax.f32 %v5053, 0.0
          %v5080 = vpack.c.bf16 %v5056, %v5054
          %v5081 = vpack.c.bf16 %v5057, %v5055
          %v5082 = vpack.c.bf16 %v5060, %v5058
          %v5083 = vpack.c.bf16 %v5061, %v5059
          %v5084 = vpack.c.bf16 %v5064, %v5062
          %v5085 = vpack.c.bf16 %v5065, %v5063
          %v5086 = vpack.c.bf16 %v5068, %v5066
          %v5087 = vpack.c.bf16 %v5069, %v5067
          %v5088 = vpack.c.bf16 %v5072, %v5070
          %v5089 = vpack.c.bf16 %v5073, %v5071
          %v5090 = vpack.c.bf16 %v5076, %v5074
          %v5091 = vpack.c.bf16 %v5077, %v5075
          %v5092 = vpack.c.bf16 %v5078, %v5078
          %v5093 = vpack.c.bf16 %v5079, %v5079
          %v5108 = vunpack.c.l.b16 %v5080
          %v5109 = vunpack.c.l.b16 %v5081
          %v5110 = vunpack.c.h.b16 %v5080
          %v5111 = vunpack.c.h.b16 %v5081
          %v5112 = vunpack.c.l.b16 %v5082
          %v5113 = vunpack.c.l.b16 %v5083
          %v5114 = vunpack.c.h.b16 %v5082
          %v5115 = vunpack.c.h.b16 %v5083
          %v5116 = vunpack.c.l.b16 %v5084
          %v5117 = vunpack.c.l.b16 %v5085
          %v5118 = vunpack.c.h.b16 %v5084
          %v5119 = vunpack.c.h.b16 %v5085
          %v5120 = vunpack.c.l.b16 %v5086
          %v5121 = vunpack.c.l.b16 %v5087
          %v5122 = vunpack.c.h.b16 %v5086
          %v5123 = vunpack.c.h.b16 %v5087
          %v5124 = vunpack.c.l.b16 %v5088
          %v5125 = vunpack.c.l.b16 %v5089
          %v5126 = vunpack.c.h.b16 %v5088
          %v5127 = vunpack.c.h.b16 %v5089
          %v5128 = vunpack.c.l.b16 %v5090
          %v5129 = vunpack.c.l.b16 %v5091
          %v5130 = vunpack.c.h.b16 %v5090
          %v5131 = vunpack.c.h.b16 %v5091
          %v5132 = vunpack.c.l.b16 %v5092
          %v5133 = vunpack.c.l.b16 %v5093
          %v5134 = vpack.c.b16 %v5109, %v5108
          %v5135 = vpack.c.b16 %v5111, %v5110
          %v5136 = vpack.c.b16 %v5113, %v5112
          %v5137 = vpack.c.b16 %v5115, %v5114
          %v5138 = vpack.c.b16 %v5117, %v5116
          %v5139 = vpack.c.b16 %v5119, %v5118
          %v5140 = vpack.c.b16 %v5121, %v5120
          %v5141 = vpack.c.b16 %v5123, %v5122
          %v5142 = vpack.c.b16 %v5125, %v5124
          %v5143 = vpack.c.b16 %v5127, %v5126
          %v5144 = vpack.c.b16 %v5129, %v5128
          %v5145 = vpack.c.b16 %v5131, %v5130
          %v5146 = vpack.c.b16 %v5133, %v5132
          %5160 = vst [vmem:[%s1457] sm:$0xff] %v5134
          %5161 = vst [vmem:[%s1457 + $0x8] sm:$0xff] %v5135
          %5162 = vst [vmem:[%s1457 + $0x10] sm:$0xff] %v5136
          %5163 = vst [vmem:[%s1457 + $0x18] sm:$0xff] %v5137
          %5164 = vst [vmem:[%s1457 + $0x20] sm:$0xff] %v5138
          %5165 = vst [vmem:[%s1457 + $0x28] sm:$0xff] %v5139
          %5166 = vst [vmem:[%s1457 + $0x30] sm:$0xff] %v5140
          %5167 = vst [vmem:[%s1457 + $0x38] sm:$0xff] %v5141
          %5168 = vst [vmem:[%s1457 + $0x40] sm:$0xff] %v5142
          %5169 = vst [vmem:[%s1457 + $0x48] sm:$0xff] %v5143
          %5170 = vst [vmem:[%s1457 + $0x50] sm:$0xff] %v5144
          %5171 = vst [vmem:[%s1457 + $0x58] sm:$0xff] %v5145
          %5172 = vst [vmem:[%s1457 + $0x60] sm:$0xff] %v5146
        $region82: #{netG_28_forward.4} parent=69 // pred_fallthru
          _
        %s5173 = sand.u32 %s152, 1
        %s5174 = sand.u32 %s152, 1
        %s5175 = smul.addr %s5174, 104
        %s5176 = scalar_lea.vmem [#allocation4], %s5175
        // Predicated region
        $region83: #{netG_28_forward.4} parent=69 // pred_check
          %p5177 = pneg %p162
        $region84: #{netG_28_forward.4} parent=69 // pred_check_branch
          %5179 = sbr.rel (%p5177) target = $region86
        $region85: #{netG_28_forward.4} parent=69 // pred_region
          %s5180 = smul.u32 13, %s20
          %s5181 = smul.u32 2, %s21
          %s5182 = smul.addr %s5180, 4
          %s5183 = sadd.s32 %s5181, %s5182
          %s5184 = smul.addr %s5183, 4
          %s5185 = scalar_lea.vmem %s4, %s5184
          // Predicated region
          $region87: #{netG_28_forward.4} parent=85 // pred_check
            _
          $region88: #{netG_28_forward.4} parent=85 // pred_check_branch
            %5187 = sbr.rel (0) target = $region90
          $region89: #{netG_28_forward.4} parent=85 // pred_region
            // Predicated region
            $region91: #{netG_28_forward.4} parent=89 // pred_check
              _
            $region92: #{netG_28_forward.4} parent=89 // pred_check_branch
              %5189 = sbr.rel (0) target = $region94
            $region93: #{netG_28_forward.4} parent=89 // pred_region
              // Predicated region
              $region106: #{netG_28_forward.4} parent=93 // pred_check
                _
              $region107: #{netG_28_forward.4} parent=93 // pred_check_branch
                %5228 = sbr.rel (0) target = $region109
              $region108: #{netG_28_forward.4} parent=93 // pred_region
                loop: start=0, step=1, limit=1
                $region110: #{netG_28_forward.4} parent=108 // loop_pre_header
                  _
                $region111: #{netG_28_forward.4} parent=108 // loop_header
                  %s5230 = sphi 0, %s5234
                  %p5231 = scmp.ge.s32.totalorder %s5230, 1
                  %s5235 = sphi %s5176, %s5176
                  %s5236 = sphi %s5185, %s5185
                $region112: #{netG_28_forward.4} parent=108 // loop_header_branch
                  %5233 = sbr.rel (%p5231) target = $region116
                $region113: #{netG_28_forward.4} parent=108 // loop_body
                  %v5237 = vld [vmem:[%s5235] sm:$0xff]
                  %5238 = vst [vmem:[%s5236] sm:$0xff] %v5237
                  %v5239 = vld [vmem:[%s5235 + $0x8] sm:$0xff]
                  %5240 = vst [vmem:[%s5236 + $0x10] sm:$0xff] %v5239
                  %v5241 = vld [vmem:[%s5235 + $0x10] sm:$0xff]
                  %5242 = vst [vmem:[%s5236 + $0x20] sm:$0xff] %v5241
                  %v5243 = vld [vmem:[%s5235 + $0x18] sm:$0xff]
                  %5244 = vst [vmem:[%s5236 + $0x30] sm:$0xff] %v5243
                  %v5245 = vld [vmem:[%s5235 + $0x20] sm:$0xff]
                  %5246 = vst [vmem:[%s5236 + $0x40] sm:$0xff] %v5245
                  %v5247 = vld [vmem:[%s5235 + $0x28] sm:$0xff]
                  %5248 = vst [vmem:[%s5236 + $0x50] sm:$0xff] %v5247
                  %v5249 = vld [vmem:[%s5235 + $0x30] sm:$0xff]
                  %5250 = vst [vmem:[%s5236 + $0x60] sm:$0xff] %v5249
                  %v5251 = vld [vmem:[%s5235 + $0x38] sm:$0xff]
                  %5252 = vst [vmem:[%s5236 + $0x70] sm:$0xff] %v5251
                  %v5253 = vld [vmem:[%s5235 + $0x40] sm:$0xff]
                  %5254 = vst [vmem:[%s5236 + $0x80] sm:$0xff] %v5253
                  %v5255 = vld [vmem:[%s5235 + $0x48] sm:$0xff]
                  %5256 = vst [vmem:[%s5236 + $0x90] sm:$0xff] %v5255
                  %v5257 = vld [vmem:[%s5235 + $0x50] sm:$0xff]
                  %5258 = vst [vmem:[%s5236 + $0xa0] sm:$0xff] %v5257
                  %v5259 = vld [vmem:[%s5235 + $0x58] sm:$0xff]
                  %5260 = vst [vmem:[%s5236 + $0xb0] sm:$0xff] %v5259
                  %v5261 = vld [vmem:[%s5235 + $0x60] sm:$0xff]
                  %5262 = vst [vmem:[%s5236 + $0xc0] sm:$0xff] %v5261
                $region114: #{netG_28_forward.4} parent=108 // loop_footer
                  %s5234 = sadd.s32 1, %s5230
                $region115: #{netG_28_forward.4} parent=108 // loop_footer_branch
                  %5229 = sbr.rel target = $region111
                $region116: #{netG_28_forward.4} parent=108 // loop_exit
                  _
              $region109: #{netG_28_forward.4} parent=93 // pred_fallthru
                _
              // Predicated region
              $region117: #{netG_28_forward.4} parent=93 // pred_check
                _
              $region118: #{netG_28_forward.4} parent=93 // pred_check_branch
                %5264 = sbr.rel target = $region120
              $region119: #{netG_28_forward.4} parent=93 // pred_region
                _
              $region120: #{netG_28_forward.4} parent=93 // pred_fallthru
                _
            $region94: #{netG_28_forward.4} parent=89 // pred_fallthru
              _
            // Predicated region
            $region95: #{netG_28_forward.4} parent=89 // pred_check
              _
            $region96: #{netG_28_forward.4} parent=89 // pred_check_branch
              %5191 = sbr.rel target = $region98
            $region97: #{netG_28_forward.4} parent=89 // pred_region
              loop: start=0, step=1, limit=1
              $region99: #{netG_28_forward.4} parent=97 // loop_pre_header
                _
              $region100: #{netG_28_forward.4} parent=97 // loop_header
                %s5194 = sphi 0, %s5198
                %p5195 = scmp.ge.s32.totalorder %s5194, 1
                %s5199 = sphi %s5176, %s5176
                %s5200 = sphi %s5185, %s5185
              $region101: #{netG_28_forward.4} parent=97 // loop_header_branch
                %5197 = sbr.rel (%p5195) target = $region105
              $region102: #{netG_28_forward.4} parent=97 // loop_body
                %v5201 = vld [vmem:[%s5199] sm:$0xff]
                %5202 = vst [vmem:[%s5200] sm:$0xff] %v5201
                %v5203 = vld [vmem:[%s5199 + $0x8] sm:$0xff]
                %5204 = vst [vmem:[%s5200 + $0x10] sm:$0xff] %v5203
                %v5205 = vld [vmem:[%s5199 + $0x10] sm:$0xff]
                %5206 = vst [vmem:[%s5200 + $0x20] sm:$0xff] %v5205
                %v5207 = vld [vmem:[%s5199 + $0x18] sm:$0xff]
                %5208 = vst [vmem:[%s5200 + $0x30] sm:$0xff] %v5207
                %v5209 = vld [vmem:[%s5199 + $0x20] sm:$0xff]
                %5210 = vst [vmem:[%s5200 + $0x40] sm:$0xff] %v5209
                %v5211 = vld [vmem:[%s5199 + $0x28] sm:$0xff]
                %5212 = vst [vmem:[%s5200 + $0x50] sm:$0xff] %v5211
                %v5213 = vld [vmem:[%s5199 + $0x30] sm:$0xff]
                %5214 = vst [vmem:[%s5200 + $0x60] sm:$0xff] %v5213
                %v5215 = vld [vmem:[%s5199 + $0x38] sm:$0xff]
                %5216 = vst [vmem:[%s5200 + $0x70] sm:$0xff] %v5215
                %v5217 = vld [vmem:[%s5199 + $0x40] sm:$0xff]
                %5218 = vst [vmem:[%s5200 + $0x80] sm:$0xff] %v5217
                %v5219 = vld [vmem:[%s5199 + $0x48] sm:$0xff]
                %5220 = vst [vmem:[%s5200 + $0x90] sm:$0xff] %v5219
                %v5221 = vld [vmem:[%s5199 + $0x50] sm:$0xff]
                %5222 = vst [vmem:[%s5200 + $0xa0] sm:$0xff] %v5221
                %v5223 = vld [vmem:[%s5199 + $0x58] sm:$0xff]
                %5224 = vst [vmem:[%s5200 + $0xb0] sm:$0xff] %v5223
                %v5225 = vld [vmem:[%s5199 + $0x60] sm:$0xff]
                %5226 = vst [vmem:[%s5200 + $0xc0] sm:$0xff] %v5225
              $region103: #{netG_28_forward.4} parent=97 // loop_footer
                %s5198 = sadd.s32 1, %s5194
              $region104: #{netG_28_forward.4} parent=97 // loop_footer_branch
                %5193 = sbr.rel target = $region100
              $region105: #{netG_28_forward.4} parent=97 // loop_exit
                _
            $region98: #{netG_28_forward.4} parent=89 // pred_fallthru
              _
          $region90: #{netG_28_forward.4} parent=85 // pred_fallthru
            _
          %5265 = vnop
        $region86: #{netG_28_forward.4} parent=69 // pred_fallthru
          _
      $region70: #{netG_28_forward.4} parent=5 // pred_fallthru
        _
      %p5266 = scmp.le.s32.totalorder 2, %s10
      // Predicated region
      $region121: #{netG_28_forward.4} parent=5 // pred_check
        %p5267 = pneg %p5266
      $region122: #{netG_28_forward.4} parent=5 // pred_check_branch
        %5269 = sbr.rel (%p5267) target = $region124
      $region123: #{netG_28_forward.4} parent=5 // pred_region
        %s5270 = ssub.s32 %s10, 2
        // Predicated region
        $region125: #{netG_28_forward.4} parent=123 // pred_check
          %p5271 = pneg %p168
        $region126: #{netG_28_forward.4} parent=123 // pred_check_branch
          %5273 = sbr.rel (%p5271) target = $region128
        $region127: #{netG_28_forward.4} parent=123 // pred_region
          %s5274 = sand.u32 %s153, 1
          %s5275 = sand.u32 %s153, 1
          %s5276 = smul.addr %s5275, 104
          %s5277 = scalar_lea.vmem [#allocation4], %s5276
        $region128: #{netG_28_forward.4} parent=123 // pred_fallthru
          _
      $region124: #{netG_28_forward.4} parent=5 // pred_fallthru
        _
    $region6: #{netG_28_forward.4} parent=1 // loop_footer
      %s14 = sadd.s32 1, %s10
    $region7: #{netG_28_forward.4} parent=1 // loop_footer_branch
      %9 = sbr.rel target = $region3
    $region8: #{netG_28_forward.4} parent=1 // loop_exit
      _

// kernel: netG_28_forward.5
$region0: #{netG_28_forward.5}
  #allocation0 [shape = 'u32[]', space=smem, size = 0x4, offset = 0x4, fixed_abs, tag = 'smem constant byte address 0x4 - core index']
  #allocation1 [shape = 'u32[144,128]{1,0:T(1,128)}', space=vmem, size = 0x12000, scoped, tag = 'internal scratch']
  #allocation2 [shape = 'f32[392,128]{1,0:T(8,128)}', space=vmem, size = 0x31000, scoped, tag = 'scratch operand']
  %s0 = inlined_call_operand.vmem [shape: bf16[392,1152], index: 0, kind: input, shape index: {}]
  %s1 = inlined_call_operand.vmem [shape: bf16[1152,128], index: 1, kind: input, shape index: {}]
  %s2 = inlined_call_operand.vmem [shape: f32[1,128], index: 2, kind: input, shape index: {}]
  %s3 = inlined_call_operand.vmem [shape: f32[1,128], index: 3, kind: input, shape index: {}]
  %s4 = inlined_call_operand.vmem [shape: f32[392,128], index: 4, kind: output, shape index: {}]
  %s5 = sld [smem:[#allocation0]]
  $region34: #{netG_28_forward.5} parent=0
    _
  %s7 = ssub.s32 1, %s5
  %s8 = scalar_select 0, %s7, %s5
  // Predicated region
  $region2: #{netG_28_forward.5} parent=0 // pred_check
    _
  $region3: #{netG_28_forward.5} parent=0 // pred_check_branch
    %10 = sbr.rel (0) target = $region5
  $region4: #{netG_28_forward.5} parent=0 // pred_region
    _
  $region5: #{netG_28_forward.5} parent=0 // pred_fallthru
    _
  // Predicated region
  $region6: #{netG_28_forward.5} parent=0 // pred_check
    _
  $region7: #{netG_28_forward.5} parent=0 // pred_check_branch
    %12 = sbr.rel (0) target = $region9
  $region8: #{netG_28_forward.5} parent=0 // pred_region
    _
  $region9: #{netG_28_forward.5} parent=0 // pred_fallthru
    _
  // Predicated region
  $region10: #{netG_28_forward.5} parent=0 // pred_check
    _
  $region11: #{netG_28_forward.5} parent=0 // pred_check_branch
    %14 = sbr.rel (0) target = $region13
  $region12: #{netG_28_forward.5} parent=0 // pred_region
    _
  $region13: #{netG_28_forward.5} parent=0 // pred_fallthru
    _
  // Predicated region
  $region14: #{netG_28_forward.5} parent=0 // pred_check
    _
  $region15: #{netG_28_forward.5} parent=0 // pred_check_branch
    %16 = sbr.rel (0) target = $region17
  $region16: #{netG_28_forward.5} parent=0 // pred_region
    _
  $region17: #{netG_28_forward.5} parent=0 // pred_fallthru
    _
  %p18 = scmp.eq.s32.totalorder 0, 0
  // Predicated region
  $region18: #{netG_28_forward.5} parent=0 // pred_check
    %p19 = pneg %p18
  $region19: #{netG_28_forward.5} parent=0 // pred_check_branch
    %21 = sbr.rel (%p19) target = $region21
  $region20: #{netG_28_forward.5} parent=0 // pred_region
    %22 = vst [vmem:[#allocation2] sm:$0xff] 0.0
    %23 = vst [vmem:[#allocation2 + $0x8] sm:$0xff] 0.0
    %24 = vst [vmem:[#allocation2 + $0x10] sm:$0xff] 0.0
    %25 = vst [vmem:[#allocation2 + $0x18] sm:$0xff] 0.0
    %26 = vst [vmem:[#allocation2 + $0x20] sm:$0xff] 0.0
    %27 = vst [vmem:[#allocation2 + $0x28] sm:$0xff] 0.0
    %28 = vst [vmem:[#allocation2 + $0x30] sm:$0xff] 0.0
    %29 = vst [vmem:[#allocation2 + $0x38] sm:$0xff] 0.0
    %30 = vst [vmem:[#allocation2 + $0x40] sm:$0xff] 0.0
    %31 = vst [vmem:[#allocation2 + $0x48] sm:$0xff] 0.0
    %32 = vst [vmem:[#allocation2 + $0x50] sm:$0xff] 0.0
    %33 = vst [vmem:[#allocation2 + $0x58] sm:$0xff] 0.0
    %34 = vst [vmem:[#allocation2 + $0x60] sm:$0xff] 0.0
    %35 = vst [vmem:[#allocation2 + $0x68] sm:$0xff] 0.0
    %36 = vst [vmem:[#allocation2 + $0x70] sm:$0xff] 0.0
    %37 = vst [vmem:[#allocation2 + $0x78] sm:$0xff] 0.0
    %38 = vst [vmem:[#allocation2 + $0x80] sm:$0xff] 0.0
    %39 = vst [vmem:[#allocation2 + $0x88] sm:$0xff] 0.0
    %40 = vst [vmem:[#allocation2 + $0x90] sm:$0xff] 0.0
    %41 = vst [vmem:[#allocation2 + $0x98] sm:$0xff] 0.0
    %42 = vst [vmem:[#allocation2 + $0xa0] sm:$0xff] 0.0
    %43 = vst [vmem:[#allocation2 + $0xa8] sm:$0xff] 0.0
    %44 = vst [vmem:[#allocation2 + $0xb0] sm:$0xff] 0.0
    %45 = vst [vmem:[#allocation2 + $0xb8] sm:$0xff] 0.0
    %46 = vst [vmem:[#allocation2 + $0xc0] sm:$0xff] 0.0
    %47 = vst [vmem:[#allocation2 + $0xc8] sm:$0xff] 0.0
    %48 = vst [vmem:[#allocation2 + $0xd0] sm:$0xff] 0.0
    %49 = vst [vmem:[#allocation2 + $0xd8] sm:$0xff] 0.0
    %50 = vst [vmem:[#allocation2 + $0xe0] sm:$0xff] 0.0
    %51 = vst [vmem:[#allocation2 + $0xe8] sm:$0xff] 0.0
    %52 = vst [vmem:[#allocation2 + $0xf0] sm:$0xff] 0.0
    %53 = vst [vmem:[#allocation2 + $0xf8] sm:$0xff] 0.0
    %54 = vst [vmem:[#allocation2 + $0x100] sm:$0xff] 0.0
    %55 = vst [vmem:[#allocation2 + $0x108] sm:$0xff] 0.0
    %56 = vst [vmem:[#allocation2 + $0x110] sm:$0xff] 0.0
    %57 = vst [vmem:[#allocation2 + $0x118] sm:$0xff] 0.0
    %58 = vst [vmem:[#allocation2 + $0x120] sm:$0xff] 0.0
    %59 = vst [vmem:[#allocation2 + $0x128] sm:$0xff] 0.0
    %60 = vst [vmem:[#allocation2 + $0x130] sm:$0xff] 0.0
    %61 = vst [vmem:[#allocation2 + $0x138] sm:$0xff] 0.0
    %62 = vst [vmem:[#allocation2 + $0x140] sm:$0xff] 0.0
    %63 = vst [vmem:[#allocation2 + $0x148] sm:$0xff] 0.0
    %64 = vst [vmem:[#allocation2 + $0x150] sm:$0xff] 0.0
    %65 = vst [vmem:[#allocation2 + $0x158] sm:$0xff] 0.0
    %66 = vst [vmem:[#allocation2 + $0x160] sm:$0xff] 0.0
    %67 = vst [vmem:[#allocation2 + $0x168] sm:$0xff] 0.0
    %68 = vst [vmem:[#allocation2 + $0x170] sm:$0xff] 0.0
    %69 = vst [vmem:[#allocation2 + $0x178] sm:$0xff] 0.0
    %70 = vst [vmem:[#allocation2 + $0x180] sm:$0xff] 0.0
  $region21: #{netG_28_forward.5} parent=0 // pred_fallthru
    _
  %v71 = vld [vmem:[#allocation2] sm:$0xff]
  %v72 = vld [vmem:[#allocation2 + $0x8] sm:$0xff]
  %v73 = vld [vmem:[#allocation2 + $0x10] sm:$0xff]
  %v74 = vld [vmem:[#allocation2 + $0x18] sm:$0xff]
  %v75 = vld [vmem:[#allocation2 + $0x20] sm:$0xff]
  %v76 = vld [vmem:[#allocation2 + $0x28] sm:$0xff]
  %v77 = vld [vmem:[#allocation2 + $0x30] sm:$0xff]
  %v78 = vld [vmem:[#allocation2 + $0x38] sm:$0xff]
  %v79 = vld [vmem:[#allocation2 + $0x40] sm:$0xff]
  %v80 = vld [vmem:[#allocation2 + $0x48] sm:$0xff]
  %v81 = vld [vmem:[#allocation2 + $0x50] sm:$0xff]
  %v82 = vld [vmem:[#allocation2 + $0x58] sm:$0xff]
  %v83 = vld [vmem:[#allocation2 + $0x60] sm:$0xff]
  %v84 = vld [vmem:[#allocation2 + $0x68] sm:$0xff]
  %v85 = vld [vmem:[#allocation2 + $0x70] sm:$0xff]
  %v86 = vld [vmem:[#allocation2 + $0x78] sm:$0xff]
  %v87 = vld [vmem:[#allocation2 + $0x80] sm:$0xff]
  %v88 = vld [vmem:[#allocation2 + $0x88] sm:$0xff]
  %v89 = vld [vmem:[#allocation2 + $0x90] sm:$0xff]
  %v90 = vld [vmem:[#allocation2 + $0x98] sm:$0xff]
  %v91 = vld [vmem:[#allocation2 + $0xa0] sm:$0xff]
  %v92 = vld [vmem:[#allocation2 + $0xa8] sm:$0xff]
  %v93 = vld [vmem:[#allocation2 + $0xb0] sm:$0xff]
  %v94 = vld [vmem:[#allocation2 + $0xb8] sm:$0xff]
  %v95 = vld [vmem:[#allocation2 + $0xc0] sm:$0xff]
  %v96 = vld [vmem:[#allocation2 + $0xc8] sm:$0xff]
  %v97 = vld [vmem:[#allocation2 + $0xd0] sm:$0xff]
  %v98 = vld [vmem:[#allocation2 + $0xd8] sm:$0xff]
  %v99 = vld [vmem:[#allocation2 + $0xe0] sm:$0xff]
  %v100 = vld [vmem:[#allocation2 + $0xe8] sm:$0xff]
  %v101 = vld [vmem:[#allocation2 + $0xf0] sm:$0xff]
  %v102 = vld [vmem:[#allocation2 + $0xf8] sm:$0xff]
  %v103 = vld [vmem:[#allocation2 + $0x100] sm:$0xff]
  %v104 = vld [vmem:[#allocation2 + $0x108] sm:$0xff]
  %v105 = vld [vmem:[#allocation2 + $0x110] sm:$0xff]
  %v106 = vld [vmem:[#allocation2 + $0x118] sm:$0xff]
  %v107 = vld [vmem:[#allocation2 + $0x120] sm:$0xff]
  %v108 = vld [vmem:[#allocation2 + $0x128] sm:$0xff]
  %v109 = vld [vmem:[#allocation2 + $0x130] sm:$0xff]
  %v110 = vld [vmem:[#allocation2 + $0x138] sm:$0xff]
  %v111 = vld [vmem:[#allocation2 + $0x140] sm:$0xff]
  %v112 = vld [vmem:[#allocation2 + $0x148] sm:$0xff]
  %v113 = vld [vmem:[#allocation2 + $0x150] sm:$0xff]
  %v114 = vld [vmem:[#allocation2 + $0x158] sm:$0xff]
  %v115 = vld [vmem:[#allocation2 + $0x160] sm:$0xff]
  %v116 = vld [vmem:[#allocation2 + $0x168] sm:$0xff]
  %v117 = vld [vmem:[#allocation2 + $0x170] sm:$0xff]
  %v118 = vld [vmem:[#allocation2 + $0x178] sm:$0xff]
  %v119 = vld [vmem:[#allocation2 + $0x180] sm:$0xff]
  %v120 = vld [vmem:[%s0] sm:$0xff]
  %v121 = vld [vmem:[%s0 + $0x8] sm:$0xff]
  %v122 = vld [vmem:[%s0 + $0x10] sm:$0xff]
  %v123 = vld [vmem:[%s0 + $0x18] sm:$0xff]
  %v124 = vld [vmem:[%s0 + $0x20] sm:$0xf]
  %v125 = vld [vmem:[%s0 + $0x24] sm:$0xff]
  %v126 = vld [vmem:[%s0 + $0x2c] sm:$0xff]
  %v127 = vld [vmem:[%s0 + $0x34] sm:$0xff]
  %v128 = vld [vmem:[%s0 + $0x3c] sm:$0xff]
  %v129 = vld [vmem:[%s0 + $0x44] sm:$0xf]
  %v130 = vld [vmem:[%s0 + $0x48] sm:$0xff]
  %v131 = vld [vmem:[%s0 + $0x50] sm:$0xff]
  %v132 = vld [vmem:[%s0 + $0x58] sm:$0xff]
  %v133 = vld [vmem:[%s0 + $0x60] sm:$0xff]
  %v134 = vld [vmem:[%s0 + $0x68] sm:$0xf]
  %v135 = vld [vmem:[%s0 + $0x6c] sm:$0xff]
  %v136 = vld [vmem:[%s0 + $0x74] sm:$0xff]
  %v137 = vld [vmem:[%s0 + $0x7c] sm:$0xff]
  %v138 = vld [vmem:[%s0 + $0x84] sm:$0xff]
  %v139 = vld [vmem:[%s0 + $0x8c] sm:$0xf]
  %v140 = vld [vmem:[%s0 + $0x90] sm:$0xff]
  %v141 = vld [vmem:[%s0 + $0x98] sm:$0xff]
  %v142 = vld [vmem:[%s0 + $0xa0] sm:$0xff]
  %v143 = vld [vmem:[%s0 + $0xa8] sm:$0xff]
  %v144 = vld [vmem:[%s0 + $0xb0] sm:$0xf]
  %v145 = vld [vmem:[%s0 + $0xb4] sm:$0xff]
  %v146 = vld [vmem:[%s0 + $0xbc] sm:$0xff]
  %v147 = vld [vmem:[%s0 + $0xc4] sm:$0xff]
  %v148 = vld [vmem:[%s0 + $0xcc] sm:$0xff]
  %v149 = vld [vmem:[%s0 + $0xd4] sm:$0xf]
  %v150 = vld [vmem:[%s0 + $0xd8] sm:$0xff]
  %v151 = vld [vmem:[%s0 + $0xe0] sm:$0xff]
  %v152 = vld [vmem:[%s0 + $0xe8] sm:$0xff]
  %v153 = vld [vmem:[%s0 + $0xf0] sm:$0xff]
  %v154 = vld [vmem:[%s0 + $0xf8] sm:$0xf]
  %v155 = vld [vmem:[%s0 + $0xfc] sm:$0xff]
  %v156 = vld [vmem:[%s0 + $0x104] sm:$0xff]
  %v157 = vld [vmem:[%s0 + $0x10c] sm:$0xff]
  %v158 = vld [vmem:[%s0 + $0x114] sm:$0xff]
  %v159 = vld [vmem:[%s0 + $0x11c] sm:$0xf]
  %v160 = vld [vmem:[%s0 + $0x120] sm:$0xff]
  %v161 = vld [vmem:[%s0 + $0x128] sm:$0xff]
  %v162 = vld [vmem:[%s0 + $0x130] sm:$0xff]
  %v163 = vld [vmem:[%s0 + $0x138] sm:$0xff]
  %v164 = vld [vmem:[%s0 + $0x140] sm:$0xf]
  %v165 = vld [vmem:[%s0 + $0x144] sm:$0xff]
  %v166 = vld [vmem:[%s0 + $0x14c] sm:$0xff]
  %v167 = vld [vmem:[%s0 + $0x154] sm:$0xff]
  %v168 = vld [vmem:[%s0 + $0x15c] sm:$0xff]
  %v169 = vld [vmem:[%s0 + $0x164] sm:$0xf]
  %v170 = vld [vmem:[%s0 + $0x168] sm:$0xff]
  %v171 = vld [vmem:[%s0 + $0x170] sm:$0xff]
  %v172 = vld [vmem:[%s0 + $0x178] sm:$0xff]
  %v173 = vld [vmem:[%s0 + $0x180] sm:$0xff]
  %v174 = vld [vmem:[%s0 + $0x188] sm:$0xf]
  %v175 = vld [vmem:[%s0 + $0x18c] sm:$0xff]
  %v176 = vld [vmem:[%s0 + $0x194] sm:$0xff]
  %v177 = vld [vmem:[%s0 + $0x19c] sm:$0xff]
  %v178 = vld [vmem:[%s0 + $0x1a4] sm:$0xff]
  %v179 = vld [vmem:[%s0 + $0x1ac] sm:$0xf]
  %v180 = vld [vmem:[%s0 + $0x1b0] sm:$0xff]
  %v181 = vld [vmem:[%s0 + $0x1b8] sm:$0xff]
  %v182 = vld [vmem:[%s0 + $0x1c0] sm:$0xff]
  %v183 = vld [vmem:[%s0 + $0x1c8] sm:$0xff]
  %v184 = vld [vmem:[%s0 + $0x1d0] sm:$0xf]
  %v185 = vld [vmem:[%s0 + $0x1d4] sm:$0xff]
  %v186 = vld [vmem:[%s0 + $0x1dc] sm:$0xff]
  %v187 = vld [vmem:[%s0 + $0x1e4] sm:$0xff]
  %v188 = vld [vmem:[%s0 + $0x1ec] sm:$0xff]
  %v189 = vld [vmem:[%s0 + $0x1f4] sm:$0xf]
  %v190 = vld [vmem:[%s0 + $0x1f8] sm:$0xff]
  %v191 = vld [vmem:[%s0 + $0x200] sm:$0xff]
  %v192 = vld [vmem:[%s0 + $0x208] sm:$0xff]
  %v193 = vld [vmem:[%s0 + $0x210] sm:$0xff]
  %v194 = vld [vmem:[%s0 + $0x218] sm:$0xf]
  %v195 = vld [vmem:[%s0 + $0x21c] sm:$0xff]
  %v196 = vld [vmem:[%s0 + $0x224] sm:$0xff]
  %v197 = vld [vmem:[%s0 + $0x22c] sm:$0xff]
  %v198 = vld [vmem:[%s0 + $0x234] sm:$0xff]
  %v199 = vld [vmem:[%s0 + $0x23c] sm:$0xf]
  %v200 = vld [vmem:[%s0 + $0x240] sm:$0xff]
  %v201 = vld [vmem:[%s0 + $0x248] sm:$0xff]
  %v202 = vld [vmem:[%s0 + $0x250] sm:$0xff]
  %v203 = vld [vmem:[%s0 + $0x258] sm:$0xff]
  %v204 = vld [vmem:[%s0 + $0x260] sm:$0xf]
  %v205 = vld [vmem:[%s0 + $0x264] sm:$0xff]
  %v206 = vld [vmem:[%s0 + $0x26c] sm:$0xff]
  %v207 = vld [vmem:[%s0 + $0x274] sm:$0xff]
  %v208 = vld [vmem:[%s0 + $0x27c] sm:$0xff]
  %v209 = vld [vmem:[%s0 + $0x284] sm:$0xf]
  %v210 = vld [vmem:[%s0 + $0x288] sm:$0xff]
  %v211 = vld [vmem:[%s0 + $0x290] sm:$0xff]
  %v212 = vld [vmem:[%s0 + $0x298] sm:$0xff]
  %v213 = vld [vmem:[%s0 + $0x2a0] sm:$0xff]
  %v214 = vld [vmem:[%s0 + $0x2a8] sm:$0xf]
  %v215 = vld [vmem:[%s0 + $0x2ac] sm:$0xff]
  %v216 = vld [vmem:[%s0 + $0x2b4] sm:$0xff]
  %v217 = vld [vmem:[%s0 + $0x2bc] sm:$0xff]
  %v218 = vld [vmem:[%s0 + $0x2c4] sm:$0xff]
  %v219 = vld [vmem:[%s0 + $0x2cc] sm:$0xf]
  %v220 = vld [vmem:[%s0 + $0x2d0] sm:$0xff]
  %v221 = vld [vmem:[%s0 + $0x2d8] sm:$0xff]
  %v222 = vld [vmem:[%s0 + $0x2e0] sm:$0xff]
  %v223 = vld [vmem:[%s0 + $0x2e8] sm:$0xff]
  %v224 = vld [vmem:[%s0 + $0x2f0] sm:$0xf]
  %v225 = vld [vmem:[%s0 + $0x2f4] sm:$0xff]
  %v226 = vld [vmem:[%s0 + $0x2fc] sm:$0xff]
  %v227 = vld [vmem:[%s0 + $0x304] sm:$0xff]
  %v228 = vld [vmem:[%s0 + $0x30c] sm:$0xff]
  %v229 = vld [vmem:[%s0 + $0x314] sm:$0xf]
  %v230 = vld [vmem:[%s0 + $0x318] sm:$0xff]
  %v231 = vld [vmem:[%s0 + $0x320] sm:$0xff]
  %v232 = vld [vmem:[%s0 + $0x328] sm:$0xff]
  %v233 = vld [vmem:[%s0 + $0x330] sm:$0xff]
  %v234 = vld [vmem:[%s0 + $0x338] sm:$0xf]
  %v235 = vld [vmem:[%s0 + $0x33c] sm:$0xff]
  %v236 = vld [vmem:[%s0 + $0x344] sm:$0xff]
  %v237 = vld [vmem:[%s0 + $0x34c] sm:$0xff]
  %v238 = vld [vmem:[%s0 + $0x354] sm:$0xff]
  %v239 = vld [vmem:[%s0 + $0x35c] sm:$0xf]
  %v240 = vld [vmem:[%s0 + $0x360] sm:$0xff]
  %v241 = vld [vmem:[%s0 + $0x368] sm:$0xff]
  %v242 = vld [vmem:[%s0 + $0x370] sm:$0xff]
  %v243 = vld [vmem:[%s0 + $0x378] sm:$0xff]
  %v244 = vld [vmem:[%s0 + $0x380] sm:$0xf]
  %v245 = vld [vmem:[%s0 + $0x384] sm:$0xff]
  %v246 = vld [vmem:[%s0 + $0x38c] sm:$0xff]
  %v247 = vld [vmem:[%s0 + $0x394] sm:$0xff]
  %v248 = vld [vmem:[%s0 + $0x39c] sm:$0xff]
  %v249 = vld [vmem:[%s0 + $0x3a4] sm:$0xf]
  %v250 = vld [vmem:[%s0 + $0x3a8] sm:$0xff]
  %v251 = vld [vmem:[%s0 + $0x3b0] sm:$0xff]
  %v252 = vld [vmem:[%s0 + $0x3b8] sm:$0xff]
  %v253 = vld [vmem:[%s0 + $0x3c0] sm:$0xff]
  %v254 = vld [vmem:[%s0 + $0x3c8] sm:$0xf]
  %v255 = vld [vmem:[%s0 + $0x3cc] sm:$0xff]
  %v256 = vld [vmem:[%s0 + $0x3d4] sm:$0xff]
  %v257 = vld [vmem:[%s0 + $0x3dc] sm:$0xff]
  %v258 = vld [vmem:[%s0 + $0x3e4] sm:$0xff]
  %v259 = vld [vmem:[%s0 + $0x3ec] sm:$0xf]
  %v260 = vld [vmem:[%s0 + $0x3f0] sm:$0xff]
  %v261 = vld [vmem:[%s0 + $0x3f8] sm:$0xff]
  %v262 = vld [vmem:[%s0 + $0x400] sm:$0xff]
  %v263 = vld [vmem:[%s0 + $0x408] sm:$0xff]
  %v264 = vld [vmem:[%s0 + $0x410] sm:$0xf]
  %v265 = vld [vmem:[%s0 + $0x414] sm:$0xff]
  %v266 = vld [vmem:[%s0 + $0x41c] sm:$0xff]
  %v267 = vld [vmem:[%s0 + $0x424] sm:$0xff]
  %v268 = vld [vmem:[%s0 + $0x42c] sm:$0xff]
  %v269 = vld [vmem:[%s0 + $0x434] sm:$0xf]
  %v270 = vld [vmem:[%s0 + $0x438] sm:$0xff]
  %v271 = vld [vmem:[%s0 + $0x440] sm:$0xff]
  %v272 = vld [vmem:[%s0 + $0x448] sm:$0xff]
  %v273 = vld [vmem:[%s0 + $0x450] sm:$0xff]
  %v274 = vld [vmem:[%s0 + $0x458] sm:$0xf]
  %v275 = vld [vmem:[%s0 + $0x45c] sm:$0xff]
  %v276 = vld [vmem:[%s0 + $0x464] sm:$0xff]
  %v277 = vld [vmem:[%s0 + $0x46c] sm:$0xff]
  %v278 = vld [vmem:[%s0 + $0x474] sm:$0xff]
  %v279 = vld [vmem:[%s0 + $0x47c] sm:$0xf]
  %v280 = vld [vmem:[%s0 + $0x480] sm:$0xff]
  %v281 = vld [vmem:[%s0 + $0x488] sm:$0xff]
  %v282 = vld [vmem:[%s0 + $0x490] sm:$0xff]
  %v283 = vld [vmem:[%s0 + $0x498] sm:$0xff]
  %v284 = vld [vmem:[%s0 + $0x4a0] sm:$0xf]
  %v285 = vld [vmem:[%s0 + $0x4a4] sm:$0xff]
  %v286 = vld [vmem:[%s0 + $0x4ac] sm:$0xff]
  %v287 = vld [vmem:[%s0 + $0x4b4] sm:$0xff]
  %v288 = vld [vmem:[%s0 + $0x4bc] sm:$0xff]
  %v289 = vld [vmem:[%s0 + $0x4c4] sm:$0xf]
  %v290 = vld [vmem:[%s0 + $0x4c8] sm:$0xff]
  %v291 = vld [vmem:[%s0 + $0x4d0] sm:$0xff]
  %v292 = vld [vmem:[%s0 + $0x4d8] sm:$0xff]
  %v293 = vld [vmem:[%s0 + $0x4e0] sm:$0xff]
  %v294 = vld [vmem:[%s0 + $0x4e8] sm:$0xf]
  %v295 = vld [vmem:[%s0 + $0x4ec] sm:$0xff]
  %v296 = vld [vmem:[%s0 + $0x4f4] sm:$0xff]
  %v297 = vld [vmem:[%s0 + $0x4fc] sm:$0xff]
  %v298 = vld [vmem:[%s0 + $0x504] sm:$0xff]
  %v299 = vld [vmem:[%s0 + $0x50c] sm:$0xf]
  %v300 = vld [vmem:[%s0 + $0x510] sm:$0xff]
  %v301 = vld [vmem:[%s0 + $0x518] sm:$0xff]
  %v302 = vld [vmem:[%s0 + $0x520] sm:$0xff]
  %v303 = vld [vmem:[%s0 + $0x528] sm:$0xff]
  %v304 = vld [vmem:[%s0 + $0x530] sm:$0xf]
  %v305 = vld [vmem:[%s0 + $0x534] sm:$0xff]
  %v306 = vld [vmem:[%s0 + $0x53c] sm:$0xff]
  %v307 = vld [vmem:[%s0 + $0x544] sm:$0xff]
  %v308 = vld [vmem:[%s0 + $0x54c] sm:$0xff]
  %v309 = vld [vmem:[%s0 + $0x554] sm:$0xf]
  %v310 = vld [vmem:[%s0 + $0x558] sm:$0xff]
  %v311 = vld [vmem:[%s0 + $0x560] sm:$0xff]
  %v312 = vld [vmem:[%s0 + $0x568] sm:$0xff]
  %v313 = vld [vmem:[%s0 + $0x570] sm:$0xff]
  %v314 = vld [vmem:[%s0 + $0x578] sm:$0xf]
  %v315 = vld [vmem:[%s0 + $0x57c] sm:$0xff]
  %v316 = vld [vmem:[%s0 + $0x584] sm:$0xff]
  %v317 = vld [vmem:[%s0 + $0x58c] sm:$0xff]
  %v318 = vld [vmem:[%s0 + $0x594] sm:$0xff]
  %v319 = vld [vmem:[%s0 + $0x59c] sm:$0xf]
  %v320 = vld [vmem:[%s0 + $0x5a0] sm:$0xff]
  %v321 = vld [vmem:[%s0 + $0x5a8] sm:$0xff]
  %v322 = vld [vmem:[%s0 + $0x5b0] sm:$0xff]
  %v323 = vld [vmem:[%s0 + $0x5b8] sm:$0xff]
  %v324 = vld [vmem:[%s0 + $0x5c0] sm:$0xf]
  %v325 = vld [vmem:[%s0 + $0x5c4] sm:$0xff]
  %v326 = vld [vmem:[%s0 + $0x5cc] sm:$0xff]
  %v327 = vld [vmem:[%s0 + $0x5d4] sm:$0xff]
  %v328 = vld [vmem:[%s0 + $0x5dc] sm:$0xff]
  %v329 = vld [vmem:[%s0 + $0x5e4] sm:$0xf]
  %v330 = vld [vmem:[%s0 + $0x5e8] sm:$0xff]
  %v331 = vld [vmem:[%s0 + $0x5f0] sm:$0xff]
  %v332 = vld [vmem:[%s0 + $0x5f8] sm:$0xff]
  %v333 = vld [vmem:[%s0 + $0x600] sm:$0xff]
  %v334 = vld [vmem:[%s0 + $0x608] sm:$0xf]
  %v335 = vld [vmem:[%s0 + $0x60c] sm:$0xff]
  %v336 = vld [vmem:[%s0 + $0x614] sm:$0xff]
  %v337 = vld [vmem:[%s0 + $0x61c] sm:$0xff]
  %v338 = vld [vmem:[%s0 + $0x624] sm:$0xff]
  %v339 = vld [vmem:[%s0 + $0x62c] sm:$0xf]
  %v340 = vld [vmem:[%s0 + $0x630] sm:$0xff]
  %v341 = vld [vmem:[%s0 + $0x638] sm:$0xff]
  %v342 = vld [vmem:[%s0 + $0x640] sm:$0xff]
  %v343 = vld [vmem:[%s0 + $0x648] sm:$0xff]
  %v344 = vld [vmem:[%s0 + $0x650] sm:$0xf]
  %v345 = vld [vmem:[%s0 + $0x654] sm:$0xff]
  %v346 = vld [vmem:[%s0 + $0x65c] sm:$0xff]
  %v347 = vld [vmem:[%s0 + $0x664] sm:$0xff]
  %v348 = vld [vmem:[%s0 + $0x66c] sm:$0xff]
  %v349 = vld [vmem:[%s0 + $0x674] sm:$0xf]
  %v350 = vld [vmem:[%s0 + $0x678] sm:$0xff]
  %v351 = vld [vmem:[%s0 + $0x680] sm:$0xff]
  %v352 = vld [vmem:[%s0 + $0x688] sm:$0xff]
  %v353 = vld [vmem:[%s0 + $0x690] sm:$0xff]
  %v354 = vld [vmem:[%s0 + $0x698] sm:$0xf]
  %v355 = vld [vmem:[%s0 + $0x69c] sm:$0xff]
  %v356 = vld [vmem:[%s0 + $0x6a4] sm:$0xff]
  %v357 = vld [vmem:[%s0 + $0x6ac] sm:$0xff]
  %v358 = vld [vmem:[%s0 + $0x6b4] sm:$0xff]
  %v359 = vld [vmem:[%s0 + $0x6bc] sm:$0xf]
  %v360 = vld [vmem:[%s0 + $0x6c0] sm:$0xff]
  %v361 = vld [vmem:[%s0 + $0x6c8] sm:$0xff]
  %v362 = vld [vmem:[%s0 + $0x6d0] sm:$0xff]
  %v363 = vld [vmem:[%s0 + $0x6d8] sm:$0xff]
  %v364 = vld [vmem:[%s0 + $0x6e0] sm:$0xf]
  %v365 = vld [vmem:[%s1] sm:$0xf]
  %v366 = vld [vmem:[%s1 + $0x4] sm:$0xf]
  %v367 = vld [vmem:[%s1 + $0x8] sm:$0xf]
  %v368 = vld [vmem:[%s1 + $0xc] sm:$0xf]
  %v369 = vld [vmem:[%s1 + $0x10] sm:$0xf]
  %v370 = vld [vmem:[%s1 + $0x14] sm:$0xf]
  %v371 = vld [vmem:[%s1 + $0x18] sm:$0xf]
  %v372 = vld [vmem:[%s1 + $0x1c] sm:$0xf]
  %v373 = vld [vmem:[%s1 + $0x20] sm:$0xf]
  %v374 = vld [vmem:[%s1 + $0x24] sm:$0xf]
  %v375 = vld [vmem:[%s1 + $0x28] sm:$0xf]
  %v376 = vld [vmem:[%s1 + $0x2c] sm:$0xf]
  %v377 = vld [vmem:[%s1 + $0x30] sm:$0xf]
  %v378 = vld [vmem:[%s1 + $0x34] sm:$0xf]
  %v379 = vld [vmem:[%s1 + $0x38] sm:$0xf]
  %v380 = vld [vmem:[%s1 + $0x3c] sm:$0xf]
  %v381 = vld [vmem:[%s1 + $0x40] sm:$0xf]
  %v382 = vld [vmem:[%s1 + $0x44] sm:$0xf]
  %v383 = vld [vmem:[%s1 + $0x48] sm:$0xf]
  %v384 = vld [vmem:[%s1 + $0x4c] sm:$0xf]
  %v385 = vld [vmem:[%s1 + $0x50] sm:$0xf]
  %v386 = vld [vmem:[%s1 + $0x54] sm:$0xf]
  %v387 = vld [vmem:[%s1 + $0x58] sm:$0xf]
  %v388 = vld [vmem:[%s1 + $0x5c] sm:$0xf]
  %v389 = vld [vmem:[%s1 + $0x60] sm:$0xf]
  %v390 = vld [vmem:[%s1 + $0x64] sm:$0xf]
  %v391 = vld [vmem:[%s1 + $0x68] sm:$0xf]
  %v392 = vld [vmem:[%s1 + $0x6c] sm:$0xf]
  %v393 = vld [vmem:[%s1 + $0x70] sm:$0xf]
  %v394 = vld [vmem:[%s1 + $0x74] sm:$0xf]
  %v395 = vld [vmem:[%s1 + $0x78] sm:$0xf]
  %v396 = vld [vmem:[%s1 + $0x7c] sm:$0xf]
  %v397 = vld [vmem:[%s1 + $0x80] sm:$0xf]
  %v398 = vld [vmem:[%s1 + $0x84] sm:$0xf]
  %v399 = vld [vmem:[%s1 + $0x88] sm:$0xf]
  %v400 = vld [vmem:[%s1 + $0x8c] sm:$0xf]
  %v401 = vld [vmem:[%s1 + $0x90] sm:$0xf]
  %v402 = vld [vmem:[%s1 + $0x94] sm:$0xf]
  %v403 = vld [vmem:[%s1 + $0x98] sm:$0xf]
  %v404 = vld [vmem:[%s1 + $0x9c] sm:$0xf]
  %v405 = vld [vmem:[%s1 + $0xa0] sm:$0xf]
  %v406 = vld [vmem:[%s1 + $0xa4] sm:$0xf]
  %v407 = vld [vmem:[%s1 + $0xa8] sm:$0xf]
  %v408 = vld [vmem:[%s1 + $0xac] sm:$0xf]
  %v409 = vld [vmem:[%s1 + $0xb0] sm:$0xf]
  %v410 = vld [vmem:[%s1 + $0xb4] sm:$0xf]
  %v411 = vld [vmem:[%s1 + $0xb8] sm:$0xf]
  %v412 = vld [vmem:[%s1 + $0xbc] sm:$0xf]
  %v413 = vld [vmem:[%s1 + $0xc0] sm:$0xf]
  %v414 = vld [vmem:[%s1 + $0xc4] sm:$0xf]
  %v415 = vld [vmem:[%s1 + $0xc8] sm:$0xf]
  %v416 = vld [vmem:[%s1 + $0xcc] sm:$0xf]
  %v417 = vld [vmem:[%s1 + $0xd0] sm:$0xf]
  %v418 = vld [vmem:[%s1 + $0xd4] sm:$0xf]
  %v419 = vld [vmem:[%s1 + $0xd8] sm:$0xf]
  %v420 = vld [vmem:[%s1 + $0xdc] sm:$0xf]
  %v421 = vld [vmem:[%s1 + $0xe0] sm:$0xf]
  %v422 = vld [vmem:[%s1 + $0xe4] sm:$0xf]
  %v423 = vld [vmem:[%s1 + $0xe8] sm:$0xf]
  %v424 = vld [vmem:[%s1 + $0xec] sm:$0xf]
  %v425 = vld [vmem:[%s1 + $0xf0] sm:$0xf]
  %v426 = vld [vmem:[%s1 + $0xf4] sm:$0xf]
  %v427 = vld [vmem:[%s1 + $0xf8] sm:$0xf]
  %v428 = vld [vmem:[%s1 + $0xfc] sm:$0xf]
  %v429 = vld [vmem:[%s1 + $0x100] sm:$0xf]
  %v430 = vld [vmem:[%s1 + $0x104] sm:$0xf]
  %v431 = vld [vmem:[%s1 + $0x108] sm:$0xf]
  %v432 = vld [vmem:[%s1 + $0x10c] sm:$0xf]
  %v433 = vld [vmem:[%s1 + $0x110] sm:$0xf]
  %v434 = vld [vmem:[%s1 + $0x114] sm:$0xf]
  %v435 = vld [vmem:[%s1 + $0x118] sm:$0xf]
  %v436 = vld [vmem:[%s1 + $0x11c] sm:$0xf]
  %v437 = vld [vmem:[%s1 + $0x120] sm:$0xf]
  %v438 = vld [vmem:[%s1 + $0x124] sm:$0xf]
  %v439 = vld [vmem:[%s1 + $0x128] sm:$0xf]
  %v440 = vld [vmem:[%s1 + $0x12c] sm:$0xf]
  %v441 = vld [vmem:[%s1 + $0x130] sm:$0xf]
  %v442 = vld [vmem:[%s1 + $0x134] sm:$0xf]
  %v443 = vld [vmem:[%s1 + $0x138] sm:$0xf]
  %v444 = vld [vmem:[%s1 + $0x13c] sm:$0xf]
  %v445 = vld [vmem:[%s1 + $0x140] sm:$0xf]
  %v446 = vld [vmem:[%s1 + $0x144] sm:$0xf]
  %v447 = vld [vmem:[%s1 + $0x148] sm:$0xf]
  %v448 = vld [vmem:[%s1 + $0x14c] sm:$0xf]
  %v449 = vld [vmem:[%s1 + $0x150] sm:$0xf]
  %v450 = vld [vmem:[%s1 + $0x154] sm:$0xf]
  %v451 = vld [vmem:[%s1 + $0x158] sm:$0xf]
  %v452 = vld [vmem:[%s1 + $0x15c] sm:$0xf]
  %v453 = vld [vmem:[%s1 + $0x160] sm:$0xf]
  %v454 = vld [vmem:[%s1 + $0x164] sm:$0xf]
  %v455 = vld [vmem:[%s1 + $0x168] sm:$0xf]
  %v456 = vld [vmem:[%s1 + $0x16c] sm:$0xf]
  %v457 = vld [vmem:[%s1 + $0x170] sm:$0xf]
  %v458 = vld [vmem:[%s1 + $0x174] sm:$0xf]
  %v459 = vld [vmem:[%s1 + $0x178] sm:$0xf]
  %v460 = vld [vmem:[%s1 + $0x17c] sm:$0xf]
  %v461 = vld [vmem:[%s1 + $0x180] sm:$0xf]
  %v462 = vld [vmem:[%s1 + $0x184] sm:$0xf]
  %v463 = vld [vmem:[%s1 + $0x188] sm:$0xf]
  %v464 = vld [vmem:[%s1 + $0x18c] sm:$0xf]
  %v465 = vld [vmem:[%s1 + $0x190] sm:$0xf]
  %v466 = vld [vmem:[%s1 + $0x194] sm:$0xf]
  %v467 = vld [vmem:[%s1 + $0x198] sm:$0xf]
  %v468 = vld [vmem:[%s1 + $0x19c] sm:$0xf]
  %v469 = vld [vmem:[%s1 + $0x1a0] sm:$0xf]
  %v470 = vld [vmem:[%s1 + $0x1a4] sm:$0xf]
  %v471 = vld [vmem:[%s1 + $0x1a8] sm:$0xf]
  %v472 = vld [vmem:[%s1 + $0x1ac] sm:$0xf]
  %v473 = vld [vmem:[%s1 + $0x1b0] sm:$0xf]
  %v474 = vld [vmem:[%s1 + $0x1b4] sm:$0xf]
  %v475 = vld [vmem:[%s1 + $0x1b8] sm:$0xf]
  %v476 = vld [vmem:[%s1 + $0x1bc] sm:$0xf]
  %v477 = vld [vmem:[%s1 + $0x1c0] sm:$0xf]
  %v478 = vld [vmem:[%s1 + $0x1c4] sm:$0xf]
  %v479 = vld [vmem:[%s1 + $0x1c8] sm:$0xf]
  %v480 = vld [vmem:[%s1 + $0x1cc] sm:$0xf]
  %v481 = vld [vmem:[%s1 + $0x1d0] sm:$0xf]
  %v482 = vld [vmem:[%s1 + $0x1d4] sm:$0xf]
  %v483 = vld [vmem:[%s1 + $0x1d8] sm:$0xf]
  %v484 = vld [vmem:[%s1 + $0x1dc] sm:$0xf]
  %v485 = vld [vmem:[%s1 + $0x1e0] sm:$0xf]
  %v486 = vld [vmem:[%s1 + $0x1e4] sm:$0xf]
  %v487 = vld [vmem:[%s1 + $0x1e8] sm:$0xf]
  %v488 = vld [vmem:[%s1 + $0x1ec] sm:$0xf]
  %v489 = vld [vmem:[%s1 + $0x1f0] sm:$0xf]
  %v490 = vld [vmem:[%s1 + $0x1f4] sm:$0xf]
  %v491 = vld [vmem:[%s1 + $0x1f8] sm:$0xf]
  %v492 = vld [vmem:[%s1 + $0x1fc] sm:$0xf]
  %v493 = vld [vmem:[%s1 + $0x200] sm:$0xf]
  %v494 = vld [vmem:[%s1 + $0x204] sm:$0xf]
  %v495 = vld [vmem:[%s1 + $0x208] sm:$0xf]
  %v496 = vld [vmem:[%s1 + $0x20c] sm:$0xf]
  %v497 = vld [vmem:[%s1 + $0x210] sm:$0xf]
  %v498 = vld [vmem:[%s1 + $0x214] sm:$0xf]
  %v499 = vld [vmem:[%s1 + $0x218] sm:$0xf]
  %v500 = vld [vmem:[%s1 + $0x21c] sm:$0xf]
  %v501 = vld [vmem:[%s1 + $0x220] sm:$0xf]
  %v502 = vld [vmem:[%s1 + $0x224] sm:$0xf]
  %v503 = vld [vmem:[%s1 + $0x228] sm:$0xf]
  %v504 = vld [vmem:[%s1 + $0x22c] sm:$0xf]
  %v505 = vld [vmem:[%s1 + $0x230] sm:$0xf]
  %v506 = vld [vmem:[%s1 + $0x234] sm:$0xf]
  %v507 = vld [vmem:[%s1 + $0x238] sm:$0xf]
  %v508 = vld [vmem:[%s1 + $0x23c] sm:$0xf]
  %v754 = vunpack.c.l.b16 %v120
  %v755 = vunpack.c.h.b16 %v120
  %v756 = vunpack.c.l.b16 %v121
  %v757 = vunpack.c.h.b16 %v121
  %v758 = vunpack.c.l.b16 %v122
  %v759 = vunpack.c.h.b16 %v122
  %v760 = vunpack.c.l.b16 %v123
  %v761 = vunpack.c.h.b16 %v123
  %v762 = vunpack.c.l.b16 %v124
  %v763 = vunpack.c.l.b16 %v125
  %v764 = vunpack.c.h.b16 %v125
  %v765 = vunpack.c.l.b16 %v126
  %v766 = vunpack.c.h.b16 %v126
  %v767 = vunpack.c.l.b16 %v127
  %v768 = vunpack.c.h.b16 %v127
  %v769 = vunpack.c.l.b16 %v128
  %v770 = vunpack.c.h.b16 %v128
  %v771 = vunpack.c.l.b16 %v129
  %v772 = vunpack.c.l.b16 %v130
  %v773 = vunpack.c.h.b16 %v130
  %v774 = vunpack.c.l.b16 %v131
  %v775 = vunpack.c.h.b16 %v131
  %v776 = vunpack.c.l.b16 %v132
  %v777 = vunpack.c.h.b16 %v132
  %v778 = vunpack.c.l.b16 %v133
  %v779 = vunpack.c.h.b16 %v133
  %v780 = vunpack.c.l.b16 %v134
  %v781 = vunpack.c.l.b16 %v135
  %v782 = vunpack.c.h.b16 %v135
  %v783 = vunpack.c.l.b16 %v136
  %v784 = vunpack.c.h.b16 %v136
  %v785 = vunpack.c.l.b16 %v137
  %v786 = vunpack.c.h.b16 %v137
  %v787 = vunpack.c.l.b16 %v138
  %v788 = vunpack.c.h.b16 %v138
  %v789 = vunpack.c.l.b16 %v139
  %v790 = vunpack.c.l.b16 %v140
  %v791 = vunpack.c.h.b16 %v140
  %v792 = vunpack.c.l.b16 %v141
  %v793 = vunpack.c.h.b16 %v141
  %v794 = vunpack.c.l.b16 %v142
  %v795 = vunpack.c.h.b16 %v142
  %v796 = vunpack.c.l.b16 %v143
  %v797 = vunpack.c.h.b16 %v143
  %v798 = vunpack.c.l.b16 %v144
  %v799 = vunpack.c.l.b16 %v145
  %v800 = vunpack.c.h.b16 %v145
  %v801 = vunpack.c.l.b16 %v146
  %v802 = vunpack.c.h.b16 %v146
  %v803 = vunpack.c.l.b16 %v147
  %v804 = vunpack.c.h.b16 %v147
  %v805 = vunpack.c.l.b16 %v148
  %v806 = vunpack.c.h.b16 %v148
  %v807 = vunpack.c.l.b16 %v149
  %v808 = vunpack.c.l.b16 %v150
  %v809 = vunpack.c.h.b16 %v150
  %v810 = vunpack.c.l.b16 %v151
  %v811 = vunpack.c.h.b16 %v151
  %v812 = vunpack.c.l.b16 %v152
  %v813 = vunpack.c.h.b16 %v152
  %v814 = vunpack.c.l.b16 %v153
  %v815 = vunpack.c.h.b16 %v153
  %v816 = vunpack.c.l.b16 %v154
  %v817 = vunpack.c.l.b16 %v155
  %v818 = vunpack.c.h.b16 %v155
  %v819 = vunpack.c.l.b16 %v156
  %v820 = vunpack.c.h.b16 %v156
  %v821 = vunpack.c.l.b16 %v157
  %v822 = vunpack.c.h.b16 %v157
  %v823 = vunpack.c.l.b16 %v158
  %v824 = vunpack.c.h.b16 %v158
  %v825 = vunpack.c.l.b16 %v159
  %v826 = vunpack.c.l.b16 %v160
  %v827 = vunpack.c.h.b16 %v160
  %v828 = vunpack.c.l.b16 %v161
  %v829 = vunpack.c.h.b16 %v161
  %v830 = vunpack.c.l.b16 %v162
  %v831 = vunpack.c.h.b16 %v162
  %v832 = vunpack.c.l.b16 %v163
  %v833 = vunpack.c.h.b16 %v163
  %v834 = vunpack.c.l.b16 %v164
  %v835 = vunpack.c.l.b16 %v165
  %v836 = vunpack.c.h.b16 %v165
  %v837 = vunpack.c.l.b16 %v166
  %v838 = vunpack.c.h.b16 %v166
  %v839 = vunpack.c.l.b16 %v167
  %v840 = vunpack.c.h.b16 %v167
  %v841 = vunpack.c.l.b16 %v168
  %v842 = vunpack.c.h.b16 %v168
  %v843 = vunpack.c.l.b16 %v169
  %v844 = vunpack.c.l.b16 %v170
  %v845 = vunpack.c.h.b16 %v170
  %v846 = vunpack.c.l.b16 %v171
  %v847 = vunpack.c.h.b16 %v171
  %v848 = vunpack.c.l.b16 %v172
  %v849 = vunpack.c.h.b16 %v172
  %v850 = vunpack.c.l.b16 %v173
  %v851 = vunpack.c.h.b16 %v173
  %v852 = vunpack.c.l.b16 %v174
  %v853 = vunpack.c.l.b16 %v175
  %v854 = vunpack.c.h.b16 %v175
  %v855 = vunpack.c.l.b16 %v176
  %v856 = vunpack.c.h.b16 %v176
  %v857 = vunpack.c.l.b16 %v177
  %v858 = vunpack.c.h.b16 %v177
  %v859 = vunpack.c.l.b16 %v178
  %v860 = vunpack.c.h.b16 %v178
  %v861 = vunpack.c.l.b16 %v179
  %v862 = vunpack.c.l.b16 %v180
  %v863 = vunpack.c.h.b16 %v180
  %v864 = vunpack.c.l.b16 %v181
  %v865 = vunpack.c.h.b16 %v181
  %v866 = vunpack.c.l.b16 %v182
  %v867 = vunpack.c.h.b16 %v182
  %v868 = vunpack.c.l.b16 %v183
  %v869 = vunpack.c.h.b16 %v183
  %v870 = vunpack.c.l.b16 %v184
  %v871 = vunpack.c.l.b16 %v185
  %v872 = vunpack.c.h.b16 %v185
  %v873 = vunpack.c.l.b16 %v186
  %v874 = vunpack.c.h.b16 %v186
  %v875 = vunpack.c.l.b16 %v187
  %v876 = vunpack.c.h.b16 %v187
  %v877 = vunpack.c.l.b16 %v188
  %v878 = vunpack.c.h.b16 %v188
  %v879 = vunpack.c.l.b16 %v189
  %v880 = vunpack.c.l.b16 %v190
  %v881 = vunpack.c.h.b16 %v190
  %v882 = vunpack.c.l.b16 %v191
  %v883 = vunpack.c.h.b16 %v191
  %v884 = vunpack.c.l.b16 %v192
  %v885 = vunpack.c.h.b16 %v192
  %v886 = vunpack.c.l.b16 %v193
  %v887 = vunpack.c.h.b16 %v193
  %v888 = vunpack.c.l.b16 %v194
  %v889 = vunpack.c.l.b16 %v195
  %v890 = vunpack.c.h.b16 %v195
  %v891 = vunpack.c.l.b16 %v196
  %v892 = vunpack.c.h.b16 %v196
  %v893 = vunpack.c.l.b16 %v197
  %v894 = vunpack.c.h.b16 %v197
  %v895 = vunpack.c.l.b16 %v198
  %v896 = vunpack.c.h.b16 %v198
  %v897 = vunpack.c.l.b16 %v199
  %v898 = vunpack.c.l.b16 %v200
  %v899 = vunpack.c.h.b16 %v200
  %v900 = vunpack.c.l.b16 %v201
  %v901 = vunpack.c.h.b16 %v201
  %v902 = vunpack.c.l.b16 %v202
  %v903 = vunpack.c.h.b16 %v202
  %v904 = vunpack.c.l.b16 %v203
  %v905 = vunpack.c.h.b16 %v203
  %v906 = vunpack.c.l.b16 %v204
  %v907 = vunpack.c.l.b16 %v205
  %v908 = vunpack.c.h.b16 %v205
  %v909 = vunpack.c.l.b16 %v206
  %v910 = vunpack.c.h.b16 %v206
  %v911 = vunpack.c.l.b16 %v207
  %v912 = vunpack.c.h.b16 %v207
  %v913 = vunpack.c.l.b16 %v208
  %v914 = vunpack.c.h.b16 %v208
  %v915 = vunpack.c.l.b16 %v209
  %v916 = vunpack.c.l.b16 %v210
  %v917 = vunpack.c.h.b16 %v210
  %v918 = vunpack.c.l.b16 %v211
  %v919 = vunpack.c.h.b16 %v211
  %v920 = vunpack.c.l.b16 %v212
  %v921 = vunpack.c.h.b16 %v212
  %v922 = vunpack.c.l.b16 %v213
  %v923 = vunpack.c.h.b16 %v213
  %v924 = vunpack.c.l.b16 %v214
  %v925 = vunpack.c.l.b16 %v215
  %v926 = vunpack.c.h.b16 %v215
  %v927 = vunpack.c.l.b16 %v216
  %v928 = vunpack.c.h.b16 %v216
  %v929 = vunpack.c.l.b16 %v217
  %v930 = vunpack.c.h.b16 %v217
  %v931 = vunpack.c.l.b16 %v218
  %v932 = vunpack.c.h.b16 %v218
  %v933 = vunpack.c.l.b16 %v219
  %v934 = vunpack.c.l.b16 %v220
  %v935 = vunpack.c.h.b16 %v220
  %v936 = vunpack.c.l.b16 %v221
  %v937 = vunpack.c.h.b16 %v221
  %v938 = vunpack.c.l.b16 %v222
  %v939 = vunpack.c.h.b16 %v222
  %v940 = vunpack.c.l.b16 %v223
  %v941 = vunpack.c.h.b16 %v223
  %v942 = vunpack.c.l.b16 %v224
  %v943 = vunpack.c.l.b16 %v225
  %v944 = vunpack.c.h.b16 %v225
  %v945 = vunpack.c.l.b16 %v226
  %v946 = vunpack.c.h.b16 %v226
  %v947 = vunpack.c.l.b16 %v227
  %v948 = vunpack.c.h.b16 %v227
  %v949 = vunpack.c.l.b16 %v228
  %v950 = vunpack.c.h.b16 %v228
  %v951 = vunpack.c.l.b16 %v229
  %v952 = vunpack.c.l.b16 %v230
  %v953 = vunpack.c.h.b16 %v230
  %v954 = vunpack.c.l.b16 %v231
  %v955 = vunpack.c.h.b16 %v231
  %v956 = vunpack.c.l.b16 %v232
  %v957 = vunpack.c.h.b16 %v232
  %v958 = vunpack.c.l.b16 %v233
  %v959 = vunpack.c.h.b16 %v233
  %v960 = vunpack.c.l.b16 %v234
  %v961 = vunpack.c.l.b16 %v235
  %v962 = vunpack.c.h.b16 %v235
  %v963 = vunpack.c.l.b16 %v236
  %v964 = vunpack.c.h.b16 %v236
  %v965 = vunpack.c.l.b16 %v237
  %v966 = vunpack.c.h.b16 %v237
  %v967 = vunpack.c.l.b16 %v238
  %v968 = vunpack.c.h.b16 %v238
  %v969 = vunpack.c.l.b16 %v239
  %v970 = vunpack.c.l.b16 %v240
  %v971 = vunpack.c.h.b16 %v240
  %v972 = vunpack.c.l.b16 %v241
  %v973 = vunpack.c.h.b16 %v241
  %v974 = vunpack.c.l.b16 %v242
  %v975 = vunpack.c.h.b16 %v242
  %v976 = vunpack.c.l.b16 %v243
  %v977 = vunpack.c.h.b16 %v243
  %v978 = vunpack.c.l.b16 %v244
  %v979 = vunpack.c.l.b16 %v245
  %v980 = vunpack.c.h.b16 %v245
  %v981 = vunpack.c.l.b16 %v246
  %v982 = vunpack.c.h.b16 %v246
  %v983 = vunpack.c.l.b16 %v247
  %v984 = vunpack.c.h.b16 %v247
  %v985 = vunpack.c.l.b16 %v248
  %v986 = vunpack.c.h.b16 %v248
  %v987 = vunpack.c.l.b16 %v249
  %v988 = vunpack.c.l.b16 %v250
  %v989 = vunpack.c.h.b16 %v250
  %v990 = vunpack.c.l.b16 %v251
  %v991 = vunpack.c.h.b16 %v251
  %v992 = vunpack.c.l.b16 %v252
  %v993 = vunpack.c.h.b16 %v252
  %v994 = vunpack.c.l.b16 %v253
  %v995 = vunpack.c.h.b16 %v253
  %v996 = vunpack.c.l.b16 %v254
  %v997 = vunpack.c.l.b16 %v255
  %v998 = vunpack.c.h.b16 %v255
  %v999 = vunpack.c.l.b16 %v256
  %v1000 = vunpack.c.h.b16 %v256
  %v1001 = vunpack.c.l.b16 %v257
  %v1002 = vunpack.c.h.b16 %v257
  %v1003 = vunpack.c.l.b16 %v258
  %v1004 = vunpack.c.h.b16 %v258
  %v1005 = vunpack.c.l.b16 %v259
  %v1006 = vunpack.c.l.b16 %v260
  %v1007 = vunpack.c.h.b16 %v260
  %v1008 = vunpack.c.l.b16 %v261
  %v1009 = vunpack.c.h.b16 %v261
  %v1010 = vunpack.c.l.b16 %v262
  %v1011 = vunpack.c.h.b16 %v262
  %v1012 = vunpack.c.l.b16 %v263
  %v1013 = vunpack.c.h.b16 %v263
  %v1014 = vunpack.c.l.b16 %v264
  %v1015 = vunpack.c.l.b16 %v265
  %v1016 = vunpack.c.h.b16 %v265
  %v1017 = vunpack.c.l.b16 %v266
  %v1018 = vunpack.c.h.b16 %v266
  %v1019 = vunpack.c.l.b16 %v267
  %v1020 = vunpack.c.h.b16 %v267
  %v1021 = vunpack.c.l.b16 %v268
  %v1022 = vunpack.c.h.b16 %v268
  %v1023 = vunpack.c.l.b16 %v269
  %v1024 = vunpack.c.l.b16 %v270
  %v1025 = vunpack.c.h.b16 %v270
  %v1026 = vunpack.c.l.b16 %v271
  %v1027 = vunpack.c.h.b16 %v271
  %v1028 = vunpack.c.l.b16 %v272
  %v1029 = vunpack.c.h.b16 %v272
  %v1030 = vunpack.c.l.b16 %v273
  %v1031 = vunpack.c.h.b16 %v273
  %v1032 = vunpack.c.l.b16 %v274
  %v1033 = vunpack.c.l.b16 %v275
  %v1034 = vunpack.c.h.b16 %v275
  %v1035 = vunpack.c.l.b16 %v276
  %v1036 = vunpack.c.h.b16 %v276
  %v1037 = vunpack.c.l.b16 %v277
  %v1038 = vunpack.c.h.b16 %v277
  %v1039 = vunpack.c.l.b16 %v278
  %v1040 = vunpack.c.h.b16 %v278
  %v1041 = vunpack.c.l.b16 %v279
  %v1042 = vunpack.c.l.b16 %v280
  %v1043 = vunpack.c.h.b16 %v280
  %v1044 = vunpack.c.l.b16 %v281
  %v1045 = vunpack.c.h.b16 %v281
  %v1046 = vunpack.c.l.b16 %v282
  %v1047 = vunpack.c.h.b16 %v282
  %v1048 = vunpack.c.l.b16 %v283
  %v1049 = vunpack.c.h.b16 %v283
  %v1050 = vunpack.c.l.b16 %v284
  %v1051 = vunpack.c.l.b16 %v285
  %v1052 = vunpack.c.h.b16 %v285
  %v1053 = vunpack.c.l.b16 %v286
  %v1054 = vunpack.c.h.b16 %v286
  %v1055 = vunpack.c.l.b16 %v287
  %v1056 = vunpack.c.h.b16 %v287
  %v1057 = vunpack.c.l.b16 %v288
  %v1058 = vunpack.c.h.b16 %v288
  %v1059 = vunpack.c.l.b16 %v289
  %v1060 = vunpack.c.l.b16 %v290
  %v1061 = vunpack.c.h.b16 %v290
  %v1062 = vunpack.c.l.b16 %v291
  %v1063 = vunpack.c.h.b16 %v291
  %v1064 = vunpack.c.l.b16 %v292
  %v1065 = vunpack.c.h.b16 %v292
  %v1066 = vunpack.c.l.b16 %v293
  %v1067 = vunpack.c.h.b16 %v293
  %v1068 = vunpack.c.l.b16 %v294
  %v1069 = vunpack.c.l.b16 %v295
  %v1070 = vunpack.c.h.b16 %v295
  %v1071 = vunpack.c.l.b16 %v296
  %v1072 = vunpack.c.h.b16 %v296
  %v1073 = vunpack.c.l.b16 %v297
  %v1074 = vunpack.c.h.b16 %v297
  %v1075 = vunpack.c.l.b16 %v298
  %v1076 = vunpack.c.h.b16 %v298
  %v1077 = vunpack.c.l.b16 %v299
  %v1078 = vunpack.c.l.b16 %v300
  %v1079 = vunpack.c.h.b16 %v300
  %v1080 = vunpack.c.l.b16 %v301
  %v1081 = vunpack.c.h.b16 %v301
  %v1082 = vunpack.c.l.b16 %v302
  %v1083 = vunpack.c.h.b16 %v302
  %v1084 = vunpack.c.l.b16 %v303
  %v1085 = vunpack.c.h.b16 %v303
  %v1086 = vunpack.c.l.b16 %v304
  %v1087 = vunpack.c.l.b16 %v305
  %v1088 = vunpack.c.h.b16 %v305
  %v1089 = vunpack.c.l.b16 %v306
  %v1090 = vunpack.c.h.b16 %v306
  %v1091 = vunpack.c.l.b16 %v307
  %v1092 = vunpack.c.h.b16 %v307
  %v1093 = vunpack.c.l.b16 %v308
  %v1094 = vunpack.c.h.b16 %v308
  %v1095 = vunpack.c.l.b16 %v309
  %v1096 = vunpack.c.l.b16 %v310
  %v1097 = vunpack.c.h.b16 %v310
  %v1098 = vunpack.c.l.b16 %v311
  %v1099 = vunpack.c.h.b16 %v311
  %v1100 = vunpack.c.l.b16 %v312
  %v1101 = vunpack.c.h.b16 %v312
  %v1102 = vunpack.c.l.b16 %v313
  %v1103 = vunpack.c.h.b16 %v313
  %v1104 = vunpack.c.l.b16 %v314
  %v1105 = vunpack.c.l.b16 %v315
  %v1106 = vunpack.c.h.b16 %v315
  %v1107 = vunpack.c.l.b16 %v316
  %v1108 = vunpack.c.h.b16 %v316
  %v1109 = vunpack.c.l.b16 %v317
  %v1110 = vunpack.c.h.b16 %v317
  %v1111 = vunpack.c.l.b16 %v318
  %v1112 = vunpack.c.h.b16 %v318
  %v1113 = vunpack.c.l.b16 %v319
  %v1114 = vunpack.c.l.b16 %v320
  %v1115 = vunpack.c.h.b16 %v320
  %v1116 = vunpack.c.l.b16 %v321
  %v1117 = vunpack.c.h.b16 %v321
  %v1118 = vunpack.c.l.b16 %v322
  %v1119 = vunpack.c.h.b16 %v322
  %v1120 = vunpack.c.l.b16 %v323
  %v1121 = vunpack.c.h.b16 %v323
  %v1122 = vunpack.c.l.b16 %v324
  %v1123 = vunpack.c.l.b16 %v325
  %v1124 = vunpack.c.h.b16 %v325
  %v1125 = vunpack.c.l.b16 %v326
  %v1126 = vunpack.c.h.b16 %v326
  %v1127 = vunpack.c.l.b16 %v327
  %v1128 = vunpack.c.h.b16 %v327
  %v1129 = vunpack.c.l.b16 %v328
  %v1130 = vunpack.c.h.b16 %v328
  %v1131 = vunpack.c.l.b16 %v329
  %v1132 = vunpack.c.l.b16 %v330
  %v1133 = vunpack.c.h.b16 %v330
  %v1134 = vunpack.c.l.b16 %v331
  %v1135 = vunpack.c.h.b16 %v331
  %v1136 = vunpack.c.l.b16 %v332
  %v1137 = vunpack.c.h.b16 %v332
  %v1138 = vunpack.c.l.b16 %v333
  %v1139 = vunpack.c.h.b16 %v333
  %v1140 = vunpack.c.l.b16 %v334
  %v1141 = vunpack.c.l.b16 %v335
  %v1142 = vunpack.c.h.b16 %v335
  %v1143 = vunpack.c.l.b16 %v336
  %v1144 = vunpack.c.h.b16 %v336
  %v1145 = vunpack.c.l.b16 %v337
  %v1146 = vunpack.c.h.b16 %v337
  %v1147 = vunpack.c.l.b16 %v338
  %v1148 = vunpack.c.h.b16 %v338
  %v1149 = vunpack.c.l.b16 %v339
  %v1150 = vunpack.c.l.b16 %v340
  %v1151 = vunpack.c.h.b16 %v340
  %v1152 = vunpack.c.l.b16 %v341
  %v1153 = vunpack.c.h.b16 %v341
  %v1154 = vunpack.c.l.b16 %v342
  %v1155 = vunpack.c.h.b16 %v342
  %v1156 = vunpack.c.l.b16 %v343
  %v1157 = vunpack.c.h.b16 %v343
  %v1158 = vunpack.c.l.b16 %v344
  %v1159 = vunpack.c.l.b16 %v345
  %v1160 = vunpack.c.h.b16 %v345
  %v1161 = vunpack.c.l.b16 %v346
  %v1162 = vunpack.c.h.b16 %v346
  %v1163 = vunpack.c.l.b16 %v347
  %v1164 = vunpack.c.h.b16 %v347
  %v1165 = vunpack.c.l.b16 %v348
  %v1166 = vunpack.c.h.b16 %v348
  %v1167 = vunpack.c.l.b16 %v349
  %v1168 = vunpack.c.l.b16 %v350
  %v1169 = vunpack.c.h.b16 %v350
  %v1170 = vunpack.c.l.b16 %v351
  %v1171 = vunpack.c.h.b16 %v351
  %v1172 = vunpack.c.l.b16 %v352
  %v1173 = vunpack.c.h.b16 %v352
  %v1174 = vunpack.c.l.b16 %v353
  %v1175 = vunpack.c.h.b16 %v353
  %v1176 = vunpack.c.l.b16 %v354
  %v1177 = vunpack.c.l.b16 %v355
  %v1178 = vunpack.c.h.b16 %v355
  %v1179 = vunpack.c.l.b16 %v356
  %v1180 = vunpack.c.h.b16 %v356
  %v1181 = vunpack.c.l.b16 %v357
  %v1182 = vunpack.c.h.b16 %v357
  %v1183 = vunpack.c.l.b16 %v358
  %v1184 = vunpack.c.h.b16 %v358
  %v1185 = vunpack.c.l.b16 %v359
  %v1186 = vunpack.c.l.b16 %v360
  %v1187 = vunpack.c.h.b16 %v360
  %v1188 = vunpack.c.l.b16 %v361
  %v1189 = vunpack.c.h.b16 %v361
  %v1190 = vunpack.c.l.b16 %v362
  %v1191 = vunpack.c.h.b16 %v362
  %v1192 = vunpack.c.l.b16 %v363
  %v1193 = vunpack.c.h.b16 %v363
  %v1194 = vunpack.c.l.b16 %v364
  %v1195 = vpack.c.b16 %v763, %v754
  %v1196 = vpack.c.b16 %v764, %v755
  %v1197 = vpack.c.b16 %v765, %v756
  %v1198 = vpack.c.b16 %v766, %v757
  %v1199 = vpack.c.b16 %v767, %v758
  %v1200 = vpack.c.b16 %v768, %v759
  %v1201 = vpack.c.b16 %v769, %v760
  %v1202 = vpack.c.b16 %v770, %v761
  %v1203 = vpack.c.b16 %v771, %v762
  %v1204 = vpack.c.b16 %v781, %v772
  %v1205 = vpack.c.b16 %v782, %v773
  %v1206 = vpack.c.b16 %v783, %v774
  %v1207 = vpack.c.b16 %v784, %v775
  %v1208 = vpack.c.b16 %v785, %v776
  %v1209 = vpack.c.b16 %v786, %v777
  %v1210 = vpack.c.b16 %v787, %v778
  %v1211 = vpack.c.b16 %v788, %v779
  %v1212 = vpack.c.b16 %v789, %v780
  %v1213 = vpack.c.b16 %v799, %v790
  %v1214 = vpack.c.b16 %v800, %v791
  %v1215 = vpack.c.b16 %v801, %v792
  %v1216 = vpack.c.b16 %v802, %v793
  %v1217 = vpack.c.b16 %v803, %v794
  %v1218 = vpack.c.b16 %v804, %v795
  %v1219 = vpack.c.b16 %v805, %v796
  %v1220 = vpack.c.b16 %v806, %v797
  %v1221 = vpack.c.b16 %v807, %v798
  %v1222 = vpack.c.b16 %v817, %v808
  %v1223 = vpack.c.b16 %v818, %v809
  %v1224 = vpack.c.b16 %v819, %v810
  %v1225 = vpack.c.b16 %v820, %v811
  %v1226 = vpack.c.b16 %v821, %v812
  %v1227 = vpack.c.b16 %v822, %v813
  %v1228 = vpack.c.b16 %v823, %v814
  %v1229 = vpack.c.b16 %v824, %v815
  %v1230 = vpack.c.b16 %v825, %v816
  %v1231 = vpack.c.b16 %v835, %v826
  %v1232 = vpack.c.b16 %v836, %v827
  %v1233 = vpack.c.b16 %v837, %v828
  %v1234 = vpack.c.b16 %v838, %v829
  %v1235 = vpack.c.b16 %v839, %v830
  %v1236 = vpack.c.b16 %v840, %v831
  %v1237 = vpack.c.b16 %v841, %v832
  %v1238 = vpack.c.b16 %v842, %v833
  %v1239 = vpack.c.b16 %v843, %v834
  %v1240 = vpack.c.b16 %v853, %v844
  %v1241 = vpack.c.b16 %v854, %v845
  %v1242 = vpack.c.b16 %v855, %v846
  %v1243 = vpack.c.b16 %v856, %v847
  %v1244 = vpack.c.b16 %v857, %v848
  %v1245 = vpack.c.b16 %v858, %v849
  %v1246 = vpack.c.b16 %v859, %v850
  %v1247 = vpack.c.b16 %v860, %v851
  %v1248 = vpack.c.b16 %v861, %v852
  %v1249 = vpack.c.b16 %v871, %v862
  %v1250 = vpack.c.b16 %v872, %v863
  %v1251 = vpack.c.b16 %v873, %v864
  %v1252 = vpack.c.b16 %v874, %v865
  %v1253 = vpack.c.b16 %v875, %v866
  %v1254 = vpack.c.b16 %v876, %v867
  %v1255 = vpack.c.b16 %v877, %v868
  %v1256 = vpack.c.b16 %v878, %v869
  %v1257 = vpack.c.b16 %v879, %v870
  %v1258 = vpack.c.b16 %v889, %v880
  %v1259 = vpack.c.b16 %v890, %v881
  %v1260 = vpack.c.b16 %v891, %v882
  %v1261 = vpack.c.b16 %v892, %v883
  %v1262 = vpack.c.b16 %v893, %v884
  %v1263 = vpack.c.b16 %v894, %v885
  %v1264 = vpack.c.b16 %v895, %v886
  %v1265 = vpack.c.b16 %v896, %v887
  %v1266 = vpack.c.b16 %v897, %v888
  %v1267 = vpack.c.b16 %v907, %v898
  %v1268 = vpack.c.b16 %v908, %v899
  %v1269 = vpack.c.b16 %v909, %v900
  %v1270 = vpack.c.b16 %v910, %v901
  %v1271 = vpack.c.b16 %v911, %v902
  %v1272 = vpack.c.b16 %v912, %v903
  %v1273 = vpack.c.b16 %v913, %v904
  %v1274 = vpack.c.b16 %v914, %v905
  %v1275 = vpack.c.b16 %v915, %v906
  %v1276 = vpack.c.b16 %v925, %v916
  %v1277 = vpack.c.b16 %v926, %v917
  %v1278 = vpack.c.b16 %v927, %v918
  %v1279 = vpack.c.b16 %v928, %v919
  %v1280 = vpack.c.b16 %v929, %v920
  %v1281 = vpack.c.b16 %v930, %v921
  %v1282 = vpack.c.b16 %v931, %v922
  %v1283 = vpack.c.b16 %v932, %v923
  %v1284 = vpack.c.b16 %v933, %v924
  %v1285 = vpack.c.b16 %v943, %v934
  %v1286 = vpack.c.b16 %v944, %v935
  %v1287 = vpack.c.b16 %v945, %v936
  %v1288 = vpack.c.b16 %v946, %v937
  %v1289 = vpack.c.b16 %v947, %v938
  %v1290 = vpack.c.b16 %v948, %v939
  %v1291 = vpack.c.b16 %v949, %v940
  %v1292 = vpack.c.b16 %v950, %v941
  %v1293 = vpack.c.b16 %v951, %v942
  %v1294 = vpack.c.b16 %v961, %v952
  %v1295 = vpack.c.b16 %v962, %v953
  %v1296 = vpack.c.b16 %v963, %v954
  %v1297 = vpack.c.b16 %v964, %v955
  %v1298 = vpack.c.b16 %v965, %v956
  %v1299 = vpack.c.b16 %v966, %v957
  %v1300 = vpack.c.b16 %v967, %v958
  %v1301 = vpack.c.b16 %v968, %v959
  %v1302 = vpack.c.b16 %v969, %v960
  %v1303 = vpack.c.b16 %v979, %v970
  %v1304 = vpack.c.b16 %v980, %v971
  %v1305 = vpack.c.b16 %v981, %v972
  %v1306 = vpack.c.b16 %v982, %v973
  %v1307 = vpack.c.b16 %v983, %v974
  %v1308 = vpack.c.b16 %v984, %v975
  %v1309 = vpack.c.b16 %v985, %v976
  %v1310 = vpack.c.b16 %v986, %v977
  %v1311 = vpack.c.b16 %v987, %v978
  %v1312 = vpack.c.b16 %v997, %v988
  %v1313 = vpack.c.b16 %v998, %v989
  %v1314 = vpack.c.b16 %v999, %v990
  %v1315 = vpack.c.b16 %v1000, %v991
  %v1316 = vpack.c.b16 %v1001, %v992
  %v1317 = vpack.c.b16 %v1002, %v993
  %v1318 = vpack.c.b16 %v1003, %v994
  %v1319 = vpack.c.b16 %v1004, %v995
  %v1320 = vpack.c.b16 %v1005, %v996
  %v1321 = vpack.c.b16 %v1015, %v1006
  %v1322 = vpack.c.b16 %v1016, %v1007
  %v1323 = vpack.c.b16 %v1017, %v1008
  %v1324 = vpack.c.b16 %v1018, %v1009
  %v1325 = vpack.c.b16 %v1019, %v1010
  %v1326 = vpack.c.b16 %v1020, %v1011
  %v1327 = vpack.c.b16 %v1021, %v1012
  %v1328 = vpack.c.b16 %v1022, %v1013
  %v1329 = vpack.c.b16 %v1023, %v1014
  %v1330 = vpack.c.b16 %v1033, %v1024
  %v1331 = vpack.c.b16 %v1034, %v1025
  %v1332 = vpack.c.b16 %v1035, %v1026
  %v1333 = vpack.c.b16 %v1036, %v1027
  %v1334 = vpack.c.b16 %v1037, %v1028
  %v1335 = vpack.c.b16 %v1038, %v1029
  %v1336 = vpack.c.b16 %v1039, %v1030
  %v1337 = vpack.c.b16 %v1040, %v1031
  %v1338 = vpack.c.b16 %v1041, %v1032
  %v1339 = vpack.c.b16 %v1051, %v1042
  %v1340 = vpack.c.b16 %v1052, %v1043
  %v1341 = vpack.c.b16 %v1053, %v1044
  %v1342 = vpack.c.b16 %v1054, %v1045
  %v1343 = vpack.c.b16 %v1055, %v1046
  %v1344 = vpack.c.b16 %v1056, %v1047
  %v1345 = vpack.c.b16 %v1057, %v1048
  %v1346 = vpack.c.b16 %v1058, %v1049
  %v1347 = vpack.c.b16 %v1059, %v1050
  %v1348 = vpack.c.b16 %v1069, %v1060
  %v1349 = vpack.c.b16 %v1070, %v1061
  %v1350 = vpack.c.b16 %v1071, %v1062
  %v1351 = vpack.c.b16 %v1072, %v1063
  %v1352 = vpack.c.b16 %v1073, %v1064
  %v1353 = vpack.c.b16 %v1074, %v1065
  %v1354 = vpack.c.b16 %v1075, %v1066
  %v1355 = vpack.c.b16 %v1076, %v1067
  %v1356 = vpack.c.b16 %v1077, %v1068
  %v1357 = vpack.c.b16 %v1087, %v1078
  %v1358 = vpack.c.b16 %v1088, %v1079
  %v1359 = vpack.c.b16 %v1089, %v1080
  %v1360 = vpack.c.b16 %v1090, %v1081
  %v1361 = vpack.c.b16 %v1091, %v1082
  %v1362 = vpack.c.b16 %v1092, %v1083
  %v1363 = vpack.c.b16 %v1093, %v1084
  %v1364 = vpack.c.b16 %v1094, %v1085
  %v1365 = vpack.c.b16 %v1095, %v1086
  %v1366 = vpack.c.b16 %v1105, %v1096
  %v1367 = vpack.c.b16 %v1106, %v1097
  %v1368 = vpack.c.b16 %v1107, %v1098
  %v1369 = vpack.c.b16 %v1108, %v1099
  %v1370 = vpack.c.b16 %v1109, %v1100
  %v1371 = vpack.c.b16 %v1110, %v1101
  %v1372 = vpack.c.b16 %v1111, %v1102
  %v1373 = vpack.c.b16 %v1112, %v1103
  %v1374 = vpack.c.b16 %v1113, %v1104
  %v1375 = vpack.c.b16 %v1123, %v1114
  %v1376 = vpack.c.b16 %v1124, %v1115
  %v1377 = vpack.c.b16 %v1125, %v1116
  %v1378 = vpack.c.b16 %v1126, %v1117
  %v1379 = vpack.c.b16 %v1127, %v1118
  %v1380 = vpack.c.b16 %v1128, %v1119
  %v1381 = vpack.c.b16 %v1129, %v1120
  %v1382 = vpack.c.b16 %v1130, %v1121
  %v1383 = vpack.c.b16 %v1131, %v1122
  %v1384 = vpack.c.b16 %v1141, %v1132
  %v1385 = vpack.c.b16 %v1142, %v1133
  %v1386 = vpack.c.b16 %v1143, %v1134
  %v1387 = vpack.c.b16 %v1144, %v1135
  %v1388 = vpack.c.b16 %v1145, %v1136
  %v1389 = vpack.c.b16 %v1146, %v1137
  %v1390 = vpack.c.b16 %v1147, %v1138
  %v1391 = vpack.c.b16 %v1148, %v1139
  %v1392 = vpack.c.b16 %v1149, %v1140
  %v1393 = vpack.c.b16 %v1159, %v1150
  %v1394 = vpack.c.b16 %v1160, %v1151
  %v1395 = vpack.c.b16 %v1161, %v1152
  %v1396 = vpack.c.b16 %v1162, %v1153
  %v1397 = vpack.c.b16 %v1163, %v1154
  %v1398 = vpack.c.b16 %v1164, %v1155
  %v1399 = vpack.c.b16 %v1165, %v1156
  %v1400 = vpack.c.b16 %v1166, %v1157
  %v1401 = vpack.c.b16 %v1167, %v1158
  %v1402 = vpack.c.b16 %v1177, %v1168
  %v1403 = vpack.c.b16 %v1178, %v1169
  %v1404 = vpack.c.b16 %v1179, %v1170
  %v1405 = vpack.c.b16 %v1180, %v1171
  %v1406 = vpack.c.b16 %v1181, %v1172
  %v1407 = vpack.c.b16 %v1182, %v1173
  %v1408 = vpack.c.b16 %v1183, %v1174
  %v1409 = vpack.c.b16 %v1184, %v1175
  %v1410 = vpack.c.b16 %v1185, %v1176
  %v1411 = vpack.c.b16 %v1186, %v1186
  %v1412 = vpack.c.b16 %v1187, %v1187
  %v1413 = vpack.c.b16 %v1188, %v1188
  %v1414 = vpack.c.b16 %v1189, %v1189
  %v1415 = vpack.c.b16 %v1190, %v1190
  %v1416 = vpack.c.b16 %v1191, %v1191
  %v1417 = vpack.c.b16 %v1192, %v1192
  %v1418 = vpack.c.b16 %v1193, %v1193
  %v1419 = vpack.c.b16 %v1194, %v1194
  %v1789 = vunpack.c.l.b16 %v365
  %v1790 = vunpack.c.l.b16 %v366
  %v1791 = vunpack.c.l.b16 %v367
  %v1792 = vunpack.c.l.b16 %v368
  %v1793 = vunpack.c.l.b16 %v369
  %v1794 = vunpack.c.l.b16 %v370
  %v1795 = vunpack.c.l.b16 %v371
  %v1796 = vunpack.c.l.b16 %v372
  %v1797 = vunpack.c.l.b16 %v373
  %v1798 = vunpack.c.l.b16 %v374
  %v1799 = vunpack.c.l.b16 %v375
  %v1800 = vunpack.c.l.b16 %v376
  %v1801 = vunpack.c.l.b16 %v377
  %v1802 = vunpack.c.l.b16 %v378
  %v1803 = vunpack.c.l.b16 %v379
  %v1804 = vunpack.c.l.b16 %v380
  %v1805 = vunpack.c.l.b16 %v381
  %v1806 = vunpack.c.l.b16 %v382
  %v1807 = vunpack.c.l.b16 %v383
  %v1808 = vunpack.c.l.b16 %v384
  %v1809 = vunpack.c.l.b16 %v385
  %v1810 = vunpack.c.l.b16 %v386
  %v1811 = vunpack.c.l.b16 %v387
  %v1812 = vunpack.c.l.b16 %v388
  %v1813 = vunpack.c.l.b16 %v389
  %v1814 = vunpack.c.l.b16 %v390
  %v1815 = vunpack.c.l.b16 %v391
  %v1816 = vunpack.c.l.b16 %v392
  %v1817 = vunpack.c.l.b16 %v393
  %v1818 = vunpack.c.l.b16 %v394
  %v1819 = vunpack.c.l.b16 %v395
  %v1820 = vunpack.c.l.b16 %v396
  %v1821 = vunpack.c.l.b16 %v397
  %v1822 = vunpack.c.l.b16 %v398
  %v1823 = vunpack.c.l.b16 %v399
  %v1824 = vunpack.c.l.b16 %v400
  %v1825 = vunpack.c.l.b16 %v401
  %v1826 = vunpack.c.l.b16 %v402
  %v1827 = vunpack.c.l.b16 %v403
  %v1828 = vunpack.c.l.b16 %v404
  %v1829 = vunpack.c.l.b16 %v405
  %v1830 = vunpack.c.l.b16 %v406
  %v1831 = vunpack.c.l.b16 %v407
  %v1832 = vunpack.c.l.b16 %v408
  %v1833 = vunpack.c.l.b16 %v409
  %v1834 = vunpack.c.l.b16 %v410
  %v1835 = vunpack.c.l.b16 %v411
  %v1836 = vunpack.c.l.b16 %v412
  %v1837 = vunpack.c.l.b16 %v413
  %v1838 = vunpack.c.l.b16 %v414
  %v1839 = vunpack.c.l.b16 %v415
  %v1840 = vunpack.c.l.b16 %v416
  %v1841 = vunpack.c.l.b16 %v417
  %v1842 = vunpack.c.l.b16 %v418
  %v1843 = vunpack.c.l.b16 %v419
  %v1844 = vunpack.c.l.b16 %v420
  %v1845 = vunpack.c.l.b16 %v421
  %v1846 = vunpack.c.l.b16 %v422
  %v1847 = vunpack.c.l.b16 %v423
  %v1848 = vunpack.c.l.b16 %v424
  %v1849 = vunpack.c.l.b16 %v425
  %v1850 = vunpack.c.l.b16 %v426
  %v1851 = vunpack.c.l.b16 %v427
  %v1852 = vunpack.c.l.b16 %v428
  %v1853 = vunpack.c.l.b16 %v429
  %v1854 = vunpack.c.l.b16 %v430
  %v1855 = vunpack.c.l.b16 %v431
  %v1856 = vunpack.c.l.b16 %v432
  %v1857 = vunpack.c.l.b16 %v433
  %v1858 = vunpack.c.l.b16 %v434
  %v1859 = vunpack.c.l.b16 %v435
  %v1860 = vunpack.c.l.b16 %v436
  %v1861 = vunpack.c.l.b16 %v437
  %v1862 = vunpack.c.l.b16 %v438
  %v1863 = vunpack.c.l.b16 %v439
  %v1864 = vunpack.c.l.b16 %v440
  %v1865 = vunpack.c.l.b16 %v441
  %v1866 = vunpack.c.l.b16 %v442
  %v1867 = vunpack.c.l.b16 %v443
  %v1868 = vunpack.c.l.b16 %v444
  %v1869 = vunpack.c.l.b16 %v445
  %v1870 = vunpack.c.l.b16 %v446
  %v1871 = vunpack.c.l.b16 %v447
  %v1872 = vunpack.c.l.b16 %v448
  %v1873 = vunpack.c.l.b16 %v449
  %v1874 = vunpack.c.l.b16 %v450
  %v1875 = vunpack.c.l.b16 %v451
  %v1876 = vunpack.c.l.b16 %v452
  %v1877 = vunpack.c.l.b16 %v453
  %v1878 = vunpack.c.l.b16 %v454
  %v1879 = vunpack.c.l.b16 %v455
  %v1880 = vunpack.c.l.b16 %v456
  %v1881 = vunpack.c.l.b16 %v457
  %v1882 = vunpack.c.l.b16 %v458
  %v1883 = vunpack.c.l.b16 %v459
  %v1884 = vunpack.c.l.b16 %v460
  %v1885 = vunpack.c.l.b16 %v461
  %v1886 = vunpack.c.l.b16 %v462
  %v1887 = vunpack.c.l.b16 %v463
  %v1888 = vunpack.c.l.b16 %v464
  %v1889 = vunpack.c.l.b16 %v465
  %v1890 = vunpack.c.l.b16 %v466
  %v1891 = vunpack.c.l.b16 %v467
  %v1892 = vunpack.c.l.b16 %v468
  %v1893 = vunpack.c.l.b16 %v469
  %v1894 = vunpack.c.l.b16 %v470
  %v1895 = vunpack.c.l.b16 %v471
  %v1896 = vunpack.c.l.b16 %v472
  %v1897 = vunpack.c.l.b16 %v473
  %v1898 = vunpack.c.l.b16 %v474
  %v1899 = vunpack.c.l.b16 %v475
  %v1900 = vunpack.c.l.b16 %v476
  %v1901 = vunpack.c.l.b16 %v477
  %v1902 = vunpack.c.l.b16 %v478
  %v1903 = vunpack.c.l.b16 %v479
  %v1904 = vunpack.c.l.b16 %v480
  %v1905 = vunpack.c.l.b16 %v481
  %v1906 = vunpack.c.l.b16 %v482
  %v1907 = vunpack.c.l.b16 %v483
  %v1908 = vunpack.c.l.b16 %v484
  %v1909 = vunpack.c.l.b16 %v485
  %v1910 = vunpack.c.l.b16 %v486
  %v1911 = vunpack.c.l.b16 %v487
  %v1912 = vunpack.c.l.b16 %v488
  %v1913 = vunpack.c.l.b16 %v489
  %v1914 = vunpack.c.l.b16 %v490
  %v1915 = vunpack.c.l.b16 %v491
  %v1916 = vunpack.c.l.b16 %v492
  %v1917 = vunpack.c.l.b16 %v493
  %v1918 = vunpack.c.l.b16 %v494
  %v1919 = vunpack.c.l.b16 %v495
  %v1920 = vunpack.c.l.b16 %v496
  %v1921 = vunpack.c.l.b16 %v497
  %v1922 = vunpack.c.l.b16 %v498
  %v1923 = vunpack.c.l.b16 %v499
  %v1924 = vunpack.c.l.b16 %v500
  %v1925 = vunpack.c.l.b16 %v501
  %v1926 = vunpack.c.l.b16 %v502
  %v1927 = vunpack.c.l.b16 %v503
  %v1928 = vunpack.c.l.b16 %v504
  %v1929 = vunpack.c.l.b16 %v505
  %v1930 = vunpack.c.l.b16 %v506
  %v1931 = vunpack.c.l.b16 %v507
  %v1932 = vunpack.c.l.b16 %v508
  %v1933 = vpack.c.b16 %v1790, %v1789
  %v1934 = vpack.c.b16 %v1792, %v1791
  %v1935 = vpack.c.b16 %v1794, %v1793
  %v1936 = vpack.c.b16 %v1796, %v1795
  %v1937 = vpack.c.b16 %v1798, %v1797
  %v1938 = vpack.c.b16 %v1800, %v1799
  %v1939 = vpack.c.b16 %v1802, %v1801
  %v1940 = vpack.c.b16 %v1804, %v1803
  %v1941 = vpack.c.b16 %v1806, %v1805
  %v1942 = vpack.c.b16 %v1808, %v1807
  %v1943 = vpack.c.b16 %v1810, %v1809
  %v1944 = vpack.c.b16 %v1812, %v1811
  %v1945 = vpack.c.b16 %v1814, %v1813
  %v1946 = vpack.c.b16 %v1816, %v1815
  %v1947 = vpack.c.b16 %v1818, %v1817
  %v1948 = vpack.c.b16 %v1820, %v1819
  %v1949 = vpack.c.b16 %v1822, %v1821
  %v1950 = vpack.c.b16 %v1824, %v1823
  %v1951 = vpack.c.b16 %v1826, %v1825
  %v1952 = vpack.c.b16 %v1828, %v1827
  %v1953 = vpack.c.b16 %v1830, %v1829
  %v1954 = vpack.c.b16 %v1832, %v1831
  %v1955 = vpack.c.b16 %v1834, %v1833
  %v1956 = vpack.c.b16 %v1836, %v1835
  %v1957 = vpack.c.b16 %v1838, %v1837
  %v1958 = vpack.c.b16 %v1840, %v1839
  %v1959 = vpack.c.b16 %v1842, %v1841
  %v1960 = vpack.c.b16 %v1844, %v1843
  %v1961 = vpack.c.b16 %v1846, %v1845
  %v1962 = vpack.c.b16 %v1848, %v1847
  %v1963 = vpack.c.b16 %v1850, %v1849
  %v1964 = vpack.c.b16 %v1852, %v1851
  %v1965 = vpack.c.b16 %v1854, %v1853
  %v1966 = vpack.c.b16 %v1856, %v1855
  %v1967 = vpack.c.b16 %v1858, %v1857
  %v1968 = vpack.c.b16 %v1860, %v1859
  %v1969 = vpack.c.b16 %v1862, %v1861
  %v1970 = vpack.c.b16 %v1864, %v1863
  %v1971 = vpack.c.b16 %v1866, %v1865
  %v1972 = vpack.c.b16 %v1868, %v1867
  %v1973 = vpack.c.b16 %v1870, %v1869
  %v1974 = vpack.c.b16 %v1872, %v1871
  %v1975 = vpack.c.b16 %v1874, %v1873
  %v1976 = vpack.c.b16 %v1876, %v1875
  %v1977 = vpack.c.b16 %v1878, %v1877
  %v1978 = vpack.c.b16 %v1880, %v1879
  %v1979 = vpack.c.b16 %v1882, %v1881
  %v1980 = vpack.c.b16 %v1884, %v1883
  %v1981 = vpack.c.b16 %v1886, %v1885
  %v1982 = vpack.c.b16 %v1888, %v1887
  %v1983 = vpack.c.b16 %v1890, %v1889
  %v1984 = vpack.c.b16 %v1892, %v1891
  %v1985 = vpack.c.b16 %v1894, %v1893
  %v1986 = vpack.c.b16 %v1896, %v1895
  %v1987 = vpack.c.b16 %v1898, %v1897
  %v1988 = vpack.c.b16 %v1900, %v1899
  %v1989 = vpack.c.b16 %v1902, %v1901
  %v1990 = vpack.c.b16 %v1904, %v1903
  %v1991 = vpack.c.b16 %v1906, %v1905
  %v1992 = vpack.c.b16 %v1908, %v1907
  %v1993 = vpack.c.b16 %v1910, %v1909
  %v1994 = vpack.c.b16 %v1912, %v1911
  %v1995 = vpack.c.b16 %v1914, %v1913
  %v1996 = vpack.c.b16 %v1916, %v1915
  %v1997 = vpack.c.b16 %v1918, %v1917
  %v1998 = vpack.c.b16 %v1920, %v1919
  %v1999 = vpack.c.b16 %v1922, %v1921
  %v2000 = vpack.c.b16 %v1924, %v1923
  %v2001 = vpack.c.b16 %v1926, %v1925
  %v2002 = vpack.c.b16 %v1928, %v1927
  %v2003 = vpack.c.b16 %v1930, %v1929
  %v2004 = vpack.c.b16 %v1932, %v1931
  %2077 = vmatprep.subr.bf16.mxu0 0
  %2078 = vmatpush1.bf16.msra.mxu0 %v1933
  %2079 = vmatprep.subr.bf16.mxu0 0
  %2080 = vmatpush1.bf16.msra.mxu0 %v1934
  %2081 = vmatprep.subr.bf16.mxu0 0
  %2082 = vmatpush1.bf16.msra.mxu0 %v1935
  %2083 = vmatprep.subr.bf16.mxu0 0
  %2084 = vmatpush1.bf16.msra.mxu0 %v1936
  %2085 = vmatprep.subr.bf16.mxu0 0
  %2086 = vmatpush1.bf16.msra.mxu0 %v1937
  %2087 = vmatprep.subr.bf16.mxu0 0
  %2088 = vmatpush1.bf16.msra.mxu0 %v1938
  %2089 = vmatprep.subr.bf16.mxu0 0
  %2090 = vmatpush1.bf16.msra.mxu0 %v1939
  %2091 = vmatprep.subr.bf16.mxu0 0
  %2092 = vmatpush1.bf16.msra.mxu0 %v1940
  %2093 = vmatprep.subr.bf16.mxu0 0
  %2094 = vmatpush1.bf16.msra.mxu0 %v1941
  %2095 = vmatprep.subr.bf16.mxu0 0
  %2096 = vmatpush1.bf16.msra.mxu0 %v1942
  %2097 = vmatprep.subr.bf16.mxu0 0
  %2098 = vmatpush1.bf16.msra.mxu0 %v1943
  %2099 = vmatprep.subr.bf16.mxu0 0
  %2100 = vmatpush1.bf16.msra.mxu0 %v1944
  %2101 = vmatprep.subr.bf16.mxu0 0
  %2102 = vmatpush1.bf16.msra.mxu0 %v1945
  %2103 = vmatprep.subr.bf16.mxu0 0
  %2104 = vmatpush1.bf16.msra.mxu0 %v1946
  %2105 = vmatprep.subr.bf16.mxu0 0
  %2106 = vmatpush1.bf16.msra.mxu0 %v1947
  %2107 = vmatprep.subr.bf16.mxu0 0
  %2108 = vmatpush1.bf16.msra.mxu0 %v1948
  %2109 = vmatprep.mubr.bf16.mxu0 %v1196
  %2110 = vmatmul.mubr.bf16.gmra.mrb[0].mxu0 %v1195
  %v2111 = vpop.f32.mrb[0].mxu0
  %v2112 = vadd.f32 0.0, %v2111
  %v2113 = vpop.f32.mrb[0].mxu0
  %v2114 = vpop.f32.mrb[0].mxu0
  %v2115 = vadd.f32 0.0, %v2114
  %v2116 = vpop.f32.mrb[0].mxu0
  %2117 = vmatprep.mubr.bf16.mxu0 %v1205
  %2118 = vmatmul.mubr.bf16.gmra.mrb[0].mxu0 %v1204
  %v2119 = vpop.f32.mrb[0].mxu0
  %v2120 = vadd.f32 0.0, %v2119
  %v2121 = vpop.f32.mrb[0].mxu0
  %v2122 = vpop.f32.mrb[0].mxu0
  %v2123 = vadd.f32 0.0, %v2122
  %v2124 = vpop.f32.mrb[0].mxu0
  %2125 = vmatprep.mubr.bf16.mxu0 %v1214
  %2126 = vmatmul.mubr.bf16.gmra.mrb[0].mxu0 %v1213
  %v2127 = vpop.f32.mrb[0].mxu0
  %v2128 = vadd.f32 0.0, %v2127
  %v2129 = vpop.f32.mrb[0].mxu0
  %v2130 = vpop.f32.mrb[0].mxu0
  %v2131 = vadd.f32 0.0, %v2130
  %v2132 = vpop.f32.mrb[0].mxu0
  %2133 = vmatprep.mubr.bf16.mxu0 %v1223
  %2134 = vmatmul.mubr.bf16.gmra.mrb[0].mxu0 %v1222
  %v2135 = vpop.f32.mrb[0].mxu0
  %v2136 = vadd.f32 0.0, %v2135
  %v2137 = vpop.f32.mrb[0].mxu0
  %v2138 = vpop.f32.mrb[0].mxu0
  %v2139 = vadd.f32 0.0, %v2138
  %v2140 = vpop.f32.mrb[0].mxu0
  %2141 = vmatprep.mubr.bf16.mxu0 %v1232
  %2142 = vmatmul.mubr.bf16.gmra.mrb[0].mxu0 %v1231
  %v2143 = vpop.f32.mrb[0].mxu0
  %v2144 = vadd.f32 0.0, %v2143
  %v2145 = vpop.f32.mrb[0].mxu0
  %v2146 = vpop.f32.mrb[0].mxu0
  %v2147 = vadd.f32 0.0, %v2146
  %v2148 = vpop.f32.mrb[0].mxu0
  %2149 = vmatprep.mubr.bf16.mxu0 %v1241
  %2150 = vmatmul.mubr.bf16.gmra.mrb[0].mxu0 %v1240
  %v2151 = vpop.f32.mrb[0].mxu0
  %v2152 = vadd.f32 0.0, %v2151
  %v2153 = vpop.f32.mrb[0].mxu0
  %v2154 = vpop.f32.mrb[0].mxu0
  %v2155 = vadd.f32 0.0, %v2154
  %v2156 = vpop.f32.mrb[0].mxu0
  %2157 = vmatprep.mubr.bf16.mxu0 %v1250
  %2158 = vmatmul.mubr.bf16.gmra.mrb[0].mxu0 %v1249
  %v2159 = vpop.f32.mrb[0].mxu0
  %v2160 = vadd.f32 0.0, %v2159
  %v2161 = vpop.f32.mrb[0].mxu0
  %v2162 = vpop.f32.mrb[0].mxu0
  %v2163 = vadd.f32 0.0, %v2162
  %v2164 = vpop.f32.mrb[0].mxu0
  %2165 = vmatprep.mubr.bf16.mxu0 %v1259
  %2166 = vmatmul.mubr.bf16.gmra.mrb[0].mxu0 %v1258
  %v2167 = vpop.f32.mrb[0].mxu0
  %v2168 = vadd.f32 0.0, %v2167
  %v2169 = vpop.f32.mrb[0].mxu0
  %v2170 = vpop.f32.mrb[0].mxu0
  %v2171 = vadd.f32 0.0, %v2170
  %v2172 = vpop.f32.mrb[0].mxu0
  %2173 = vmatprep.mubr.bf16.mxu0 %v1268
  %2174 = vmatmul.mubr.bf16.gmra.mrb[0].mxu0 %v1267
  %v2175 = vpop.f32.mrb[0].mxu0
  %v2176 = vadd.f32 0.0, %v2175
  %v2177 = vpop.f32.mrb[0].mxu0
  %v2178 = vpop.f32.mrb[0].mxu0
  %v2179 = vadd.f32 0.0, %v2178
  %v2180 = vpop.f32.mrb[0].mxu0
  %2181 = vmatprep.mubr.bf16.mxu0 %v1277
  %2182 = vmatmul.mubr.bf16.gmra.mrb[0].mxu0 %v1276
  %v2183 = vpop.f32.mrb[0].mxu0
  %v2184 = vadd.f32 0.0, %v2183
  %v2185 = vpop.f32.mrb[0].mxu0
  %v2186 = vpop.f32.mrb[0].mxu0
  %v2187 = vadd.f32 0.0, %v2186
  %v2188 = vpop.f32.mrb[0].mxu0
  %2189 = vmatprep.mubr.bf16.mxu0 %v1286
  %2190 = vmatmul.mubr.bf16.gmra.mrb[0].mxu0 %v1285
  %v2191 = vpop.f32.mrb[0].mxu0
  %v2192 = vadd.f32 0.0, %v2191
  %v2193 = vpop.f32.mrb[0].mxu0
  %v2194 = vpop.f32.mrb[0].mxu0
  %v2195 = vadd.f32 0.0, %v2194
  %v2196 = vpop.f32.mrb[0].mxu0
  %2197 = vmatprep.mubr.bf16.mxu0 %v1295
  %2198 = vmatmul.mubr.bf16.gmra.mrb[0].mxu0 %v1294
  %v2199 = vpop.f32.mrb[0].mxu0
  %v2200 = vadd.f32 0.0, %v2199
  %v2201 = vpop.f32.mrb[0].mxu0
  %v2202 = vpop.f32.mrb[0].mxu0
  %v2203 = vadd.f32 0.0, %v2202
  %v2204 = vpop.f32.mrb[0].mxu0
  %2205 = vmatprep.mubr.bf16.mxu0 %v1304
  %2206 = vmatmul.mubr.bf16.gmra.mrb[0].mxu0 %v1303
  %v2207 = vpop.f32.mrb[0].mxu0
  %v2208 = vadd.f32 0.0, %v2207
  %v2209 = vpop.f32.mrb[0].mxu0
  %v2210 = vpop.f32.mrb[0].mxu0
  %v2211 = vadd.f32 0.0, %v2210
  %v2212 = vpop.f32.mrb[0].mxu0
  %2213 = vmatprep.mubr.bf16.mxu0 %v1313
  %2214 = vmatmul.mubr.bf16.gmra.mrb[0].mxu0 %v1312
  %v2215 = vpop.f32.mrb[0].mxu0
  %v2216 = vadd.f32 0.0, %v2215
  %v2217 = vpop.f32.mrb[0].mxu0
  %v2218 = vpop.f32.mrb[0].mxu0
  %v2219 = vadd.f32 0.0, %v2218
  %v2220 = vpop.f32.mrb[0].mxu0
  %2221 = vmatprep.mubr.bf16.mxu0 %v1322
  %2222 = vmatmul.mubr.bf16.gmra.mrb[0].mxu0 %v1321
  %v2223 = vpop.f32.mrb[0].mxu0
  %v2224 = vadd.f32 0.0, %v2223
  %v2225 = vpop.f32.mrb[0].mxu0
  %v2226 = vpop.f32.mrb[0].mxu0
  %v2227 = vadd.f32 0.0, %v2226
  %v2228 = vpop.f32.mrb[0].mxu0
  %2229 = vmatprep.mubr.bf16.mxu0 %v1331
  %2230 = vmatmul.mubr.bf16.gmra.mrb[0].mxu0 %v1330
  %v2231 = vpop.f32.mrb[0].mxu0
  %v2232 = vadd.f32 0.0, %v2231
  %v2233 = vpop.f32.mrb[0].mxu0
  %v2234 = vpop.f32.mrb[0].mxu0
  %v2235 = vadd.f32 0.0, %v2234
  %v2236 = vpop.f32.mrb[0].mxu0
  %2237 = vmatprep.mubr.bf16.mxu0 %v1340
  %2238 = vmatmul.mubr.bf16.gmra.mrb[0].mxu0 %v1339
  %v2239 = vpop.f32.mrb[0].mxu0
  %v2240 = vadd.f32 0.0, %v2239
  %v2241 = vpop.f32.mrb[0].mxu0
  %v2242 = vpop.f32.mrb[0].mxu0
  %v2243 = vadd.f32 0.0, %v2242
  %v2244 = vpop.f32.mrb[0].mxu0
  %2245 = vmatprep.mubr.bf16.mxu0 %v1349
  %2246 = vmatmul.mubr.bf16.gmra.mrb[0].mxu0 %v1348
  %v2247 = vpop.f32.mrb[0].mxu0
  %v2248 = vadd.f32 0.0, %v2247
  %v2249 = vpop.f32.mrb[0].mxu0
  %v2250 = vpop.f32.mrb[0].mxu0
  %v2251 = vadd.f32 0.0, %v2250
  %v2252 = vpop.f32.mrb[0].mxu0
  %2253 = vmatprep.mubr.bf16.mxu0 %v1358
  %2254 = vmatmul.mubr.bf16.gmra.mrb[0].mxu0 %v1357
  %v2255 = vpop.f32.mrb[0].mxu0
  %v2256 = vadd.f32 0.0, %v2255
  %v2257 = vpop.f32.mrb[0].mxu0
  %v2258 = vpop.f32.mrb[0].mxu0
  %v2259 = vadd.f32 0.0, %v2258
  %v2260 = vpop.f32.mrb[0].mxu0
  %2261 = vmatprep.mubr.bf16.mxu0 %v1367
  %2262 = vmatmul.mubr.bf16.gmra.mrb[0].mxu0 %v1366
  %v2263 = vpop.f32.mrb[0].mxu0
  %v2264 = vadd.f32 0.0, %v2263
  %v2265 = vpop.f32.mrb[0].mxu0
  %v2266 = vpop.f32.mrb[0].mxu0
  %v2267 = vadd.f32 0.0, %v2266
  %v2268 = vpop.f32.mrb[0].mxu0
  %2269 = vmatprep.mubr.bf16.mxu0 %v1376
  %2270 = vmatmul.mubr.bf16.gmra.mrb[0].mxu0 %v1375
  %v2271 = vpop.f32.mrb[0].mxu0
  %v2272 = vadd.f32 0.0, %v2271
  %v2273 = vpop.f32.mrb[0].mxu0
  %v2274 = vpop.f32.mrb[0].mxu0
  %v2275 = vadd.f32 0.0, %v2274
  %v2276 = vpop.f32.mrb[0].mxu0
  %2277 = vmatprep.mubr.bf16.mxu0 %v1385
  %2278 = vmatmul.mubr.bf16.gmra.mrb[0].mxu0 %v1384
  %v2279 = vpop.f32.mrb[0].mxu0
  %v2280 = vadd.f32 0.0, %v2279
  %v2281 = vpop.f32.mrb[0].mxu0
  %v2282 = vpop.f32.mrb[0].mxu0
  %v2283 = vadd.f32 0.0, %v2282
  %v2284 = vpop.f32.mrb[0].mxu0
  %2285 = vmatprep.mubr.bf16.mxu0 %v1394
  %2286 = vmatmul.mubr.bf16.gmra.mrb[0].mxu0 %v1393
  %v2287 = vpop.f32.mrb[0].mxu0
  %v2288 = vadd.f32 0.0, %v2287
  %v2289 = vpop.f32.mrb[0].mxu0
  %v2290 = vpop.f32.mrb[0].mxu0
  %v2291 = vadd.f32 0.0, %v2290
  %v2292 = vpop.f32.mrb[0].mxu0
  %2293 = vmatprep.mubr.bf16.mxu0 %v1403
  %2294 = vmatmul.mubr.bf16.gmra.mrb[0].mxu0 %v1402
  %v2295 = vpop.f32.mrb[0].mxu0
  %v2296 = vadd.f32 0.0, %v2295
  %v2297 = vpop.f32.mrb[0].mxu0
  %v2298 = vpop.f32.mrb[0].mxu0
  %v2299 = vadd.f32 0.0, %v2298
  %v2300 = vpop.f32.mrb[0].mxu0
  %2301 = vmatprep.mubr.bf16.mxu0 %v1412
  %2302 = vmatmul.mubr.bf16.gmra.mrb[0].mxu0 %v1411
  %v2303 = vpop.f32.mrb[0].mxu0
  %v2304 = vadd.f32 0.0, %v2303
  %v2305 = vpop.f32.mrb[0].mxu0
  %v2306 = vpop.f32.mrb[0].mxu0
  %v2307 = vpop.f32.mrb[0].mxu0
  %2308 = vdwg.mxu0
  %2309 = vmatprep.subr.bf16.mxu0 0
  %2310 = vmatpush1.bf16.msra.mxu0 %v1949
  %2311 = vmatprep.subr.bf16.mxu0 0
  %2312 = vmatpush1.bf16.msra.mxu0 %v1950
  %2313 = vmatprep.subr.bf16.mxu0 0
  %2314 = vmatpush1.bf16.msra.mxu0 %v1951
  %2315 = vmatprep.subr.bf16.mxu0 0
  %2316 = vmatpush1.bf16.msra.mxu0 %v1952
  %2317 = vmatprep.subr.bf16.mxu0 0
  %2318 = vmatpush1.bf16.msra.mxu0 %v1953
  %2319 = vmatprep.subr.bf16.mxu0 0
  %2320 = vmatpush1.bf16.msra.mxu0 %v1954
  %2321 = vmatprep.subr.bf16.mxu0 0
  %2322 = vmatpush1.bf16.msra.mxu0 %v1955
  %2323 = vmatprep.subr.bf16.mxu0 0
  %2324 = vmatpush1.bf16.msra.mxu0 %v1956
  %2325 = vmatprep.subr.bf16.mxu0 0
  %2326 = vmatpush1.bf16.msra.mxu0 %v1957
  %2327 = vmatprep.subr.bf16.mxu0 0
  %2328 = vmatpush1.bf16.msra.mxu0 %v1958
  %2329 = vmatprep.subr.bf16.mxu0 0
  %2330 = vmatpush1.bf16.msra.mxu0 %v1959
  %2331 = vmatprep.subr.bf16.mxu0 0
  %2332 = vmatpush1.bf16.msra.mxu0 %v1960
  %2333 = vmatprep.subr.bf16.mxu0 0
  %2334 = vmatpush1.bf16.msra.mxu0 %v1961
  %2335 = vmatprep.subr.bf16.mxu0 0
  %2336 = vmatpush1.bf16.msra.mxu0 %v1962
  %2337 = vmatprep.subr.bf16.mxu0 0
  %2338 = vmatpush1.bf16.msra.mxu0 %v1963
  %2339 = vmatprep.subr.bf16.mxu0 0
  %2340 = vmatpush1.bf16.msra.mxu0 %v1964
  %2341 = vmatprep.mubr.bf16.mxu0 %v1198
  %2342 = vmatmul.mubr.bf16.gmra.mrb[0].mxu0 %v1197
  %v2343 = vpop.f32.mrb[0].mxu0
  %v2344 = vadd.f32 %v2112, %v2343
  %v2345 = vpop.f32.mrb[0].mxu0
  %v2346 = vpop.f32.mrb[0].mxu0
  %v2347 = vadd.f32 %v2115, %v2346
  %v2348 = vpop.f32.mrb[0].mxu0
  %2349 = vmatprep.mubr.bf16.mxu0 %v1207
  %2350 = vmatmul.mubr.bf16.gmra.mrb[0].mxu0 %v1206
  %v2351 = vpop.f32.mrb[0].mxu0
  %v2352 = vadd.f32 %v2120, %v2351
  %v2353 = vpop.f32.mrb[0].mxu0
  %v2354 = vpop.f32.mrb[0].mxu0
  %v2355 = vadd.f32 %v2123, %v2354
  %v2356 = vpop.f32.mrb[0].mxu0
  %2357 = vmatprep.mubr.bf16.mxu0 %v1216
  %2358 = vmatmul.mubr.bf16.gmra.mrb[0].mxu0 %v1215
  %v2359 = vpop.f32.mrb[0].mxu0
  %v2360 = vadd.f32 %v2128, %v2359
  %v2361 = vpop.f32.mrb[0].mxu0
  %v2362 = vpop.f32.mrb[0].mxu0
  %v2363 = vadd.f32 %v2131, %v2362
  %v2364 = vpop.f32.mrb[0].mxu0
  %2365 = vmatprep.mubr.bf16.mxu0 %v1225
  %2366 = vmatmul.mubr.bf16.gmra.mrb[0].mxu0 %v1224
  %v2367 = vpop.f32.mrb[0].mxu0
  %v2368 = vadd.f32 %v2136, %v2367
  %v2369 = vpop.f32.mrb[0].mxu0
  %v2370 = vpop.f32.mrb[0].mxu0
  %v2371 = vadd.f32 %v2139, %v2370
  %v2372 = vpop.f32.mrb[0].mxu0
  %2373 = vmatprep.mubr.bf16.mxu0 %v1234
  %2374 = vmatmul.mubr.bf16.gmra.mrb[0].mxu0 %v1233
  %v2375 = vpop.f32.mrb[0].mxu0
  %v2376 = vadd.f32 %v2144, %v2375
  %v2377 = vpop.f32.mrb[0].mxu0
  %v2378 = vpop.f32.mrb[0].mxu0
  %v2379 = vadd.f32 %v2147, %v2378
  %v2380 = vpop.f32.mrb[0].mxu0
  %2381 = vmatprep.mubr.bf16.mxu0 %v1243
  %2382 = vmatmul.mubr.bf16.gmra.mrb[0].mxu0 %v1242
  %v2383 = vpop.f32.mrb[0].mxu0
  %v2384 = vadd.f32 %v2152, %v2383
  %v2385 = vpop.f32.mrb[0].mxu0
  %v2386 = vpop.f32.mrb[0].mxu0
  %v2387 = vadd.f32 %v2155, %v2386
  %v2388 = vpop.f32.mrb[0].mxu0
  %2389 = vmatprep.mubr.bf16.mxu0 %v1252
  %2390 = vmatmul.mubr.bf16.gmra.mrb[0].mxu0 %v1251
  %v2391 = vpop.f32.mrb[0].mxu0
  %v2392 = vadd.f32 %v2160, %v2391
  %v2393 = vpop.f32.mrb[0].mxu0
  %v2394 = vpop.f32.mrb[0].mxu0
  %v2395 = vadd.f32 %v2163, %v2394
  %v2396 = vpop.f32.mrb[0].mxu0
  %2397 = vmatprep.mubr.bf16.mxu0 %v1261
  %2398 = vmatmul.mubr.bf16.gmra.mrb[0].mxu0 %v1260
  %v2399 = vpop.f32.mrb[0].mxu0
  %v2400 = vadd.f32 %v2168, %v2399
  %v2401 = vpop.f32.mrb[0].mxu0
  %v2402 = vpop.f32.mrb[0].mxu0
  %v2403 = vadd.f32 %v2171, %v2402
  %v2404 = vpop.f32.mrb[0].mxu0
  %2405 = vmatprep.mubr.bf16.mxu0 %v1270
  %2406 = vmatmul.mubr.bf16.gmra.mrb[0].mxu0 %v1269
  %v2407 = vpop.f32.mrb[0].mxu0
  %v2408 = vadd.f32 %v2176, %v2407
  %v2409 = vpop.f32.mrb[0].mxu0
  %v2410 = vpop.f32.mrb[0].mxu0
  %v2411 = vadd.f32 %v2179, %v2410
  %v2412 = vpop.f32.mrb[0].mxu0
  %2413 = vmatprep.mubr.bf16.mxu0 %v1279
  %2414 = vmatmul.mubr.bf16.gmra.mrb[0].mxu0 %v1278
  %v2415 = vpop.f32.mrb[0].mxu0
  %v2416 = vadd.f32 %v2184, %v2415
  %v2417 = vpop.f32.mrb[0].mxu0
  %v2418 = vpop.f32.mrb[0].mxu0
  %v2419 = vadd.f32 %v2187, %v2418
  %v2420 = vpop.f32.mrb[0].mxu0
  %2421 = vmatprep.mubr.bf16.mxu0 %v1288
  %2422 = vmatmul.mubr.bf16.gmra.mrb[0].mxu0 %v1287
  %v2423 = vpop.f32.mrb[0].mxu0
  %v2424 = vadd.f32 %v2192, %v2423
  %v2425 = vpop.f32.mrb[0].mxu0
  %v2426 = vpop.f32.mrb[0].mxu0
  %v2427 = vadd.f32 %v2195, %v2426
  %v2428 = vpop.f32.mrb[0].mxu0
  %2429 = vmatprep.mubr.bf16.mxu0 %v1297
  %2430 = vmatmul.mubr.bf16.gmra.mrb[0].mxu0 %v1296
  %v2431 = vpop.f32.mrb[0].mxu0
  %v2432 = vadd.f32 %v2200, %v2431
  %v2433 = vpop.f32.mrb[0].mxu0
  %v2434 = vpop.f32.mrb[0].mxu0
  %v2435 = vadd.f32 %v2203, %v2434
  %v2436 = vpop.f32.mrb[0].mxu0
  %2437 = vmatprep.mubr.bf16.mxu0 %v1306
  %2438 = vmatmul.mubr.bf16.gmra.mrb[0].mxu0 %v1305
  %v2439 = vpop.f32.mrb[0].mxu0
  %v2440 = vadd.f32 %v2208, %v2439
  %v2441 = vpop.f32.mrb[0].mxu0
  %v2442 = vpop.f32.mrb[0].mxu0
  %v2443 = vadd.f32 %v2211, %v2442
  %v2444 = vpop.f32.mrb[0].mxu0
  %2445 = vmatprep.mubr.bf16.mxu0 %v1315
  %2446 = vmatmul.mubr.bf16.gmra.mrb[0].mxu0 %v1314
  %v2447 = vpop.f32.mrb[0].mxu0
  %v2448 = vadd.f32 %v2216, %v2447
  %v2449 = vpop.f32.mrb[0].mxu0
  %v2450 = vpop.f32.mrb[0].mxu0
  %v2451 = vadd.f32 %v2219, %v2450
  %v2452 = vpop.f32.mrb[0].mxu0
  %2453 = vmatprep.mubr.bf16.mxu0 %v1324
  %2454 = vmatmul.mubr.bf16.gmra.mrb[0].mxu0 %v1323
  %v2455 = vpop.f32.mrb[0].mxu0
  %v2456 = vadd.f32 %v2224, %v2455
  %v2457 = vpop.f32.mrb[0].mxu0
  %v2458 = vpop.f32.mrb[0].mxu0
  %v2459 = vadd.f32 %v2227, %v2458
  %v2460 = vpop.f32.mrb[0].mxu0
  %2461 = vmatprep.mubr.bf16.mxu0 %v1333
  %2462 = vmatmul.mubr.bf16.gmra.mrb[0].mxu0 %v1332
  %v2463 = vpop.f32.mrb[0].mxu0
  %v2464 = vadd.f32 %v2232, %v2463
  %v2465 = vpop.f32.mrb[0].mxu0
  %v2466 = vpop.f32.mrb[0].mxu0
  %v2467 = vadd.f32 %v2235, %v2466
  %v2468 = vpop.f32.mrb[0].mxu0
  %2469 = vmatprep.mubr.bf16.mxu0 %v1342
  %2470 = vmatmul.mubr.bf16.gmra.mrb[0].mxu0 %v1341
  %v2471 = vpop.f32.mrb[0].mxu0
  %v2472 = vadd.f32 %v2240, %v2471
  %v2473 = vpop.f32.mrb[0].mxu0
  %v2474 = vpop.f32.mrb[0].mxu0
  %v2475 = vadd.f32 %v2243, %v2474
  %v2476 = vpop.f32.mrb[0].mxu0
  %2477 = vmatprep.mubr.bf16.mxu0 %v1351
  %2478 = vmatmul.mubr.bf16.gmra.mrb[0].mxu0 %v1350
  %v2479 = vpop.f32.mrb[0].mxu0
  %v2480 = vadd.f32 %v2248, %v2479
  %v2481 = vpop.f32.mrb[0].mxu0
  %v2482 = vpop.f32.mrb[0].mxu0
  %v2483 = vadd.f32 %v2251, %v2482
  %v2484 = vpop.f32.mrb[0].mxu0
  %2485 = vmatprep.mubr.bf16.mxu0 %v1360
  %2486 = vmatmul.mubr.bf16.gmra.mrb[0].mxu0 %v1359
  %v2487 = vpop.f32.mrb[0].mxu0
  %v2488 = vadd.f32 %v2256, %v2487
  %v2489 = vpop.f32.mrb[0].mxu0
  %v2490 = vpop.f32.mrb[0].mxu0
  %v2491 = vadd.f32 %v2259, %v2490
  %v2492 = vpop.f32.mrb[0].mxu0
  %2493 = vmatprep.mubr.bf16.mxu0 %v1369
  %2494 = vmatmul.mubr.bf16.gmra.mrb[0].mxu0 %v1368
  %v2495 = vpop.f32.mrb[0].mxu0
  %v2496 = vadd.f32 %v2264, %v2495
  %v2497 = vpop.f32.mrb[0].mxu0
  %v2498 = vpop.f32.mrb[0].mxu0
  %v2499 = vadd.f32 %v2267, %v2498
  %v2500 = vpop.f32.mrb[0].mxu0
  %2501 = vmatprep.mubr.bf16.mxu0 %v1378
  %2502 = vmatmul.mubr.bf16.gmra.mrb[0].mxu0 %v1377
  %v2503 = vpop.f32.mrb[0].mxu0
  %v2504 = vadd.f32 %v2272, %v2503
  %v2505 = vpop.f32.mrb[0].mxu0
  %v2506 = vpop.f32.mrb[0].mxu0
  %v2507 = vadd.f32 %v2275, %v2506
  %v2508 = vpop.f32.mrb[0].mxu0
  %2509 = vmatprep.mubr.bf16.mxu0 %v1387
  %2510 = vmatmul.mubr.bf16.gmra.mrb[0].mxu0 %v1386
  %v2511 = vpop.f32.mrb[0].mxu0
  %v2512 = vadd.f32 %v2280, %v2511
  %v2513 = vpop.f32.mrb[0].mxu0
  %v2514 = vpop.f32.mrb[0].mxu0
  %v2515 = vadd.f32 %v2283, %v2514
  %v2516 = vpop.f32.mrb[0].mxu0
  %2517 = vmatprep.mubr.bf16.mxu0 %v1396
  %2518 = vmatmul.mubr.bf16.gmra.mrb[0].mxu0 %v1395
  %v2519 = vpop.f32.mrb[0].mxu0
  %v2520 = vadd.f32 %v2288, %v2519
  %v2521 = vpop.f32.mrb[0].mxu0
  %v2522 = vpop.f32.mrb[0].mxu0
  %v2523 = vadd.f32 %v2291, %v2522
  %v2524 = vpop.f32.mrb[0].mxu0
  %2525 = vmatprep.mubr.bf16.mxu0 %v1405
  %2526 = vmatmul.mubr.bf16.gmra.mrb[0].mxu0 %v1404
  %v2527 = vpop.f32.mrb[0].mxu0
  %v2528 = vadd.f32 %v2296, %v2527
  %v2529 = vpop.f32.mrb[0].mxu0
  %v2530 = vpop.f32.mrb[0].mxu0
  %v2531 = vadd.f32 %v2299, %v2530
  %v2532 = vpop.f32.mrb[0].mxu0
  %2533 = vmatprep.mubr.bf16.mxu0 %v1414
  %2534 = vmatmul.mubr.bf16.gmra.mrb[0].mxu0 %v1413
  %v2535 = vpop.f32.mrb[0].mxu0
  %v2536 = vadd.f32 %v2304, %v2535
  %v2537 = vpop.f32.mrb[0].mxu0
  %v2538 = vpop.f32.mrb[0].mxu0
  %v2539 = vpop.f32.mrb[0].mxu0
  %2540 = vdwg.mxu0
  %2541 = vmatprep.subr.bf16.mxu0 0
  %2542 = vmatpush1.bf16.msra.mxu0 %v1965
  %2543 = vmatprep.subr.bf16.mxu0 0
  %2544 = vmatpush1.bf16.msra.mxu0 %v1966
  %2545 = vmatprep.subr.bf16.mxu0 0
  %2546 = vmatpush1.bf16.msra.mxu0 %v1967
  %2547 = vmatprep.subr.bf16.mxu0 0
  %2548 = vmatpush1.bf16.msra.mxu0 %v1968
  %2549 = vmatprep.subr.bf16.mxu0 0
  %2550 = vmatpush1.bf16.msra.mxu0 %v1969
  %2551 = vmatprep.subr.bf16.mxu0 0
  %2552 = vmatpush1.bf16.msra.mxu0 %v1970
  %2553 = vmatprep.subr.bf16.mxu0 0
  %2554 = vmatpush1.bf16.msra.mxu0 %v1971
  %2555 = vmatprep.subr.bf16.mxu0 0
  %2556 = vmatpush1.bf16.msra.mxu0 %v1972
  %2557 = vmatprep.subr.bf16.mxu0 0
  %2558 = vmatpush1.bf16.msra.mxu0 %v1973
  %2559 = vmatprep.subr.bf16.mxu0 0
  %2560 = vmatpush1.bf16.msra.mxu0 %v1974
  %2561 = vmatprep.subr.bf16.mxu0 0
  %2562 = vmatpush1.bf16.msra.mxu0 %v1975
  %2563 = vmatprep.subr.bf16.mxu0 0
  %2564 = vmatpush1.bf16.msra.mxu0 %v1976
  %2565 = vmatprep.subr.bf16.mxu0 0
  %2566 = vmatpush1.bf16.msra.mxu0 %v1977
  %2567 = vmatprep.subr.bf16.mxu0 0
  %2568 = vmatpush1.bf16.msra.mxu0 %v1978
  %2569 = vmatprep.subr.bf16.mxu0 0
  %2570 = vmatpush1.bf16.msra.mxu0 %v1979
  %2571 = vmatprep.subr.bf16.mxu0 0
  %2572 = vmatpush1.bf16.msra.mxu0 %v1980
  %2573 = vmatprep.mubr.bf16.mxu0 %v1200
  %2574 = vmatmul.mubr.bf16.gmra.mrb[0].mxu0 %v1199
  %v2575 = vpop.f32.mrb[0].mxu0
  %v2576 = vadd.f32 %v2344, %v2575
  %v2577 = vpop.f32.mrb[0].mxu0
  %v2578 = vpop.f32.mrb[0].mxu0
  %v2579 = vadd.f32 %v2347, %v2578
  %v2580 = vpop.f32.mrb[0].mxu0
  %2581 = vmatprep.mubr.bf16.mxu0 %v1209
  %2582 = vmatmul.mubr.bf16.gmra.mrb[0].mxu0 %v1208
  %v2583 = vpop.f32.mrb[0].mxu0
  %v2584 = vadd.f32 %v2352, %v2583
  %v2585 = vpop.f32.mrb[0].mxu0
  %v2586 = vpop.f32.mrb[0].mxu0
  %v2587 = vadd.f32 %v2355, %v2586
  %v2588 = vpop.f32.mrb[0].mxu0
  %2589 = vmatprep.mubr.bf16.mxu0 %v1218
  %2590 = vmatmul.mubr.bf16.gmra.mrb[0].mxu0 %v1217
  %v2591 = vpop.f32.mrb[0].mxu0
  %v2592 = vadd.f32 %v2360, %v2591
  %v2593 = vpop.f32.mrb[0].mxu0
  %v2594 = vpop.f32.mrb[0].mxu0
  %v2595 = vadd.f32 %v2363, %v2594
  %v2596 = vpop.f32.mrb[0].mxu0
  %2597 = vmatprep.mubr.bf16.mxu0 %v1227
  %2598 = vmatmul.mubr.bf16.gmra.mrb[0].mxu0 %v1226
  %v2599 = vpop.f32.mrb[0].mxu0
  %v2600 = vadd.f32 %v2368, %v2599
  %v2601 = vpop.f32.mrb[0].mxu0
  %v2602 = vpop.f32.mrb[0].mxu0
  %v2603 = vadd.f32 %v2371, %v2602
  %v2604 = vpop.f32.mrb[0].mxu0
  %2605 = vmatprep.mubr.bf16.mxu0 %v1236
  %2606 = vmatmul.mubr.bf16.gmra.mrb[0].mxu0 %v1235
  %v2607 = vpop.f32.mrb[0].mxu0
  %v2608 = vadd.f32 %v2376, %v2607
  %v2609 = vpop.f32.mrb[0].mxu0
  %v2610 = vpop.f32.mrb[0].mxu0
  %v2611 = vadd.f32 %v2379, %v2610
  %v2612 = vpop.f32.mrb[0].mxu0
  %2613 = vmatprep.mubr.bf16.mxu0 %v1245
  %2614 = vmatmul.mubr.bf16.gmra.mrb[0].mxu0 %v1244
  %v2615 = vpop.f32.mrb[0].mxu0
  %v2616 = vadd.f32 %v2384, %v2615
  %v2617 = vpop.f32.mrb[0].mxu0
  %v2618 = vpop.f32.mrb[0].mxu0
  %v2619 = vadd.f32 %v2387, %v2618
  %v2620 = vpop.f32.mrb[0].mxu0
  %2621 = vmatprep.mubr.bf16.mxu0 %v1254
  %2622 = vmatmul.mubr.bf16.gmra.mrb[0].mxu0 %v1253
  %v2623 = vpop.f32.mrb[0].mxu0
  %v2624 = vadd.f32 %v2392, %v2623
  %v2625 = vpop.f32.mrb[0].mxu0
  %v2626 = vpop.f32.mrb[0].mxu0
  %v2627 = vadd.f32 %v2395, %v2626
  %v2628 = vpop.f32.mrb[0].mxu0
  %2629 = vmatprep.mubr.bf16.mxu0 %v1263
  %2630 = vmatmul.mubr.bf16.gmra.mrb[0].mxu0 %v1262
  %v2631 = vpop.f32.mrb[0].mxu0
  %v2632 = vadd.f32 %v2400, %v2631
  %v2633 = vpop.f32.mrb[0].mxu0
  %v2634 = vpop.f32.mrb[0].mxu0
  %v2635 = vadd.f32 %v2403, %v2634
  %v2636 = vpop.f32.mrb[0].mxu0
  %2637 = vmatprep.mubr.bf16.mxu0 %v1272
  %2638 = vmatmul.mubr.bf16.gmra.mrb[0].mxu0 %v1271
  %v2639 = vpop.f32.mrb[0].mxu0
  %v2640 = vadd.f32 %v2408, %v2639
  %v2641 = vpop.f32.mrb[0].mxu0
  %v2642 = vpop.f32.mrb[0].mxu0
  %v2643 = vadd.f32 %v2411, %v2642
  %v2644 = vpop.f32.mrb[0].mxu0
  %2645 = vmatprep.mubr.bf16.mxu0 %v1281
  %2646 = vmatmul.mubr.bf16.gmra.mrb[0].mxu0 %v1280
  %v2647 = vpop.f32.mrb[0].mxu0
  %v2648 = vadd.f32 %v2416, %v2647
  %v2649 = vpop.f32.mrb[0].mxu0
  %v2650 = vpop.f32.mrb[0].mxu0
  %v2651 = vadd.f32 %v2419, %v2650
  %v2652 = vpop.f32.mrb[0].mxu0
  %2653 = vmatprep.mubr.bf16.mxu0 %v1290
  %2654 = vmatmul.mubr.bf16.gmra.mrb[0].mxu0 %v1289
  %v2655 = vpop.f32.mrb[0].mxu0
  %v2656 = vadd.f32 %v2424, %v2655
  %v2657 = vpop.f32.mrb[0].mxu0
  %v2658 = vpop.f32.mrb[0].mxu0
  %v2659 = vadd.f32 %v2427, %v2658
  %v2660 = vpop.f32.mrb[0].mxu0
  %2661 = vmatprep.mubr.bf16.mxu0 %v1299
  %2662 = vmatmul.mubr.bf16.gmra.mrb[0].mxu0 %v1298
  %v2663 = vpop.f32.mrb[0].mxu0
  %v2664 = vadd.f32 %v2432, %v2663
  %v2665 = vpop.f32.mrb[0].mxu0
  %v2666 = vpop.f32.mrb[0].mxu0
  %v2667 = vadd.f32 %v2435, %v2666
  %v2668 = vpop.f32.mrb[0].mxu0
  %2669 = vmatprep.mubr.bf16.mxu0 %v1308
  %2670 = vmatmul.mubr.bf16.gmra.mrb[0].mxu0 %v1307
  %v2671 = vpop.f32.mrb[0].mxu0
  %v2672 = vadd.f32 %v2440, %v2671
  %v2673 = vpop.f32.mrb[0].mxu0
  %v2674 = vpop.f32.mrb[0].mxu0
  %v2675 = vadd.f32 %v2443, %v2674
  %v2676 = vpop.f32.mrb[0].mxu0
  %2677 = vmatprep.mubr.bf16.mxu0 %v1317
  %2678 = vmatmul.mubr.bf16.gmra.mrb[0].mxu0 %v1316
  %v2679 = vpop.f32.mrb[0].mxu0
  %v2680 = vadd.f32 %v2448, %v2679
  %v2681 = vpop.f32.mrb[0].mxu0
  %v2682 = vpop.f32.mrb[0].mxu0
  %v2683 = vadd.f32 %v2451, %v2682
  %v2684 = vpop.f32.mrb[0].mxu0
  %2685 = vmatprep.mubr.bf16.mxu0 %v1326
  %2686 = vmatmul.mubr.bf16.gmra.mrb[0].mxu0 %v1325
  %v2687 = vpop.f32.mrb[0].mxu0
  %v2688 = vadd.f32 %v2456, %v2687
  %v2689 = vpop.f32.mrb[0].mxu0
  %v2690 = vpop.f32.mrb[0].mxu0
  %v2691 = vadd.f32 %v2459, %v2690
  %v2692 = vpop.f32.mrb[0].mxu0
  %2693 = vmatprep.mubr.bf16.mxu0 %v1335
  %2694 = vmatmul.mubr.bf16.gmra.mrb[0].mxu0 %v1334
  %v2695 = vpop.f32.mrb[0].mxu0
  %v2696 = vadd.f32 %v2464, %v2695
  %v2697 = vpop.f32.mrb[0].mxu0
  %v2698 = vpop.f32.mrb[0].mxu0
  %v2699 = vadd.f32 %v2467, %v2698
  %v2700 = vpop.f32.mrb[0].mxu0
  %2701 = vmatprep.mubr.bf16.mxu0 %v1344
  %2702 = vmatmul.mubr.bf16.gmra.mrb[0].mxu0 %v1343
  %v2703 = vpop.f32.mrb[0].mxu0
  %v2704 = vadd.f32 %v2472, %v2703
  %v2705 = vpop.f32.mrb[0].mxu0
  %v2706 = vpop.f32.mrb[0].mxu0
  %v2707 = vadd.f32 %v2475, %v2706
  %v2708 = vpop.f32.mrb[0].mxu0
  %2709 = vmatprep.mubr.bf16.mxu0 %v1353
  %2710 = vmatmul.mubr.bf16.gmra.mrb[0].mxu0 %v1352
  %v2711 = vpop.f32.mrb[0].mxu0
  %v2712 = vadd.f32 %v2480, %v2711
  %v2713 = vpop.f32.mrb[0].mxu0
  %v2714 = vpop.f32.mrb[0].mxu0
  %v2715 = vadd.f32 %v2483, %v2714
  %v2716 = vpop.f32.mrb[0].mxu0
  %2717 = vmatprep.mubr.bf16.mxu0 %v1362
  %2718 = vmatmul.mubr.bf16.gmra.mrb[0].mxu0 %v1361
  %v2719 = vpop.f32.mrb[0].mxu0
  %v2720 = vadd.f32 %v2488, %v2719
  %v2721 = vpop.f32.mrb[0].mxu0
  %v2722 = vpop.f32.mrb[0].mxu0
  %v2723 = vadd.f32 %v2491, %v2722
  %v2724 = vpop.f32.mrb[0].mxu0
  %2725 = vmatprep.mubr.bf16.mxu0 %v1371
  %2726 = vmatmul.mubr.bf16.gmra.mrb[0].mxu0 %v1370
  %v2727 = vpop.f32.mrb[0].mxu0
  %v2728 = vadd.f32 %v2496, %v2727
  %v2729 = vpop.f32.mrb[0].mxu0
  %v2730 = vpop.f32.mrb[0].mxu0
  %v2731 = vadd.f32 %v2499, %v2730
  %v2732 = vpop.f32.mrb[0].mxu0
  %2733 = vmatprep.mubr.bf16.mxu0 %v1380
  %2734 = vmatmul.mubr.bf16.gmra.mrb[0].mxu0 %v1379
  %v2735 = vpop.f32.mrb[0].mxu0
  %v2736 = vadd.f32 %v2504, %v2735
  %v2737 = vpop.f32.mrb[0].mxu0
  %v2738 = vpop.f32.mrb[0].mxu0
  %v2739 = vadd.f32 %v2507, %v2738
  %v2740 = vpop.f32.mrb[0].mxu0
  %2741 = vmatprep.mubr.bf16.mxu0 %v1389
  %2742 = vmatmul.mubr.bf16.gmra.mrb[0].mxu0 %v1388
  %v2743 = vpop.f32.mrb[0].mxu0
  %v2744 = vadd.f32 %v2512, %v2743
  %v2745 = vpop.f32.mrb[0].mxu0
  %v2746 = vpop.f32.mrb[0].mxu0
  %v2747 = vadd.f32 %v2515, %v2746
  %v2748 = vpop.f32.mrb[0].mxu0
  %2749 = vmatprep.mubr.bf16.mxu0 %v1398
  %2750 = vmatmul.mubr.bf16.gmra.mrb[0].mxu0 %v1397
  %v2751 = vpop.f32.mrb[0].mxu0
  %v2752 = vadd.f32 %v2520, %v2751
  %v2753 = vpop.f32.mrb[0].mxu0
  %v2754 = vpop.f32.mrb[0].mxu0
  %v2755 = vadd.f32 %v2523, %v2754
  %v2756 = vpop.f32.mrb[0].mxu0
  %2757 = vmatprep.mubr.bf16.mxu0 %v1407
  %2758 = vmatmul.mubr.bf16.gmra.mrb[0].mxu0 %v1406
  %v2759 = vpop.f32.mrb[0].mxu0
  %v2760 = vadd.f32 %v2528, %v2759
  %v2761 = vpop.f32.mrb[0].mxu0
  %v2762 = vpop.f32.mrb[0].mxu0
  %v2763 = vadd.f32 %v2531, %v2762
  %v2764 = vpop.f32.mrb[0].mxu0
  %2765 = vmatprep.mubr.bf16.mxu0 %v1416
  %2766 = vmatmul.mubr.bf16.gmra.mrb[0].mxu0 %v1415
  %v2767 = vpop.f32.mrb[0].mxu0
  %v2768 = vadd.f32 %v2536, %v2767
  %v2769 = vpop.f32.mrb[0].mxu0
  %v2770 = vpop.f32.mrb[0].mxu0
  %v2771 = vpop.f32.mrb[0].mxu0
  %2772 = vdwg.mxu0
  %2773 = vmatprep.subr.bf16.mxu0 0
  %2774 = vmatpush1.bf16.msra.mxu0 %v1981
  %2775 = vmatprep.subr.bf16.mxu0 0
  %2776 = vmatpush1.bf16.msra.mxu0 %v1982
  %2777 = vmatprep.subr.bf16.mxu0 0
  %2778 = vmatpush1.bf16.msra.mxu0 %v1983
  %2779 = vmatprep.subr.bf16.mxu0 0
  %2780 = vmatpush1.bf16.msra.mxu0 %v1984
  %2781 = vmatprep.subr.bf16.mxu0 0
  %2782 = vmatpush1.bf16.msra.mxu0 %v1985
  %2783 = vmatprep.subr.bf16.mxu0 0
  %2784 = vmatpush1.bf16.msra.mxu0 %v1986
  %2785 = vmatprep.subr.bf16.mxu0 0
  %2786 = vmatpush1.bf16.msra.mxu0 %v1987
  %2787 = vmatprep.subr.bf16.mxu0 0
  %2788 = vmatpush1.bf16.msra.mxu0 %v1988
  %2789 = vmatprep.subr.bf16.mxu0 0
  %2790 = vmatpush1.bf16.msra.mxu0 %v1989
  %2791 = vmatprep.subr.bf16.mxu0 0
  %2792 = vmatpush1.bf16.msra.mxu0 %v1990
  %2793 = vmatprep.subr.bf16.mxu0 0
  %2794 = vmatpush1.bf16.msra.mxu0 %v1991
  %2795 = vmatprep.subr.bf16.mxu0 0
  %2796 = vmatpush1.bf16.msra.mxu0 %v1992
  %2797 = vmatprep.subr.bf16.mxu0 0
  %2798 = vmatpush1.bf16.msra.mxu0 %v1993
  %2799 = vmatprep.subr.bf16.mxu0 0
  %2800 = vmatpush1.bf16.msra.mxu0 %v1994
  %2801 = vmatprep.subr.bf16.mxu0 0
  %2802 = vmatpush1.bf16.msra.mxu0 %v1995
  %2803 = vmatprep.subr.bf16.mxu0 0
  %2804 = vmatpush1.bf16.msra.mxu0 %v1996
  %2805 = vmatprep.mubr.bf16.mxu0 %v1202
  %2806 = vmatmul.mubr.bf16.gmra.mrb[0].mxu0 %v1201
  %v2807 = vpop.f32.mrb[0].mxu0
  %v2808 = vadd.f32 %v2576, %v2807
  %v2809 = vpop.f32.mrb[0].mxu0
  %v2810 = vpop.f32.mrb[0].mxu0
  %v2811 = vadd.f32 %v2579, %v2810
  %v2812 = vpop.f32.mrb[0].mxu0
  %2813 = vmatprep.mubr.bf16.mxu0 %v1211
  %2814 = vmatmul.mubr.bf16.gmra.mrb[0].mxu0 %v1210
  %v2815 = vpop.f32.mrb[0].mxu0
  %v2816 = vadd.f32 %v2584, %v2815
  %v2817 = vpop.f32.mrb[0].mxu0
  %v2818 = vpop.f32.mrb[0].mxu0
  %v2819 = vadd.f32 %v2587, %v2818
  %v2820 = vpop.f32.mrb[0].mxu0
  %2821 = vmatprep.mubr.bf16.mxu0 %v1220
  %2822 = vmatmul.mubr.bf16.gmra.mrb[0].mxu0 %v1219
  %v2823 = vpop.f32.mrb[0].mxu0
  %v2824 = vadd.f32 %v2592, %v2823
  %v2825 = vpop.f32.mrb[0].mxu0
  %v2826 = vpop.f32.mrb[0].mxu0
  %v2827 = vadd.f32 %v2595, %v2826
  %v2828 = vpop.f32.mrb[0].mxu0
  %2829 = vmatprep.mubr.bf16.mxu0 %v1229
  %2830 = vmatmul.mubr.bf16.gmra.mrb[0].mxu0 %v1228
  %v2831 = vpop.f32.mrb[0].mxu0
  %v2832 = vadd.f32 %v2600, %v2831
  %v2833 = vpop.f32.mrb[0].mxu0
  %v2834 = vpop.f32.mrb[0].mxu0
  %v2835 = vadd.f32 %v2603, %v2834
  %v2836 = vpop.f32.mrb[0].mxu0
  %2837 = vmatprep.mubr.bf16.mxu0 %v1238
  %2838 = vmatmul.mubr.bf16.gmra.mrb[0].mxu0 %v1237
  %v2839 = vpop.f32.mrb[0].mxu0
  %v2840 = vadd.f32 %v2608, %v2839
  %v2841 = vpop.f32.mrb[0].mxu0
  %v2842 = vpop.f32.mrb[0].mxu0
  %v2843 = vadd.f32 %v2611, %v2842
  %v2844 = vpop.f32.mrb[0].mxu0
  %2845 = vmatprep.mubr.bf16.mxu0 %v1247
  %2846 = vmatmul.mubr.bf16.gmra.mrb[0].mxu0 %v1246
  %v2847 = vpop.f32.mrb[0].mxu0
  %v2848 = vadd.f32 %v2616, %v2847
  %v2849 = vpop.f32.mrb[0].mxu0
  %v2850 = vpop.f32.mrb[0].mxu0
  %v2851 = vadd.f32 %v2619, %v2850
  %v2852 = vpop.f32.mrb[0].mxu0
  %2853 = vmatprep.mubr.bf16.mxu0 %v1256
  %2854 = vmatmul.mubr.bf16.gmra.mrb[0].mxu0 %v1255
  %v2855 = vpop.f32.mrb[0].mxu0
  %v2856 = vadd.f32 %v2624, %v2855
  %v2857 = vpop.f32.mrb[0].mxu0
  %v2858 = vpop.f32.mrb[0].mxu0
  %v2859 = vadd.f32 %v2627, %v2858
  %v2860 = vpop.f32.mrb[0].mxu0
  %2861 = vmatprep.mubr.bf16.mxu0 %v1265
  %2862 = vmatmul.mubr.bf16.gmra.mrb[0].mxu0 %v1264
  %v2863 = vpop.f32.mrb[0].mxu0
  %v2864 = vadd.f32 %v2632, %v2863
  %v2865 = vpop.f32.mrb[0].mxu0
  %v2866 = vpop.f32.mrb[0].mxu0
  %v2867 = vadd.f32 %v2635, %v2866
  %v2868 = vpop.f32.mrb[0].mxu0
  %2869 = vmatprep.mubr.bf16.mxu0 %v1274
  %2870 = vmatmul.mubr.bf16.gmra.mrb[0].mxu0 %v1273
  %v2871 = vpop.f32.mrb[0].mxu0
  %v2872 = vadd.f32 %v2640, %v2871
  %v2873 = vpop.f32.mrb[0].mxu0
  %v2874 = vpop.f32.mrb[0].mxu0
  %v2875 = vadd.f32 %v2643, %v2874
  %v2876 = vpop.f32.mrb[0].mxu0
  %2877 = vmatprep.mubr.bf16.mxu0 %v1283
  %2878 = vmatmul.mubr.bf16.gmra.mrb[0].mxu0 %v1282
  %v2879 = vpop.f32.mrb[0].mxu0
  %v2880 = vadd.f32 %v2648, %v2879
  %v2881 = vpop.f32.mrb[0].mxu0
  %v2882 = vpop.f32.mrb[0].mxu0
  %v2883 = vadd.f32 %v2651, %v2882
  %v2884 = vpop.f32.mrb[0].mxu0
  %2885 = vmatprep.mubr.bf16.mxu0 %v1292
  %2886 = vmatmul.mubr.bf16.gmra.mrb[0].mxu0 %v1291
  %v2887 = vpop.f32.mrb[0].mxu0
  %v2888 = vadd.f32 %v2656, %v2887
  %v2889 = vpop.f32.mrb[0].mxu0
  %v2890 = vpop.f32.mrb[0].mxu0
  %v2891 = vadd.f32 %v2659, %v2890
  %v2892 = vpop.f32.mrb[0].mxu0
  %2893 = vmatprep.mubr.bf16.mxu0 %v1301
  %2894 = vmatmul.mubr.bf16.gmra.mrb[0].mxu0 %v1300
  %v2895 = vpop.f32.mrb[0].mxu0
  %v2896 = vadd.f32 %v2664, %v2895
  %v2897 = vpop.f32.mrb[0].mxu0
  %v2898 = vpop.f32.mrb[0].mxu0
  %v2899 = vadd.f32 %v2667, %v2898
  %v2900 = vpop.f32.mrb[0].mxu0
  %2901 = vmatprep.mubr.bf16.mxu0 %v1310
  %2902 = vmatmul.mubr.bf16.gmra.mrb[0].mxu0 %v1309
  %v2903 = vpop.f32.mrb[0].mxu0
  %v2904 = vadd.f32 %v2672, %v2903
  %v2905 = vpop.f32.mrb[0].mxu0
  %v2906 = vpop.f32.mrb[0].mxu0
  %v2907 = vadd.f32 %v2675, %v2906
  %v2908 = vpop.f32.mrb[0].mxu0
  %2909 = vmatprep.mubr.bf16.mxu0 %v1319
  %2910 = vmatmul.mubr.bf16.gmra.mrb[0].mxu0 %v1318
  %v2911 = vpop.f32.mrb[0].mxu0
  %v2912 = vadd.f32 %v2680, %v2911
  %v2913 = vpop.f32.mrb[0].mxu0
  %v2914 = vpop.f32.mrb[0].mxu0
  %v2915 = vadd.f32 %v2683, %v2914
  %v2916 = vpop.f32.mrb[0].mxu0
  %2917 = vmatprep.mubr.bf16.mxu0 %v1328
  %2918 = vmatmul.mubr.bf16.gmra.mrb[0].mxu0 %v1327
  %v2919 = vpop.f32.mrb[0].mxu0
  %v2920 = vadd.f32 %v2688, %v2919
  %v2921 = vpop.f32.mrb[0].mxu0
  %v2922 = vpop.f32.mrb[0].mxu0
  %v2923 = vadd.f32 %v2691, %v2922
  %v2924 = vpop.f32.mrb[0].mxu0
  %2925 = vmatprep.mubr.bf16.mxu0 %v1337
  %2926 = vmatmul.mubr.bf16.gmra.mrb[0].mxu0 %v1336
  %v2927 = vpop.f32.mrb[0].mxu0
  %v2928 = vadd.f32 %v2696, %v2927
  %v2929 = vpop.f32.mrb[0].mxu0
  %v2930 = vpop.f32.mrb[0].mxu0
  %v2931 = vadd.f32 %v2699, %v2930
  %v2932 = vpop.f32.mrb[0].mxu0
  %2933 = vmatprep.mubr.bf16.mxu0 %v1346
  %2934 = vmatmul.mubr.bf16.gmra.mrb[0].mxu0 %v1345
  %v2935 = vpop.f32.mrb[0].mxu0
  %v2936 = vadd.f32 %v2704, %v2935
  %v2937 = vpop.f32.mrb[0].mxu0
  %v2938 = vpop.f32.mrb[0].mxu0
  %v2939 = vadd.f32 %v2707, %v2938
  %v2940 = vpop.f32.mrb[0].mxu0
  %2941 = vmatprep.mubr.bf16.mxu0 %v1355
  %2942 = vmatmul.mubr.bf16.gmra.mrb[0].mxu0 %v1354
  %v2943 = vpop.f32.mrb[0].mxu0
  %v2944 = vadd.f32 %v2712, %v2943
  %v2945 = vpop.f32.mrb[0].mxu0
  %v2946 = vpop.f32.mrb[0].mxu0
  %v2947 = vadd.f32 %v2715, %v2946
  %v2948 = vpop.f32.mrb[0].mxu0
  %2949 = vmatprep.mubr.bf16.mxu0 %v1364
  %2950 = vmatmul.mubr.bf16.gmra.mrb[0].mxu0 %v1363
  %v2951 = vpop.f32.mrb[0].mxu0
  %v2952 = vadd.f32 %v2720, %v2951
  %v2953 = vpop.f32.mrb[0].mxu0
  %v2954 = vpop.f32.mrb[0].mxu0
  %v2955 = vadd.f32 %v2723, %v2954
  %v2956 = vpop.f32.mrb[0].mxu0
  %2957 = vmatprep.mubr.bf16.mxu0 %v1373
  %2958 = vmatmul.mubr.bf16.gmra.mrb[0].mxu0 %v1372
  %v2959 = vpop.f32.mrb[0].mxu0
  %v2960 = vadd.f32 %v2728, %v2959
  %v2961 = vpop.f32.mrb[0].mxu0
  %v2962 = vpop.f32.mrb[0].mxu0
  %v2963 = vadd.f32 %v2731, %v2962
  %v2964 = vpop.f32.mrb[0].mxu0
  %2965 = vmatprep.mubr.bf16.mxu0 %v1382
  %2966 = vmatmul.mubr.bf16.gmra.mrb[0].mxu0 %v1381
  %v2967 = vpop.f32.mrb[0].mxu0
  %v2968 = vadd.f32 %v2736, %v2967
  %v2969 = vpop.f32.mrb[0].mxu0
  %v2970 = vpop.f32.mrb[0].mxu0
  %v2971 = vadd.f32 %v2739, %v2970
  %v2972 = vpop.f32.mrb[0].mxu0
  %2973 = vmatprep.mubr.bf16.mxu0 %v1391
  %2974 = vmatmul.mubr.bf16.gmra.mrb[0].mxu0 %v1390
  %v2975 = vpop.f32.mrb[0].mxu0
  %v2976 = vadd.f32 %v2744, %v2975
  %v2977 = vpop.f32.mrb[0].mxu0
  %v2978 = vpop.f32.mrb[0].mxu0
  %v2979 = vadd.f32 %v2747, %v2978
  %v2980 = vpop.f32.mrb[0].mxu0
  %2981 = vmatprep.mubr.bf16.mxu0 %v1400
  %2982 = vmatmul.mubr.bf16.gmra.mrb[0].mxu0 %v1399
  %v2983 = vpop.f32.mrb[0].mxu0
  %v2984 = vadd.f32 %v2752, %v2983
  %v2985 = vpop.f32.mrb[0].mxu0
  %v2986 = vpop.f32.mrb[0].mxu0
  %v2987 = vadd.f32 %v2755, %v2986
  %v2988 = vpop.f32.mrb[0].mxu0
  %2989 = vmatprep.mubr.bf16.mxu0 %v1409
  %2990 = vmatmul.mubr.bf16.gmra.mrb[0].mxu0 %v1408
  %v2991 = vpop.f32.mrb[0].mxu0
  %v2992 = vadd.f32 %v2760, %v2991
  %v2993 = vpop.f32.mrb[0].mxu0
  %v2994 = vpop.f32.mrb[0].mxu0
  %v2995 = vadd.f32 %v2763, %v2994
  %v2996 = vpop.f32.mrb[0].mxu0
  %2997 = vmatprep.mubr.bf16.mxu0 %v1418
  %2998 = vmatmul.mubr.bf16.gmra.mrb[0].mxu0 %v1417
  %v2999 = vpop.f32.mrb[0].mxu0
  %v3000 = vadd.f32 %v2768, %v2999
  %v3001 = vpop.f32.mrb[0].mxu0
  %v3002 = vpop.f32.mrb[0].mxu0
  %v3003 = vpop.f32.mrb[0].mxu0
  %3004 = vdwg.mxu0
  %3005 = vmatprep.subr.bf16.mxu0 0
  %3006 = vmatpush1.bf16.msra.mxu0 %v1997
  %3007 = vmatprep.subr.bf16.mxu0 0
  %3008 = vmatpush1.bf16.msra.mxu0 %v1998
  %3009 = vmatprep.subr.bf16.mxu0 0
  %3010 = vmatpush1.bf16.msra.mxu0 %v1999
  %3011 = vmatprep.subr.bf16.mxu0 0
  %3012 = vmatpush1.bf16.msra.mxu0 %v2000
  %3013 = vmatprep.subr.bf16.mxu0 0
  %3014 = vmatpush1.bf16.msra.mxu0 %v2001
  %3015 = vmatprep.subr.bf16.mxu0 0
  %3016 = vmatpush1.bf16.msra.mxu0 %v2002
  %3017 = vmatprep.subr.bf16.mxu0 0
  %3018 = vmatpush1.bf16.msra.mxu0 %v2003
  %3019 = vmatprep.subr.bf16.mxu0 0
  %3020 = vmatpush1.bf16.msra.mxu0 %v2004
  %3021 = vmatprep.subr.bf16.mxu0 0
  %3022 = vmatpush1.bf16.msra.mxu0 0
  %3023 = vmatprep.subr.bf16.mxu0 0
  %3024 = vmatpush1.bf16.msra.mxu0 0
  %3025 = vmatprep.subr.bf16.mxu0 0
  %3026 = vmatpush1.bf16.msra.mxu0 0
  %3027 = vmatprep.subr.bf16.mxu0 0
  %3028 = vmatpush1.bf16.msra.mxu0 0
  %3029 = vmatprep.subr.bf16.mxu0 0
  %3030 = vmatpush1.bf16.msra.mxu0 0
  %3031 = vmatprep.subr.bf16.mxu0 0
  %3032 = vmatpush1.bf16.msra.mxu0 0
  %3033 = vmatprep.subr.bf16.mxu0 0
  %3034 = vmatpush1.bf16.msra.mxu0 0
  %3035 = vmatprep.subr.bf16.mxu0 0
  %3036 = vmatpush1.bf16.msra.mxu0 0
  %3037 = vmatprep.mubr.bf16.mxu0 0
  %3038 = vmatmul.mubr.bf16.gmra.mrb[0].mxu0 %v1203
  %v3039 = vpop.f32.mrb[0].mxu0
  %v3040 = vadd.f32 %v2808, %v3039
  %v3041 = vpop.f32.mrb[0].mxu0
  %v3042 = vpop.f32.mrb[0].mxu0
  %v3043 = vadd.f32 %v2811, %v3042
  %v3044 = vpop.f32.mrb[0].mxu0
  %3045 = vmatprep.mubr.bf16.mxu0 0
  %3046 = vmatmul.mubr.bf16.gmra.mrb[0].mxu0 %v1212
  %v3047 = vpop.f32.mrb[0].mxu0
  %v3048 = vadd.f32 %v2816, %v3047
  %v3049 = vpop.f32.mrb[0].mxu0
  %v3050 = vpop.f32.mrb[0].mxu0
  %v3051 = vadd.f32 %v2819, %v3050
  %v3052 = vpop.f32.mrb[0].mxu0
  %3053 = vmatprep.mubr.bf16.mxu0 0
  %3054 = vmatmul.mubr.bf16.gmra.mrb[0].mxu0 %v1221
  %v3055 = vpop.f32.mrb[0].mxu0
  %v3056 = vadd.f32 %v2824, %v3055
  %v3057 = vpop.f32.mrb[0].mxu0
  %v3058 = vpop.f32.mrb[0].mxu0
  %v3059 = vadd.f32 %v2827, %v3058
  %v3060 = vpop.f32.mrb[0].mxu0
  %3061 = vmatprep.mubr.bf16.mxu0 0
  %3062 = vmatmul.mubr.bf16.gmra.mrb[0].mxu0 %v1230
  %v3063 = vpop.f32.mrb[0].mxu0
  %v3064 = vadd.f32 %v2832, %v3063
  %v3065 = vpop.f32.mrb[0].mxu0
  %v3066 = vpop.f32.mrb[0].mxu0
  %v3067 = vadd.f32 %v2835, %v3066
  %v3068 = vpop.f32.mrb[0].mxu0
  %3069 = vmatprep.mubr.bf16.mxu0 0
  %3070 = vmatmul.mubr.bf16.gmra.mrb[0].mxu0 %v1239
  %v3071 = vpop.f32.mrb[0].mxu0
  %v3072 = vadd.f32 %v2840, %v3071
  %v3073 = vpop.f32.mrb[0].mxu0
  %v3074 = vpop.f32.mrb[0].mxu0
  %v3075 = vadd.f32 %v2843, %v3074
  %v3076 = vpop.f32.mrb[0].mxu0
  %3077 = vmatprep.mubr.bf16.mxu0 0
  %3078 = vmatmul.mubr.bf16.gmra.mrb[0].mxu0 %v1248
  %v3079 = vpop.f32.mrb[0].mxu0
  %v3080 = vadd.f32 %v2848, %v3079
  %v3081 = vpop.f32.mrb[0].mxu0
  %v3082 = vpop.f32.mrb[0].mxu0
  %v3083 = vadd.f32 %v2851, %v3082
  %v3084 = vpop.f32.mrb[0].mxu0
  %3085 = vmatprep.mubr.bf16.mxu0 0
  %3086 = vmatmul.mubr.bf16.gmra.mrb[0].mxu0 %v1257
  %v3087 = vpop.f32.mrb[0].mxu0
  %v3088 = vadd.f32 %v2856, %v3087
  %v3089 = vpop.f32.mrb[0].mxu0
  %v3090 = vpop.f32.mrb[0].mxu0
  %v3091 = vadd.f32 %v2859, %v3090
  %v3092 = vpop.f32.mrb[0].mxu0
  %3093 = vmatprep.mubr.bf16.mxu0 0
  %3094 = vmatmul.mubr.bf16.gmra.mrb[0].mxu0 %v1266
  %v3095 = vpop.f32.mrb[0].mxu0
  %v3096 = vadd.f32 %v2864, %v3095
  %v3097 = vpop.f32.mrb[0].mxu0
  %v3098 = vpop.f32.mrb[0].mxu0
  %v3099 = vadd.f32 %v2867, %v3098
  %v3100 = vpop.f32.mrb[0].mxu0
  %3101 = vmatprep.mubr.bf16.mxu0 0
  %3102 = vmatmul.mubr.bf16.gmra.mrb[0].mxu0 %v1275
  %v3103 = vpop.f32.mrb[0].mxu0
  %v3104 = vadd.f32 %v2872, %v3103
  %v3105 = vpop.f32.mrb[0].mxu0
  %v3106 = vpop.f32.mrb[0].mxu0
  %v3107 = vadd.f32 %v2875, %v3106
  %v3108 = vpop.f32.mrb[0].mxu0
  %3109 = vmatprep.mubr.bf16.mxu0 0
  %3110 = vmatmul.mubr.bf16.gmra.mrb[0].mxu0 %v1284
  %v3111 = vpop.f32.mrb[0].mxu0
  %v3112 = vadd.f32 %v2880, %v3111
  %v3113 = vpop.f32.mrb[0].mxu0
  %v3114 = vpop.f32.mrb[0].mxu0
  %v3115 = vadd.f32 %v2883, %v3114
  %v3116 = vpop.f32.mrb[0].mxu0
  %3117 = vmatprep.mubr.bf16.mxu0 0
  %3118 = vmatmul.mubr.bf16.gmra.mrb[0].mxu0 %v1293
  %v3119 = vpop.f32.mrb[0].mxu0
  %v3120 = vadd.f32 %v2888, %v3119
  %v3121 = vpop.f32.mrb[0].mxu0
  %v3122 = vpop.f32.mrb[0].mxu0
  %v3123 = vadd.f32 %v2891, %v3122
  %v3124 = vpop.f32.mrb[0].mxu0
  %3125 = vmatprep.mubr.bf16.mxu0 0
  %3126 = vmatmul.mubr.bf16.gmra.mrb[0].mxu0 %v1302
  %v3127 = vpop.f32.mrb[0].mxu0
  %v3128 = vadd.f32 %v2896, %v3127
  %v3129 = vpop.f32.mrb[0].mxu0
  %v3130 = vpop.f32.mrb[0].mxu0
  %v3131 = vadd.f32 %v2899, %v3130
  %v3132 = vpop.f32.mrb[0].mxu0
  %3133 = vmatprep.mubr.bf16.mxu0 0
  %3134 = vmatmul.mubr.bf16.gmra.mrb[0].mxu0 %v1311
  %v3135 = vpop.f32.mrb[0].mxu0
  %v3136 = vadd.f32 %v2904, %v3135
  %v3137 = vpop.f32.mrb[0].mxu0
  %v3138 = vpop.f32.mrb[0].mxu0
  %v3139 = vadd.f32 %v2907, %v3138
  %v3140 = vpop.f32.mrb[0].mxu0
  %3141 = vmatprep.mubr.bf16.mxu0 0
  %3142 = vmatmul.mubr.bf16.gmra.mrb[0].mxu0 %v1320
  %v3143 = vpop.f32.mrb[0].mxu0
  %v3144 = vadd.f32 %v2912, %v3143
  %v3145 = vpop.f32.mrb[0].mxu0
  %v3146 = vpop.f32.mrb[0].mxu0
  %v3147 = vadd.f32 %v2915, %v3146
  %v3148 = vpop.f32.mrb[0].mxu0
  %3149 = vmatprep.mubr.bf16.mxu0 0
  %3150 = vmatmul.mubr.bf16.gmra.mrb[0].mxu0 %v1329
  %v3151 = vpop.f32.mrb[0].mxu0
  %v3152 = vadd.f32 %v2920, %v3151
  %v3153 = vpop.f32.mrb[0].mxu0
  %v3154 = vpop.f32.mrb[0].mxu0
  %v3155 = vadd.f32 %v2923, %v3154
  %v3156 = vpop.f32.mrb[0].mxu0
  %3157 = vmatprep.mubr.bf16.mxu0 0
  %3158 = vmatmul.mubr.bf16.gmra.mrb[0].mxu0 %v1338
  %v3159 = vpop.f32.mrb[0].mxu0
  %v3160 = vadd.f32 %v2928, %v3159
  %v3161 = vpop.f32.mrb[0].mxu0
  %v3162 = vpop.f32.mrb[0].mxu0
  %v3163 = vadd.f32 %v2931, %v3162
  %v3164 = vpop.f32.mrb[0].mxu0
  %3165 = vmatprep.mubr.bf16.mxu0 0
  %3166 = vmatmul.mubr.bf16.gmra.mrb[0].mxu0 %v1347
  %v3167 = vpop.f32.mrb[0].mxu0
  %v3168 = vadd.f32 %v2936, %v3167
  %v3169 = vpop.f32.mrb[0].mxu0
  %v3170 = vpop.f32.mrb[0].mxu0
  %v3171 = vadd.f32 %v2939, %v3170
  %v3172 = vpop.f32.mrb[0].mxu0
  %3173 = vmatprep.mubr.bf16.mxu0 0
  %3174 = vmatmul.mubr.bf16.gmra.mrb[0].mxu0 %v1356
  %v3175 = vpop.f32.mrb[0].mxu0
  %v3176 = vadd.f32 %v2944, %v3175
  %v3177 = vpop.f32.mrb[0].mxu0
  %v3178 = vpop.f32.mrb[0].mxu0
  %v3179 = vadd.f32 %v2947, %v3178
  %v3180 = vpop.f32.mrb[0].mxu0
  %3181 = vmatprep.mubr.bf16.mxu0 0
  %3182 = vmatmul.mubr.bf16.gmra.mrb[0].mxu0 %v1365
  %v3183 = vpop.f32.mrb[0].mxu0
  %v3184 = vadd.f32 %v2952, %v3183
  %v3185 = vpop.f32.mrb[0].mxu0
  %v3186 = vpop.f32.mrb[0].mxu0
  %v3187 = vadd.f32 %v2955, %v3186
  %v3188 = vpop.f32.mrb[0].mxu0
  %3189 = vmatprep.mubr.bf16.mxu0 0
  %3190 = vmatmul.mubr.bf16.gmra.mrb[0].mxu0 %v1374
  %v3191 = vpop.f32.mrb[0].mxu0
  %v3192 = vadd.f32 %v2960, %v3191
  %v3193 = vpop.f32.mrb[0].mxu0
  %v3194 = vpop.f32.mrb[0].mxu0
  %v3195 = vadd.f32 %v2963, %v3194
  %v3196 = vpop.f32.mrb[0].mxu0
  %3197 = vmatprep.mubr.bf16.mxu0 0
  %3198 = vmatmul.mubr.bf16.gmra.mrb[0].mxu0 %v1383
  %v3199 = vpop.f32.mrb[0].mxu0
  %v3200 = vadd.f32 %v2968, %v3199
  %v3201 = vpop.f32.mrb[0].mxu0
  %v3202 = vpop.f32.mrb[0].mxu0
  %v3203 = vadd.f32 %v2971, %v3202
  %v3204 = vpop.f32.mrb[0].mxu0
  %3205 = vmatprep.mubr.bf16.mxu0 0
  %3206 = vmatmul.mubr.bf16.gmra.mrb[0].mxu0 %v1392
  %v3207 = vpop.f32.mrb[0].mxu0
  %v3208 = vadd.f32 %v2976, %v3207
  %v3209 = vpop.f32.mrb[0].mxu0
  %v3210 = vpop.f32.mrb[0].mxu0
  %v3211 = vadd.f32 %v2979, %v3210
  %v3212 = vpop.f32.mrb[0].mxu0
  %3213 = vmatprep.mubr.bf16.mxu0 0
  %3214 = vmatmul.mubr.bf16.gmra.mrb[0].mxu0 %v1401
  %v3215 = vpop.f32.mrb[0].mxu0
  %v3216 = vadd.f32 %v2984, %v3215
  %v3217 = vpop.f32.mrb[0].mxu0
  %v3218 = vpop.f32.mrb[0].mxu0
  %v3219 = vadd.f32 %v2987, %v3218
  %v3220 = vpop.f32.mrb[0].mxu0
  %3221 = vmatprep.mubr.bf16.mxu0 0
  %3222 = vmatmul.mubr.bf16.gmra.mrb[0].mxu0 %v1410
  %v3223 = vpop.f32.mrb[0].mxu0
  %v3224 = vadd.f32 %v2992, %v3223
  %v3225 = vpop.f32.mrb[0].mxu0
  %v3226 = vpop.f32.mrb[0].mxu0
  %v3227 = vadd.f32 %v2995, %v3226
  %v3228 = vpop.f32.mrb[0].mxu0
  %3229 = vmatprep.mubr.bf16.mxu0 0
  %3230 = vmatmul.mubr.bf16.gmra.mrb[0].mxu0 %v1419
  %v3231 = vpop.f32.mrb[0].mxu0
  %v3232 = vadd.f32 %v3000, %v3231
  %v3233 = vpop.f32.mrb[0].mxu0
  %v3234 = vpop.f32.mrb[0].mxu0
  %v3235 = vpop.f32.mrb[0].mxu0
  %3236 = vdwg.mxu0
  %v3237 = vadd.f32 %v71, %v3040
  %v3238 = vadd.f32 %v72, %v3043
  %v3239 = vadd.f32 %v73, %v3048
  %v3240 = vadd.f32 %v74, %v3051
  %v3241 = vadd.f32 %v75, %v3056
  %v3242 = vadd.f32 %v76, %v3059
  %v3243 = vadd.f32 %v77, %v3064
  %v3244 = vadd.f32 %v78, %v3067
  %v3245 = vadd.f32 %v79, %v3072
  %v3246 = vadd.f32 %v80, %v3075
  %v3247 = vadd.f32 %v81, %v3080
  %v3248 = vadd.f32 %v82, %v3083
  %v3249 = vadd.f32 %v83, %v3088
  %v3250 = vadd.f32 %v84, %v3091
  %v3251 = vadd.f32 %v85, %v3096
  %v3252 = vadd.f32 %v86, %v3099
  %v3253 = vadd.f32 %v87, %v3104
  %v3254 = vadd.f32 %v88, %v3107
  %v3255 = vadd.f32 %v89, %v3112
  %v3256 = vadd.f32 %v90, %v3115
  %v3257 = vadd.f32 %v91, %v3120
  %v3258 = vadd.f32 %v92, %v3123
  %v3259 = vadd.f32 %v93, %v3128
  %v3260 = vadd.f32 %v94, %v3131
  %v3261 = vadd.f32 %v95, %v3136
  %v3262 = vadd.f32 %v96, %v3139
  %v3263 = vadd.f32 %v97, %v3144
  %v3264 = vadd.f32 %v98, %v3147
  %v3265 = vadd.f32 %v99, %v3152
  %v3266 = vadd.f32 %v100, %v3155
  %v3267 = vadd.f32 %v101, %v3160
  %v3268 = vadd.f32 %v102, %v3163
  %v3269 = vadd.f32 %v103, %v3168
  %v3270 = vadd.f32 %v104, %v3171
  %v3271 = vadd.f32 %v105, %v3176
  %v3272 = vadd.f32 %v106, %v3179
  %v3273 = vadd.f32 %v107, %v3184
  %v3274 = vadd.f32 %v108, %v3187
  %v3275 = vadd.f32 %v109, %v3192
  %v3276 = vadd.f32 %v110, %v3195
  %v3277 = vadd.f32 %v111, %v3200
  %v3278 = vadd.f32 %v112, %v3203
  %v3279 = vadd.f32 %v113, %v3208
  %v3280 = vadd.f32 %v114, %v3211
  %v3281 = vadd.f32 %v115, %v3216
  %v3282 = vadd.f32 %v116, %v3219
  %v3283 = vadd.f32 %v117, %v3224
  %v3284 = vadd.f32 %v118, %v3227
  %v3285 = vadd.f32 %v119, %v3232
  %3286 = vst [vmem:[#allocation2] sm:$0xff] %v3237
  %3287 = vst [vmem:[#allocation2 + $0x8] sm:$0xff] %v3238
  %3288 = vst [vmem:[#allocation2 + $0x10] sm:$0xff] %v3239
  %3289 = vst [vmem:[#allocation2 + $0x18] sm:$0xff] %v3240
  %3290 = vst [vmem:[#allocation2 + $0x20] sm:$0xff] %v3241
  %3291 = vst [vmem:[#allocation2 + $0x28] sm:$0xff] %v3242
  %3292 = vst [vmem:[#allocation2 + $0x30] sm:$0xff] %v3243
  %3293 = vst [vmem:[#allocation2 + $0x38] sm:$0xff] %v3244
  %3294 = vst [vmem:[#allocation2 + $0x40] sm:$0xff] %v3245
  %3295 = vst [vmem:[#allocation2 + $0x48] sm:$0xff] %v3246
  %3296 = vst [vmem:[#allocation2 + $0x50] sm:$0xff] %v3247
  %3297 = vst [vmem:[#allocation2 + $0x58] sm:$0xff] %v3248
  %3298 = vst [vmem:[#allocation2 + $0x60] sm:$0xff] %v3249
  %3299 = vst [vmem:[#allocation2 + $0x68] sm:$0xff] %v3250
  %3300 = vst [vmem:[#allocation2 + $0x70] sm:$0xff] %v3251
  %3301 = vst [vmem:[#allocation2 + $0x78] sm:$0xff] %v3252
  %3302 = vst [vmem:[#allocation2 + $0x80] sm:$0xff] %v3253
  %3303 = vst [vmem:[#allocation2 + $0x88] sm:$0xff] %v3254
  %3304 = vst [vmem:[#allocation2 + $0x90] sm:$0xff] %v3255
  %3305 = vst [vmem:[#allocation2 + $0x98] sm:$0xff] %v3256
  %3306 = vst [vmem:[#allocation2 + $0xa0] sm:$0xff] %v3257
  %3307 = vst [vmem:[#allocation2 + $0xa8] sm:$0xff] %v3258
  %3308 = vst [vmem:[#allocation2 + $0xb0] sm:$0xff] %v3259
  %3309 = vst [vmem:[#allocation2 + $0xb8] sm:$0xff] %v3260
  %3310 = vst [vmem:[#allocation2 + $0xc0] sm:$0xff] %v3261
  %3311 = vst [vmem:[#allocation2 + $0xc8] sm:$0xff] %v3262
  %3312 = vst [vmem:[#allocation2 + $0xd0] sm:$0xff] %v3263
  %3313 = vst [vmem:[#allocation2 + $0xd8] sm:$0xff] %v3264
  %3314 = vst [vmem:[#allocation2 + $0xe0] sm:$0xff] %v3265
  %3315 = vst [vmem:[#allocation2 + $0xe8] sm:$0xff] %v3266
  %3316 = vst [vmem:[#allocation2 + $0xf0] sm:$0xff] %v3267
  %3317 = vst [vmem:[#allocation2 + $0xf8] sm:$0xff] %v3268
  %3318 = vst [vmem:[#allocation2 + $0x100] sm:$0xff] %v3269
  %3319 = vst [vmem:[#allocation2 + $0x108] sm:$0xff] %v3270
  %3320 = vst [vmem:[#allocation2 + $0x110] sm:$0xff] %v3271
  %3321 = vst [vmem:[#allocation2 + $0x118] sm:$0xff] %v3272
  %3322 = vst [vmem:[#allocation2 + $0x120] sm:$0xff] %v3273
  %3323 = vst [vmem:[#allocation2 + $0x128] sm:$0xff] %v3274
  %3324 = vst [vmem:[#allocation2 + $0x130] sm:$0xff] %v3275
  %3325 = vst [vmem:[#allocation2 + $0x138] sm:$0xff] %v3276
  %3326 = vst [vmem:[#allocation2 + $0x140] sm:$0xff] %v3277
  %3327 = vst [vmem:[#allocation2 + $0x148] sm:$0xff] %v3278
  %3328 = vst [vmem:[#allocation2 + $0x150] sm:$0xff] %v3279
  %3329 = vst [vmem:[#allocation2 + $0x158] sm:$0xff] %v3280
  %3330 = vst [vmem:[#allocation2 + $0x160] sm:$0xff] %v3281
  %3331 = vst [vmem:[#allocation2 + $0x168] sm:$0xff] %v3282
  %3332 = vst [vmem:[#allocation2 + $0x170] sm:$0xff] %v3283
  %3333 = vst [vmem:[#allocation2 + $0x178] sm:$0xff] %v3284
  %3334 = vst [vmem:[#allocation2 + $0x180] sm:$0xff] %v3285
  // Predicated region
  $region22: #{netG_28_forward.5} parent=0 // pred_check
    %p3335 = pneg %p18
  $region23: #{netG_28_forward.5} parent=0 // pred_check_branch
    %3337 = sbr.rel (%p3335) target = $region25
  $region24: #{netG_28_forward.5} parent=0 // pred_region
    %v3338 = vld [vmem:[#allocation2] sm:$0xff]
    %v3339 = vld [vmem:[#allocation2 + $0x8] sm:$0xff]
    %v3340 = vld [vmem:[#allocation2 + $0x10] sm:$0xff]
    %v3341 = vld [vmem:[#allocation2 + $0x18] sm:$0xff]
    %v3342 = vld [vmem:[#allocation2 + $0x20] sm:$0xff]
    %v3343 = vld [vmem:[#allocation2 + $0x28] sm:$0xff]
    %v3344 = vld [vmem:[#allocation2 + $0x30] sm:$0xff]
    %v3345 = vld [vmem:[#allocation2 + $0x38] sm:$0xff]
    %v3346 = vld [vmem:[#allocation2 + $0x40] sm:$0xff]
    %v3347 = vld [vmem:[#allocation2 + $0x48] sm:$0xff]
    %v3348 = vld [vmem:[#allocation2 + $0x50] sm:$0xff]
    %v3349 = vld [vmem:[#allocation2 + $0x58] sm:$0xff]
    %v3350 = vld [vmem:[#allocation2 + $0x60] sm:$0xff]
    %v3351 = vld [vmem:[#allocation2 + $0x68] sm:$0xff]
    %v3352 = vld [vmem:[#allocation2 + $0x70] sm:$0xff]
    %v3353 = vld [vmem:[#allocation2 + $0x78] sm:$0xff]
    %v3354 = vld [vmem:[#allocation2 + $0x80] sm:$0xff]
    %v3355 = vld [vmem:[#allocation2 + $0x88] sm:$0xff]
    %v3356 = vld [vmem:[#allocation2 + $0x90] sm:$0xff]
    %v3357 = vld [vmem:[#allocation2 + $0x98] sm:$0xff]
    %v3358 = vld [vmem:[#allocation2 + $0xa0] sm:$0xff]
    %v3359 = vld [vmem:[#allocation2 + $0xa8] sm:$0xff]
    %v3360 = vld [vmem:[#allocation2 + $0xb0] sm:$0xff]
    %v3361 = vld [vmem:[#allocation2 + $0xb8] sm:$0xff]
    %v3362 = vld [vmem:[#allocation2 + $0xc0] sm:$0xff]
    %v3363 = vld [vmem:[#allocation2 + $0xc8] sm:$0xff]
    %v3364 = vld [vmem:[#allocation2 + $0xd0] sm:$0xff]
    %v3365 = vld [vmem:[#allocation2 + $0xd8] sm:$0xff]
    %v3366 = vld [vmem:[#allocation2 + $0xe0] sm:$0xff]
    %v3367 = vld [vmem:[#allocation2 + $0xe8] sm:$0xff]
    %v3368 = vld [vmem:[#allocation2 + $0xf0] sm:$0xff]
    %v3369 = vld [vmem:[#allocation2 + $0xf8] sm:$0xff]
    %v3370 = vld [vmem:[#allocation2 + $0x100] sm:$0xff]
    %v3371 = vld [vmem:[#allocation2 + $0x108] sm:$0xff]
    %v3372 = vld [vmem:[#allocation2 + $0x110] sm:$0xff]
    %v3373 = vld [vmem:[#allocation2 + $0x118] sm:$0xff]
    %v3374 = vld [vmem:[#allocation2 + $0x120] sm:$0xff]
    %v3375 = vld [vmem:[#allocation2 + $0x128] sm:$0xff]
    %v3376 = vld [vmem:[#allocation2 + $0x130] sm:$0xff]
    %v3377 = vld [vmem:[#allocation2 + $0x138] sm:$0xff]
    %v3378 = vld [vmem:[#allocation2 + $0x140] sm:$0xff]
    %v3379 = vld [vmem:[#allocation2 + $0x148] sm:$0xff]
    %v3380 = vld [vmem:[#allocation2 + $0x150] sm:$0xff]
    %v3381 = vld [vmem:[#allocation2 + $0x158] sm:$0xff]
    %v3382 = vld [vmem:[#allocation2 + $0x160] sm:$0xff]
    %v3383 = vld [vmem:[#allocation2 + $0x168] sm:$0xff]
    %v3384 = vld [vmem:[#allocation2 + $0x170] sm:$0xff]
    %v3385 = vld [vmem:[#allocation2 + $0x178] sm:$0xff]
    %v3386 = vld [vmem:[#allocation2 + $0x180] sm:$0xff]
    %v3387 = vld [vmem:[%s2] sm:$0x1]
    %v3389 = vlaneseq
    %v3390 = vshrl.u32 %v3389, 7
    %v3391 = vsub.s32 0, %v3390
    %v3392 = vrot.slane %v3387, %v3391
    %v3394 = vmul.f32 %v3338, %v3392
    %v3395 = vmul.f32 %v3339, %v3392
    %v3396 = vmul.f32 %v3340, %v3392
    %v3397 = vmul.f32 %v3341, %v3392
    %v3398 = vmul.f32 %v3342, %v3392
    %v3399 = vmul.f32 %v3343, %v3392
    %v3400 = vmul.f32 %v3344, %v3392
    %v3401 = vmul.f32 %v3345, %v3392
    %v3402 = vmul.f32 %v3346, %v3392
    %v3403 = vmul.f32 %v3347, %v3392
    %v3404 = vmul.f32 %v3348, %v3392
    %v3405 = vmul.f32 %v3349, %v3392
    %v3406 = vmul.f32 %v3350, %v3392
    %v3407 = vmul.f32 %v3351, %v3392
    %v3408 = vmul.f32 %v3352, %v3392
    %v3409 = vmul.f32 %v3353, %v3392
    %v3410 = vmul.f32 %v3354, %v3392
    %v3411 = vmul.f32 %v3355, %v3392
    %v3412 = vmul.f32 %v3356, %v3392
    %v3413 = vmul.f32 %v3357, %v3392
    %v3414 = vmul.f32 %v3358, %v3392
    %v3415 = vmul.f32 %v3359, %v3392
    %v3416 = vmul.f32 %v3360, %v3392
    %v3417 = vmul.f32 %v3361, %v3392
    %v3418 = vmul.f32 %v3362, %v3392
    %v3419 = vmul.f32 %v3363, %v3392
    %v3420 = vmul.f32 %v3364, %v3392
    %v3421 = vmul.f32 %v3365, %v3392
    %v3422 = vmul.f32 %v3366, %v3392
    %v3423 = vmul.f32 %v3367, %v3392
    %v3424 = vmul.f32 %v3368, %v3392
    %v3425 = vmul.f32 %v3369, %v3392
    %v3426 = vmul.f32 %v3370, %v3392
    %v3427 = vmul.f32 %v3371, %v3392
    %v3428 = vmul.f32 %v3372, %v3392
    %v3429 = vmul.f32 %v3373, %v3392
    %v3430 = vmul.f32 %v3374, %v3392
    %v3431 = vmul.f32 %v3375, %v3392
    %v3432 = vmul.f32 %v3376, %v3392
    %v3433 = vmul.f32 %v3377, %v3392
    %v3434 = vmul.f32 %v3378, %v3392
    %v3435 = vmul.f32 %v3379, %v3392
    %v3436 = vmul.f32 %v3380, %v3392
    %v3437 = vmul.f32 %v3381, %v3392
    %v3438 = vmul.f32 %v3382, %v3392
    %v3439 = vmul.f32 %v3383, %v3392
    %v3440 = vmul.f32 %v3384, %v3392
    %v3441 = vmul.f32 %v3385, %v3392
    %v3442 = vmul.f32 %v3386, %v3392
    %v3443 = vld [vmem:[%s3] sm:$0x1]
    %v3445 = vlaneseq
    %v3446 = vshrl.u32 %v3445, 7
    %v3447 = vsub.s32 0, %v3446
    %v3448 = vrot.slane %v3443, %v3447
    %v3450 = vadd.f32 %v3394, %v3448
    %v3451 = vadd.f32 %v3395, %v3448
    %v3452 = vadd.f32 %v3396, %v3448
    %v3453 = vadd.f32 %v3397, %v3448
    %v3454 = vadd.f32 %v3398, %v3448
    %v3455 = vadd.f32 %v3399, %v3448
    %v3456 = vadd.f32 %v3400, %v3448
    %v3457 = vadd.f32 %v3401, %v3448
    %v3458 = vadd.f32 %v3402, %v3448
    %v3459 = vadd.f32 %v3403, %v3448
    %v3460 = vadd.f32 %v3404, %v3448
    %v3461 = vadd.f32 %v3405, %v3448
    %v3462 = vadd.f32 %v3406, %v3448
    %v3463 = vadd.f32 %v3407, %v3448
    %v3464 = vadd.f32 %v3408, %v3448
    %v3465 = vadd.f32 %v3409, %v3448
    %v3466 = vadd.f32 %v3410, %v3448
    %v3467 = vadd.f32 %v3411, %v3448
    %v3468 = vadd.f32 %v3412, %v3448
    %v3469 = vadd.f32 %v3413, %v3448
    %v3470 = vadd.f32 %v3414, %v3448
    %v3471 = vadd.f32 %v3415, %v3448
    %v3472 = vadd.f32 %v3416, %v3448
    %v3473 = vadd.f32 %v3417, %v3448
    %v3474 = vadd.f32 %v3418, %v3448
    %v3475 = vadd.f32 %v3419, %v3448
    %v3476 = vadd.f32 %v3420, %v3448
    %v3477 = vadd.f32 %v3421, %v3448
    %v3478 = vadd.f32 %v3422, %v3448
    %v3479 = vadd.f32 %v3423, %v3448
    %v3480 = vadd.f32 %v3424, %v3448
    %v3481 = vadd.f32 %v3425, %v3448
    %v3482 = vadd.f32 %v3426, %v3448
    %v3483 = vadd.f32 %v3427, %v3448
    %v3484 = vadd.f32 %v3428, %v3448
    %v3485 = vadd.f32 %v3429, %v3448
    %v3486 = vadd.f32 %v3430, %v3448
    %v3487 = vadd.f32 %v3431, %v3448
    %v3488 = vadd.f32 %v3432, %v3448
    %v3489 = vadd.f32 %v3433, %v3448
    %v3490 = vadd.f32 %v3434, %v3448
    %v3491 = vadd.f32 %v3435, %v3448
    %v3492 = vadd.f32 %v3436, %v3448
    %v3493 = vadd.f32 %v3437, %v3448
    %v3494 = vadd.f32 %v3438, %v3448
    %v3495 = vadd.f32 %v3439, %v3448
    %v3496 = vadd.f32 %v3440, %v3448
    %v3497 = vadd.f32 %v3441, %v3448
    %v3498 = vadd.f32 %v3442, %v3448
    %v3499 = vtanh.pop %v3450
    %v3500 = vtanh.pop %v3451
    %v3501 = vtanh.pop %v3452
    %v3502 = vtanh.pop %v3453
    %v3503 = vtanh.pop %v3454
    %v3504 = vtanh.pop %v3455
    %v3505 = vtanh.pop %v3456
    %v3506 = vtanh.pop %v3457
    %v3507 = vtanh.pop %v3458
    %v3508 = vtanh.pop %v3459
    %v3509 = vtanh.pop %v3460
    %v3510 = vtanh.pop %v3461
    %v3511 = vtanh.pop %v3462
    %v3512 = vtanh.pop %v3463
    %v3513 = vtanh.pop %v3464
    %v3514 = vtanh.pop %v3465
    %v3515 = vtanh.pop %v3466
    %v3516 = vtanh.pop %v3467
    %v3517 = vtanh.pop %v3468
    %v3518 = vtanh.pop %v3469
    %v3519 = vtanh.pop %v3470
    %v3520 = vtanh.pop %v3471
    %v3521 = vtanh.pop %v3472
    %v3522 = vtanh.pop %v3473
    %v3523 = vtanh.pop %v3474
    %v3524 = vtanh.pop %v3475
    %v3525 = vtanh.pop %v3476
    %v3526 = vtanh.pop %v3477
    %v3527 = vtanh.pop %v3478
    %v3528 = vtanh.pop %v3479
    %v3529 = vtanh.pop %v3480
    %v3530 = vtanh.pop %v3481
    %v3531 = vtanh.pop %v3482
    %v3532 = vtanh.pop %v3483
    %v3533 = vtanh.pop %v3484
    %v3534 = vtanh.pop %v3485
    %v3535 = vtanh.pop %v3486
    %v3536 = vtanh.pop %v3487
    %v3537 = vtanh.pop %v3488
    %v3538 = vtanh.pop %v3489
    %v3539 = vtanh.pop %v3490
    %v3540 = vtanh.pop %v3491
    %v3541 = vtanh.pop %v3492
    %v3542 = vtanh.pop %v3493
    %v3543 = vtanh.pop %v3494
    %v3544 = vtanh.pop %v3495
    %v3545 = vtanh.pop %v3496
    %v3546 = vtanh.pop %v3497
    %v3547 = vtanh.pop %v3498
    %3548 = vst [vmem:[%s4] sm:$0xff] %v3499
    %3549 = vst [vmem:[%s4 + $0x8] sm:$0xff] %v3500
    %3550 = vst [vmem:[%s4 + $0x10] sm:$0xff] %v3501
    %3551 = vst [vmem:[%s4 + $0x18] sm:$0xff] %v3502
    %3552 = vst [vmem:[%s4 + $0x20] sm:$0xff] %v3503
    %3553 = vst [vmem:[%s4 + $0x28] sm:$0xff] %v3504
    %3554 = vst [vmem:[%s4 + $0x30] sm:$0xff] %v3505
    %3555 = vst [vmem:[%s4 + $0x38] sm:$0xff] %v3506
    %3556 = vst [vmem:[%s4 + $0x40] sm:$0xff] %v3507
    %3557 = vst [vmem:[%s4 + $0x48] sm:$0xff] %v3508
    %3558 = vst [vmem:[%s4 + $0x50] sm:$0xff] %v3509
    %3559 = vst [vmem:[%s4 + $0x58] sm:$0xff] %v3510
    %3560 = vst [vmem:[%s4 + $0x60] sm:$0xff] %v3511
    %3561 = vst [vmem:[%s4 + $0x68] sm:$0xff] %v3512
    %3562 = vst [vmem:[%s4 + $0x70] sm:$0xff] %v3513
    %3563 = vst [vmem:[%s4 + $0x78] sm:$0xff] %v3514
    %3564 = vst [vmem:[%s4 + $0x80] sm:$0xff] %v3515
    %3565 = vst [vmem:[%s4 + $0x88] sm:$0xff] %v3516
    %3566 = vst [vmem:[%s4 + $0x90] sm:$0xff] %v3517
    %3567 = vst [vmem:[%s4 + $0x98] sm:$0xff] %v3518
    %3568 = vst [vmem:[%s4 + $0xa0] sm:$0xff] %v3519
    %3569 = vst [vmem:[%s4 + $0xa8] sm:$0xff] %v3520
    %3570 = vst [vmem:[%s4 + $0xb0] sm:$0xff] %v3521
    %3571 = vst [vmem:[%s4 + $0xb8] sm:$0xff] %v3522
    %3572 = vst [vmem:[%s4 + $0xc0] sm:$0xff] %v3523
    %3573 = vst [vmem:[%s4 + $0xc8] sm:$0xff] %v3524
    %3574 = vst [vmem:[%s4 + $0xd0] sm:$0xff] %v3525
    %3575 = vst [vmem:[%s4 + $0xd8] sm:$0xff] %v3526
    %3576 = vst [vmem:[%s4 + $0xe0] sm:$0xff] %v3527
    %3577 = vst [vmem:[%s4 + $0xe8] sm:$0xff] %v3528
    %3578 = vst [vmem:[%s4 + $0xf0] sm:$0xff] %v3529
    %3579 = vst [vmem:[%s4 + $0xf8] sm:$0xff] %v3530
    %3580 = vst [vmem:[%s4 + $0x100] sm:$0xff] %v3531
    %3581 = vst [vmem:[%s4 + $0x108] sm:$0xff] %v3532
    %3582 = vst [vmem:[%s4 + $0x110] sm:$0xff] %v3533
    %3583 = vst [vmem:[%s4 + $0x118] sm:$0xff] %v3534
    %3584 = vst [vmem:[%s4 + $0x120] sm:$0xff] %v3535
    %3585 = vst [vmem:[%s4 + $0x128] sm:$0xff] %v3536
    %3586 = vst [vmem:[%s4 + $0x130] sm:$0xff] %v3537
    %3587 = vst [vmem:[%s4 + $0x138] sm:$0xff] %v3538
    %3588 = vst [vmem:[%s4 + $0x140] sm:$0xff] %v3539
    %3589 = vst [vmem:[%s4 + $0x148] sm:$0xff] %v3540
    %3590 = vst [vmem:[%s4 + $0x150] sm:$0xff] %v3541
    %3591 = vst [vmem:[%s4 + $0x158] sm:$0xff] %v3542
    %3592 = vst [vmem:[%s4 + $0x160] sm:$0xff] %v3543
    %3593 = vst [vmem:[%s4 + $0x168] sm:$0xff] %v3544
    %3594 = vst [vmem:[%s4 + $0x170] sm:$0xff] %v3545
    %3595 = vst [vmem:[%s4 + $0x178] sm:$0xff] %v3546
    %3596 = vst [vmem:[%s4 + $0x180] sm:$0xff] %v3547
  $region25: #{netG_28_forward.5} parent=0 // pred_fallthru
    _
  // Predicated region
  $region26: #{netG_28_forward.5} parent=0 // pred_check
    _
  $region27: #{netG_28_forward.5} parent=0 // pred_check_branch
    %3598 = sbr.rel (0) target = $region29
  $region28: #{netG_28_forward.5} parent=0 // pred_region
    _
  $region29: #{netG_28_forward.5} parent=0 // pred_fallthru
    _
  // Predicated region
  $region30: #{netG_28_forward.5} parent=0 // pred_check
    _
  $region31: #{netG_28_forward.5} parent=0 // pred_check_branch
    %3600 = sbr.rel (0) target = $region33
  $region32: #{netG_28_forward.5} parent=0 // pred_region
    _
  $region33: #{netG_28_forward.5} parent=0 // pred_fallthru
    _

</llo_original>
